<compile_context>
chip_gen: v6e
topology: v6e:2x2x1
jax: 0.10.0
libtpu: 0.0.40
codegen_flags: <defaults>
</compile_context>

<pallas_src>
import functools
import math

import jax
import jax.numpy as jnp
from jax.experimental import pallas as pl
from jax.experimental.pallas import tpu as pltpu


# ----------------------------------------------------------------------------
# One LSTM layer, fully in-kernel, batch-first.  PyTorch gate order i,f,g,o.
# ----------------------------------------------------------------------------
def _lstm_layer(seq, w_ih, w_hh, bias, out_buf):
    """seq:(B,S,D) value, w_ih:(D,4H), w_hh:(H,4H), bias:(1,4H),
    out_buf:(B,S,H) VMEM scratch ref.  Returns (B,S,H) value."""
    B, S, D = seq.shape
    H4 = w_ih.shape[1]
    H = H4 // 4

    # Hoist the input projection out of the recurrence: one large MXU matmul
    # for all timesteps (bias folded in here once, not per step).
    gx = jnp.dot(seq.reshape(B * S, D), w_ih,
                 preferred_element_type=jnp.float32) + bias       # (B*S, 4H)
    gx = gx.reshape(B, S, H4)

    h = jnp.zeros((B, H), jnp.float32)
    c = jnp.zeros((B, H), jnp.float32)

    # S is small & static -> full unroll; only h @ W_hh is serially dependent.
    # TODO(synk): for long sequences switch to lax.fori_loop over a VMEM
    # scratch to bound code size / live ranges.
    for t in range(S):
        g = gx[:, t, :] + jnp.dot(h, w_hh,
                                  preferred_element_type=jnp.float32)  # (B,4H)
        i_g = jax.nn.sigmoid(g[:, 0 * H:1 * H])
        f_g = jax.nn.sigmoid(g[:, 1 * H:2 * H])
        g_g = jnp.tanh(g[:, 2 * H:3 * H])
        o_g = jax.nn.sigmoid(g[:, 3 * H:4 * H])
        c = f_g * c + i_g * g_g
        h = o_g * jnp.tanh(c)
        out_buf[:, t:t + 1, :] = h.reshape(B, 1, H)
    return out_buf[...]


# ----------------------------------------------------------------------------
# Fused whole-model forward kernel (gridless; everything resident in VMEM).
# ----------------------------------------------------------------------------
def _fused_forward_kernel(*refs, n_l1, n_l2):
    it = iter(refs)
    x_ref = next(it)
    lstm1 = [(next(it), next(it), next(it)) for _ in range(n_l1)]
    fc1_w, fc1_b = next(it), next(it)
    fc2_w, fc2_b = next(it), next(it)
    lstm2 = [(next(it), next(it), next(it)) for _ in range(n_l2)]
    fco_w, fco_b = next(it), next(it)
    o_ref = next(it)
    bufs1 = [next(it) for _ in range(n_l1)]
    bufs2 = [next(it) for _ in range(n_l2)]

    seq = x_ref[...]                                              # (B, S, Din)
    B, S, _ = seq.shape

    # lstm1 stack (inter-layer dropout = identity in eval mode)
    for (w_ih, w_hh, b), buf in zip(lstm1, bufs1):
        seq = _lstm_layer(seq, w_ih[...], w_hh[...], b[...], buf)
    H = seq.shape[-1]

    # fc1 -> relu -> fc2 -> relu on flattened (B*S, H)   (dropout = identity)
    flat = seq.reshape(B * S, H)
    enc = jnp.maximum(
        jnp.dot(flat, fc1_w[...], preferred_element_type=jnp.float32)
        + fc1_b[...], 0.0)
    dec = jnp.maximum(
        jnp.dot(enc, fc2_w[...], preferred_element_type=jnp.float32)
        + fc2_b[...], 0.0)
    seq = dec.reshape(B, S, H)

    # lstm2 stack
    for (w_ih, w_hh, b), buf in zip(lstm2, bufs2):
        seq = _lstm_layer(seq, w_ih[...], w_hh[...], b[...], buf)
    E = seq.shape[-1]

    # fc_out
    recon = (jnp.dot(seq.reshape(B * S, E), fco_w[...],
                     preferred_element_type=jnp.float32) + fco_b[...])
    o_ref[...] = recon.reshape(B, S, -1).astype(o_ref.dtype)


def lstm_model_forward(x, params):
    """x: (B, S, input_dim) -> recon: (B, S, input_dim)."""
    B, S, Din = x.shape
    H = params["lstm1"][0][1].shape[0]
    E = params["lstm2"][0][1].shape[0]
    n1, n2 = len(params["lstm1"]), len(params["lstm2"])

    args = [x]
    for layer in params["lstm1"]:
        args.extend(layer)
    args += [params["fc1_w"], params["fc1_b"], params["fc2_w"], params["fc2_b"]]
    for layer in params["lstm2"]:
        args.extend(layer)
    args += [params["fc_out_w"], params["fc_out_b"]]

    kernel = functools.partial(_fused_forward_kernel, n_l1=n1, n_l2=n2)
    scratch = ([pltpu.VMEM((B, S, H), jnp.float32) for _ in range(n1)]
               + [pltpu.VMEM((B, S, E), jnp.float32) for _ in range(n2)])

    return pl.pallas_call(
        kernel,
        out_shape=jax.ShapeDtypeStruct((B, S, Din), jnp.float32),
        scratch_shapes=scratch,
    )(*args)


# ----------------------------------------------------------------------------
# Deterministic parameter construction (PyTorch default uniform init ranges).
# ----------------------------------------------------------------------------
def _uniform(key, shape, bound):
    return jax.random.uniform(key, shape, jnp.float32, -bound, bound)


def make_lstm_params(key, input_dim, hidden_dim, n_layers):
    layers = []
    k = 1.0 / math.sqrt(hidden_dim)
    for layer in range(n_layers):
        d_in = input_dim if layer == 0 else hidden_dim
        key, k1, k2, k3, k4 = jax.random.split(key, 5)
        w_ih = _uniform(k1, (4 * hidden_dim, d_in), k)        # PyTorch layout
        w_hh = _uniform(k2, (4 * hidden_dim, hidden_dim), k)
        b_ih = _uniform(k3, (4 * hidden_dim,), k)
        b_hh = _uniform(k4, (4 * hidden_dim,), k)
        layers.append((w_ih.T, w_hh.T, (b_ih + b_hh).reshape(1, -1)))
    return key, layers


def make_params(key, input_dim, hidden_dim, encoder_dim, n_layers):
    params = {}
    key, params["lstm1"] = make_lstm_params(key, input_dim, hidden_dim, n_layers)
    key, params["lstm2"] = make_lstm_params(key, hidden_dim, encoder_dim, n_layers)

    def make_linear(key, d_in, d_out):
        k = 1.0 / math.sqrt(d_in)
        key, kw, kb = jax.random.split(key, 3)
        w = _uniform(kw, (d_out, d_in), k)                    # PyTorch layout
        b = _uniform(kb, (d_out,), k)
        return key, w.T, b.reshape(1, -1)                     # kernel layout

    key, params["fc1_w"], params["fc1_b"] = make_linear(key, hidden_dim, encoder_dim)
    key, params["fc2_w"], params["fc2_b"] = make_linear(key, encoder_dim, hidden_dim)
    key, params["fc_out_w"], params["fc_out_b"] = make_linear(key, encoder_dim, input_dim)
    return params


# ----------------------------------------------------------------------------
# Pure-JAX reference (lax.scan LSTM) for a correctness check.
# ----------------------------------------------------------------------------
def _ref_lstm_stack(x_tm, layers):
    h_seq = x_tm
    for (w_ih_t, w_hh_t, bias) in layers:
        H = w_hh_t.shape[0]
        B = h_seq.shape[1]

        def step(carry, x_t):
            h, c = carry
            g = x_t @ w_ih_t + h @ w_hh_t + bias
            i = jax.nn.sigmoid(g[:, 0 * H:1 * H])
            f = jax.nn.sigmoid(g[:, 1 * H:2 * H])
            gg = jnp.tanh(g[:, 2 * H:3 * H])
            o = jax.nn.sigmoid(g[:, 3 * H:4 * H])
            c = f * c + i * gg
            h = o * jnp.tanh(c)
            return (h, c), h

        init = (jnp.zeros((B, H), jnp.float32), jnp.zeros((B, H), jnp.float32))
        _, h_seq = jax.lax.scan(step, init, h_seq)
    return h_seq


def ref_forward(x, params):
    B, S, Din = x.shape
    H = params["lstm1"][0][1].shape[0]
    out1 = jnp.transpose(_ref_lstm_stack(jnp.transpose(x, (1, 0, 2)),
                                         params["lstm1"]), (1, 0, 2))
    flat = out1.reshape(B * S, H)
    enc = jax.nn.relu(flat @ params["fc1_w"] + params["fc1_b"])
    dec = jax.nn.relu(enc @ params["fc2_w"] + params["fc2_b"]).reshape(B, S, H)
    out2 = jnp.transpose(_ref_lstm_stack(jnp.transpose(dec, (1, 0, 2)),
                                         params["lstm2"]), (1, 0, 2))
    E = out2.shape[-1]
    recon = out2.reshape(B * S, E) @ params["fc_out_w"] + params["fc_out_b"]
    return recon.reshape(B, S, Din)


if __name__ == "__main__":
    # Hyperparameters implied by the module (small test sizes).
    BATCH, SEQ = 2, 8
    INPUT_DIM, HIDDEN_DIM, ENCODER_DIM, N_LAYERS = 8, 32, 16, 2

    key = jax.random.PRNGKey(0)
    key, kx = jax.random.split(key)
    x = jax.random.normal(kx, (BATCH, SEQ, INPUT_DIM), jnp.float32)

    params = make_params(key, INPUT_DIM, HIDDEN_DIM, ENCODER_DIM, N_LAYERS)

    recon = jax.jit(lstm_model_forward)(x, params)
    recon = jax.block_until_ready(recon)

    assert recon.shape == (BATCH, SEQ, INPUT_DIM), recon.shape

    ref = jax.block_until_ready(ref_forward(x, params))
    if not jnp.allclose(recon, ref, rtol=1e-3, atol=1e-3):
        raise AssertionError("Pallas output does not match JAX reference")

    print("KERNEL_OK")
</pallas_src>

<mosaic_0001>
module attributes {stable_mosaic.version = 11 : i64} {
  func.func @_fused_forward_kernel(%arg0: memref<2x8x8xf32, #tpu.memory_space<vmem>>, %arg1: memref<8x128xf32, #tpu.memory_space<vmem>>, %arg2: memref<32x128xf32, #tpu.memory_space<vmem>>, %arg3: memref<1x128xf32, #tpu.memory_space<vmem>>, %arg4: memref<32x128xf32, #tpu.memory_space<vmem>>, %arg5: memref<32x128xf32, #tpu.memory_space<vmem>>, %arg6: memref<1x128xf32, #tpu.memory_space<vmem>>, %arg7: memref<32x16xf32, #tpu.memory_space<vmem>>, %arg8: memref<1x16xf32, #tpu.memory_space<vmem>>, %arg9: memref<16x32xf32, #tpu.memory_space<vmem>>, %arg10: memref<1x32xf32, #tpu.memory_space<vmem>>, %arg11: memref<32x64xf32, #tpu.memory_space<vmem>>, %arg12: memref<16x64xf32, #tpu.memory_space<vmem>>, %arg13: memref<1x64xf32, #tpu.memory_space<vmem>>, %arg14: memref<16x64xf32, #tpu.memory_space<vmem>>, %arg15: memref<16x64xf32, #tpu.memory_space<vmem>>, %arg16: memref<1x64xf32, #tpu.memory_space<vmem>>, %arg17: memref<16x8xf32, #tpu.memory_space<vmem>>, %arg18: memref<1x8xf32, #tpu.memory_space<vmem>>, %arg19: memref<2x8x8xf32, #tpu.memory_space<vmem>>, %arg20: memref<2x8x32xf32, #tpu.memory_space<vmem>>, %arg21: memref<2x8x32xf32, #tpu.memory_space<vmem>>, %arg22: memref<2x8x16xf32, #tpu.memory_space<vmem>>, %arg23: memref<2x8x16xf32, #tpu.memory_space<vmem>>) attributes {dimension_semantics = [], scalar_prefetch = 0 : i64, scratch_operands = 4 : i64, tpu.core_type = #tpu.core_type<tc>} {
    %c0 = arith.constant 0 : index
    %c0_0 = arith.constant 0 : index
    %c0_1 = arith.constant 0 : index
    %0 = vector.load %arg0[%c0, %c0_0, %c0_1] : memref<2x8x8xf32, #tpu.memory_space<vmem>>, vector<2x8x8xf32>
    %c0_2 = arith.constant 0 : index
    %c0_3 = arith.constant 0 : index
    %1 = vector.load %arg1[%c0_2, %c0_3] : memref<8x128xf32, #tpu.memory_space<vmem>>, vector<8x128xf32>
    %c0_4 = arith.constant 0 : index
    %c0_5 = arith.constant 0 : index
    %2 = vector.load %arg2[%c0_4, %c0_5] : memref<32x128xf32, #tpu.memory_space<vmem>>, vector<32x128xf32>
    %c0_6 = arith.constant 0 : index
    %c0_7 = arith.constant 0 : index
    %3 = vector.load %arg3[%c0_6, %c0_7] : memref<1x128xf32, #tpu.memory_space<vmem>>, vector<1x128xf32>
    %4 = vector.shape_cast %0 : vector<2x8x8xf32> to vector<16x8xf32>
    %cst = arith.constant dense<0.000000e+00> : vector<16x128xf32>
    %5 = tpu.matmul %4, %1, %cst {dimension_numbers = #tpu.dot_dimension_numbers<[1], [0], [0], [1], [0, 0, 1, 1], [], []>} : vector<16x8xf32>, vector<8x128xf32>, vector<16x128xf32> -> vector<16x128xf32>
    %6 = vector.broadcast %3 : vector<1x128xf32> to vector<16x128xf32>
    %7 = arith.addf %5, %6 : vector<16x128xf32>
    %8 = vector.shape_cast %7 : vector<16x128xf32> to vector<2x8x128xf32>
    %cst_8 = arith.constant 0.000000e+00 : f32
    %9 = vector.broadcast %cst_8 : f32 to vector<2x32xf32>
    %cst_9 = arith.constant 0.000000e+00 : f32
    %10 = vector.broadcast %cst_9 : f32 to vector<2x32xf32>
    %11 = vector.extract_strided_slice %8 {offsets = [0, 0, 0], sizes = [2, 1, 128], strides = [1, 1, 1]} : vector<2x8x128xf32> to vector<2x1x128xf32>
    %12 = vector.shape_cast %11 : vector<2x1x128xf32> to vector<2x128xf32>
    %cst_10 = arith.constant dense<0.000000e+00> : vector<2x128xf32>
    %13 = tpu.matmul %9, %2, %cst_10 {dimension_numbers = #tpu.dot_dimension_numbers<[1], [0], [0], [1], [0, 0, 1, 1], [], []>} : vector<2x32xf32>, vector<32x128xf32>, vector<2x128xf32> -> vector<2x128xf32>
    %14 = arith.addf %12, %13 : vector<2x128xf32>
    %15 = vector.extract_strided_slice %14 {offsets = [0, 0], sizes = [2, 32], strides = [1, 1]} : vector<2x128xf32> to vector<2x32xf32>
    %16 = arith.negf %15 : vector<2x32xf32>
    %17 = math.exp %16 : vector<2x32xf32>
    %cst_11 = arith.constant 1.000000e+00 : f32
    %18 = vector.broadcast %cst_11 : f32 to vector<2x32xf32>
    %19 = arith.addf %18, %17 : vector<2x32xf32>
    %20 = arith.divf %18, %19 : vector<2x32xf32>
    %21 = vector.extract_strided_slice %14 {offsets = [0, 32], sizes = [2, 32], strides = [1, 1]} : vector<2x128xf32> to vector<2x32xf32>
    %22 = arith.negf %21 : vector<2x32xf32>
    %23 = math.exp %22 : vector<2x32xf32>
    %cst_12 = arith.constant 1.000000e+00 : f32
    %24 = vector.broadcast %cst_12 : f32 to vector<2x32xf32>
    %25 = arith.addf %24, %23 : vector<2x32xf32>
    %26 = arith.divf %24, %25 : vector<2x32xf32>
    %27 = vector.extract_strided_slice %14 {offsets = [0, 64], sizes = [2, 32], strides = [1, 1]} : vector<2x128xf32> to vector<2x32xf32>
    %28 = math.tanh %27 : vector<2x32xf32>
    %29 = vector.extract_strided_slice %14 {offsets = [0, 96], sizes = [2, 32], strides = [1, 1]} : vector<2x128xf32> to vector<2x32xf32>
    %30 = arith.negf %29 : vector<2x32xf32>
    %31 = math.exp %30 : vector<2x32xf32>
    %cst_13 = arith.constant 1.000000e+00 : f32
    %32 = vector.broadcast %cst_13 : f32 to vector<2x32xf32>
    %33 = arith.addf %32, %31 : vector<2x32xf32>
    %34 = arith.divf %32, %33 : vector<2x32xf32>
    %35 = arith.mulf %26, %10 : vector<2x32xf32>
    %36 = arith.mulf %20, %28 : vector<2x32xf32>
    %37 = arith.addf %35, %36 : vector<2x32xf32>
    %38 = math.tanh %37 : vector<2x32xf32>
    %39 = arith.mulf %34, %38 : vector<2x32xf32>
    %40 = vector.shape_cast %39 : vector<2x32xf32> to vector<2x1x32xf32>
    %c0_14 = arith.constant 0 : index
    %c0_15 = arith.constant 0 : index
    %c0_16 = arith.constant 0 : index
    %41 = vector.load %arg20[%c0_14, %c0_15, %c0_16] : memref<2x8x32xf32, #tpu.memory_space<vmem>>, vector<2x1x32xf32>
    tpu.vector_store %arg20[%c0_14, %c0_15, %c0_16], %40 {strides = array<i32>} : memref<2x8x32xf32, #tpu.memory_space<vmem>>, vector<2x1x32xf32>,
    %42 = vector.extract_strided_slice %8 {offsets = [0, 1, 0], sizes = [2, 1, 128], strides = [1, 1, 1]} : vector<2x8x128xf32> to vector<2x1x128xf32>
    %43 = vector.shape_cast %42 : vector<2x1x128xf32> to vector<2x128xf32>
    %cst_17 = arith.constant dense<0.000000e+00> : vector<2x128xf32>
    %44 = tpu.matmul %39, %2, %cst_17 {dimension_numbers = #tpu.dot_dimension_numbers<[1], [0], [0], [1], [0, 0, 1, 1], [], []>} : vector<2x32xf32>, vector<32x128xf32>, vector<2x128xf32> -> vector<2x128xf32>
    %45 = arith.addf %43, %44 : vector<2x128xf32>
    %46 = vector.extract_strided_slice %45 {offsets = [0, 0], sizes = [2, 32], strides = [1, 1]} : vector<2x128xf32> to vector<2x32xf32>
    %47 = arith.negf %46 : vector<2x32xf32>
    %48 = math.exp %47 : vector<2x32xf32>
    %cst_18 = arith.constant 1.000000e+00 : f32
    %49 = vector.broadcast %cst_18 : f32 to vector<2x32xf32>
    %50 = arith.addf %49, %48 : vector<2x32xf32>
    %51 = arith.divf %49, %50 : vector<2x32xf32>
    %52 = vector.extract_strided_slice %45 {offsets = [0, 32], sizes = [2, 32], strides = [1, 1]} : vector<2x128xf32> to vector<2x32xf32>
    %53 = arith.negf %52 : vector<2x32xf32>
    %54 = math.exp %53 : vector<2x32xf32>
    %cst_19 = arith.constant 1.000000e+00 : f32
    %55 = vector.broadcast %cst_19 : f32 to vector<2x32xf32>
    %56 = arith.addf %55, %54 : vector<2x32xf32>
    %57 = arith.divf %55, %56 : vector<2x32xf32>
    %58 = vector.extract_strided_slice %45 {offsets = [0, 64], sizes = [2, 32], strides = [1, 1]} : vector<2x128xf32> to vector<2x32xf32>
    %59 = math.tanh %58 : vector<2x32xf32>
    %60 = vector.extract_strided_slice %45 {offsets = [0, 96], sizes = [2, 32], strides = [1, 1]} : vector<2x128xf32> to vector<2x32xf32>
    %61 = arith.negf %60 : vector<2x32xf32>
    %62 = math.exp %61 : vector<2x32xf32>
    %cst_20 = arith.constant 1.000000e+00 : f32
    %63 = vector.broadcast %cst_20 : f32 to vector<2x32xf32>
    %64 = arith.addf %63, %62 : vector<2x32xf32>
    %65 = arith.divf %63, %64 : vector<2x32xf32>
    %66 = arith.mulf %57, %37 : vector<2x32xf32>
    %67 = arith.mulf %51, %59 : vector<2x32xf32>
    %68 = arith.addf %66, %67 : vector<2x32xf32>
    %69 = math.tanh %68 : vector<2x32xf32>
    %70 = arith.mulf %65, %69 : vector<2x32xf32>
    %71 = vector.shape_cast %70 : vector<2x32xf32> to vector<2x1x32xf32>
    %c0_21 = arith.constant 0 : index
    %c1 = arith.constant 1 : index
    %c0_22 = arith.constant 0 : index
    %72 = vector.load %arg20[%c0_21, %c1, %c0_22] : memref<2x8x32xf32, #tpu.memory_space<vmem>>, vector<2x1x32xf32>
    tpu.vector_store %arg20[%c0_21, %c1, %c0_22], %71 {strides = array<i32>} : memref<2x8x32xf32, #tpu.memory_space<vmem>>, vector<2x1x32xf32>,
    %73 = vector.extract_strided_slice %8 {offsets = [0, 2, 0], sizes = [2, 1, 128], strides = [1, 1, 1]} : vector<2x8x128xf32> to vector<2x1x128xf32>
    %74 = vector.shape_cast %73 : vector<2x1x128xf32> to vector<2x128xf32>
    %cst_23 = arith.constant dense<0.000000e+00> : vector<2x128xf32>
    %75 = tpu.matmul %70, %2, %cst_23 {dimension_numbers = #tpu.dot_dimension_numbers<[1], [0], [0], [1], [0, 0, 1, 1], [], []>} : vector<2x32xf32>, vector<32x128xf32>, vector<2x128xf32> -> vector<2x128xf32>
    %76 = arith.addf %74, %75 : vector<2x128xf32>
    %77 = vector.extract_strided_slice %76 {offsets = [0, 0], sizes = [2, 32], strides = [1, 1]} : vector<2x128xf32> to vector<2x32xf32>
    %78 = arith.negf %77 : vector<2x32xf32>
    %79 = math.exp %78 : vector<2x32xf32>
    %cst_24 = arith.constant 1.000000e+00 : f32
    %80 = vector.broadcast %cst_24 : f32 to vector<2x32xf32>
    %81 = arith.addf %80, %79 : vector<2x32xf32>
    %82 = arith.divf %80, %81 : vector<2x32xf32>
    %83 = vector.extract_strided_slice %76 {offsets = [0, 32], sizes = [2, 32], strides = [1, 1]} : vector<2x128xf32> to vector<2x32xf32>
    %84 = arith.negf %83 : vector<2x32xf32>
    %85 = math.exp %84 : vector<2x32xf32>
    %cst_25 = arith.constant 1.000000e+00 : f32
    %86 = vector.broadcast %cst_25 : f32 to vector<2x32xf32>
    %87 = arith.addf %86, %85 : vector<2x32xf32>
    %88 = arith.divf %86, %87 : vector<2x32xf32>
    %89 = vector.extract_strided_slice %76 {offsets = [0, 64], sizes = [2, 32], strides = [1, 1]} : vector<2x128xf32> to vector<2x32xf32>
    %90 = math.tanh %89 : vector<2x32xf32>
    %91 = vector.extract_strided_slice %76 {offsets = [0, 96], sizes = [2, 32], strides = [1, 1]} : vector<2x128xf32> to vector<2x32xf32>
    %92 = arith.negf %91 : vector<2x32xf32>
    %93 = math.exp %92 : vector<2x32xf32>
    %cst_26 = arith.constant 1.000000e+00 : f32
    %94 = vector.broadcast %cst_26 : f32 to vector<2x32xf32>
    %95 = arith.addf %94, %93 : vector<2x32xf32>
    %96 = arith.divf %94, %95 : vector<2x32xf32>
    %97 = arith.mulf %88, %68 : vector<2x32xf32>
    %98 = arith.mulf %82, %90 : vector<2x32xf32>
    %99 = arith.addf %97, %98 : vector<2x32xf32>
    %100 = math.tanh %99 : vector<2x32xf32>
    %101 = arith.mulf %96, %100 : vector<2x32xf32>
    %102 = vector.shape_cast %101 : vector<2x32xf32> to vector<2x1x32xf32>
    %c0_27 = arith.constant 0 : index
    %c2 = arith.constant 2 : index
    %c0_28 = arith.constant 0 : index
    %103 = vector.load %arg20[%c0_27, %c2, %c0_28] : memref<2x8x32xf32, #tpu.memory_space<vmem>>, vector<2x1x32xf32>
    tpu.vector_store %arg20[%c0_27, %c2, %c0_28], %102 {strides = array<i32>} : memref<2x8x32xf32, #tpu.memory_space<vmem>>, vector<2x1x32xf32>,
    %104 = vector.extract_strided_slice %8 {offsets = [0, 3, 0], sizes = [2, 1, 128], strides = [1, 1, 1]} : vector<2x8x128xf32> to vector<2x1x128xf32>
    %105 = vector.shape_cast %104 : vector<2x1x128xf32> to vector<2x128xf32>
    %cst_29 = arith.constant dense<0.000000e+00> : vector<2x128xf32>
    %106 = tpu.matmul %101, %2, %cst_29 {dimension_numbers = #tpu.dot_dimension_numbers<[1], [0], [0], [1], [0, 0, 1, 1], [], []>} : vector<2x32xf32>, vector<32x128xf32>, vector<2x128xf32> -> vector<2x128xf32>
    %107 = arith.addf %105, %106 : vector<2x128xf32>
    %108 = vector.extract_strided_slice %107 {offsets = [0, 0], sizes = [2, 32], strides = [1, 1]} : vector<2x128xf32> to vector<2x32xf32>
    %109 = arith.negf %108 : vector<2x32xf32>
    %110 = math.exp %109 : vector<2x32xf32>
    %cst_30 = arith.constant 1.000000e+00 : f32
    %111 = vector.broadcast %cst_30 : f32 to vector<2x32xf32>
    %112 = arith.addf %111, %110 : vector<2x32xf32>
    %113 = arith.divf %111, %112 : vector<2x32xf32>
    %114 = vector.extract_strided_slice %107 {offsets = [0, 32], sizes = [2, 32], strides = [1, 1]} : vector<2x128xf32> to vector<2x32xf32>
    %115 = arith.negf %114 : vector<2x32xf32>
    %116 = math.exp %115 : vector<2x32xf32>
    %cst_31 = arith.constant 1.000000e+00 : f32
    %117 = vector.broadcast %cst_31 : f32 to vector<2x32xf32>
    %118 = arith.addf %117, %116 : vector<2x32xf32>
    %119 = arith.divf %117, %118 : vector<2x32xf32>
    %120 = vector.extract_strided_slice %107 {offsets = [0, 64], sizes = [2, 32], strides = [1, 1]} : vector<2x128xf32> to vector<2x32xf32>
    %121 = math.tanh %120 : vector<2x32xf32>
    %122 = vector.extract_strided_slice %107 {offsets = [0, 96], sizes = [2, 32], strides = [1, 1]} : vector<2x128xf32> to vector<2x32xf32>
    %123 = arith.negf %122 : vector<2x32xf32>
    %124 = math.exp %123 : vector<2x32xf32>
    %cst_32 = arith.constant 1.000000e+00 : f32
    %125 = vector.broadcast %cst_32 : f32 to vector<2x32xf32>
    %126 = arith.addf %125, %124 : vector<2x32xf32>
    %127 = arith.divf %125, %126 : vector<2x32xf32>
    %128 = arith.mulf %119, %99 : vector<2x32xf32>
    %129 = arith.mulf %113, %121 : vector<2x32xf32>
    %130 = arith.addf %128, %129 : vector<2x32xf32>
    %131 = math.tanh %130 : vector<2x32xf32>
    %132 = arith.mulf %127, %131 : vector<2x32xf32>
    %133 = vector.shape_cast %132 : vector<2x32xf32> to vector<2x1x32xf32>
    %c0_33 = arith.constant 0 : index
    %c3 = arith.constant 3 : index
    %c0_34 = arith.constant 0 : index
    %134 = vector.load %arg20[%c0_33, %c3, %c0_34] : memref<2x8x32xf32, #tpu.memory_space<vmem>>, vector<2x1x32xf32>
    tpu.vector_store %arg20[%c0_33, %c3, %c0_34], %133 {strides = array<i32>} : memref<2x8x32xf32, #tpu.memory_space<vmem>>, vector<2x1x32xf32>,
    %135 = vector.extract_strided_slice %8 {offsets = [0, 4, 0], sizes = [2, 1, 128], strides = [1, 1, 1]} : vector<2x8x128xf32> to vector<2x1x128xf32>
    %136 = vector.shape_cast %135 : vector<2x1x128xf32> to vector<2x128xf32>
    %cst_35 = arith.constant dense<0.000000e+00> : vector<2x128xf32>
    %137 = tpu.matmul %132, %2, %cst_35 {dimension_numbers = #tpu.dot_dimension_numbers<[1], [0], [0], [1], [0, 0, 1, 1], [], []>} : vector<2x32xf32>, vector<32x128xf32>, vector<2x128xf32> -> vector<2x128xf32>
    %138 = arith.addf %136, %137 : vector<2x128xf32>
    %139 = vector.extract_strided_slice %138 {offsets = [0, 0], sizes = [2, 32], strides = [1, 1]} : vector<2x128xf32> to vector<2x32xf32>
    %140 = arith.negf %139 : vector<2x32xf32>
    %141 = math.exp %140 : vector<2x32xf32>
    %cst_36 = arith.constant 1.000000e+00 : f32
    %142 = vector.broadcast %cst_36 : f32 to vector<2x32xf32>
    %143 = arith.addf %142, %141 : vector<2x32xf32>
    %144 = arith.divf %142, %143 : vector<2x32xf32>
    %145 = vector.extract_strided_slice %138 {offsets = [0, 32], sizes = [2, 32], strides = [1, 1]} : vector<2x128xf32> to vector<2x32xf32>
    %146 = arith.negf %145 : vector<2x32xf32>
    %147 = math.exp %146 : vector<2x32xf32>
    %cst_37 = arith.constant 1.000000e+00 : f32
    %148 = vector.broadcast %cst_37 : f32 to vector<2x32xf32>
    %149 = arith.addf %148, %147 : vector<2x32xf32>
    %150 = arith.divf %148, %149 : vector<2x32xf32>
    %151 = vector.extract_strided_slice %138 {offsets = [0, 64], sizes = [2, 32], strides = [1, 1]} : vector<2x128xf32> to vector<2x32xf32>
    %152 = math.tanh %151 : vector<2x32xf32>
    %153 = vector.extract_strided_slice %138 {offsets = [0, 96], sizes = [2, 32], strides = [1, 1]} : vector<2x128xf32> to vector<2x32xf32>
    %154 = arith.negf %153 : vector<2x32xf32>
    %155 = math.exp %154 : vector<2x32xf32>
    %cst_38 = arith.constant 1.000000e+00 : f32
    %156 = vector.broadcast %cst_38 : f32 to vector<2x32xf32>
    %157 = arith.addf %156, %155 : vector<2x32xf32>
    %158 = arith.divf %156, %157 : vector<2x32xf32>
    %159 = arith.mulf %150, %130 : vector<2x32xf32>
    %160 = arith.mulf %144, %152 : vector<2x32xf32>
    %161 = arith.addf %159, %160 : vector<2x32xf32>
    %162 = math.tanh %161 : vector<2x32xf32>
    %163 = arith.mulf %158, %162 : vector<2x32xf32>
    %164 = vector.shape_cast %163 : vector<2x32xf32> to vector<2x1x32xf32>
    %c0_39 = arith.constant 0 : index
    %c4 = arith.constant 4 : index
    %c0_40 = arith.constant 0 : index
    %165 = vector.load %arg20[%c0_39, %c4, %c0_40] : memref<2x8x32xf32, #tpu.memory_space<vmem>>, vector<2x1x32xf32>
    tpu.vector_store %arg20[%c0_39, %c4, %c0_40], %164 {strides = array<i32>} : memref<2x8x32xf32, #tpu.memory_space<vmem>>, vector<2x1x32xf32>,
    %166 = vector.extract_strided_slice %8 {offsets = [0, 5, 0], sizes = [2, 1, 128], strides = [1, 1, 1]} : vector<2x8x128xf32> to vector<2x1x128xf32>
    %167 = vector.shape_cast %166 : vector<2x1x128xf32> to vector<2x128xf32>
    %cst_41 = arith.constant dense<0.000000e+00> : vector<2x128xf32>
    %168 = tpu.matmul %163, %2, %cst_41 {dimension_numbers = #tpu.dot_dimension_numbers<[1], [0], [0], [1], [0, 0, 1, 1], [], []>} : vector<2x32xf32>, vector<32x128xf32>, vector<2x128xf32> -> vector<2x128xf32>
    %169 = arith.addf %167, %168 : vector<2x128xf32>
    %170 = vector.extract_strided_slice %169 {offsets = [0, 0], sizes = [2, 32], strides = [1, 1]} : vector<2x128xf32> to vector<2x32xf32>
    %171 = arith.negf %170 : vector<2x32xf32>
    %172 = math.exp %171 : vector<2x32xf32>
    %cst_42 = arith.constant 1.000000e+00 : f32
    %173 = vector.broadcast %cst_42 : f32 to vector<2x32xf32>
    %174 = arith.addf %173, %172 : vector<2x32xf32>
    %175 = arith.divf %173, %174 : vector<2x32xf32>
    %176 = vector.extract_strided_slice %169 {offsets = [0, 32], sizes = [2, 32], strides = [1, 1]} : vector<2x128xf32> to vector<2x32xf32>
    %177 = arith.negf %176 : vector<2x32xf32>
    %178 = math.exp %177 : vector<2x32xf32>
    %cst_43 = arith.constant 1.000000e+00 : f32
    %179 = vector.broadcast %cst_43 : f32 to vector<2x32xf32>
    %180 = arith.addf %179, %178 : vector<2x32xf32>
    %181 = arith.divf %179, %180 : vector<2x32xf32>
    %182 = vector.extract_strided_slice %169 {offsets = [0, 64], sizes = [2, 32], strides = [1, 1]} : vector<2x128xf32> to vector<2x32xf32>
    %183 = math.tanh %182 : vector<2x32xf32>
    %184 = vector.extract_strided_slice %169 {offsets = [0, 96], sizes = [2, 32], strides = [1, 1]} : vector<2x128xf32> to vector<2x32xf32>
    %185 = arith.negf %184 : vector<2x32xf32>
    %186 = math.exp %185 : vector<2x32xf32>
    %cst_44 = arith.constant 1.000000e+00 : f32
    %187 = vector.broadcast %cst_44 : f32 to vector<2x32xf32>
    %188 = arith.addf %187, %186 : vector<2x32xf32>
    %189 = arith.divf %187, %188 : vector<2x32xf32>
    %190 = arith.mulf %181, %161 : vector<2x32xf32>
    %191 = arith.mulf %175, %183 : vector<2x32xf32>
    %192 = arith.addf %190, %191 : vector<2x32xf32>
    %193 = math.tanh %192 : vector<2x32xf32>
    %194 = arith.mulf %189, %193 : vector<2x32xf32>
    %195 = vector.shape_cast %194 : vector<2x32xf32> to vector<2x1x32xf32>
    %c0_45 = arith.constant 0 : index
    %c5 = arith.constant 5 : index
    %c0_46 = arith.constant 0 : index
    %196 = vector.load %arg20[%c0_45, %c5, %c0_46] : memref<2x8x32xf32, #tpu.memory_space<vmem>>, vector<2x1x32xf32>
    tpu.vector_store %arg20[%c0_45, %c5, %c0_46], %195 {strides = array<i32>} : memref<2x8x32xf32, #tpu.memory_space<vmem>>, vector<2x1x32xf32>,
    %197 = vector.extract_strided_slice %8 {offsets = [0, 6, 0], sizes = [2, 1, 128], strides = [1, 1, 1]} : vector<2x8x128xf32> to vector<2x1x128xf32>
    %198 = vector.shape_cast %197 : vector<2x1x128xf32> to vector<2x128xf32>
    %cst_47 = arith.constant dense<0.000000e+00> : vector<2x128xf32>
    %199 = tpu.matmul %194, %2, %cst_47 {dimension_numbers = #tpu.dot_dimension_numbers<[1], [0], [0], [1], [0, 0, 1, 1], [], []>} : vector<2x32xf32>, vector<32x128xf32>, vector<2x128xf32> -> vector<2x128xf32>
    %200 = arith.addf %198, %199 : vector<2x128xf32>
    %201 = vector.extract_strided_slice %200 {offsets = [0, 0], sizes = [2, 32], strides = [1, 1]} : vector<2x128xf32> to vector<2x32xf32>
    %202 = arith.negf %201 : vector<2x32xf32>
    %203 = math.exp %202 : vector<2x32xf32>
    %cst_48 = arith.constant 1.000000e+00 : f32
    %204 = vector.broadcast %cst_48 : f32 to vector<2x32xf32>
    %205 = arith.addf %204, %203 : vector<2x32xf32>
    %206 = arith.divf %204, %205 : vector<2x32xf32>
    %207 = vector.extract_strided_slice %200 {offsets = [0, 32], sizes = [2, 32], strides = [1, 1]} : vector<2x128xf32> to vector<2x32xf32>
    %208 = arith.negf %207 : vector<2x32xf32>
    %209 = math.exp %208 : vector<2x32xf32>
    %cst_49 = arith.constant 1.000000e+00 : f32
    %210 = vector.broadcast %cst_49 : f32 to vector<2x32xf32>
    %211 = arith.addf %210, %209 : vector<2x32xf32>
    %212 = arith.divf %210, %211 : vector<2x32xf32>
    %213 = vector.extract_strided_slice %200 {offsets = [0, 64], sizes = [2, 32], strides = [1, 1]} : vector<2x128xf32> to vector<2x32xf32>
    %214 = math.tanh %213 : vector<2x32xf32>
    %215 = vector.extract_strided_slice %200 {offsets = [0, 96], sizes = [2, 32], strides = [1, 1]} : vector<2x128xf32> to vector<2x32xf32>
    %216 = arith.negf %215 : vector<2x32xf32>
    %217 = math.exp %216 : vector<2x32xf32>
    %cst_50 = arith.constant 1.000000e+00 : f32
    %218 = vector.broadcast %cst_50 : f32 to vector<2x32xf32>
    %219 = arith.addf %218, %217 : vector<2x32xf32>
    %220 = arith.divf %218, %219 : vector<2x32xf32>
    %221 = arith.mulf %212, %192 : vector<2x32xf32>
    %222 = arith.mulf %206, %214 : vector<2x32xf32>
    %223 = arith.addf %221, %222 : vector<2x32xf32>
    %224 = math.tanh %223 : vector<2x32xf32>
    %225 = arith.mulf %220, %224 : vector<2x32xf32>
    %226 = vector.shape_cast %225 : vector<2x32xf32> to vector<2x1x32xf32>
    %c0_51 = arith.constant 0 : index
    %c6 = arith.constant 6 : index
    %c0_52 = arith.constant 0 : index
    %227 = vector.load %arg20[%c0_51, %c6, %c0_52] : memref<2x8x32xf32, #tpu.memory_space<vmem>>, vector<2x1x32xf32>
    tpu.vector_store %arg20[%c0_51, %c6, %c0_52], %226 {strides = array<i32>} : memref<2x8x32xf32, #tpu.memory_space<vmem>>, vector<2x1x32xf32>,
    %228 = vector.extract_strided_slice %8 {offsets = [0, 7, 0], sizes = [2, 1, 128], strides = [1, 1, 1]} : vector<2x8x128xf32> to vector<2x1x128xf32>
    %229 = vector.shape_cast %228 : vector<2x1x128xf32> to vector<2x128xf32>
    %cst_53 = arith.constant dense<0.000000e+00> : vector<2x128xf32>
    %230 = tpu.matmul %225, %2, %cst_53 {dimension_numbers = #tpu.dot_dimension_numbers<[1], [0], [0], [1], [0, 0, 1, 1], [], []>} : vector<2x32xf32>, vector<32x128xf32>, vector<2x128xf32> -> vector<2x128xf32>
    %231 = arith.addf %229, %230 : vector<2x128xf32>
    %232 = vector.extract_strided_slice %231 {offsets = [0, 0], sizes = [2, 32], strides = [1, 1]} : vector<2x128xf32> to vector<2x32xf32>
    %233 = arith.negf %232 : vector<2x32xf32>
    %234 = math.exp %233 : vector<2x32xf32>
    %cst_54 = arith.constant 1.000000e+00 : f32
    %235 = vector.broadcast %cst_54 : f32 to vector<2x32xf32>
    %236 = arith.addf %235, %234 : vector<2x32xf32>
    %237 = arith.divf %235, %236 : vector<2x32xf32>
    %238 = vector.extract_strided_slice %231 {offsets = [0, 32], sizes = [2, 32], strides = [1, 1]} : vector<2x128xf32> to vector<2x32xf32>
    %239 = arith.negf %238 : vector<2x32xf32>
    %240 = math.exp %239 : vector<2x32xf32>
    %cst_55 = arith.constant 1.000000e+00 : f32
    %241 = vector.broadcast %cst_55 : f32 to vector<2x32xf32>
    %242 = arith.addf %241, %240 : vector<2x32xf32>
    %243 = arith.divf %241, %242 : vector<2x32xf32>
    %244 = vector.extract_strided_slice %231 {offsets = [0, 64], sizes = [2, 32], strides = [1, 1]} : vector<2x128xf32> to vector<2x32xf32>
    %245 = math.tanh %244 : vector<2x32xf32>
    %246 = vector.extract_strided_slice %231 {offsets = [0, 96], sizes = [2, 32], strides = [1, 1]} : vector<2x128xf32> to vector<2x32xf32>
    %247 = arith.negf %246 : vector<2x32xf32>
    %248 = math.exp %247 : vector<2x32xf32>
    %cst_56 = arith.constant 1.000000e+00 : f32
    %249 = vector.broadcast %cst_56 : f32 to vector<2x32xf32>
    %250 = arith.addf %249, %248 : vector<2x32xf32>
    %251 = arith.divf %249, %250 : vector<2x32xf32>
    %252 = arith.mulf %243, %223 : vector<2x32xf32>
    %253 = arith.mulf %237, %245 : vector<2x32xf32>
    %254 = arith.addf %252, %253 : vector<2x32xf32>
    %255 = math.tanh %254 : vector<2x32xf32>
    %256 = arith.mulf %251, %255 : vector<2x32xf32>
    %257 = vector.shape_cast %256 : vector<2x32xf32> to vector<2x1x32xf32>
    %c0_57 = arith.constant 0 : index
    %c7 = arith.constant 7 : index
    %c0_58 = arith.constant 0 : index
    %258 = vector.load %arg20[%c0_57, %c7, %c0_58] : memref<2x8x32xf32, #tpu.memory_space<vmem>>, vector<2x1x32xf32>
    tpu.vector_store %arg20[%c0_57, %c7, %c0_58], %257 {strides = array<i32>} : memref<2x8x32xf32, #tpu.memory_space<vmem>>, vector<2x1x32xf32>,
    %c0_59 = arith.constant 0 : index
    %c0_60 = arith.constant 0 : index
    %c0_61 = arith.constant 0 : index
    %259 = vector.load %arg20[%c0_59, %c0_60, %c0_61] : memref<2x8x32xf32, #tpu.memory_space<vmem>>, vector<2x8x32xf32>
    %c0_62 = arith.constant 0 : index
    %c0_63 = arith.constant 0 : index
    %260 = vector.load %arg4[%c0_62, %c0_63] : memref<32x128xf32, #tpu.memory_space<vmem>>, vector<32x128xf32>
    %c0_64 = arith.constant 0 : index
    %c0_65 = arith.constant 0 : index
    %261 = vector.load %arg5[%c0_64, %c0_65] : memref<32x128xf32, #tpu.memory_space<vmem>>, vector<32x128xf32>
    %c0_66 = arith.constant 0 : index
    %c0_67 = arith.constant 0 : index
    %262 = vector.load %arg6[%c0_66, %c0_67] : memref<1x128xf32, #tpu.memory_space<vmem>>, vector<1x128xf32>
    %263 = vector.shape_cast %259 : vector<2x8x32xf32> to vector<16x32xf32>
    %cst_68 = arith.constant dense<0.000000e+00> : vector<16x128xf32>
    %264 = tpu.matmul %263, %260, %cst_68 {dimension_numbers = #tpu.dot_dimension_numbers<[1], [0], [0], [1], [0, 0, 1, 1], [], []>} : vector<16x32xf32>, vector<32x128xf32>, vector<16x128xf32> -> vector<16x128xf32>
    %265 = vector.broadcast %262 : vector<1x128xf32> to vector<16x128xf32>
    %266 = arith.addf %264, %265 : vector<16x128xf32>
    %267 = vector.shape_cast %266 : vector<16x128xf32> to vector<2x8x128xf32>
    %cst_69 = arith.constant 0.000000e+00 : f32
    %268 = vector.broadcast %cst_69 : f32 to vector<2x32xf32>
    %cst_70 = arith.constant 0.000000e+00 : f32
    %269 = vector.broadcast %cst_70 : f32 to vector<2x32xf32>
    %270 = vector.extract_strided_slice %267 {offsets = [0, 0, 0], sizes = [2, 1, 128], strides = [1, 1, 1]} : vector<2x8x128xf32> to vector<2x1x128xf32>
    %271 = vector.shape_cast %270 : vector<2x1x128xf32> to vector<2x128xf32>
    %cst_71 = arith.constant dense<0.000000e+00> : vector<2x128xf32>
    %272 = tpu.matmul %268, %261, %cst_71 {dimension_numbers = #tpu.dot_dimension_numbers<[1], [0], [0], [1], [0, 0, 1, 1], [], []>} : vector<2x32xf32>, vector<32x128xf32>, vector<2x128xf32> -> vector<2x128xf32>
    %273 = arith.addf %271, %272 : vector<2x128xf32>
    %274 = vector.extract_strided_slice %273 {offsets = [0, 0], sizes = [2, 32], strides = [1, 1]} : vector<2x128xf32> to vector<2x32xf32>
    %275 = arith.negf %274 : vector<2x32xf32>
    %276 = math.exp %275 : vector<2x32xf32>
    %cst_72 = arith.constant 1.000000e+00 : f32
    %277 = vector.broadcast %cst_72 : f32 to vector<2x32xf32>
    %278 = arith.addf %277, %276 : vector<2x32xf32>
    %279 = arith.divf %277, %278 : vector<2x32xf32>
    %280 = vector.extract_strided_slice %273 {offsets = [0, 32], sizes = [2, 32], strides = [1, 1]} : vector<2x128xf32> to vector<2x32xf32>
    %281 = arith.negf %280 : vector<2x32xf32>
    %282 = math.exp %281 : vector<2x32xf32>
    %cst_73 = arith.constant 1.000000e+00 : f32
    %283 = vector.broadcast %cst_73 : f32 to vector<2x32xf32>
    %284 = arith.addf %283, %282 : vector<2x32xf32>
    %285 = arith.divf %283, %284 : vector<2x32xf32>
    %286 = vector.extract_strided_slice %273 {offsets = [0, 64], sizes = [2, 32], strides = [1, 1]} : vector<2x128xf32> to vector<2x32xf32>
    %287 = math.tanh %286 : vector<2x32xf32>
    %288 = vector.extract_strided_slice %273 {offsets = [0, 96], sizes = [2, 32], strides = [1, 1]} : vector<2x128xf32> to vector<2x32xf32>
    %289 = arith.negf %288 : vector<2x32xf32>
    %290 = math.exp %289 : vector<2x32xf32>
    %cst_74 = arith.constant 1.000000e+00 : f32
    %291 = vector.broadcast %cst_74 : f32 to vector<2x32xf32>
    %292 = arith.addf %291, %290 : vector<2x32xf32>
    %293 = arith.divf %291, %292 : vector<2x32xf32>
    %294 = arith.mulf %285, %269 : vector<2x32xf32>
    %295 = arith.mulf %279, %287 : vector<2x32xf32>
    %296 = arith.addf %294, %295 : vector<2x32xf32>
    %297 = math.tanh %296 : vector<2x32xf32>
    %298 = arith.mulf %293, %297 : vector<2x32xf32>
    %299 = vector.shape_cast %298 : vector<2x32xf32> to vector<2x1x32xf32>
    %c0_75 = arith.constant 0 : index
    %c0_76 = arith.constant 0 : index
    %c0_77 = arith.constant 0 : index
    %300 = vector.load %arg21[%c0_75, %c0_76, %c0_77] : memref<2x8x32xf32, #tpu.memory_space<vmem>>, vector<2x1x32xf32>
    tpu.vector_store %arg21[%c0_75, %c0_76, %c0_77], %299 {strides = array<i32>} : memref<2x8x32xf32, #tpu.memory_space<vmem>>, vector<2x1x32xf32>,
    %301 = vector.extract_strided_slice %267 {offsets = [0, 1, 0], sizes = [2, 1, 128], strides = [1, 1, 1]} : vector<2x8x128xf32> to vector<2x1x128xf32>
    %302 = vector.shape_cast %301 : vector<2x1x128xf32> to vector<2x128xf32>
    %cst_78 = arith.constant dense<0.000000e+00> : vector<2x128xf32>
    %303 = tpu.matmul %298, %261, %cst_78 {dimension_numbers = #tpu.dot_dimension_numbers<[1], [0], [0], [1], [0, 0, 1, 1], [], []>} : vector<2x32xf32>, vector<32x128xf32>, vector<2x128xf32> -> vector<2x128xf32>
    %304 = arith.addf %302, %303 : vector<2x128xf32>
    %305 = vector.extract_strided_slice %304 {offsets = [0, 0], sizes = [2, 32], strides = [1, 1]} : vector<2x128xf32> to vector<2x32xf32>
    %306 = arith.negf %305 : vector<2x32xf32>
    %307 = math.exp %306 : vector<2x32xf32>
    %cst_79 = arith.constant 1.000000e+00 : f32
    %308 = vector.broadcast %cst_79 : f32 to vector<2x32xf32>
    %309 = arith.addf %308, %307 : vector<2x32xf32>
    %310 = arith.divf %308, %309 : vector<2x32xf32>
    %311 = vector.extract_strided_slice %304 {offsets = [0, 32], sizes = [2, 32], strides = [1, 1]} : vector<2x128xf32> to vector<2x32xf32>
    %312 = arith.negf %311 : vector<2x32xf32>
    %313 = math.exp %312 : vector<2x32xf32>
    %cst_80 = arith.constant 1.000000e+00 : f32
    %314 = vector.broadcast %cst_80 : f32 to vector<2x32xf32>
    %315 = arith.addf %314, %313 : vector<2x32xf32>
    %316 = arith.divf %314, %315 : vector<2x32xf32>
    %317 = vector.extract_strided_slice %304 {offsets = [0, 64], sizes = [2, 32], strides = [1, 1]} : vector<2x128xf32> to vector<2x32xf32>
    %318 = math.tanh %317 : vector<2x32xf32>
    %319 = vector.extract_strided_slice %304 {offsets = [0, 96], sizes = [2, 32], strides = [1, 1]} : vector<2x128xf32> to vector<2x32xf32>
    %320 = arith.negf %319 : vector<2x32xf32>
    %321 = math.exp %320 : vector<2x32xf32>
    %cst_81 = arith.constant 1.000000e+00 : f32
    %322 = vector.broadcast %cst_81 : f32 to vector<2x32xf32>
    %323 = arith.addf %322, %321 : vector<2x32xf32>
    %324 = arith.divf %322, %323 : vector<2x32xf32>
    %325 = arith.mulf %316, %296 : vector<2x32xf32>
    %326 = arith.mulf %310, %318 : vector<2x32xf32>
    %327 = arith.addf %325, %326 : vector<2x32xf32>
    %328 = math.tanh %327 : vector<2x32xf32>
    %329 = arith.mulf %324, %328 : vector<2x32xf32>
    %330 = vector.shape_cast %329 : vector<2x32xf32> to vector<2x1x32xf32>
    %c0_82 = arith.constant 0 : index
    %c1_83 = arith.constant 1 : index
    %c0_84 = arith.constant 0 : index
    %331 = vector.load %arg21[%c0_82, %c1_83, %c0_84] : memref<2x8x32xf32, #tpu.memory_space<vmem>>, vector<2x1x32xf32>
    tpu.vector_store %arg21[%c0_82, %c1_83, %c0_84], %330 {strides = array<i32>} : memref<2x8x32xf32, #tpu.memory_space<vmem>>, vector<2x1x32xf32>,
    %332 = vector.extract_strided_slice %267 {offsets = [0, 2, 0], sizes = [2, 1, 128], strides = [1, 1, 1]} : vector<2x8x128xf32> to vector<2x1x128xf32>
    %333 = vector.shape_cast %332 : vector<2x1x128xf32> to vector<2x128xf32>
    %cst_85 = arith.constant dense<0.000000e+00> : vector<2x128xf32>
    %334 = tpu.matmul %329, %261, %cst_85 {dimension_numbers = #tpu.dot_dimension_numbers<[1], [0], [0], [1], [0, 0, 1, 1], [], []>} : vector<2x32xf32>, vector<32x128xf32>, vector<2x128xf32> -> vector<2x128xf32>
    %335 = arith.addf %333, %334 : vector<2x128xf32>
    %336 = vector.extract_strided_slice %335 {offsets = [0, 0], sizes = [2, 32], strides = [1, 1]} : vector<2x128xf32> to vector<2x32xf32>
    %337 = arith.negf %336 : vector<2x32xf32>
    %338 = math.exp %337 : vector<2x32xf32>
    %cst_86 = arith.constant 1.000000e+00 : f32
    %339 = vector.broadcast %cst_86 : f32 to vector<2x32xf32>
    %340 = arith.addf %339, %338 : vector<2x32xf32>
    %341 = arith.divf %339, %340 : vector<2x32xf32>
    %342 = vector.extract_strided_slice %335 {offsets = [0, 32], sizes = [2, 32], strides = [1, 1]} : vector<2x128xf32> to vector<2x32xf32>
    %343 = arith.negf %342 : vector<2x32xf32>
    %344 = math.exp %343 : vector<2x32xf32>
    %cst_87 = arith.constant 1.000000e+00 : f32
    %345 = vector.broadcast %cst_87 : f32 to vector<2x32xf32>
    %346 = arith.addf %345, %344 : vector<2x32xf32>
    %347 = arith.divf %345, %346 : vector<2x32xf32>
    %348 = vector.extract_strided_slice %335 {offsets = [0, 64], sizes = [2, 32], strides = [1, 1]} : vector<2x128xf32> to vector<2x32xf32>
    %349 = math.tanh %348 : vector<2x32xf32>
    %350 = vector.extract_strided_slice %335 {offsets = [0, 96], sizes = [2, 32], strides = [1, 1]} : vector<2x128xf32> to vector<2x32xf32>
    %351 = arith.negf %350 : vector<2x32xf32>
    %352 = math.exp %351 : vector<2x32xf32>
    %cst_88 = arith.constant 1.000000e+00 : f32
    %353 = vector.broadcast %cst_88 : f32 to vector<2x32xf32>
    %354 = arith.addf %353, %352 : vector<2x32xf32>
    %355 = arith.divf %353, %354 : vector<2x32xf32>
    %356 = arith.mulf %347, %327 : vector<2x32xf32>
    %357 = arith.mulf %341, %349 : vector<2x32xf32>
    %358 = arith.addf %356, %357 : vector<2x32xf32>
    %359 = math.tanh %358 : vector<2x32xf32>
    %360 = arith.mulf %355, %359 : vector<2x32xf32>
    %361 = vector.shape_cast %360 : vector<2x32xf32> to vector<2x1x32xf32>
    %c0_89 = arith.constant 0 : index
    %c2_90 = arith.constant 2 : index
    %c0_91 = arith.constant 0 : index
    %362 = vector.load %arg21[%c0_89, %c2_90, %c0_91] : memref<2x8x32xf32, #tpu.memory_space<vmem>>, vector<2x1x32xf32>
    tpu.vector_store %arg21[%c0_89, %c2_90, %c0_91], %361 {strides = array<i32>} : memref<2x8x32xf32, #tpu.memory_space<vmem>>, vector<2x1x32xf32>,
    %363 = vector.extract_strided_slice %267 {offsets = [0, 3, 0], sizes = [2, 1, 128], strides = [1, 1, 1]} : vector<2x8x128xf32> to vector<2x1x128xf32>
    %364 = vector.shape_cast %363 : vector<2x1x128xf32> to vector<2x128xf32>
    %cst_92 = arith.constant dense<0.000000e+00> : vector<2x128xf32>
    %365 = tpu.matmul %360, %261, %cst_92 {dimension_numbers = #tpu.dot_dimension_numbers<[1], [0], [0], [1], [0, 0, 1, 1], [], []>} : vector<2x32xf32>, vector<32x128xf32>, vector<2x128xf32> -> vector<2x128xf32>
    %366 = arith.addf %364, %365 : vector<2x128xf32>
    %367 = vector.extract_strided_slice %366 {offsets = [0, 0], sizes = [2, 32], strides = [1, 1]} : vector<2x128xf32> to vector<2x32xf32>
    %368 = arith.negf %367 : vector<2x32xf32>
    %369 = math.exp %368 : vector<2x32xf32>
    %cst_93 = arith.constant 1.000000e+00 : f32
    %370 = vector.broadcast %cst_93 : f32 to vector<2x32xf32>
    %371 = arith.addf %370, %369 : vector<2x32xf32>
    %372 = arith.divf %370, %371 : vector<2x32xf32>
    %373 = vector.extract_strided_slice %366 {offsets = [0, 32], sizes = [2, 32], strides = [1, 1]} : vector<2x128xf32> to vector<2x32xf32>
    %374 = arith.negf %373 : vector<2x32xf32>
    %375 = math.exp %374 : vector<2x32xf32>
    %cst_94 = arith.constant 1.000000e+00 : f32
    %376 = vector.broadcast %cst_94 : f32 to vector<2x32xf32>
    %377 = arith.addf %376, %375 : vector<2x32xf32>
    %378 = arith.divf %376, %377 : vector<2x32xf32>
    %379 = vector.extract_strided_slice %366 {offsets = [0, 64], sizes = [2, 32], strides = [1, 1]} : vector<2x128xf32> to vector<2x32xf32>
    %380 = math.tanh %379 : vector<2x32xf32>
    %381 = vector.extract_strided_slice %366 {offsets = [0, 96], sizes = [2, 32], strides = [1, 1]} : vector<2x128xf32> to vector<2x32xf32>
    %382 = arith.negf %381 : vector<2x32xf32>
    %383 = math.exp %382 : vector<2x32xf32>
    %cst_95 = arith.constant 1.000000e+00 : f32
    %384 = vector.broadcast %cst_95 : f32 to vector<2x32xf32>
    %385 = arith.addf %384, %383 : vector<2x32xf32>
    %386 = arith.divf %384, %385 : vector<2x32xf32>
    %387 = arith.mulf %378, %358 : vector<2x32xf32>
    %388 = arith.mulf %372, %380 : vector<2x32xf32>
    %389 = arith.addf %387, %388 : vector<2x32xf32>
    %390 = math.tanh %389 : vector<2x32xf32>
    %391 = arith.mulf %386, %390 : vector<2x32xf32>
    %392 = vector.shape_cast %391 : vector<2x32xf32> to vector<2x1x32xf32>
    %c0_96 = arith.constant 0 : index
    %c3_97 = arith.constant 3 : index
    %c0_98 = arith.constant 0 : index
    %393 = vector.load %arg21[%c0_96, %c3_97, %c0_98] : memref<2x8x32xf32, #tpu.memory_space<vmem>>, vector<2x1x32xf32>
    tpu.vector_store %arg21[%c0_96, %c3_97, %c0_98], %392 {strides = array<i32>} : memref<2x8x32xf32, #tpu.memory_space<vmem>>, vector<2x1x32xf32>,
    %394 = vector.extract_strided_slice %267 {offsets = [0, 4, 0], sizes = [2, 1, 128], strides = [1, 1, 1]} : vector<2x8x128xf32> to vector<2x1x128xf32>
    %395 = vector.shape_cast %394 : vector<2x1x128xf32> to vector<2x128xf32>
    %cst_99 = arith.constant dense<0.000000e+00> : vector<2x128xf32>
    %396 = tpu.matmul %391, %261, %cst_99 {dimension_numbers = #tpu.dot_dimension_numbers<[1], [0], [0], [1], [0, 0, 1, 1], [], []>} : vector<2x32xf32>, vector<32x128xf32>, vector<2x128xf32> -> vector<2x128xf32>
    %397 = arith.addf %395, %396 : vector<2x128xf32>
    %398 = vector.extract_strided_slice %397 {offsets = [0, 0], sizes = [2, 32], strides = [1, 1]} : vector<2x128xf32> to vector<2x32xf32>
    %399 = arith.negf %398 : vector<2x32xf32>
    %400 = math.exp %399 : vector<2x32xf32>
    %cst_100 = arith.constant 1.000000e+00 : f32
    %401 = vector.broadcast %cst_100 : f32 to vector<2x32xf32>
    %402 = arith.addf %401, %400 : vector<2x32xf32>
    %403 = arith.divf %401, %402 : vector<2x32xf32>
    %404 = vector.extract_strided_slice %397 {offsets = [0, 32], sizes = [2, 32], strides = [1, 1]} : vector<2x128xf32> to vector<2x32xf32>
    %405 = arith.negf %404 : vector<2x32xf32>
    %406 = math.exp %405 : vector<2x32xf32>
    %cst_101 = arith.constant 1.000000e+00 : f32
    %407 = vector.broadcast %cst_101 : f32 to vector<2x32xf32>
    %408 = arith.addf %407, %406 : vector<2x32xf32>
    %409 = arith.divf %407, %408 : vector<2x32xf32>
    %410 = vector.extract_strided_slice %397 {offsets = [0, 64], sizes = [2, 32], strides = [1, 1]} : vector<2x128xf32> to vector<2x32xf32>
    %411 = math.tanh %410 : vector<2x32xf32>
    %412 = vector.extract_strided_slice %397 {offsets = [0, 96], sizes = [2, 32], strides = [1, 1]} : vector<2x128xf32> to vector<2x32xf32>
    %413 = arith.negf %412 : vector<2x32xf32>
    %414 = math.exp %413 : vector<2x32xf32>
    %cst_102 = arith.constant 1.000000e+00 : f32
    %415 = vector.broadcast %cst_102 : f32 to vector<2x32xf32>
    %416 = arith.addf %415, %414 : vector<2x32xf32>
    %417 = arith.divf %415, %416 : vector<2x32xf32>
    %418 = arith.mulf %409, %389 : vector<2x32xf32>
    %419 = arith.mulf %403, %411 : vector<2x32xf32>
    %420 = arith.addf %418, %419 : vector<2x32xf32>
    %421 = math.tanh %420 : vector<2x32xf32>
    %422 = arith.mulf %417, %421 : vector<2x32xf32>
    %423 = vector.shape_cast %422 : vector<2x32xf32> to vector<2x1x32xf32>
    %c0_103 = arith.constant 0 : index
    %c4_104 = arith.constant 4 : index
    %c0_105 = arith.constant 0 : index
    %424 = vector.load %arg21[%c0_103, %c4_104, %c0_105] : memref<2x8x32xf32, #tpu.memory_space<vmem>>, vector<2x1x32xf32>
    tpu.vector_store %arg21[%c0_103, %c4_104, %c0_105], %423 {strides = array<i32>} : memref<2x8x32xf32, #tpu.memory_space<vmem>>, vector<2x1x32xf32>,
    %425 = vector.extract_strided_slice %267 {offsets = [0, 5, 0], sizes = [2, 1, 128], strides = [1, 1, 1]} : vector<2x8x128xf32> to vector<2x1x128xf32>
    %426 = vector.shape_cast %425 : vector<2x1x128xf32> to vector<2x128xf32>
    %cst_106 = arith.constant dense<0.000000e+00> : vector<2x128xf32>
    %427 = tpu.matmul %422, %261, %cst_106 {dimension_numbers = #tpu.dot_dimension_numbers<[1], [0], [0], [1], [0, 0, 1, 1], [], []>} : vector<2x32xf32>, vector<32x128xf32>, vector<2x128xf32> -> vector<2x128xf32>
    %428 = arith.addf %426, %427 : vector<2x128xf32>
    %429 = vector.extract_strided_slice %428 {offsets = [0, 0], sizes = [2, 32], strides = [1, 1]} : vector<2x128xf32> to vector<2x32xf32>
    %430 = arith.negf %429 : vector<2x32xf32>
    %431 = math.exp %430 : vector<2x32xf32>
    %cst_107 = arith.constant 1.000000e+00 : f32
    %432 = vector.broadcast %cst_107 : f32 to vector<2x32xf32>
    %433 = arith.addf %432, %431 : vector<2x32xf32>
    %434 = arith.divf %432, %433 : vector<2x32xf32>
    %435 = vector.extract_strided_slice %428 {offsets = [0, 32], sizes = [2, 32], strides = [1, 1]} : vector<2x128xf32> to vector<2x32xf32>
    %436 = arith.negf %435 : vector<2x32xf32>
    %437 = math.exp %436 : vector<2x32xf32>
    %cst_108 = arith.constant 1.000000e+00 : f32
    %438 = vector.broadcast %cst_108 : f32 to vector<2x32xf32>
    %439 = arith.addf %438, %437 : vector<2x32xf32>
    %440 = arith.divf %438, %439 : vector<2x32xf32>
    %441 = vector.extract_strided_slice %428 {offsets = [0, 64], sizes = [2, 32], strides = [1, 1]} : vector<2x128xf32> to vector<2x32xf32>
    %442 = math.tanh %441 : vector<2x32xf32>
    %443 = vector.extract_strided_slice %428 {offsets = [0, 96], sizes = [2, 32], strides = [1, 1]} : vector<2x128xf32> to vector<2x32xf32>
    %444 = arith.negf %443 : vector<2x32xf32>
    %445 = math.exp %444 : vector<2x32xf32>
    %cst_109 = arith.constant 1.000000e+00 : f32
    %446 = vector.broadcast %cst_109 : f32 to vector<2x32xf32>
    %447 = arith.addf %446, %445 : vector<2x32xf32>
    %448 = arith.divf %446, %447 : vector<2x32xf32>
    %449 = arith.mulf %440, %420 : vector<2x32xf32>
    %450 = arith.mulf %434, %442 : vector<2x32xf32>
    %451 = arith.addf %449, %450 : vector<2x32xf32>
    %452 = math.tanh %451 : vector<2x32xf32>
    %453 = arith.mulf %448, %452 : vector<2x32xf32>
    %454 = vector.shape_cast %453 : vector<2x32xf32> to vector<2x1x32xf32>
    %c0_110 = arith.constant 0 : index
    %c5_111 = arith.constant 5 : index
    %c0_112 = arith.constant 0 : index
    %455 = vector.load %arg21[%c0_110, %c5_111, %c0_112] : memref<2x8x32xf32, #tpu.memory_space<vmem>>, vector<2x1x32xf32>
    tpu.vector_store %arg21[%c0_110, %c5_111, %c0_112], %454 {strides = array<i32>} : memref<2x8x32xf32, #tpu.memory_space<vmem>>, vector<2x1x32xf32>,
    %456 = vector.extract_strided_slice %267 {offsets = [0, 6, 0], sizes = [2, 1, 128], strides = [1, 1, 1]} : vector<2x8x128xf32> to vector<2x1x128xf32>
    %457 = vector.shape_cast %456 : vector<2x1x128xf32> to vector<2x128xf32>
    %cst_113 = arith.constant dense<0.000000e+00> : vector<2x128xf32>
    %458 = tpu.matmul %453, %261, %cst_113 {dimension_numbers = #tpu.dot_dimension_numbers<[1], [0], [0], [1], [0, 0, 1, 1], [], []>} : vector<2x32xf32>, vector<32x128xf32>, vector<2x128xf32> -> vector<2x128xf32>
    %459 = arith.addf %457, %458 : vector<2x128xf32>
    %460 = vector.extract_strided_slice %459 {offsets = [0, 0], sizes = [2, 32], strides = [1, 1]} : vector<2x128xf32> to vector<2x32xf32>
    %461 = arith.negf %460 : vector<2x32xf32>
    %462 = math.exp %461 : vector<2x32xf32>
    %cst_114 = arith.constant 1.000000e+00 : f32
    %463 = vector.broadcast %cst_114 : f32 to vector<2x32xf32>
    %464 = arith.addf %463, %462 : vector<2x32xf32>
    %465 = arith.divf %463, %464 : vector<2x32xf32>
    %466 = vector.extract_strided_slice %459 {offsets = [0, 32], sizes = [2, 32], strides = [1, 1]} : vector<2x128xf32> to vector<2x32xf32>
    %467 = arith.negf %466 : vector<2x32xf32>
    %468 = math.exp %467 : vector<2x32xf32>
    %cst_115 = arith.constant 1.000000e+00 : f32
    %469 = vector.broadcast %cst_115 : f32 to vector<2x32xf32>
    %470 = arith.addf %469, %468 : vector<2x32xf32>
    %471 = arith.divf %469, %470 : vector<2x32xf32>
    %472 = vector.extract_strided_slice %459 {offsets = [0, 64], sizes = [2, 32], strides = [1, 1]} : vector<2x128xf32> to vector<2x32xf32>
    %473 = math.tanh %472 : vector<2x32xf32>
    %474 = vector.extract_strided_slice %459 {offsets = [0, 96], sizes = [2, 32], strides = [1, 1]} : vector<2x128xf32> to vector<2x32xf32>
    %475 = arith.negf %474 : vector<2x32xf32>
    %476 = math.exp %475 : vector<2x32xf32>
    %cst_116 = arith.constant 1.000000e+00 : f32
    %477 = vector.broadcast %cst_116 : f32 to vector<2x32xf32>
    %478 = arith.addf %477, %476 : vector<2x32xf32>
    %479 = arith.divf %477, %478 : vector<2x32xf32>
    %480 = arith.mulf %471, %451 : vector<2x32xf32>
    %481 = arith.mulf %465, %473 : vector<2x32xf32>
    %482 = arith.addf %480, %481 : vector<2x32xf32>
    %483 = math.tanh %482 : vector<2x32xf32>
    %484 = arith.mulf %479, %483 : vector<2x32xf32>
    %485 = vector.shape_cast %484 : vector<2x32xf32> to vector<2x1x32xf32>
    %c0_117 = arith.constant 0 : index
    %c6_118 = arith.constant 6 : index
    %c0_119 = arith.constant 0 : index
    %486 = vector.load %arg21[%c0_117, %c6_118, %c0_119] : memref<2x8x32xf32, #tpu.memory_space<vmem>>, vector<2x1x32xf32>
    tpu.vector_store %arg21[%c0_117, %c6_118, %c0_119], %485 {strides = array<i32>} : memref<2x8x32xf32, #tpu.memory_space<vmem>>, vector<2x1x32xf32>,
    %487 = vector.extract_strided_slice %267 {offsets = [0, 7, 0], sizes = [2, 1, 128], strides = [1, 1, 1]} : vector<2x8x128xf32> to vector<2x1x128xf32>
    %488 = vector.shape_cast %487 : vector<2x1x128xf32> to vector<2x128xf32>
    %cst_120 = arith.constant dense<0.000000e+00> : vector<2x128xf32>
    %489 = tpu.matmul %484, %261, %cst_120 {dimension_numbers = #tpu.dot_dimension_numbers<[1], [0], [0], [1], [0, 0, 1, 1], [], []>} : vector<2x32xf32>, vector<32x128xf32>, vector<2x128xf32> -> vector<2x128xf32>
    %490 = arith.addf %488, %489 : vector<2x128xf32>
    %491 = vector.extract_strided_slice %490 {offsets = [0, 0], sizes = [2, 32], strides = [1, 1]} : vector<2x128xf32> to vector<2x32xf32>
    %492 = arith.negf %491 : vector<2x32xf32>
    %493 = math.exp %492 : vector<2x32xf32>
    %cst_121 = arith.constant 1.000000e+00 : f32
    %494 = vector.broadcast %cst_121 : f32 to vector<2x32xf32>
    %495 = arith.addf %494, %493 : vector<2x32xf32>
    %496 = arith.divf %494, %495 : vector<2x32xf32>
    %497 = vector.extract_strided_slice %490 {offsets = [0, 32], sizes = [2, 32], strides = [1, 1]} : vector<2x128xf32> to vector<2x32xf32>
    %498 = arith.negf %497 : vector<2x32xf32>
    %499 = math.exp %498 : vector<2x32xf32>
    %cst_122 = arith.constant 1.000000e+00 : f32
    %500 = vector.broadcast %cst_122 : f32 to vector<2x32xf32>
    %501 = arith.addf %500, %499 : vector<2x32xf32>
    %502 = arith.divf %500, %501 : vector<2x32xf32>
    %503 = vector.extract_strided_slice %490 {offsets = [0, 64], sizes = [2, 32], strides = [1, 1]} : vector<2x128xf32> to vector<2x32xf32>
    %504 = math.tanh %503 : vector<2x32xf32>
    %505 = vector.extract_strided_slice %490 {offsets = [0, 96], sizes = [2, 32], strides = [1, 1]} : vector<2x128xf32> to vector<2x32xf32>
    %506 = arith.negf %505 : vector<2x32xf32>
    %507 = math.exp %506 : vector<2x32xf32>
    %cst_123 = arith.constant 1.000000e+00 : f32
    %508 = vector.broadcast %cst_123 : f32 to vector<2x32xf32>
    %509 = arith.addf %508, %507 : vector<2x32xf32>
    %510 = arith.divf %508, %509 : vector<2x32xf32>
    %511 = arith.mulf %502, %482 : vector<2x32xf32>
    %512 = arith.mulf %496, %504 : vector<2x32xf32>
    %513 = arith.addf %511, %512 : vector<2x32xf32>
    %514 = math.tanh %513 : vector<2x32xf32>
    %515 = arith.mulf %510, %514 : vector<2x32xf32>
    %516 = vector.shape_cast %515 : vector<2x32xf32> to vector<2x1x32xf32>
    %c0_124 = arith.constant 0 : index
    %c7_125 = arith.constant 7 : index
    %c0_126 = arith.constant 0 : index
    %517 = vector.load %arg21[%c0_124, %c7_125, %c0_126] : memref<2x8x32xf32, #tpu.memory_space<vmem>>, vector<2x1x32xf32>
    tpu.vector_store %arg21[%c0_124, %c7_125, %c0_126], %516 {strides = array<i32>} : memref<2x8x32xf32, #tpu.memory_space<vmem>>, vector<2x1x32xf32>,
    %c0_127 = arith.constant 0 : index
    %c0_128 = arith.constant 0 : index
    %c0_129 = arith.constant 0 : index
    %518 = vector.load %arg21[%c0_127, %c0_128, %c0_129] : memref<2x8x32xf32, #tpu.memory_space<vmem>>, vector<2x8x32xf32>
    %519 = vector.shape_cast %518 : vector<2x8x32xf32> to vector<16x32xf32>
    %c0_130 = arith.constant 0 : index
    %c0_131 = arith.constant 0 : index
    %520 = vector.load %arg7[%c0_130, %c0_131] : memref<32x16xf32, #tpu.memory_space<vmem>>, vector<32x16xf32>
    %cst_132 = arith.constant dense<0.000000e+00> : vector<16x16xf32>
    %521 = tpu.matmul %519, %520, %cst_132 {dimension_numbers = #tpu.dot_dimension_numbers<[1], [0], [0], [1], [0, 0, 1, 1], [], []>} : vector<16x32xf32>, vector<32x16xf32>, vector<16x16xf32> -> vector<16x16xf32>
    %c0_133 = arith.constant 0 : index
    %c0_134 = arith.constant 0 : index
    %522 = vector.load %arg8[%c0_133, %c0_134] : memref<1x16xf32, #tpu.memory_space<vmem>>, vector<1x16xf32>
    %523 = vector.broadcast %522 : vector<1x16xf32> to vector<16x16xf32>
    %524 = arith.addf %521, %523 : vector<16x16xf32>
    %cst_135 = arith.constant 0.000000e+00 : f32
    %525 = vector.broadcast %cst_135 : f32 to vector<16x16xf32>
    %526 = arith.maximumf %524, %525 : vector<16x16xf32>
    %c0_136 = arith.constant 0 : index
    %c0_137 = arith.constant 0 : index
    %527 = vector.load %arg9[%c0_136, %c0_137] : memref<16x32xf32, #tpu.memory_space<vmem>>, vector<16x32xf32>
    %cst_138 = arith.constant dense<0.000000e+00> : vector<16x32xf32>
    %528 = tpu.matmul %526, %527, %cst_138 {dimension_numbers = #tpu.dot_dimension_numbers<[1], [0], [0], [1], [0, 0, 1, 1], [], []>} : vector<16x16xf32>, vector<16x32xf32>, vector<16x32xf32> -> vector<16x32xf32>
    %c0_139 = arith.constant 0 : index
    %c0_140 = arith.constant 0 : index
    %529 = vector.load %arg10[%c0_139, %c0_140] : memref<1x32xf32, #tpu.memory_space<vmem>>, vector<1x32xf32>
    %530 = vector.broadcast %529 : vector<1x32xf32> to vector<16x32xf32>
    %531 = arith.addf %528, %530 : vector<16x32xf32>
    %cst_141 = arith.constant 0.000000e+00 : f32
    %532 = vector.broadcast %cst_141 : f32 to vector<16x32xf32>
    %533 = arith.maximumf %531, %532 : vector<16x32xf32>
    %534 = vector.shape_cast %533 : vector<16x32xf32> to vector<2x8x32xf32>
    %c0_142 = arith.constant 0 : index
    %c0_143 = arith.constant 0 : index
    %535 = vector.load %arg11[%c0_142, %c0_143] : memref<32x64xf32, #tpu.memory_space<vmem>>, vector<32x64xf32>
    %c0_144 = arith.constant 0 : index
    %c0_145 = arith.constant 0 : index
    %536 = vector.load %arg12[%c0_144, %c0_145] : memref<16x64xf32, #tpu.memory_space<vmem>>, vector<16x64xf32>
    %c0_146 = arith.constant 0 : index
    %c0_147 = arith.constant 0 : index
    %537 = vector.load %arg13[%c0_146, %c0_147] : memref<1x64xf32, #tpu.memory_space<vmem>>, vector<1x64xf32>
    %538 = vector.shape_cast %534 : vector<2x8x32xf32> to vector<16x32xf32>
    %cst_148 = arith.constant dense<0.000000e+00> : vector<16x64xf32>
    %539 = tpu.matmul %538, %535, %cst_148 {dimension_numbers = #tpu.dot_dimension_numbers<[1], [0], [0], [1], [0, 0, 1, 1], [], []>} : vector<16x32xf32>, vector<32x64xf32>, vector<16x64xf32> -> vector<16x64xf32>
    %540 = vector.broadcast %537 : vector<1x64xf32> to vector<16x64xf32>
    %541 = arith.addf %539, %540 : vector<16x64xf32>
    %542 = vector.shape_cast %541 : vector<16x64xf32> to vector<2x8x64xf32>
    %cst_149 = arith.constant 0.000000e+00 : f32
    %543 = vector.broadcast %cst_149 : f32 to vector<2x16xf32>
    %cst_150 = arith.constant 0.000000e+00 : f32
    %544 = vector.broadcast %cst_150 : f32 to vector<2x16xf32>
    %545 = vector.extract_strided_slice %542 {offsets = [0, 0, 0], sizes = [2, 1, 64], strides = [1, 1, 1]} : vector<2x8x64xf32> to vector<2x1x64xf32>
    %546 = vector.shape_cast %545 : vector<2x1x64xf32> to vector<2x64xf32>
    %cst_151 = arith.constant dense<0.000000e+00> : vector<2x64xf32>
    %547 = tpu.matmul %543, %536, %cst_151 {dimension_numbers = #tpu.dot_dimension_numbers<[1], [0], [0], [1], [0, 0, 1, 1], [], []>} : vector<2x16xf32>, vector<16x64xf32>, vector<2x64xf32> -> vector<2x64xf32>
    %548 = arith.addf %546, %547 : vector<2x64xf32>
    %549 = vector.extract_strided_slice %548 {offsets = [0, 0], sizes = [2, 16], strides = [1, 1]} : vector<2x64xf32> to vector<2x16xf32>
    %550 = arith.negf %549 : vector<2x16xf32>
    %551 = math.exp %550 : vector<2x16xf32>
    %cst_152 = arith.constant 1.000000e+00 : f32
    %552 = vector.broadcast %cst_152 : f32 to vector<2x16xf32>
    %553 = arith.addf %552, %551 : vector<2x16xf32>
    %554 = arith.divf %552, %553 : vector<2x16xf32>
    %555 = vector.extract_strided_slice %548 {offsets = [0, 16], sizes = [2, 16], strides = [1, 1]} : vector<2x64xf32> to vector<2x16xf32>
    %556 = arith.negf %555 : vector<2x16xf32>
    %557 = math.exp %556 : vector<2x16xf32>
    %cst_153 = arith.constant 1.000000e+00 : f32
    %558 = vector.broadcast %cst_153 : f32 to vector<2x16xf32>
    %559 = arith.addf %558, %557 : vector<2x16xf32>
    %560 = arith.divf %558, %559 : vector<2x16xf32>
    %561 = vector.extract_strided_slice %548 {offsets = [0, 32], sizes = [2, 16], strides = [1, 1]} : vector<2x64xf32> to vector<2x16xf32>
    %562 = math.tanh %561 : vector<2x16xf32>
    %563 = vector.extract_strided_slice %548 {offsets = [0, 48], sizes = [2, 16], strides = [1, 1]} : vector<2x64xf32> to vector<2x16xf32>
    %564 = arith.negf %563 : vector<2x16xf32>
    %565 = math.exp %564 : vector<2x16xf32>
    %cst_154 = arith.constant 1.000000e+00 : f32
    %566 = vector.broadcast %cst_154 : f32 to vector<2x16xf32>
    %567 = arith.addf %566, %565 : vector<2x16xf32>
    %568 = arith.divf %566, %567 : vector<2x16xf32>
    %569 = arith.mulf %560, %544 : vector<2x16xf32>
    %570 = arith.mulf %554, %562 : vector<2x16xf32>
    %571 = arith.addf %569, %570 : vector<2x16xf32>
    %572 = math.tanh %571 : vector<2x16xf32>
    %573 = arith.mulf %568, %572 : vector<2x16xf32>
    %574 = vector.shape_cast %573 : vector<2x16xf32> to vector<2x1x16xf32>
    %c0_155 = arith.constant 0 : index
    %c0_156 = arith.constant 0 : index
    %c0_157 = arith.constant 0 : index
    %575 = vector.load %arg22[%c0_155, %c0_156, %c0_157] : memref<2x8x16xf32, #tpu.memory_space<vmem>>, vector<2x1x16xf32>
    tpu.vector_store %arg22[%c0_155, %c0_156, %c0_157], %574 {strides = array<i32>} : memref<2x8x16xf32, #tpu.memory_space<vmem>>, vector<2x1x16xf32>,
    %576 = vector.extract_strided_slice %542 {offsets = [0, 1, 0], sizes = [2, 1, 64], strides = [1, 1, 1]} : vector<2x8x64xf32> to vector<2x1x64xf32>
    %577 = vector.shape_cast %576 : vector<2x1x64xf32> to vector<2x64xf32>
    %cst_158 = arith.constant dense<0.000000e+00> : vector<2x64xf32>
    %578 = tpu.matmul %573, %536, %cst_158 {dimension_numbers = #tpu.dot_dimension_numbers<[1], [0], [0], [1], [0, 0, 1, 1], [], []>} : vector<2x16xf32>, vector<16x64xf32>, vector<2x64xf32> -> vector<2x64xf32>
    %579 = arith.addf %577, %578 : vector<2x64xf32>
    %580 = vector.extract_strided_slice %579 {offsets = [0, 0], sizes = [2, 16], strides = [1, 1]} : vector<2x64xf32> to vector<2x16xf32>
    %581 = arith.negf %580 : vector<2x16xf32>
    %582 = math.exp %581 : vector<2x16xf32>
    %cst_159 = arith.constant 1.000000e+00 : f32
    %583 = vector.broadcast %cst_159 : f32 to vector<2x16xf32>
    %584 = arith.addf %583, %582 : vector<2x16xf32>
    %585 = arith.divf %583, %584 : vector<2x16xf32>
    %586 = vector.extract_strided_slice %579 {offsets = [0, 16], sizes = [2, 16], strides = [1, 1]} : vector<2x64xf32> to vector<2x16xf32>
    %587 = arith.negf %586 : vector<2x16xf32>
    %588 = math.exp %587 : vector<2x16xf32>
    %cst_160 = arith.constant 1.000000e+00 : f32
    %589 = vector.broadcast %cst_160 : f32 to vector<2x16xf32>
    %590 = arith.addf %589, %588 : vector<2x16xf32>
    %591 = arith.divf %589, %590 : vector<2x16xf32>
    %592 = vector.extract_strided_slice %579 {offsets = [0, 32], sizes = [2, 16], strides = [1, 1]} : vector<2x64xf32> to vector<2x16xf32>
    %593 = math.tanh %592 : vector<2x16xf32>
    %594 = vector.extract_strided_slice %579 {offsets = [0, 48], sizes = [2, 16], strides = [1, 1]} : vector<2x64xf32> to vector<2x16xf32>
    %595 = arith.negf %594 : vector<2x16xf32>
    %596 = math.exp %595 : vector<2x16xf32>
    %cst_161 = arith.constant 1.000000e+00 : f32
    %597 = vector.broadcast %cst_161 : f32 to vector<2x16xf32>
    %598 = arith.addf %597, %596 : vector<2x16xf32>
    %599 = arith.divf %597, %598 : vector<2x16xf32>
    %600 = arith.mulf %591, %571 : vector<2x16xf32>
    %601 = arith.mulf %585, %593 : vector<2x16xf32>
    %602 = arith.addf %600, %601 : vector<2x16xf32>
    %603 = math.tanh %602 : vector<2x16xf32>
    %604 = arith.mulf %599, %603 : vector<2x16xf32>
    %605 = vector.shape_cast %604 : vector<2x16xf32> to vector<2x1x16xf32>
    %c0_162 = arith.constant 0 : index
    %c1_163 = arith.constant 1 : index
    %c0_164 = arith.constant 0 : index
    %606 = vector.load %arg22[%c0_162, %c1_163, %c0_164] : memref<2x8x16xf32, #tpu.memory_space<vmem>>, vector<2x1x16xf32>
    tpu.vector_store %arg22[%c0_162, %c1_163, %c0_164], %605 {strides = array<i32>} : memref<2x8x16xf32, #tpu.memory_space<vmem>>, vector<2x1x16xf32>,
    %607 = vector.extract_strided_slice %542 {offsets = [0, 2, 0], sizes = [2, 1, 64], strides = [1, 1, 1]} : vector<2x8x64xf32> to vector<2x1x64xf32>
    %608 = vector.shape_cast %607 : vector<2x1x64xf32> to vector<2x64xf32>
    %cst_165 = arith.constant dense<0.000000e+00> : vector<2x64xf32>
    %609 = tpu.matmul %604, %536, %cst_165 {dimension_numbers = #tpu.dot_dimension_numbers<[1], [0], [0], [1], [0, 0, 1, 1], [], []>} : vector<2x16xf32>, vector<16x64xf32>, vector<2x64xf32> -> vector<2x64xf32>
    %610 = arith.addf %608, %609 : vector<2x64xf32>
    %611 = vector.extract_strided_slice %610 {offsets = [0, 0], sizes = [2, 16], strides = [1, 1]} : vector<2x64xf32> to vector<2x16xf32>
    %612 = arith.negf %611 : vector<2x16xf32>
    %613 = math.exp %612 : vector<2x16xf32>
    %cst_166 = arith.constant 1.000000e+00 : f32
    %614 = vector.broadcast %cst_166 : f32 to vector<2x16xf32>
    %615 = arith.addf %614, %613 : vector<2x16xf32>
    %616 = arith.divf %614, %615 : vector<2x16xf32>
    %617 = vector.extract_strided_slice %610 {offsets = [0, 16], sizes = [2, 16], strides = [1, 1]} : vector<2x64xf32> to vector<2x16xf32>
    %618 = arith.negf %617 : vector<2x16xf32>
    %619 = math.exp %618 : vector<2x16xf32>
    %cst_167 = arith.constant 1.000000e+00 : f32
    %620 = vector.broadcast %cst_167 : f32 to vector<2x16xf32>
    %621 = arith.addf %620, %619 : vector<2x16xf32>
    %622 = arith.divf %620, %621 : vector<2x16xf32>
    %623 = vector.extract_strided_slice %610 {offsets = [0, 32], sizes = [2, 16], strides = [1, 1]} : vector<2x64xf32> to vector<2x16xf32>
    %624 = math.tanh %623 : vector<2x16xf32>
    %625 = vector.extract_strided_slice %610 {offsets = [0, 48], sizes = [2, 16], strides = [1, 1]} : vector<2x64xf32> to vector<2x16xf32>
    %626 = arith.negf %625 : vector<2x16xf32>
    %627 = math.exp %626 : vector<2x16xf32>
    %cst_168 = arith.constant 1.000000e+00 : f32
    %628 = vector.broadcast %cst_168 : f32 to vector<2x16xf32>
    %629 = arith.addf %628, %627 : vector<2x16xf32>
    %630 = arith.divf %628, %629 : vector<2x16xf32>
    %631 = arith.mulf %622, %602 : vector<2x16xf32>
    %632 = arith.mulf %616, %624 : vector<2x16xf32>
    %633 = arith.addf %631, %632 : vector<2x16xf32>
    %634 = math.tanh %633 : vector<2x16xf32>
    %635 = arith.mulf %630, %634 : vector<2x16xf32>
    %636 = vector.shape_cast %635 : vector<2x16xf32> to vector<2x1x16xf32>
    %c0_169 = arith.constant 0 : index
    %c2_170 = arith.constant 2 : index
    %c0_171 = arith.constant 0 : index
    %637 = vector.load %arg22[%c0_169, %c2_170, %c0_171] : memref<2x8x16xf32, #tpu.memory_space<vmem>>, vector<2x1x16xf32>
    tpu.vector_store %arg22[%c0_169, %c2_170, %c0_171], %636 {strides = array<i32>} : memref<2x8x16xf32, #tpu.memory_space<vmem>>, vector<2x1x16xf32>,
    %638 = vector.extract_strided_slice %542 {offsets = [0, 3, 0], sizes = [2, 1, 64], strides = [1, 1, 1]} : vector<2x8x64xf32> to vector<2x1x64xf32>
    %639 = vector.shape_cast %638 : vector<2x1x64xf32> to vector<2x64xf32>
    %cst_172 = arith.constant dense<0.000000e+00> : vector<2x64xf32>
    %640 = tpu.matmul %635, %536, %cst_172 {dimension_numbers = #tpu.dot_dimension_numbers<[1], [0], [0], [1], [0, 0, 1, 1], [], []>} : vector<2x16xf32>, vector<16x64xf32>, vector<2x64xf32> -> vector<2x64xf32>
    %641 = arith.addf %639, %640 : vector<2x64xf32>
    %642 = vector.extract_strided_slice %641 {offsets = [0, 0], sizes = [2, 16], strides = [1, 1]} : vector<2x64xf32> to vector<2x16xf32>
    %643 = arith.negf %642 : vector<2x16xf32>
    %644 = math.exp %643 : vector<2x16xf32>
    %cst_173 = arith.constant 1.000000e+00 : f32
    %645 = vector.broadcast %cst_173 : f32 to vector<2x16xf32>
    %646 = arith.addf %645, %644 : vector<2x16xf32>
    %647 = arith.divf %645, %646 : vector<2x16xf32>
    %648 = vector.extract_strided_slice %641 {offsets = [0, 16], sizes = [2, 16], strides = [1, 1]} : vector<2x64xf32> to vector<2x16xf32>
    %649 = arith.negf %648 : vector<2x16xf32>
    %650 = math.exp %649 : vector<2x16xf32>
    %cst_174 = arith.constant 1.000000e+00 : f32
    %651 = vector.broadcast %cst_174 : f32 to vector<2x16xf32>
    %652 = arith.addf %651, %650 : vector<2x16xf32>
    %653 = arith.divf %651, %652 : vector<2x16xf32>
    %654 = vector.extract_strided_slice %641 {offsets = [0, 32], sizes = [2, 16], strides = [1, 1]} : vector<2x64xf32> to vector<2x16xf32>
    %655 = math.tanh %654 : vector<2x16xf32>
    %656 = vector.extract_strided_slice %641 {offsets = [0, 48], sizes = [2, 16], strides = [1, 1]} : vector<2x64xf32> to vector<2x16xf32>
    %657 = arith.negf %656 : vector<2x16xf32>
    %658 = math.exp %657 : vector<2x16xf32>
    %cst_175 = arith.constant 1.000000e+00 : f32
    %659 = vector.broadcast %cst_175 : f32 to vector<2x16xf32>
    %660 = arith.addf %659, %658 : vector<2x16xf32>
    %661 = arith.divf %659, %660 : vector<2x16xf32>
    %662 = arith.mulf %653, %633 : vector<2x16xf32>
    %663 = arith.mulf %647, %655 : vector<2x16xf32>
    %664 = arith.addf %662, %663 : vector<2x16xf32>
    %665 = math.tanh %664 : vector<2x16xf32>
    %666 = arith.mulf %661, %665 : vector<2x16xf32>
    %667 = vector.shape_cast %666 : vector<2x16xf32> to vector<2x1x16xf32>
    %c0_176 = arith.constant 0 : index
    %c3_177 = arith.constant 3 : index
    %c0_178 = arith.constant 0 : index
    %668 = vector.load %arg22[%c0_176, %c3_177, %c0_178] : memref<2x8x16xf32, #tpu.memory_space<vmem>>, vector<2x1x16xf32>
    tpu.vector_store %arg22[%c0_176, %c3_177, %c0_178], %667 {strides = array<i32>} : memref<2x8x16xf32, #tpu.memory_space<vmem>>, vector<2x1x16xf32>,
    %669 = vector.extract_strided_slice %542 {offsets = [0, 4, 0], sizes = [2, 1, 64], strides = [1, 1, 1]} : vector<2x8x64xf32> to vector<2x1x64xf32>
    %670 = vector.shape_cast %669 : vector<2x1x64xf32> to vector<2x64xf32>
    %cst_179 = arith.constant dense<0.000000e+00> : vector<2x64xf32>
    %671 = tpu.matmul %666, %536, %cst_179 {dimension_numbers = #tpu.dot_dimension_numbers<[1], [0], [0], [1], [0, 0, 1, 1], [], []>} : vector<2x16xf32>, vector<16x64xf32>, vector<2x64xf32> -> vector<2x64xf32>
    %672 = arith.addf %670, %671 : vector<2x64xf32>
    %673 = vector.extract_strided_slice %672 {offsets = [0, 0], sizes = [2, 16], strides = [1, 1]} : vector<2x64xf32> to vector<2x16xf32>
    %674 = arith.negf %673 : vector<2x16xf32>
    %675 = math.exp %674 : vector<2x16xf32>
    %cst_180 = arith.constant 1.000000e+00 : f32
    %676 = vector.broadcast %cst_180 : f32 to vector<2x16xf32>
    %677 = arith.addf %676, %675 : vector<2x16xf32>
    %678 = arith.divf %676, %677 : vector<2x16xf32>
    %679 = vector.extract_strided_slice %672 {offsets = [0, 16], sizes = [2, 16], strides = [1, 1]} : vector<2x64xf32> to vector<2x16xf32>
    %680 = arith.negf %679 : vector<2x16xf32>
    %681 = math.exp %680 : vector<2x16xf32>
    %cst_181 = arith.constant 1.000000e+00 : f32
    %682 = vector.broadcast %cst_181 : f32 to vector<2x16xf32>
    %683 = arith.addf %682, %681 : vector<2x16xf32>
    %684 = arith.divf %682, %683 : vector<2x16xf32>
    %685 = vector.extract_strided_slice %672 {offsets = [0, 32], sizes = [2, 16], strides = [1, 1]} : vector<2x64xf32> to vector<2x16xf32>
    %686 = math.tanh %685 : vector<2x16xf32>
    %687 = vector.extract_strided_slice %672 {offsets = [0, 48], sizes = [2, 16], strides = [1, 1]} : vector<2x64xf32> to vector<2x16xf32>
    %688 = arith.negf %687 : vector<2x16xf32>
    %689 = math.exp %688 : vector<2x16xf32>
    %cst_182 = arith.constant 1.000000e+00 : f32
    %690 = vector.broadcast %cst_182 : f32 to vector<2x16xf32>
    %691 = arith.addf %690, %689 : vector<2x16xf32>
    %692 = arith.divf %690, %691 : vector<2x16xf32>
    %693 = arith.mulf %684, %664 : vector<2x16xf32>
    %694 = arith.mulf %678, %686 : vector<2x16xf32>
    %695 = arith.addf %693, %694 : vector<2x16xf32>
    %696 = math.tanh %695 : vector<2x16xf32>
    %697 = arith.mulf %692, %696 : vector<2x16xf32>
    %698 = vector.shape_cast %697 : vector<2x16xf32> to vector<2x1x16xf32>
    %c0_183 = arith.constant 0 : index
    %c4_184 = arith.constant 4 : index
    %c0_185 = arith.constant 0 : index
    %699 = vector.load %arg22[%c0_183, %c4_184, %c0_185] : memref<2x8x16xf32, #tpu.memory_space<vmem>>, vector<2x1x16xf32>
    tpu.vector_store %arg22[%c0_183, %c4_184, %c0_185], %698 {strides = array<i32>} : memref<2x8x16xf32, #tpu.memory_space<vmem>>, vector<2x1x16xf32>,
    %700 = vector.extract_strided_slice %542 {offsets = [0, 5, 0], sizes = [2, 1, 64], strides = [1, 1, 1]} : vector<2x8x64xf32> to vector<2x1x64xf32>
    %701 = vector.shape_cast %700 : vector<2x1x64xf32> to vector<2x64xf32>
    %cst_186 = arith.constant dense<0.000000e+00> : vector<2x64xf32>
    %702 = tpu.matmul %697, %536, %cst_186 {dimension_numbers = #tpu.dot_dimension_numbers<[1], [0], [0], [1], [0, 0, 1, 1], [], []>} : vector<2x16xf32>, vector<16x64xf32>, vector<2x64xf32> -> vector<2x64xf32>
    %703 = arith.addf %701, %702 : vector<2x64xf32>
    %704 = vector.extract_strided_slice %703 {offsets = [0, 0], sizes = [2, 16], strides = [1, 1]} : vector<2x64xf32> to vector<2x16xf32>
    %705 = arith.negf %704 : vector<2x16xf32>
    %706 = math.exp %705 : vector<2x16xf32>
    %cst_187 = arith.constant 1.000000e+00 : f32
    %707 = vector.broadcast %cst_187 : f32 to vector<2x16xf32>
    %708 = arith.addf %707, %706 : vector<2x16xf32>
    %709 = arith.divf %707, %708 : vector<2x16xf32>
    %710 = vector.extract_strided_slice %703 {offsets = [0, 16], sizes = [2, 16], strides = [1, 1]} : vector<2x64xf32> to vector<2x16xf32>
    %711 = arith.negf %710 : vector<2x16xf32>
    %712 = math.exp %711 : vector<2x16xf32>
    %cst_188 = arith.constant 1.000000e+00 : f32
    %713 = vector.broadcast %cst_188 : f32 to vector<2x16xf32>
    %714 = arith.addf %713, %712 : vector<2x16xf32>
    %715 = arith.divf %713, %714 : vector<2x16xf32>
    %716 = vector.extract_strided_slice %703 {offsets = [0, 32], sizes = [2, 16], strides = [1, 1]} : vector<2x64xf32> to vector<2x16xf32>
    %717 = math.tanh %716 : vector<2x16xf32>
    %718 = vector.extract_strided_slice %703 {offsets = [0, 48], sizes = [2, 16], strides = [1, 1]} : vector<2x64xf32> to vector<2x16xf32>
    %719 = arith.negf %718 : vector<2x16xf32>
    %720 = math.exp %719 : vector<2x16xf32>
    %cst_189 = arith.constant 1.000000e+00 : f32
    %721 = vector.broadcast %cst_189 : f32 to vector<2x16xf32>
    %722 = arith.addf %721, %720 : vector<2x16xf32>
    %723 = arith.divf %721, %722 : vector<2x16xf32>
    %724 = arith.mulf %715, %695 : vector<2x16xf32>
    %725 = arith.mulf %709, %717 : vector<2x16xf32>
    %726 = arith.addf %724, %725 : vector<2x16xf32>
    %727 = math.tanh %726 : vector<2x16xf32>
    %728 = arith.mulf %723, %727 : vector<2x16xf32>
    %729 = vector.shape_cast %728 : vector<2x16xf32> to vector<2x1x16xf32>
    %c0_190 = arith.constant 0 : index
    %c5_191 = arith.constant 5 : index
    %c0_192 = arith.constant 0 : index
    %730 = vector.load %arg22[%c0_190, %c5_191, %c0_192] : memref<2x8x16xf32, #tpu.memory_space<vmem>>, vector<2x1x16xf32>
    tpu.vector_store %arg22[%c0_190, %c5_191, %c0_192], %729 {strides = array<i32>} : memref<2x8x16xf32, #tpu.memory_space<vmem>>, vector<2x1x16xf32>,
    %731 = vector.extract_strided_slice %542 {offsets = [0, 6, 0], sizes = [2, 1, 64], strides = [1, 1, 1]} : vector<2x8x64xf32> to vector<2x1x64xf32>
    %732 = vector.shape_cast %731 : vector<2x1x64xf32> to vector<2x64xf32>
    %cst_193 = arith.constant dense<0.000000e+00> : vector<2x64xf32>
    %733 = tpu.matmul %728, %536, %cst_193 {dimension_numbers = #tpu.dot_dimension_numbers<[1], [0], [0], [1], [0, 0, 1, 1], [], []>} : vector<2x16xf32>, vector<16x64xf32>, vector<2x64xf32> -> vector<2x64xf32>
    %734 = arith.addf %732, %733 : vector<2x64xf32>
    %735 = vector.extract_strided_slice %734 {offsets = [0, 0], sizes = [2, 16], strides = [1, 1]} : vector<2x64xf32> to vector<2x16xf32>
    %736 = arith.negf %735 : vector<2x16xf32>
    %737 = math.exp %736 : vector<2x16xf32>
    %cst_194 = arith.constant 1.000000e+00 : f32
    %738 = vector.broadcast %cst_194 : f32 to vector<2x16xf32>
    %739 = arith.addf %738, %737 : vector<2x16xf32>
    %740 = arith.divf %738, %739 : vector<2x16xf32>
    %741 = vector.extract_strided_slice %734 {offsets = [0, 16], sizes = [2, 16], strides = [1, 1]} : vector<2x64xf32> to vector<2x16xf32>
    %742 = arith.negf %741 : vector<2x16xf32>
    %743 = math.exp %742 : vector<2x16xf32>
    %cst_195 = arith.constant 1.000000e+00 : f32
    %744 = vector.broadcast %cst_195 : f32 to vector<2x16xf32>
    %745 = arith.addf %744, %743 : vector<2x16xf32>
    %746 = arith.divf %744, %745 : vector<2x16xf32>
    %747 = vector.extract_strided_slice %734 {offsets = [0, 32], sizes = [2, 16], strides = [1, 1]} : vector<2x64xf32> to vector<2x16xf32>
    %748 = math.tanh %747 : vector<2x16xf32>
    %749 = vector.extract_strided_slice %734 {offsets = [0, 48], sizes = [2, 16], strides = [1, 1]} : vector<2x64xf32> to vector<2x16xf32>
    %750 = arith.negf %749 : vector<2x16xf32>
    %751 = math.exp %750 : vector<2x16xf32>
    %cst_196 = arith.constant 1.000000e+00 : f32
    %752 = vector.broadcast %cst_196 : f32 to vector<2x16xf32>
    %753 = arith.addf %752, %751 : vector<2x16xf32>
    %754 = arith.divf %752, %753 : vector<2x16xf32>
    %755 = arith.mulf %746, %726 : vector<2x16xf32>
    %756 = arith.mulf %740, %748 : vector<2x16xf32>
    %757 = arith.addf %755, %756 : vector<2x16xf32>
    %758 = math.tanh %757 : vector<2x16xf32>
    %759 = arith.mulf %754, %758 : vector<2x16xf32>
    %760 = vector.shape_cast %759 : vector<2x16xf32> to vector<2x1x16xf32>
    %c0_197 = arith.constant 0 : index
    %c6_198 = arith.constant 6 : index
    %c0_199 = arith.constant 0 : index
    %761 = vector.load %arg22[%c0_197, %c6_198, %c0_199] : memref<2x8x16xf32, #tpu.memory_space<vmem>>, vector<2x1x16xf32>
    tpu.vector_store %arg22[%c0_197, %c6_198, %c0_199], %760 {strides = array<i32>} : memref<2x8x16xf32, #tpu.memory_space<vmem>>, vector<2x1x16xf32>,
    %762 = vector.extract_strided_slice %542 {offsets = [0, 7, 0], sizes = [2, 1, 64], strides = [1, 1, 1]} : vector<2x8x64xf32> to vector<2x1x64xf32>
    %763 = vector.shape_cast %762 : vector<2x1x64xf32> to vector<2x64xf32>
    %cst_200 = arith.constant dense<0.000000e+00> : vector<2x64xf32>
    %764 = tpu.matmul %759, %536, %cst_200 {dimension_numbers = #tpu.dot_dimension_numbers<[1], [0], [0], [1], [0, 0, 1, 1], [], []>} : vector<2x16xf32>, vector<16x64xf32>, vector<2x64xf32> -> vector<2x64xf32>
    %765 = arith.addf %763, %764 : vector<2x64xf32>
    %766 = vector.extract_strided_slice %765 {offsets = [0, 0], sizes = [2, 16], strides = [1, 1]} : vector<2x64xf32> to vector<2x16xf32>
    %767 = arith.negf %766 : vector<2x16xf32>
    %768 = math.exp %767 : vector<2x16xf32>
    %cst_201 = arith.constant 1.000000e+00 : f32
    %769 = vector.broadcast %cst_201 : f32 to vector<2x16xf32>
    %770 = arith.addf %769, %768 : vector<2x16xf32>
    %771 = arith.divf %769, %770 : vector<2x16xf32>
    %772 = vector.extract_strided_slice %765 {offsets = [0, 16], sizes = [2, 16], strides = [1, 1]} : vector<2x64xf32> to vector<2x16xf32>
    %773 = arith.negf %772 : vector<2x16xf32>
    %774 = math.exp %773 : vector<2x16xf32>
    %cst_202 = arith.constant 1.000000e+00 : f32
    %775 = vector.broadcast %cst_202 : f32 to vector<2x16xf32>
    %776 = arith.addf %775, %774 : vector<2x16xf32>
    %777 = arith.divf %775, %776 : vector<2x16xf32>
    %778 = vector.extract_strided_slice %765 {offsets = [0, 32], sizes = [2, 16], strides = [1, 1]} : vector<2x64xf32> to vector<2x16xf32>
    %779 = math.tanh %778 : vector<2x16xf32>
    %780 = vector.extract_strided_slice %765 {offsets = [0, 48], sizes = [2, 16], strides = [1, 1]} : vector<2x64xf32> to vector<2x16xf32>
    %781 = arith.negf %780 : vector<2x16xf32>
    %782 = math.exp %781 : vector<2x16xf32>
    %cst_203 = arith.constant 1.000000e+00 : f32
    %783 = vector.broadcast %cst_203 : f32 to vector<2x16xf32>
    %784 = arith.addf %783, %782 : vector<2x16xf32>
    %785 = arith.divf %783, %784 : vector<2x16xf32>
    %786 = arith.mulf %777, %757 : vector<2x16xf32>
    %787 = arith.mulf %771, %779 : vector<2x16xf32>
    %788 = arith.addf %786, %787 : vector<2x16xf32>
    %789 = math.tanh %788 : vector<2x16xf32>
    %790 = arith.mulf %785, %789 : vector<2x16xf32>
    %791 = vector.shape_cast %790 : vector<2x16xf32> to vector<2x1x16xf32>
    %c0_204 = arith.constant 0 : index
    %c7_205 = arith.constant 7 : index
    %c0_206 = arith.constant 0 : index
    %792 = vector.load %arg22[%c0_204, %c7_205, %c0_206] : memref<2x8x16xf32, #tpu.memory_space<vmem>>, vector<2x1x16xf32>
    tpu.vector_store %arg22[%c0_204, %c7_205, %c0_206], %791 {strides = array<i32>} : memref<2x8x16xf32, #tpu.memory_space<vmem>>, vector<2x1x16xf32>,
    %c0_207 = arith.constant 0 : index
    %c0_208 = arith.constant 0 : index
    %c0_209 = arith.constant 0 : index
    %793 = vector.load %arg22[%c0_207, %c0_208, %c0_209] : memref<2x8x16xf32, #tpu.memory_space<vmem>>, vector<2x8x16xf32>
    %c0_210 = arith.constant 0 : index
    %c0_211 = arith.constant 0 : index
    %794 = vector.load %arg14[%c0_210, %c0_211] : memref<16x64xf32, #tpu.memory_space<vmem>>, vector<16x64xf32>
    %c0_212 = arith.constant 0 : index
    %c0_213 = arith.constant 0 : index
    %795 = vector.load %arg15[%c0_212, %c0_213] : memref<16x64xf32, #tpu.memory_space<vmem>>, vector<16x64xf32>
    %c0_214 = arith.constant 0 : index
    %c0_215 = arith.constant 0 : index
    %796 = vector.load %arg16[%c0_214, %c0_215] : memref<1x64xf32, #tpu.memory_space<vmem>>, vector<1x64xf32>
    %797 = vector.shape_cast %793 : vector<2x8x16xf32> to vector<16x16xf32>
    %cst_216 = arith.constant dense<0.000000e+00> : vector<16x64xf32>
    %798 = tpu.matmul %797, %794, %cst_216 {dimension_numbers = #tpu.dot_dimension_numbers<[1], [0], [0], [1], [0, 0, 1, 1], [], []>} : vector<16x16xf32>, vector<16x64xf32>, vector<16x64xf32> -> vector<16x64xf32>
    %799 = vector.broadcast %796 : vector<1x64xf32> to vector<16x64xf32>
    %800 = arith.addf %798, %799 : vector<16x64xf32>
    %801 = vector.shape_cast %800 : vector<16x64xf32> to vector<2x8x64xf32>
    %cst_217 = arith.constant 0.000000e+00 : f32
    %802 = vector.broadcast %cst_217 : f32 to vector<2x16xf32>
    %cst_218 = arith.constant 0.000000e+00 : f32
    %803 = vector.broadcast %cst_218 : f32 to vector<2x16xf32>
    %804 = vector.extract_strided_slice %801 {offsets = [0, 0, 0], sizes = [2, 1, 64], strides = [1, 1, 1]} : vector<2x8x64xf32> to vector<2x1x64xf32>
    %805 = vector.shape_cast %804 : vector<2x1x64xf32> to vector<2x64xf32>
    %cst_219 = arith.constant dense<0.000000e+00> : vector<2x64xf32>
    %806 = tpu.matmul %802, %795, %cst_219 {dimension_numbers = #tpu.dot_dimension_numbers<[1], [0], [0], [1], [0, 0, 1, 1], [], []>} : vector<2x16xf32>, vector<16x64xf32>, vector<2x64xf32> -> vector<2x64xf32>
    %807 = arith.addf %805, %806 : vector<2x64xf32>
    %808 = vector.extract_strided_slice %807 {offsets = [0, 0], sizes = [2, 16], strides = [1, 1]} : vector<2x64xf32> to vector<2x16xf32>
    %809 = arith.negf %808 : vector<2x16xf32>
    %810 = math.exp %809 : vector<2x16xf32>
    %cst_220 = arith.constant 1.000000e+00 : f32
    %811 = vector.broadcast %cst_220 : f32 to vector<2x16xf32>
    %812 = arith.addf %811, %810 : vector<2x16xf32>
    %813 = arith.divf %811, %812 : vector<2x16xf32>
    %814 = vector.extract_strided_slice %807 {offsets = [0, 16], sizes = [2, 16], strides = [1, 1]} : vector<2x64xf32> to vector<2x16xf32>
    %815 = arith.negf %814 : vector<2x16xf32>
    %816 = math.exp %815 : vector<2x16xf32>
    %cst_221 = arith.constant 1.000000e+00 : f32
    %817 = vector.broadcast %cst_221 : f32 to vector<2x16xf32>
    %818 = arith.addf %817, %816 : vector<2x16xf32>
    %819 = arith.divf %817, %818 : vector<2x16xf32>
    %820 = vector.extract_strided_slice %807 {offsets = [0, 32], sizes = [2, 16], strides = [1, 1]} : vector<2x64xf32> to vector<2x16xf32>
    %821 = math.tanh %820 : vector<2x16xf32>
    %822 = vector.extract_strided_slice %807 {offsets = [0, 48], sizes = [2, 16], strides = [1, 1]} : vector<2x64xf32> to vector<2x16xf32>
    %823 = arith.negf %822 : vector<2x16xf32>
    %824 = math.exp %823 : vector<2x16xf32>
    %cst_222 = arith.constant 1.000000e+00 : f32
    %825 = vector.broadcast %cst_222 : f32 to vector<2x16xf32>
    %826 = arith.addf %825, %824 : vector<2x16xf32>
    %827 = arith.divf %825, %826 : vector<2x16xf32>
    %828 = arith.mulf %819, %803 : vector<2x16xf32>
    %829 = arith.mulf %813, %821 : vector<2x16xf32>
    %830 = arith.addf %828, %829 : vector<2x16xf32>
    %831 = math.tanh %830 : vector<2x16xf32>
    %832 = arith.mulf %827, %831 : vector<2x16xf32>
    %833 = vector.shape_cast %832 : vector<2x16xf32> to vector<2x1x16xf32>
    %c0_223 = arith.constant 0 : index
    %c0_224 = arith.constant 0 : index
    %c0_225 = arith.constant 0 : index
    %834 = vector.load %arg23[%c0_223, %c0_224, %c0_225] : memref<2x8x16xf32, #tpu.memory_space<vmem>>, vector<2x1x16xf32>
    tpu.vector_store %arg23[%c0_223, %c0_224, %c0_225], %833 {strides = array<i32>} : memref<2x8x16xf32, #tpu.memory_space<vmem>>, vector<2x1x16xf32>,
    %835 = vector.extract_strided_slice %801 {offsets = [0, 1, 0], sizes = [2, 1, 64], strides = [1, 1, 1]} : vector<2x8x64xf32> to vector<2x1x64xf32>
    %836 = vector.shape_cast %835 : vector<2x1x64xf32> to vector<2x64xf32>
    %cst_226 = arith.constant dense<0.000000e+00> : vector<2x64xf32>
    %837 = tpu.matmul %832, %795, %cst_226 {dimension_numbers = #tpu.dot_dimension_numbers<[1], [0], [0], [1], [0, 0, 1, 1], [], []>} : vector<2x16xf32>, vector<16x64xf32>, vector<2x64xf32> -> vector<2x64xf32>
    %838 = arith.addf %836, %837 : vector<2x64xf32>
    %839 = vector.extract_strided_slice %838 {offsets = [0, 0], sizes = [2, 16], strides = [1, 1]} : vector<2x64xf32> to vector<2x16xf32>
    %840 = arith.negf %839 : vector<2x16xf32>
    %841 = math.exp %840 : vector<2x16xf32>
    %cst_227 = arith.constant 1.000000e+00 : f32
    %842 = vector.broadcast %cst_227 : f32 to vector<2x16xf32>
    %843 = arith.addf %842, %841 : vector<2x16xf32>
    %844 = arith.divf %842, %843 : vector<2x16xf32>
    %845 = vector.extract_strided_slice %838 {offsets = [0, 16], sizes = [2, 16], strides = [1, 1]} : vector<2x64xf32> to vector<2x16xf32>
    %846 = arith.negf %845 : vector<2x16xf32>
    %847 = math.exp %846 : vector<2x16xf32>
    %cst_228 = arith.constant 1.000000e+00 : f32
    %848 = vector.broadcast %cst_228 : f32 to vector<2x16xf32>
    %849 = arith.addf %848, %847 : vector<2x16xf32>
    %850 = arith.divf %848, %849 : vector<2x16xf32>
    %851 = vector.extract_strided_slice %838 {offsets = [0, 32], sizes = [2, 16], strides = [1, 1]} : vector<2x64xf32> to vector<2x16xf32>
    %852 = math.tanh %851 : vector<2x16xf32>
    %853 = vector.extract_strided_slice %838 {offsets = [0, 48], sizes = [2, 16], strides = [1, 1]} : vector<2x64xf32> to vector<2x16xf32>
    %854 = arith.negf %853 : vector<2x16xf32>
    %855 = math.exp %854 : vector<2x16xf32>
    %cst_229 = arith.constant 1.000000e+00 : f32
    %856 = vector.broadcast %cst_229 : f32 to vector<2x16xf32>
    %857 = arith.addf %856, %855 : vector<2x16xf32>
    %858 = arith.divf %856, %857 : vector<2x16xf32>
    %859 = arith.mulf %850, %830 : vector<2x16xf32>
    %860 = arith.mulf %844, %852 : vector<2x16xf32>
    %861 = arith.addf %859, %860 : vector<2x16xf32>
    %862 = math.tanh %861 : vector<2x16xf32>
    %863 = arith.mulf %858, %862 : vector<2x16xf32>
    %864 = vector.shape_cast %863 : vector<2x16xf32> to vector<2x1x16xf32>
    %c0_230 = arith.constant 0 : index
    %c1_231 = arith.constant 1 : index
    %c0_232 = arith.constant 0 : index
    %865 = vector.load %arg23[%c0_230, %c1_231, %c0_232] : memref<2x8x16xf32, #tpu.memory_space<vmem>>, vector<2x1x16xf32>
    tpu.vector_store %arg23[%c0_230, %c1_231, %c0_232], %864 {strides = array<i32>} : memref<2x8x16xf32, #tpu.memory_space<vmem>>, vector<2x1x16xf32>,
    %866 = vector.extract_strided_slice %801 {offsets = [0, 2, 0], sizes = [2, 1, 64], strides = [1, 1, 1]} : vector<2x8x64xf32> to vector<2x1x64xf32>
    %867 = vector.shape_cast %866 : vector<2x1x64xf32> to vector<2x64xf32>
    %cst_233 = arith.constant dense<0.000000e+00> : vector<2x64xf32>
    %868 = tpu.matmul %863, %795, %cst_233 {dimension_numbers = #tpu.dot_dimension_numbers<[1], [0], [0], [1], [0, 0, 1, 1], [], []>} : vector<2x16xf32>, vector<16x64xf32>, vector<2x64xf32> -> vector<2x64xf32>
    %869 = arith.addf %867, %868 : vector<2x64xf32>
    %870 = vector.extract_strided_slice %869 {offsets = [0, 0], sizes = [2, 16], strides = [1, 1]} : vector<2x64xf32> to vector<2x16xf32>
    %871 = arith.negf %870 : vector<2x16xf32>
    %872 = math.exp %871 : vector<2x16xf32>
    %cst_234 = arith.constant 1.000000e+00 : f32
    %873 = vector.broadcast %cst_234 : f32 to vector<2x16xf32>
    %874 = arith.addf %873, %872 : vector<2x16xf32>
    %875 = arith.divf %873, %874 : vector<2x16xf32>
    %876 = vector.extract_strided_slice %869 {offsets = [0, 16], sizes = [2, 16], strides = [1, 1]} : vector<2x64xf32> to vector<2x16xf32>
    %877 = arith.negf %876 : vector<2x16xf32>
    %878 = math.exp %877 : vector<2x16xf32>
    %cst_235 = arith.constant 1.000000e+00 : f32
    %879 = vector.broadcast %cst_235 : f32 to vector<2x16xf32>
    %880 = arith.addf %879, %878 : vector<2x16xf32>
    %881 = arith.divf %879, %880 : vector<2x16xf32>
    %882 = vector.extract_strided_slice %869 {offsets = [0, 32], sizes = [2, 16], strides = [1, 1]} : vector<2x64xf32> to vector<2x16xf32>
    %883 = math.tanh %882 : vector<2x16xf32>
    %884 = vector.extract_strided_slice %869 {offsets = [0, 48], sizes = [2, 16], strides = [1, 1]} : vector<2x64xf32> to vector<2x16xf32>
    %885 = arith.negf %884 : vector<2x16xf32>
    %886 = math.exp %885 : vector<2x16xf32>
    %cst_236 = arith.constant 1.000000e+00 : f32
    %887 = vector.broadcast %cst_236 : f32 to vector<2x16xf32>
    %888 = arith.addf %887, %886 : vector<2x16xf32>
    %889 = arith.divf %887, %888 : vector<2x16xf32>
    %890 = arith.mulf %881, %861 : vector<2x16xf32>
    %891 = arith.mulf %875, %883 : vector<2x16xf32>
    %892 = arith.addf %890, %891 : vector<2x16xf32>
    %893 = math.tanh %892 : vector<2x16xf32>
    %894 = arith.mulf %889, %893 : vector<2x16xf32>
    %895 = vector.shape_cast %894 : vector<2x16xf32> to vector<2x1x16xf32>
    %c0_237 = arith.constant 0 : index
    %c2_238 = arith.constant 2 : index
    %c0_239 = arith.constant 0 : index
    %896 = vector.load %arg23[%c0_237, %c2_238, %c0_239] : memref<2x8x16xf32, #tpu.memory_space<vmem>>, vector<2x1x16xf32>
    tpu.vector_store %arg23[%c0_237, %c2_238, %c0_239], %895 {strides = array<i32>} : memref<2x8x16xf32, #tpu.memory_space<vmem>>, vector<2x1x16xf32>,
    %897 = vector.extract_strided_slice %801 {offsets = [0, 3, 0], sizes = [2, 1, 64], strides = [1, 1, 1]} : vector<2x8x64xf32> to vector<2x1x64xf32>
    %898 = vector.shape_cast %897 : vector<2x1x64xf32> to vector<2x64xf32>
    %cst_240 = arith.constant dense<0.000000e+00> : vector<2x64xf32>
    %899 = tpu.matmul %894, %795, %cst_240 {dimension_numbers = #tpu.dot_dimension_numbers<[1], [0], [0], [1], [0, 0, 1, 1], [], []>} : vector<2x16xf32>, vector<16x64xf32>, vector<2x64xf32> -> vector<2x64xf32>
    %900 = arith.addf %898, %899 : vector<2x64xf32>
    %901 = vector.extract_strided_slice %900 {offsets = [0, 0], sizes = [2, 16], strides = [1, 1]} : vector<2x64xf32> to vector<2x16xf32>
    %902 = arith.negf %901 : vector<2x16xf32>
    %903 = math.exp %902 : vector<2x16xf32>
    %cst_241 = arith.constant 1.000000e+00 : f32
    %904 = vector.broadcast %cst_241 : f32 to vector<2x16xf32>
    %905 = arith.addf %904, %903 : vector<2x16xf32>
    %906 = arith.divf %904, %905 : vector<2x16xf32>
    %907 = vector.extract_strided_slice %900 {offsets = [0, 16], sizes = [2, 16], strides = [1, 1]} : vector<2x64xf32> to vector<2x16xf32>
    %908 = arith.negf %907 : vector<2x16xf32>
    %909 = math.exp %908 : vector<2x16xf32>
    %cst_242 = arith.constant 1.000000e+00 : f32
    %910 = vector.broadcast %cst_242 : f32 to vector<2x16xf32>
    %911 = arith.addf %910, %909 : vector<2x16xf32>
    %912 = arith.divf %910, %911 : vector<2x16xf32>
    %913 = vector.extract_strided_slice %900 {offsets = [0, 32], sizes = [2, 16], strides = [1, 1]} : vector<2x64xf32> to vector<2x16xf32>
    %914 = math.tanh %913 : vector<2x16xf32>
    %915 = vector.extract_strided_slice %900 {offsets = [0, 48], sizes = [2, 16], strides = [1, 1]} : vector<2x64xf32> to vector<2x16xf32>
    %916 = arith.negf %915 : vector<2x16xf32>
    %917 = math.exp %916 : vector<2x16xf32>
    %cst_243 = arith.constant 1.000000e+00 : f32
    %918 = vector.broadcast %cst_243 : f32 to vector<2x16xf32>
    %919 = arith.addf %918, %917 : vector<2x16xf32>
    %920 = arith.divf %918, %919 : vector<2x16xf32>
    %921 = arith.mulf %912, %892 : vector<2x16xf32>
    %922 = arith.mulf %906, %914 : vector<2x16xf32>
    %923 = arith.addf %921, %922 : vector<2x16xf32>
    %924 = math.tanh %923 : vector<2x16xf32>
    %925 = arith.mulf %920, %924 : vector<2x16xf32>
    %926 = vector.shape_cast %925 : vector<2x16xf32> to vector<2x1x16xf32>
    %c0_244 = arith.constant 0 : index
    %c3_245 = arith.constant 3 : index
    %c0_246 = arith.constant 0 : index
    %927 = vector.load %arg23[%c0_244, %c3_245, %c0_246] : memref<2x8x16xf32, #tpu.memory_space<vmem>>, vector<2x1x16xf32>
    tpu.vector_store %arg23[%c0_244, %c3_245, %c0_246], %926 {strides = array<i32>} : memref<2x8x16xf32, #tpu.memory_space<vmem>>, vector<2x1x16xf32>,
    %928 = vector.extract_strided_slice %801 {offsets = [0, 4, 0], sizes = [2, 1, 64], strides = [1, 1, 1]} : vector<2x8x64xf32> to vector<2x1x64xf32>
    %929 = vector.shape_cast %928 : vector<2x1x64xf32> to vector<2x64xf32>
    %cst_247 = arith.constant dense<0.000000e+00> : vector<2x64xf32>
    %930 = tpu.matmul %925, %795, %cst_247 {dimension_numbers = #tpu.dot_dimension_numbers<[1], [0], [0], [1], [0, 0, 1, 1], [], []>} : vector<2x16xf32>, vector<16x64xf32>, vector<2x64xf32> -> vector<2x64xf32>
    %931 = arith.addf %929, %930 : vector<2x64xf32>
    %932 = vector.extract_strided_slice %931 {offsets = [0, 0], sizes = [2, 16], strides = [1, 1]} : vector<2x64xf32> to vector<2x16xf32>
    %933 = arith.negf %932 : vector<2x16xf32>
    %934 = math.exp %933 : vector<2x16xf32>
    %cst_248 = arith.constant 1.000000e+00 : f32
    %935 = vector.broadcast %cst_248 : f32 to vector<2x16xf32>
    %936 = arith.addf %935, %934 : vector<2x16xf32>
    %937 = arith.divf %935, %936 : vector<2x16xf32>
    %938 = vector.extract_strided_slice %931 {offsets = [0, 16], sizes = [2, 16], strides = [1, 1]} : vector<2x64xf32> to vector<2x16xf32>
    %939 = arith.negf %938 : vector<2x16xf32>
    %940 = math.exp %939 : vector<2x16xf32>
    %cst_249 = arith.constant 1.000000e+00 : f32
    %941 = vector.broadcast %cst_249 : f32 to vector<2x16xf32>
    %942 = arith.addf %941, %940 : vector<2x16xf32>
    %943 = arith.divf %941, %942 : vector<2x16xf32>
    %944 = vector.extract_strided_slice %931 {offsets = [0, 32], sizes = [2, 16], strides = [1, 1]} : vector<2x64xf32> to vector<2x16xf32>
    %945 = math.tanh %944 : vector<2x16xf32>
    %946 = vector.extract_strided_slice %931 {offsets = [0, 48], sizes = [2, 16], strides = [1, 1]} : vector<2x64xf32> to vector<2x16xf32>
    %947 = arith.negf %946 : vector<2x16xf32>
    %948 = math.exp %947 : vector<2x16xf32>
    %cst_250 = arith.constant 1.000000e+00 : f32
    %949 = vector.broadcast %cst_250 : f32 to vector<2x16xf32>
    %950 = arith.addf %949, %948 : vector<2x16xf32>
    %951 = arith.divf %949, %950 : vector<2x16xf32>
    %952 = arith.mulf %943, %923 : vector<2x16xf32>
    %953 = arith.mulf %937, %945 : vector<2x16xf32>
    %954 = arith.addf %952, %953 : vector<2x16xf32>
    %955 = math.tanh %954 : vector<2x16xf32>
    %956 = arith.mulf %951, %955 : vector<2x16xf32>
    %957 = vector.shape_cast %956 : vector<2x16xf32> to vector<2x1x16xf32>
    %c0_251 = arith.constant 0 : index
    %c4_252 = arith.constant 4 : index
    %c0_253 = arith.constant 0 : index
    %958 = vector.load %arg23[%c0_251, %c4_252, %c0_253] : memref<2x8x16xf32, #tpu.memory_space<vmem>>, vector<2x1x16xf32>
    tpu.vector_store %arg23[%c0_251, %c4_252, %c0_253], %957 {strides = array<i32>} : memref<2x8x16xf32, #tpu.memory_space<vmem>>, vector<2x1x16xf32>,
    %959 = vector.extract_strided_slice %801 {offsets = [0, 5, 0], sizes = [2, 1, 64], strides = [1, 1, 1]} : vector<2x8x64xf32> to vector<2x1x64xf32>
    %960 = vector.shape_cast %959 : vector<2x1x64xf32> to vector<2x64xf32>
    %cst_254 = arith.constant dense<0.000000e+00> : vector<2x64xf32>
    %961 = tpu.matmul %956, %795, %cst_254 {dimension_numbers = #tpu.dot_dimension_numbers<[1], [0], [0], [1], [0, 0, 1, 1], [], []>} : vector<2x16xf32>, vector<16x64xf32>, vector<2x64xf32> -> vector<2x64xf32>
    %962 = arith.addf %960, %961 : vector<2x64xf32>
    %963 = vector.extract_strided_slice %962 {offsets = [0, 0], sizes = [2, 16], strides = [1, 1]} : vector<2x64xf32> to vector<2x16xf32>
    %964 = arith.negf %963 : vector<2x16xf32>
    %965 = math.exp %964 : vector<2x16xf32>
    %cst_255 = arith.constant 1.000000e+00 : f32
    %966 = vector.broadcast %cst_255 : f32 to vector<2x16xf32>
    %967 = arith.addf %966, %965 : vector<2x16xf32>
    %968 = arith.divf %966, %967 : vector<2x16xf32>
    %969 = vector.extract_strided_slice %962 {offsets = [0, 16], sizes = [2, 16], strides = [1, 1]} : vector<2x64xf32> to vector<2x16xf32>
    %970 = arith.negf %969 : vector<2x16xf32>
    %971 = math.exp %970 : vector<2x16xf32>
    %cst_256 = arith.constant 1.000000e+00 : f32
    %972 = vector.broadcast %cst_256 : f32 to vector<2x16xf32>
    %973 = arith.addf %972, %971 : vector<2x16xf32>
    %974 = arith.divf %972, %973 : vector<2x16xf32>
    %975 = vector.extract_strided_slice %962 {offsets = [0, 32], sizes = [2, 16], strides = [1, 1]} : vector<2x64xf32> to vector<2x16xf32>
    %976 = math.tanh %975 : vector<2x16xf32>
    %977 = vector.extract_strided_slice %962 {offsets = [0, 48], sizes = [2, 16], strides = [1, 1]} : vector<2x64xf32> to vector<2x16xf32>
    %978 = arith.negf %977 : vector<2x16xf32>
    %979 = math.exp %978 : vector<2x16xf32>
    %cst_257 = arith.constant 1.000000e+00 : f32
    %980 = vector.broadcast %cst_257 : f32 to vector<2x16xf32>
    %981 = arith.addf %980, %979 : vector<2x16xf32>
    %982 = arith.divf %980, %981 : vector<2x16xf32>
    %983 = arith.mulf %974, %954 : vector<2x16xf32>
    %984 = arith.mulf %968, %976 : vector<2x16xf32>
    %985 = arith.addf %983, %984 : vector<2x16xf32>
    %986 = math.tanh %985 : vector<2x16xf32>
    %987 = arith.mulf %982, %986 : vector<2x16xf32>
    %988 = vector.shape_cast %987 : vector<2x16xf32> to vector<2x1x16xf32>
    %c0_258 = arith.constant 0 : index
    %c5_259 = arith.constant 5 : index
    %c0_260 = arith.constant 0 : index
    %989 = vector.load %arg23[%c0_258, %c5_259, %c0_260] : memref<2x8x16xf32, #tpu.memory_space<vmem>>, vector<2x1x16xf32>
    tpu.vector_store %arg23[%c0_258, %c5_259, %c0_260], %988 {strides = array<i32>} : memref<2x8x16xf32, #tpu.memory_space<vmem>>, vector<2x1x16xf32>,
    %990 = vector.extract_strided_slice %801 {offsets = [0, 6, 0], sizes = [2, 1, 64], strides = [1, 1, 1]} : vector<2x8x64xf32> to vector<2x1x64xf32>
    %991 = vector.shape_cast %990 : vector<2x1x64xf32> to vector<2x64xf32>
    %cst_261 = arith.constant dense<0.000000e+00> : vector<2x64xf32>
    %992 = tpu.matmul %987, %795, %cst_261 {dimension_numbers = #tpu.dot_dimension_numbers<[1], [0], [0], [1], [0, 0, 1, 1], [], []>} : vector<2x16xf32>, vector<16x64xf32>, vector<2x64xf32> -> vector<2x64xf32>
    %993 = arith.addf %991, %992 : vector<2x64xf32>
    %994 = vector.extract_strided_slice %993 {offsets = [0, 0], sizes = [2, 16], strides = [1, 1]} : vector<2x64xf32> to vector<2x16xf32>
    %995 = arith.negf %994 : vector<2x16xf32>
    %996 = math.exp %995 : vector<2x16xf32>
    %cst_262 = arith.constant 1.000000e+00 : f32
    %997 = vector.broadcast %cst_262 : f32 to vector<2x16xf32>
    %998 = arith.addf %997, %996 : vector<2x16xf32>
    %999 = arith.divf %997, %998 : vector<2x16xf32>
    %1000 = vector.extract_strided_slice %993 {offsets = [0, 16], sizes = [2, 16], strides = [1, 1]} : vector<2x64xf32> to vector<2x16xf32>
    %1001 = arith.negf %1000 : vector<2x16xf32>
    %1002 = math.exp %1001 : vector<2x16xf32>
    %cst_263 = arith.constant 1.000000e+00 : f32
    %1003 = vector.broadcast %cst_263 : f32 to vector<2x16xf32>
    %1004 = arith.addf %1003, %1002 : vector<2x16xf32>
    %1005 = arith.divf %1003, %1004 : vector<2x16xf32>
    %1006 = vector.extract_strided_slice %993 {offsets = [0, 32], sizes = [2, 16], strides = [1, 1]} : vector<2x64xf32> to vector<2x16xf32>
    %1007 = math.tanh %1006 : vector<2x16xf32>
    %1008 = vector.extract_strided_slice %993 {offsets = [0, 48], sizes = [2, 16], strides = [1, 1]} : vector<2x64xf32> to vector<2x16xf32>
    %1009 = arith.negf %1008 : vector<2x16xf32>
    %1010 = math.exp %1009 : vector<2x16xf32>
    %cst_264 = arith.constant 1.000000e+00 : f32
    %1011 = vector.broadcast %cst_264 : f32 to vector<2x16xf32>
    %1012 = arith.addf %1011, %1010 : vector<2x16xf32>
    %1013 = arith.divf %1011, %1012 : vector<2x16xf32>
    %1014 = arith.mulf %1005, %985 : vector<2x16xf32>
    %1015 = arith.mulf %999, %1007 : vector<2x16xf32>
    %1016 = arith.addf %1014, %1015 : vector<2x16xf32>
    %1017 = math.tanh %1016 : vector<2x16xf32>
    %1018 = arith.mulf %1013, %1017 : vector<2x16xf32>
    %1019 = vector.shape_cast %1018 : vector<2x16xf32> to vector<2x1x16xf32>
    %c0_265 = arith.constant 0 : index
    %c6_266 = arith.constant 6 : index
    %c0_267 = arith.constant 0 : index
    %1020 = vector.load %arg23[%c0_265, %c6_266, %c0_267] : memref<2x8x16xf32, #tpu.memory_space<vmem>>, vector<2x1x16xf32>
    tpu.vector_store %arg23[%c0_265, %c6_266, %c0_267], %1019 {strides = array<i32>} : memref<2x8x16xf32, #tpu.memory_space<vmem>>, vector<2x1x16xf32>,
    %1021 = vector.extract_strided_slice %801 {offsets = [0, 7, 0], sizes = [2, 1, 64], strides = [1, 1, 1]} : vector<2x8x64xf32> to vector<2x1x64xf32>
    %1022 = vector.shape_cast %1021 : vector<2x1x64xf32> to vector<2x64xf32>
    %cst_268 = arith.constant dense<0.000000e+00> : vector<2x64xf32>
    %1023 = tpu.matmul %1018, %795, %cst_268 {dimension_numbers = #tpu.dot_dimension_numbers<[1], [0], [0], [1], [0, 0, 1, 1], [], []>} : vector<2x16xf32>, vector<16x64xf32>, vector<2x64xf32> -> vector<2x64xf32>
    %1024 = arith.addf %1022, %1023 : vector<2x64xf32>
    %1025 = vector.extract_strided_slice %1024 {offsets = [0, 0], sizes = [2, 16], strides = [1, 1]} : vector<2x64xf32> to vector<2x16xf32>
    %1026 = arith.negf %1025 : vector<2x16xf32>
    %1027 = math.exp %1026 : vector<2x16xf32>
    %cst_269 = arith.constant 1.000000e+00 : f32
    %1028 = vector.broadcast %cst_269 : f32 to vector<2x16xf32>
    %1029 = arith.addf %1028, %1027 : vector<2x16xf32>
    %1030 = arith.divf %1028, %1029 : vector<2x16xf32>
    %1031 = vector.extract_strided_slice %1024 {offsets = [0, 16], sizes = [2, 16], strides = [1, 1]} : vector<2x64xf32> to vector<2x16xf32>
    %1032 = arith.negf %1031 : vector<2x16xf32>
    %1033 = math.exp %1032 : vector<2x16xf32>
    %cst_270 = arith.constant 1.000000e+00 : f32
    %1034 = vector.broadcast %cst_270 : f32 to vector<2x16xf32>
    %1035 = arith.addf %1034, %1033 : vector<2x16xf32>
    %1036 = arith.divf %1034, %1035 : vector<2x16xf32>
    %1037 = vector.extract_strided_slice %1024 {offsets = [0, 32], sizes = [2, 16], strides = [1, 1]} : vector<2x64xf32> to vector<2x16xf32>
    %1038 = math.tanh %1037 : vector<2x16xf32>
    %1039 = vector.extract_strided_slice %1024 {offsets = [0, 48], sizes = [2, 16], strides = [1, 1]} : vector<2x64xf32> to vector<2x16xf32>
    %1040 = arith.negf %1039 : vector<2x16xf32>
    %1041 = math.exp %1040 : vector<2x16xf32>
    %cst_271 = arith.constant 1.000000e+00 : f32
    %1042 = vector.broadcast %cst_271 : f32 to vector<2x16xf32>
    %1043 = arith.addf %1042, %1041 : vector<2x16xf32>
    %1044 = arith.divf %1042, %1043 : vector<2x16xf32>
    %1045 = arith.mulf %1036, %1016 : vector<2x16xf32>
    %1046 = arith.mulf %1030, %1038 : vector<2x16xf32>
    %1047 = arith.addf %1045, %1046 : vector<2x16xf32>
    %1048 = math.tanh %1047 : vector<2x16xf32>
    %1049 = arith.mulf %1044, %1048 : vector<2x16xf32>
    %1050 = vector.shape_cast %1049 : vector<2x16xf32> to vector<2x1x16xf32>
    %c0_272 = arith.constant 0 : index
    %c7_273 = arith.constant 7 : index
    %c0_274 = arith.constant 0 : index
    %1051 = vector.load %arg23[%c0_272, %c7_273, %c0_274] : memref<2x8x16xf32, #tpu.memory_space<vmem>>, vector<2x1x16xf32>
    tpu.vector_store %arg23[%c0_272, %c7_273, %c0_274], %1050 {strides = array<i32>} : memref<2x8x16xf32, #tpu.memory_space<vmem>>, vector<2x1x16xf32>,
    %c0_275 = arith.constant 0 : index
    %c0_276 = arith.constant 0 : index
    %c0_277 = arith.constant 0 : index
    %1052 = vector.load %arg23[%c0_275, %c0_276, %c0_277] : memref<2x8x16xf32, #tpu.memory_space<vmem>>, vector<2x8x16xf32>
    %1053 = vector.shape_cast %1052 : vector<2x8x16xf32> to vector<16x16xf32>
    %c0_278 = arith.constant 0 : index
    %c0_279 = arith.constant 0 : index
    %1054 = vector.load %arg17[%c0_278, %c0_279] : memref<16x8xf32, #tpu.memory_space<vmem>>, vector<16x8xf32>
    %cst_280 = arith.constant dense<0.000000e+00> : vector<16x8xf32>
    %1055 = tpu.matmul %1053, %1054, %cst_280 {dimension_numbers = #tpu.dot_dimension_numbers<[1], [0], [0], [1], [0, 0, 1, 1], [], []>} : vector<16x16xf32>, vector<16x8xf32>, vector<16x8xf32> -> vector<16x8xf32>
    %c0_281 = arith.constant 0 : index
    %c0_282 = arith.constant 0 : index
    %1056 = vector.load %arg18[%c0_281, %c0_282] : memref<1x8xf32, #tpu.memory_space<vmem>>, vector<1x8xf32>
    %1057 = vector.broadcast %1056 : vector<1x8xf32> to vector<16x8xf32>
    %1058 = arith.addf %1055, %1057 : vector<16x8xf32>
    %1059 = vector.shape_cast %1058 : vector<16x8xf32> to vector<2x8x8xf32>
    %c0_283 = arith.constant 0 : index
    %c0_284 = arith.constant 0 : index
    %c0_285 = arith.constant 0 : index
    %1060 = vector.load %arg19[%c0_283, %c0_284, %c0_285] : memref<2x8x8xf32, #tpu.memory_space<vmem>>, vector<2x8x8xf32>
    tpu.vector_store %arg19[%c0_283, %c0_284, %c0_285], %1059 {strides = array<i32>} : memref<2x8x8xf32, #tpu.memory_space<vmem>>, vector<2x8x8xf32>,
    return
  }
}

</mosaic_0001>

<llo_original>
// kernel: lstm_model_forward.1
$region0: #{lstm_model_forward.1}
  #allocation0 [shape = 'u32[]', space=smem, size = 0x4, offset = 0x4, fixed_abs, tag = 'smem constant byte address 0x4 - core index']
  #allocation1 [shape = 'u32[144,128]{1,0:T(1,128)}', space=vmem, size = 0x12000, scoped, tag = 'internal scratch']
  #allocation2 [shape = 'f32[2,8,32]{2,1,0:T(8,128)}', space=vmem, size = 0x2000, scoped, tag = 'scratch operand']
  #allocation3 [shape = 'f32[2,8,32]{2,1,0:T(8,128)}', space=vmem, size = 0x2000, scoped, tag = 'scratch operand']
  #allocation4 [shape = 'f32[2,8,16]{2,1,0:T(8,128)}', space=vmem, size = 0x2000, scoped, tag = 'scratch operand']
  #allocation5 [shape = 'f32[2,8,16]{2,1,0:T(8,128)}', space=vmem, size = 0x2000, scoped, tag = 'scratch operand']
  %s0 = inlined_call_operand.hbm [shape: f32[2,8,8], index: 0, kind: input, shape index: {}]
  %s1 = inlined_call_operand.hbm [shape: f32[8,128], index: 1, kind: input, shape index: {}]
  %s2 = inlined_call_operand.vmem [shape: f32[32,128], index: 2, kind: input, shape index: {}]
  %s3 = inlined_call_operand.vmem [shape: f32[1,128], index: 3, kind: input, shape index: {}]
  %s4 = inlined_call_operand.vmem [shape: f32[32,128], index: 4, kind: input, shape index: {}]
  %s5 = inlined_call_operand.hbm [shape: f32[32,128], index: 5, kind: input, shape index: {}]
  %s6 = inlined_call_operand.hbm [shape: f32[1,128], index: 6, kind: input, shape index: {}]
  %s7 = inlined_call_operand.vmem [shape: f32[32,16], index: 7, kind: input, shape index: {}]
  %s8 = inlined_call_operand.hbm [shape: f32[1,16], index: 8, kind: input, shape index: {}]
  %s9 = inlined_call_operand.hbm [shape: f32[16,32], index: 9, kind: input, shape index: {}]
  %s10 = inlined_call_operand.hbm [shape: f32[1,32], index: 10, kind: input, shape index: {}]
  %s11 = inlined_call_operand.hbm [shape: f32[32,64], index: 11, kind: input, shape index: {}]
  %s12 = inlined_call_operand.vmem [shape: f32[16,64], index: 12, kind: input, shape index: {}]
  %s13 = inlined_call_operand.vmem [shape: f32[1,64], index: 13, kind: input, shape index: {}]
  %s14 = inlined_call_operand.vmem [shape: f32[16,64], index: 14, kind: input, shape index: {}]
  %s15 = inlined_call_operand.hbm [shape: f32[16,64], index: 15, kind: input, shape index: {}]
  %s16 = inlined_call_operand.vmem [shape: f32[1,64], index: 16, kind: input, shape index: {}]
  %s17 = inlined_call_operand.vmem [shape: f32[16,8], index: 17, kind: input, shape index: {}]
  %s18 = inlined_call_operand.hbm [shape: f32[1,8], index: 18, kind: input, shape index: {}]
  %s19 = inlined_call_operand.hbm [shape: f32[2,8,8], index: 19, kind: output, shape index: {}]
  %s20 = sld [smem:[#allocation0]]
  $region126: #{lstm_model_forward.1} parent=0
    _
  %s22 = ssub.s32 1, %s20
  %s23 = scalar_select 0, %s22, %s20
  $region1: #{lstm_model_forward.1} parent=0
    #allocation6 [shape = 'u8[8192]{0}', space=vmem, size = 0x2000, scoped, tag = 'input window, operand 0, single buffered']
    #allocation7 [shape = 's32[1]{0}', space=sflag, size = 0x4, scoped, tag = 'scoped memory for lstm_model_forward.1']
    #allocation8 [shape = 's32[1]{0}', space=sflag, size = 0x4, scoped, tag = 'scoped memory for lstm_model_forward.1']
    #allocation9 [shape = 'u8[4096]{0}', space=vmem, size = 0x1000, scoped, tag = 'input window, operand 1, single buffered']
    #allocation10 [shape = 's32[1]{0}', space=sflag, size = 0x4, scoped, tag = 'scoped memory for lstm_model_forward.1']
    #allocation11 [shape = 'u8[16384]{0}', space=vmem, size = 0x4000, scoped, tag = 'input window, operand 5, single buffered']
    #allocation12 [shape = 'u8[512]{0}', space=vmem, size = 0x400, scoped, tag = 'input window, operand 6, single buffered']
    #allocation13 [shape = 's32[1]{0}', space=sflag, size = 0x4, scoped, tag = 'scoped memory for lstm_model_forward.1']
    #allocation14 [shape = 'u8[512]{0}', space=vmem, size = 0x400, scoped, tag = 'input window, operand 8, single buffered']
    #allocation15 [shape = 'u8[8192]{0}', space=vmem, size = 0x2000, scoped, tag = 'input window, operand 9, single buffered']
    #allocation16 [shape = 's32[1]{0}', space=sflag, size = 0x4, scoped, tag = 'scoped memory for lstm_model_forward.1']
    #allocation17 [shape = 'u8[512]{0}', space=vmem, size = 0x400, scoped, tag = 'input window, operand 10, single buffered']
    #allocation18 [shape = 'u8[16384]{0}', space=vmem, size = 0x4000, scoped, tag = 'input window, operand 11, single buffered']
    #allocation19 [shape = 's32[1]{0}', space=sflag, size = 0x4, scoped, tag = 'scoped memory for lstm_model_forward.1']
    #allocation20 [shape = 'u8[8192]{0}', space=vmem, size = 0x2000, scoped, tag = 'input window, operand 15, single buffered']
    #allocation21 [shape = 'u8[512]{0}', space=vmem, size = 0x400, scoped, tag = 'input window, operand 18, single buffered']
    #allocation22 [shape = 's32[1]{0}', space=sflag, size = 0x4, scoped, tag = 'scoped memory for lstm_model_forward.1']
    #allocation23 [shape = 'u8[8192]{0}', space=vmem, size = 0x2000, scoped, tag = 'output window, operand 0, single buffered']
    %24 = vsyncpa [#allocation7], 0
    %25 = vsyncpa [#allocation10], 0
    %26 = vsyncpa [#allocation13], 0
    %27 = vsyncpa [#allocation16], 0
    %28 = vsyncpa [#allocation19], 0
    %29 = vsyncpa [#allocation22], 0
    %30 = vsyncpa [#allocation8], 0
    // Predicated region
    $region2: #{lstm_model_forward.1} parent=1 // pred_check
      _
    $region3: #{lstm_model_forward.1} parent=1 // pred_check_branch
      %32 = sbr.rel (0) target = $region5
    $region4: #{lstm_model_forward.1} parent=1 // pred_region
      %s34 = ssub.s32 256, 256
      %35 = vsyncadd [#allocation7], %s34
      %s36 = sshll.u32 [#allocation6], 4
      %s37 = int_to_ptr.vmem [resolvable:$true] %s36
      %42 = dma.hbm_to_vmem [thread:$0]  %s0, 256, %s37, [#allocation7], 128, 128, 8
    $region5: #{lstm_model_forward.1} parent=1 // pred_fallthru
      _
    // Predicated region
    $region6: #{lstm_model_forward.1} parent=1 // pred_check
      _
    $region7: #{lstm_model_forward.1} parent=1 // pred_check_branch
      %44 = sbr.rel (0) target = $region9
    $region8: #{lstm_model_forward.1} parent=1 // pred_region
      %s46 = ssub.s32 128, 128
      %47 = vsyncadd [#allocation10], %s46
      %s49 = sshll.u32 [#allocation9], 4
      %s50 = int_to_ptr.vmem [resolvable:$true] %s49
      %52 = dma.hbm_to_vmem [thread:$0]  %s1, 128, %s50, [#allocation10]
    $region9: #{lstm_model_forward.1} parent=1 // pred_fallthru
      _
    // Predicated region
    $region10: #{lstm_model_forward.1} parent=1 // pred_check
      _
    $region11: #{lstm_model_forward.1} parent=1 // pred_check_branch
      %54 = sbr.rel (0) target = $region13
    $region12: #{lstm_model_forward.1} parent=1 // pred_region
      _
    $region13: #{lstm_model_forward.1} parent=1 // pred_fallthru
      _
    // Predicated region
    $region14: #{lstm_model_forward.1} parent=1 // pred_check
      _
    $region15: #{lstm_model_forward.1} parent=1 // pred_check_branch
      %56 = sbr.rel (0) target = $region17
    $region16: #{lstm_model_forward.1} parent=1 // pred_region
      _
    $region17: #{lstm_model_forward.1} parent=1 // pred_fallthru
      _
    // Predicated region
    $region18: #{lstm_model_forward.1} parent=1 // pred_check
      _
    $region19: #{lstm_model_forward.1} parent=1 // pred_check_branch
      %58 = sbr.rel (0) target = $region21
    $region20: #{lstm_model_forward.1} parent=1 // pred_region
      _
    $region21: #{lstm_model_forward.1} parent=1 // pred_fallthru
      _
    // Predicated region
    $region22: #{lstm_model_forward.1} parent=1 // pred_check
      _
    $region23: #{lstm_model_forward.1} parent=1 // pred_check_branch
      %60 = sbr.rel (0) target = $region25
    $region24: #{lstm_model_forward.1} parent=1 // pred_region
      %s62 = ssub.s32 512, 512
      %63 = vsyncadd [#allocation10], %s62
      %s64 = sshll.u32 [#allocation11], 4
      %s65 = int_to_ptr.vmem [resolvable:$true] %s64
      %70 = dma.hbm_to_vmem [thread:$0]  %s5, 512, %s65, [#allocation10], 128, 128, 8
    $region25: #{lstm_model_forward.1} parent=1 // pred_fallthru
      _
    // Predicated region
    $region26: #{lstm_model_forward.1} parent=1 // pred_check
      _
    $region27: #{lstm_model_forward.1} parent=1 // pred_check_branch
      %72 = sbr.rel (0) target = $region29
    $region28: #{lstm_model_forward.1} parent=1 // pred_region
      %s74 = ssub.s32 16, 16
      %75 = vsyncadd [#allocation13], %s74
      %s77 = sshll.u32 [#allocation12], 4
      %s78 = int_to_ptr.vmem [resolvable:$true] %s77
      %80 = dma.hbm_to_vmem [thread:$0]  %s6, 16, %s78, [#allocation13]
    $region29: #{lstm_model_forward.1} parent=1 // pred_fallthru
      _
    // Predicated region
    $region30: #{lstm_model_forward.1} parent=1 // pred_check
      _
    $region31: #{lstm_model_forward.1} parent=1 // pred_check_branch
      %82 = sbr.rel (0) target = $region33
    $region32: #{lstm_model_forward.1} parent=1 // pred_region
      _
    $region33: #{lstm_model_forward.1} parent=1 // pred_fallthru
      _
    // Predicated region
    $region34: #{lstm_model_forward.1} parent=1 // pred_check
      _
    $region35: #{lstm_model_forward.1} parent=1 // pred_check_branch
      %84 = sbr.rel (0) target = $region37
    $region36: #{lstm_model_forward.1} parent=1 // pred_region
      %s86 = ssub.s32 16, 16
      %87 = vsyncadd [#allocation13], %s86
      %s89 = sshll.u32 [#allocation14], 4
      %s90 = int_to_ptr.vmem [resolvable:$true] %s89
      %92 = dma.hbm_to_vmem [thread:$0]  %s8, 16, %s90, [#allocation13]
    $region37: #{lstm_model_forward.1} parent=1 // pred_fallthru
      _
    // Predicated region
    $region38: #{lstm_model_forward.1} parent=1 // pred_check
      _
    $region39: #{lstm_model_forward.1} parent=1 // pred_check_branch
      %94 = sbr.rel (0) target = $region41
    $region40: #{lstm_model_forward.1} parent=1 // pred_region
      %s96 = ssub.s32 256, 256
      %97 = vsyncadd [#allocation16], %s96
      %s98 = sshll.u32 [#allocation15], 4
      %s99 = int_to_ptr.vmem [resolvable:$true] %s98
      %104 = dma.hbm_to_vmem [thread:$0]  %s9, 256, %s99, [#allocation16], 128, 128, 8
    $region41: #{lstm_model_forward.1} parent=1 // pred_fallthru
      _
    // Predicated region
    $region42: #{lstm_model_forward.1} parent=1 // pred_check
      _
    $region43: #{lstm_model_forward.1} parent=1 // pred_check_branch
      %106 = sbr.rel (0) target = $region45
    $region44: #{lstm_model_forward.1} parent=1 // pred_region
      %s108 = ssub.s32 16, 16
      %109 = vsyncadd [#allocation16], %s108
      %s111 = sshll.u32 [#allocation17], 4
      %s112 = int_to_ptr.vmem [resolvable:$true] %s111
      %114 = dma.hbm_to_vmem [thread:$0]  %s10, 16, %s112, [#allocation16]
    $region45: #{lstm_model_forward.1} parent=1 // pred_fallthru
      _
    // Predicated region
    $region46: #{lstm_model_forward.1} parent=1 // pred_check
      _
    $region47: #{lstm_model_forward.1} parent=1 // pred_check_branch
      %116 = sbr.rel (0) target = $region49
    $region48: #{lstm_model_forward.1} parent=1 // pred_region
      %s118 = ssub.s32 512, 512
      %119 = vsyncadd [#allocation19], %s118
      %s120 = sshll.u32 [#allocation18], 4
      %s121 = int_to_ptr.vmem [resolvable:$true] %s120
      %126 = dma.hbm_to_vmem [thread:$0]  %s11, 512, %s121, [#allocation19], 128, 128, 8
    $region49: #{lstm_model_forward.1} parent=1 // pred_fallthru
      _
    // Predicated region
    $region50: #{lstm_model_forward.1} parent=1 // pred_check
      _
    $region51: #{lstm_model_forward.1} parent=1 // pred_check_branch
      %128 = sbr.rel (0) target = $region53
    $region52: #{lstm_model_forward.1} parent=1 // pred_region
      _
    $region53: #{lstm_model_forward.1} parent=1 // pred_fallthru
      _
    // Predicated region
    $region54: #{lstm_model_forward.1} parent=1 // pred_check
      _
    $region55: #{lstm_model_forward.1} parent=1 // pred_check_branch
      %130 = sbr.rel (0) target = $region57
    $region56: #{lstm_model_forward.1} parent=1 // pred_region
      _
    $region57: #{lstm_model_forward.1} parent=1 // pred_fallthru
      _
    // Predicated region
    $region58: #{lstm_model_forward.1} parent=1 // pred_check
      _
    $region59: #{lstm_model_forward.1} parent=1 // pred_check_branch
      %132 = sbr.rel (0) target = $region61
    $region60: #{lstm_model_forward.1} parent=1 // pred_region
      _
    $region61: #{lstm_model_forward.1} parent=1 // pred_fallthru
      _
    // Predicated region
    $region62: #{lstm_model_forward.1} parent=1 // pred_check
      _
    $region63: #{lstm_model_forward.1} parent=1 // pred_check_branch
      %134 = sbr.rel (0) target = $region65
    $region64: #{lstm_model_forward.1} parent=1 // pred_region
      %s136 = ssub.s32 256, 256
      %137 = vsyncadd [#allocation19], %s136
      %s138 = sshll.u32 [#allocation20], 4
      %s139 = int_to_ptr.vmem [resolvable:$true] %s138
      %144 = dma.hbm_to_vmem [thread:$0]  %s15, 256, %s139, [#allocation19], 128, 128, 8
    $region65: #{lstm_model_forward.1} parent=1 // pred_fallthru
      _
    // Predicated region
    $region66: #{lstm_model_forward.1} parent=1 // pred_check
      _
    $region67: #{lstm_model_forward.1} parent=1 // pred_check_branch
      %146 = sbr.rel (0) target = $region69
    $region68: #{lstm_model_forward.1} parent=1 // pred_region
      _
    $region69: #{lstm_model_forward.1} parent=1 // pred_fallthru
      _
    // Predicated region
    $region70: #{lstm_model_forward.1} parent=1 // pred_check
      _
    $region71: #{lstm_model_forward.1} parent=1 // pred_check_branch
      %148 = sbr.rel (0) target = $region73
    $region72: #{lstm_model_forward.1} parent=1 // pred_region
      _
    $region73: #{lstm_model_forward.1} parent=1 // pred_fallthru
      _
    // Predicated region
    $region74: #{lstm_model_forward.1} parent=1 // pred_check
      _
    $region75: #{lstm_model_forward.1} parent=1 // pred_check_branch
      %150 = sbr.rel (0) target = $region77
    $region76: #{lstm_model_forward.1} parent=1 // pred_region
      %s152 = ssub.s32 16, 16
      %153 = vsyncadd [#allocation22], %s152
      %s155 = sshll.u32 [#allocation21], 4
      %s156 = int_to_ptr.vmem [resolvable:$true] %s155
      %158 = dma.hbm_to_vmem [thread:$0]  %s18, 16, %s156, [#allocation22]
    $region77: #{lstm_model_forward.1} parent=1 // pred_fallthru
      _
    // Predicated region
    $region78: #{lstm_model_forward.1} parent=1 // pred_check
      _
    $region79: #{lstm_model_forward.1} parent=1 // pred_check_branch
      %160 = sbr.rel (0) target = $region81
    $region80: #{lstm_model_forward.1} parent=1 // pred_region
      %161 = dma.done [#allocation7], 256
    $region81: #{lstm_model_forward.1} parent=1 // pred_fallthru
      _
    // Predicated region
    $region82: #{lstm_model_forward.1} parent=1 // pred_check
      _
    $region83: #{lstm_model_forward.1} parent=1 // pred_check_branch
      %163 = sbr.rel (0) target = $region85
    $region84: #{lstm_model_forward.1} parent=1 // pred_region
      %164 = dma.done [#allocation10], 128
    $region85: #{lstm_model_forward.1} parent=1 // pred_fallthru
      _
    // Predicated region
    $region86: #{lstm_model_forward.1} parent=1 // pred_check
      _
    $region87: #{lstm_model_forward.1} parent=1 // pred_check_branch
      %166 = sbr.rel (0) target = $region89
    $region88: #{lstm_model_forward.1} parent=1 // pred_region
      %167 = dma.done [#allocation10], 512
    $region89: #{lstm_model_forward.1} parent=1 // pred_fallthru
      _
    // Predicated region
    $region90: #{lstm_model_forward.1} parent=1 // pred_check
      _
    $region91: #{lstm_model_forward.1} parent=1 // pred_check_branch
      %169 = sbr.rel (0) target = $region93
    $region92: #{lstm_model_forward.1} parent=1 // pred_region
      %170 = dma.done [#allocation13], 16
    $region93: #{lstm_model_forward.1} parent=1 // pred_fallthru
      _
    // Predicated region
    $region94: #{lstm_model_forward.1} parent=1 // pred_check
      _
    $region95: #{lstm_model_forward.1} parent=1 // pred_check_branch
      %172 = sbr.rel (0) target = $region97
    $region96: #{lstm_model_forward.1} parent=1 // pred_region
      %173 = dma.done [#allocation13], 16
    $region97: #{lstm_model_forward.1} parent=1 // pred_fallthru
      _
    // Predicated region
    $region98: #{lstm_model_forward.1} parent=1 // pred_check
      _
    $region99: #{lstm_model_forward.1} parent=1 // pred_check_branch
      %175 = sbr.rel (0) target = $region101
    $region100: #{lstm_model_forward.1} parent=1 // pred_region
      %176 = dma.done [#allocation16], 256
    $region101: #{lstm_model_forward.1} parent=1 // pred_fallthru
      _
    // Predicated region
    $region102: #{lstm_model_forward.1} parent=1 // pred_check
      _
    $region103: #{lstm_model_forward.1} parent=1 // pred_check_branch
      %178 = sbr.rel (0) target = $region105
    $region104: #{lstm_model_forward.1} parent=1 // pred_region
      %179 = dma.done [#allocation16], 16
    $region105: #{lstm_model_forward.1} parent=1 // pred_fallthru
      _
    // Predicated region
    $region106: #{lstm_model_forward.1} parent=1 // pred_check
      _
    $region107: #{lstm_model_forward.1} parent=1 // pred_check_branch
      %181 = sbr.rel (0) target = $region109
    $region108: #{lstm_model_forward.1} parent=1 // pred_region
      %182 = dma.done [#allocation19], 512
    $region109: #{lstm_model_forward.1} parent=1 // pred_fallthru
      _
    // Predicated region
    $region110: #{lstm_model_forward.1} parent=1 // pred_check
      _
    $region111: #{lstm_model_forward.1} parent=1 // pred_check_branch
      %184 = sbr.rel (0) target = $region113
    $region112: #{lstm_model_forward.1} parent=1 // pred_region
      %185 = dma.done [#allocation19], 256
    $region113: #{lstm_model_forward.1} parent=1 // pred_fallthru
      _
    // Predicated region
    $region114: #{lstm_model_forward.1} parent=1 // pred_check
      _
    $region115: #{lstm_model_forward.1} parent=1 // pred_check_branch
      %187 = sbr.rel (0) target = $region117
    $region116: #{lstm_model_forward.1} parent=1 // pred_region
      %188 = dma.done [#allocation22], 16
    $region117: #{lstm_model_forward.1} parent=1 // pred_fallthru
      _
    %v189 = vld [vmem:[#allocation6] sm:$0xff]
    %v190 = vld [vmem:[#allocation6 + $0x8] sm:$0xff]
    %v191 = vld [vmem:[#allocation9] sm:$0xff]
    %v192 = vld [vmem:[%s2] sm:$0xff]
    %v193 = vld [vmem:[%s2 + $0x8] sm:$0xff]
    %v194 = vld [vmem:[%s2 + $0x10] sm:$0xff]
    %v195 = vld [vmem:[%s2 + $0x18] sm:$0xff]
    %v196 = vld [vmem:[%s3] sm:$0x1]
    %v198 = vlaneseq
    %v199 = vshrl.u32 %v198, 7
    %v200 = vsub.s32 0, %v199
    %v201 = vrot.slane %v196, %v200
    %vm203 = vcmask 64512
    %v205 = vsel %vm203, %v189, 0
    %v208 = vsel %vm203, %v190, 0
    %210 = vmatprep.subr.mxu0 0.0
    %211 = vmatpush1.msra.mxu0 0.0
    %212 = vmatprep.subr.mxu0 0.0
    %213 = vmatpush1.msra.mxu0 0.0
    %214 = vmatprep.subr.mxu0 0.0
    %215 = vmatpush1.msra.mxu0 0.0
    %216 = vmatprep.subr.mxu0 0.0
    %217 = vmatpush1.msra.mxu0 0.0
    %218 = vmatprep.subr.mxu0 0.0
    %219 = vmatpush1.msra.mxu0 0.0
    %220 = vmatprep.subr.mxu0 0.0
    %221 = vmatpush1.msra.mxu0 0.0
    %222 = vmatprep.subr.mxu0 0.0
    %223 = vmatpush1.msra.mxu0 0.0
    %224 = vmatprep.subr.mxu0 0.0
    %225 = vmatpush1.msra.mxu0 0.0
    %226 = vmatprep.subr.mxu0 0.0
    %227 = vmatpush1.msra.mxu0 0.0
    %228 = vmatprep.subr.mxu0 0.0
    %229 = vmatpush1.msra.mxu0 0.0
    %230 = vmatprep.subr.mxu0 0.0
    %231 = vmatpush1.msra.mxu0 0.0
    %232 = vmatprep.subr.mxu0 0.0
    %233 = vmatpush1.msra.mxu0 0.0
    %234 = vmatprep.subr.mxu0 0.0
    %235 = vmatpush1.msra.mxu0 0.0
    %236 = vmatprep.subr.mxu0 0.0
    %237 = vmatpush1.msra.mxu0 0.0
    %238 = vmatprep.subr.mxu0 0.0
    %239 = vmatpush1.msra.mxu0 0.0
    %240 = vmatprep.subr.mxu0 0.0
    %241 = vmatpush1.msra.mxu0 %v191
    %242 = vmatprep.subr.mxu0 0.0
    %243 = vmatpush2.msra.mxu0 0.0
    %244 = vmatprep.subr.mxu0 0.0
    %245 = vmatpush2.msra.mxu0 0.0
    %246 = vmatprep.subr.mxu0 0.0
    %247 = vmatpush2.msra.mxu0 0.0
    %248 = vmatprep.subr.mxu0 0.0
    %249 = vmatpush2.msra.mxu0 0.0
    %250 = vmatprep.subr.mxu0 0.0
    %251 = vmatpush2.msra.mxu0 0.0
    %252 = vmatprep.subr.mxu0 0.0
    %253 = vmatpush2.msra.mxu0 0.0
    %254 = vmatprep.subr.mxu0 0.0
    %255 = vmatpush2.msra.mxu0 0.0
    %256 = vmatprep.subr.mxu0 0.0
    %257 = vmatpush2.msra.mxu0 0.0
    %258 = vmatprep.subr.mxu0 0.0
    %259 = vmatpush2.msra.mxu0 0.0
    %260 = vmatprep.subr.mxu0 0.0
    %261 = vmatpush2.msra.mxu0 0.0
    %262 = vmatprep.subr.mxu0 0.0
    %263 = vmatpush2.msra.mxu0 0.0
    %264 = vmatprep.subr.mxu0 0.0
    %265 = vmatpush2.msra.mxu0 0.0
    %266 = vmatprep.subr.mxu0 0.0
    %267 = vmatpush2.msra.mxu0 0.0
    %268 = vmatprep.subr.mxu0 0.0
    %269 = vmatpush2.msra.mxu0 0.0
    %270 = vmatprep.subr.mxu0 0.0
    %271 = vmatpush2.msra.mxu0 0.0
    %272 = vmatprep.subr.mxu0 0.0
    %273 = vmatpush2.msra.mxu0 0.0
    %274 = vmatprep.mubr.f32.mxu0 0.0
    %275 = vmatmul.mubr.f32.gmra.mxu0 %v205
    %v276 = vpop.f32.mrf.mxu0
    %v277 = vadd.f32 %v201, %v276
    %v278 = vpop.f32.mrf.mxu0
    %279 = vmatprep.mubr.f32.mxu0 0.0
    %280 = vmatmul.mubr.f32.gmra.mxu0 %v208
    %v281 = vpop.f32.mrf.mxu0
    %v282 = vadd.f32 %v201, %v281
    %v283 = vpop.f32.mrf.mxu0
    %284 = vdwg.mxu0
    %vm285 = vcmask 261120
    %v287 = vsel %vm285, 0.0, 0
    %289 = vmatprep.subr.mxu0 0.0
    %290 = vmatpush1.msra.mxu0 0.0
    %291 = vmatprep.subr.mxu0 0.0
    %292 = vmatpush1.msra.mxu0 0.0
    %293 = vmatprep.subr.mxu0 0.0
    %294 = vmatpush1.msra.mxu0 0.0
    %295 = vmatprep.subr.mxu0 0.0
    %296 = vmatpush1.msra.mxu0 0.0
    %297 = vmatprep.subr.mxu0 0.0
    %298 = vmatpush1.msra.mxu0 0.0
    %299 = vmatprep.subr.mxu0 0.0
    %300 = vmatpush1.msra.mxu0 0.0
    %301 = vmatprep.subr.mxu0 0.0
    %302 = vmatpush1.msra.mxu0 0.0
    %303 = vmatprep.subr.mxu0 0.0
    %304 = vmatpush1.msra.mxu0 0.0
    %305 = vmatprep.subr.mxu0 0.0
    %306 = vmatpush1.msra.mxu0 0.0
    %307 = vmatprep.subr.mxu0 0.0
    %308 = vmatpush1.msra.mxu0 0.0
    %309 = vmatprep.subr.mxu0 0.0
    %310 = vmatpush1.msra.mxu0 0.0
    %311 = vmatprep.subr.mxu0 0.0
    %312 = vmatpush1.msra.mxu0 0.0
    %313 = vmatprep.subr.mxu0 0.0
    %314 = vmatpush1.msra.mxu0 %v195
    %315 = vmatprep.subr.mxu0 0.0
    %316 = vmatpush1.msra.mxu0 %v194
    %317 = vmatprep.subr.mxu0 0.0
    %318 = vmatpush1.msra.mxu0 %v193
    %319 = vmatprep.subr.mxu0 0.0
    %320 = vmatpush1.msra.mxu0 %v192
    %321 = vmatprep.subr.mxu0 0.0
    %322 = vmatpush2.msra.mxu0 0.0
    %323 = vmatprep.subr.mxu0 0.0
    %324 = vmatpush2.msra.mxu0 0.0
    %325 = vmatprep.subr.mxu0 0.0
    %326 = vmatpush2.msra.mxu0 0.0
    %327 = vmatprep.subr.mxu0 0.0
    %328 = vmatpush2.msra.mxu0 0.0
    %329 = vmatprep.subr.mxu0 0.0
    %330 = vmatpush2.msra.mxu0 0.0
    %331 = vmatprep.subr.mxu0 0.0
    %332 = vmatpush2.msra.mxu0 0.0
    %333 = vmatprep.subr.mxu0 0.0
    %334 = vmatpush2.msra.mxu0 0.0
    %335 = vmatprep.subr.mxu0 0.0
    %336 = vmatpush2.msra.mxu0 0.0
    %337 = vmatprep.subr.mxu0 0.0
    %338 = vmatpush2.msra.mxu0 0.0
    %339 = vmatprep.subr.mxu0 0.0
    %340 = vmatpush2.msra.mxu0 0.0
    %341 = vmatprep.subr.mxu0 0.0
    %342 = vmatpush2.msra.mxu0 0.0
    %343 = vmatprep.subr.mxu0 0.0
    %344 = vmatpush2.msra.mxu0 0.0
    %345 = vmatprep.subr.mxu0 0.0
    %346 = vmatpush2.msra.mxu0 0.0
    %347 = vmatprep.subr.mxu0 0.0
    %348 = vmatpush2.msra.mxu0 0.0
    %349 = vmatprep.subr.mxu0 0.0
    %350 = vmatpush2.msra.mxu0 0.0
    %351 = vmatprep.subr.mxu0 0.0
    %352 = vmatpush2.msra.mxu0 0.0
    %353 = vmatprep.mubr.f32.mxu0 0.0
    %354 = vmatmul.mubr.f32.gmra.mxu0 %v287
    %v355 = vpop.f32.mrf.mxu0
    %v356 = vadd.f32 0.0, %v355
    %v357 = vpop.f32.mrf.mxu0
    %358 = vdwg.mxu0
    %v360 = vrot.slane %v356, 1
    %v363 = vadd.f32 %v277, %v356
    %v364 = vadd.f32 %v282, %v360
    %v365 = vxor.u32 %v363, 2147483648
    %v366 = vxor.u32 %v364, 2147483648
    %v367 = vmul.f32 %v365, 1.442695
    %v368 = vpow.pop %v367
    %v369 = vmul.f32 %v366, 1.442695
    %v370 = vpow.pop %v369
    %v371 = vadd.f32 %v368, 1.0
    %v372 = vadd.f32 %v370, 1.0
    %v373 = vrcp.pop %v371
    %v374 = vmul.f32 1.0, %v373
    %v375 = vrcp.pop %v372
    %v376 = vmul.f32 1.0, %v375
    %v377 = vtanh.pop %v363
    %v378 = vtanh.pop %v364
    %v379 = vmul.f32 %v374, 0.0
    %v380 = vmul.f32 %v376, 0.0
    %383 = vrot.lane.b32.xlu0 %v377, 64
    %v384 = vpop.permute.xlu0 %383
    %385 = vrot.lane.b32.xlu0 %v378, 64
    %v386 = vpop.permute.xlu0 %385
    %v389 = vmul.f32 %v374, %v384
    %v390 = vmul.f32 %v376, %v386
    %393 = vrot.lane.b32.xlu0 %v389, 32
    %v394 = vpop.permute.xlu0 %393
    %395 = vrot.lane.b32.xlu0 %v390, 32
    %v396 = vpop.permute.xlu0 %395
    %v399 = vadd.f32 %v379, %v394
    %v400 = vadd.f32 %v380, %v396
    %v401 = vtanh.pop %v399
    %v402 = vtanh.pop %v400
    %405 = vrot.lane.b32.xlu0 %v401, 64
    %v406 = vpop.permute.xlu0 %405
    %407 = vrot.lane.b32.xlu0 %v402, 64
    %v408 = vpop.permute.xlu0 %407
    %v411 = vmul.f32 %v374, %v406
    %v412 = vmul.f32 %v376, %v408
    %415 = vrot.lane.b32.xlu0 %v411, 32
    %v416 = vpop.permute.xlu0 %415
    %417 = vrot.lane.b32.xlu0 %v412, 32
    %v418 = vpop.permute.xlu0 %417
    %vm421 = vcmask 253952
    %422 = vst.msk [vmem:[#allocation2] sm:$0x1] %vm421, %v416
    %423 = vst.msk [vmem:[#allocation2 + $0x8] sm:$0x1] %vm421, %v418
    %v424 = vrot.slane %v412, 7
    %vm425 = vcmask 1041409
    %v426 = vsel %vm425, %v424, %v411
    %427 = vrot.lane.b32.xlu0 %v426, 32
    %v428 = vpop.permute.xlu0 %427
    %v429 = vsel %vm285, %v428, 0
    %431 = vmatprep.subr.mxu0 0.0
    %432 = vmatpush1.msra.mxu0 0.0
    %433 = vmatprep.subr.mxu0 0.0
    %434 = vmatpush1.msra.mxu0 0.0
    %435 = vmatprep.subr.mxu0 0.0
    %436 = vmatpush1.msra.mxu0 0.0
    %437 = vmatprep.subr.mxu0 0.0
    %438 = vmatpush1.msra.mxu0 0.0
    %439 = vmatprep.subr.mxu0 0.0
    %440 = vmatpush1.msra.mxu0 0.0
    %441 = vmatprep.subr.mxu0 0.0
    %442 = vmatpush1.msra.mxu0 0.0
    %443 = vmatprep.subr.mxu0 0.0
    %444 = vmatpush1.msra.mxu0 0.0
    %445 = vmatprep.subr.mxu0 0.0
    %446 = vmatpush1.msra.mxu0 0.0
    %447 = vmatprep.subr.mxu0 0.0
    %448 = vmatpush1.msra.mxu0 0.0
    %449 = vmatprep.subr.mxu0 0.0
    %450 = vmatpush1.msra.mxu0 0.0
    %451 = vmatprep.subr.mxu0 0.0
    %452 = vmatpush1.msra.mxu0 0.0
    %453 = vmatprep.subr.mxu0 0.0
    %454 = vmatpush1.msra.mxu0 0.0
    %455 = vmatprep.subr.mxu0 0.0
    %456 = vmatpush1.msra.mxu0 %v195
    %457 = vmatprep.subr.mxu0 0.0
    %458 = vmatpush1.msra.mxu0 %v194
    %459 = vmatprep.subr.mxu0 0.0
    %460 = vmatpush1.msra.mxu0 %v193
    %461 = vmatprep.subr.mxu0 0.0
    %462 = vmatpush1.msra.mxu0 %v192
    %463 = vmatprep.subr.mxu0 0.0
    %464 = vmatpush2.msra.mxu0 0.0
    %465 = vmatprep.subr.mxu0 0.0
    %466 = vmatpush2.msra.mxu0 0.0
    %467 = vmatprep.subr.mxu0 0.0
    %468 = vmatpush2.msra.mxu0 0.0
    %469 = vmatprep.subr.mxu0 0.0
    %470 = vmatpush2.msra.mxu0 0.0
    %471 = vmatprep.subr.mxu0 0.0
    %472 = vmatpush2.msra.mxu0 0.0
    %473 = vmatprep.subr.mxu0 0.0
    %474 = vmatpush2.msra.mxu0 0.0
    %475 = vmatprep.subr.mxu0 0.0
    %476 = vmatpush2.msra.mxu0 0.0
    %477 = vmatprep.subr.mxu0 0.0
    %478 = vmatpush2.msra.mxu0 0.0
    %479 = vmatprep.subr.mxu0 0.0
    %480 = vmatpush2.msra.mxu0 0.0
    %481 = vmatprep.subr.mxu0 0.0
    %482 = vmatpush2.msra.mxu0 0.0
    %483 = vmatprep.subr.mxu0 0.0
    %484 = vmatpush2.msra.mxu0 0.0
    %485 = vmatprep.subr.mxu0 0.0
    %486 = vmatpush2.msra.mxu0 0.0
    %487 = vmatprep.subr.mxu0 0.0
    %488 = vmatpush2.msra.mxu0 0.0
    %489 = vmatprep.subr.mxu0 0.0
    %490 = vmatpush2.msra.mxu0 0.0
    %491 = vmatprep.subr.mxu0 0.0
    %492 = vmatpush2.msra.mxu0 0.0
    %493 = vmatprep.subr.mxu0 0.0
    %494 = vmatpush2.msra.mxu0 0.0
    %495 = vmatprep.mubr.f32.mxu0 0.0
    %496 = vmatmul.mubr.f32.gmra.mxu0 %v429
    %v497 = vpop.f32.mrf.mxu0
    %v498 = vadd.f32 0.0, %v497
    %v499 = vpop.f32.mrf.mxu0
    %500 = vdwg.mxu0
    %v502 = vrot.slane %v498, 7
    %v505 = vadd.f32 %v277, %v502
    %v506 = vadd.f32 %v282, %v498
    %v507 = vxor.u32 %v505, 2147483648
    %v508 = vxor.u32 %v506, 2147483648
    %v509 = vmul.f32 %v507, 1.442695
    %v510 = vpow.pop %v509
    %v511 = vmul.f32 %v508, 1.442695
    %v512 = vpow.pop %v511
    %v513 = vadd.f32 %v510, 1.0
    %v514 = vadd.f32 %v512, 1.0
    %v515 = vrcp.pop %v513
    %v516 = vmul.f32 1.0, %v515
    %v517 = vrcp.pop %v514
    %v518 = vmul.f32 1.0, %v517
    %v519 = vtanh.pop %v505
    %v520 = vtanh.pop %v506
    %v523 = vrot.slane %v399, 7
    %v524 = vrot.slane %v400, 7
    %v527 = vmul.f32 %v516, %v523
    %v528 = vmul.f32 %v518, %v524
    %531 = vrot.lane.b32.xlu0 %v519, 64
    %v532 = vpop.permute.xlu0 %531
    %533 = vrot.lane.b32.xlu0 %v520, 64
    %v534 = vpop.permute.xlu0 %533
    %v537 = vmul.f32 %v516, %v532
    %v538 = vmul.f32 %v518, %v534
    %541 = vrot.lane.b32.xlu0 %v537, 32
    %v542 = vpop.permute.xlu0 %541
    %543 = vrot.lane.b32.xlu0 %v538, 32
    %v544 = vpop.permute.xlu0 %543
    %v547 = vadd.f32 %v527, %v542
    %v548 = vadd.f32 %v528, %v544
    %v549 = vtanh.pop %v547
    %v550 = vtanh.pop %v548
    %553 = vrot.lane.b32.xlu0 %v549, 64
    %v554 = vpop.permute.xlu0 %553
    %555 = vrot.lane.b32.xlu0 %v550, 64
    %v556 = vpop.permute.xlu0 %555
    %v559 = vmul.f32 %v516, %v554
    %v560 = vmul.f32 %v518, %v556
    %563 = vrot.lane.b32.xlu0 %v559, 32
    %v564 = vpop.permute.xlu0 %563
    %565 = vrot.lane.b32.xlu0 %v560, 32
    %v566 = vpop.permute.xlu0 %565
    %vm569 = vcmask 254977
    %570 = vst.msk [vmem:[#allocation2] sm:$0x2] %vm569, %v564
    %571 = vst.msk [vmem:[#allocation2 + $0x8] sm:$0x2] %vm569, %v566
    %v572 = vrot.slane %v559, 1
    %v573 = vsel %vm425, %v560, %v572
    %574 = vrot.lane.b32.xlu0 %v573, 32
    %v575 = vpop.permute.xlu0 %574
    %v576 = vsel %vm285, %v575, 0
    %578 = vmatprep.subr.mxu0 0.0
    %579 = vmatpush1.msra.mxu0 0.0
    %580 = vmatprep.subr.mxu0 0.0
    %581 = vmatpush1.msra.mxu0 0.0
    %582 = vmatprep.subr.mxu0 0.0
    %583 = vmatpush1.msra.mxu0 0.0
    %584 = vmatprep.subr.mxu0 0.0
    %585 = vmatpush1.msra.mxu0 0.0
    %586 = vmatprep.subr.mxu0 0.0
    %587 = vmatpush1.msra.mxu0 0.0
    %588 = vmatprep.subr.mxu0 0.0
    %589 = vmatpush1.msra.mxu0 0.0
    %590 = vmatprep.subr.mxu0 0.0
    %591 = vmatpush1.msra.mxu0 0.0
    %592 = vmatprep.subr.mxu0 0.0
    %593 = vmatpush1.msra.mxu0 0.0
    %594 = vmatprep.subr.mxu0 0.0
    %595 = vmatpush1.msra.mxu0 0.0
    %596 = vmatprep.subr.mxu0 0.0
    %597 = vmatpush1.msra.mxu0 0.0
    %598 = vmatprep.subr.mxu0 0.0
    %599 = vmatpush1.msra.mxu0 0.0
    %600 = vmatprep.subr.mxu0 0.0
    %601 = vmatpush1.msra.mxu0 0.0
    %602 = vmatprep.subr.mxu0 0.0
    %603 = vmatpush1.msra.mxu0 %v195
    %604 = vmatprep.subr.mxu0 0.0
    %605 = vmatpush1.msra.mxu0 %v194
    %606 = vmatprep.subr.mxu0 0.0
    %607 = vmatpush1.msra.mxu0 %v193
    %608 = vmatprep.subr.mxu0 0.0
    %609 = vmatpush1.msra.mxu0 %v192
    %610 = vmatprep.subr.mxu0 0.0
    %611 = vmatpush2.msra.mxu0 0.0
    %612 = vmatprep.subr.mxu0 0.0
    %613 = vmatpush2.msra.mxu0 0.0
    %614 = vmatprep.subr.mxu0 0.0
    %615 = vmatpush2.msra.mxu0 0.0
    %616 = vmatprep.subr.mxu0 0.0
    %617 = vmatpush2.msra.mxu0 0.0
    %618 = vmatprep.subr.mxu0 0.0
    %619 = vmatpush2.msra.mxu0 0.0
    %620 = vmatprep.subr.mxu0 0.0
    %621 = vmatpush2.msra.mxu0 0.0
    %622 = vmatprep.subr.mxu0 0.0
    %623 = vmatpush2.msra.mxu0 0.0
    %624 = vmatprep.subr.mxu0 0.0
    %625 = vmatpush2.msra.mxu0 0.0
    %626 = vmatprep.subr.mxu0 0.0
    %627 = vmatpush2.msra.mxu0 0.0
    %628 = vmatprep.subr.mxu0 0.0
    %629 = vmatpush2.msra.mxu0 0.0
    %630 = vmatprep.subr.mxu0 0.0
    %631 = vmatpush2.msra.mxu0 0.0
    %632 = vmatprep.subr.mxu0 0.0
    %633 = vmatpush2.msra.mxu0 0.0
    %634 = vmatprep.subr.mxu0 0.0
    %635 = vmatpush2.msra.mxu0 0.0
    %636 = vmatprep.subr.mxu0 0.0
    %637 = vmatpush2.msra.mxu0 0.0
    %638 = vmatprep.subr.mxu0 0.0
    %639 = vmatpush2.msra.mxu0 0.0
    %640 = vmatprep.subr.mxu0 0.0
    %641 = vmatpush2.msra.mxu0 0.0
    %642 = vmatprep.mubr.f32.mxu0 0.0
    %643 = vmatmul.mubr.f32.gmra.mxu0 %v576
    %v644 = vpop.f32.mrf.mxu0
    %v645 = vadd.f32 0.0, %v644
    %v646 = vpop.f32.mrf.mxu0
    %647 = vdwg.mxu0
    %v649 = vrot.slane %v645, 6
    %v650 = vrot.slane %v645, 7
    %v653 = vadd.f32 %v277, %v649
    %v654 = vadd.f32 %v282, %v650
    %v655 = vxor.u32 %v653, 2147483648
    %v656 = vxor.u32 %v654, 2147483648
    %v657 = vmul.f32 %v655, 1.442695
    %v658 = vpow.pop %v657
    %v659 = vmul.f32 %v656, 1.442695
    %v660 = vpow.pop %v659
    %v661 = vadd.f32 %v658, 1.0
    %v662 = vadd.f32 %v660, 1.0
    %v663 = vrcp.pop %v661
    %v664 = vmul.f32 1.0, %v663
    %v665 = vrcp.pop %v662
    %v666 = vmul.f32 1.0, %v665
    %v667 = vtanh.pop %v653
    %v668 = vtanh.pop %v654
    %v671 = vrot.slane %v547, 7
    %v672 = vrot.slane %v548, 7
    %v675 = vmul.f32 %v664, %v671
    %v676 = vmul.f32 %v666, %v672
    %679 = vrot.lane.b32.xlu0 %v667, 64
    %v680 = vpop.permute.xlu0 %679
    %681 = vrot.lane.b32.xlu0 %v668, 64
    %v682 = vpop.permute.xlu0 %681
    %v685 = vmul.f32 %v664, %v680
    %v686 = vmul.f32 %v666, %v682
    %689 = vrot.lane.b32.xlu0 %v685, 32
    %v690 = vpop.permute.xlu0 %689
    %691 = vrot.lane.b32.xlu0 %v686, 32
    %v692 = vpop.permute.xlu0 %691
    %v695 = vadd.f32 %v675, %v690
    %v696 = vadd.f32 %v676, %v692
    %v697 = vtanh.pop %v695
    %v698 = vtanh.pop %v696
    %701 = vrot.lane.b32.xlu0 %v697, 64
    %v702 = vpop.permute.xlu0 %701
    %703 = vrot.lane.b32.xlu0 %v698, 64
    %v704 = vpop.permute.xlu0 %703
    %v707 = vmul.f32 %v664, %v702
    %v708 = vmul.f32 %v666, %v704
    %711 = vrot.lane.b32.xlu0 %v707, 32
    %v712 = vpop.permute.xlu0 %711
    %713 = vrot.lane.b32.xlu0 %v708, 32
    %v714 = vpop.permute.xlu0 %713
    %vm717 = vcmask 256002
    %718 = vst.msk [vmem:[#allocation2] sm:$0x4] %vm717, %v712
    %719 = vst.msk [vmem:[#allocation2 + $0x8] sm:$0x4] %vm717, %v714
    %v720 = vrot.slane %v707, 2
    %v721 = vrot.slane %v708, 1
    %v722 = vsel %vm425, %v721, %v720
    %723 = vrot.lane.b32.xlu0 %v722, 32
    %v724 = vpop.permute.xlu0 %723
    %v725 = vsel %vm285, %v724, 0
    %727 = vmatprep.subr.mxu0 0.0
    %728 = vmatpush1.msra.mxu0 0.0
    %729 = vmatprep.subr.mxu0 0.0
    %730 = vmatpush1.msra.mxu0 0.0
    %731 = vmatprep.subr.mxu0 0.0
    %732 = vmatpush1.msra.mxu0 0.0
    %733 = vmatprep.subr.mxu0 0.0
    %734 = vmatpush1.msra.mxu0 0.0
    %735 = vmatprep.subr.mxu0 0.0
    %736 = vmatpush1.msra.mxu0 0.0
    %737 = vmatprep.subr.mxu0 0.0
    %738 = vmatpush1.msra.mxu0 0.0
    %739 = vmatprep.subr.mxu0 0.0
    %740 = vmatpush1.msra.mxu0 0.0
    %741 = vmatprep.subr.mxu0 0.0
    %742 = vmatpush1.msra.mxu0 0.0
    %743 = vmatprep.subr.mxu0 0.0
    %744 = vmatpush1.msra.mxu0 0.0
    %745 = vmatprep.subr.mxu0 0.0
    %746 = vmatpush1.msra.mxu0 0.0
    %747 = vmatprep.subr.mxu0 0.0
    %748 = vmatpush1.msra.mxu0 0.0
    %749 = vmatprep.subr.mxu0 0.0
    %750 = vmatpush1.msra.mxu0 0.0
    %751 = vmatprep.subr.mxu0 0.0
    %752 = vmatpush1.msra.mxu0 %v195
    %753 = vmatprep.subr.mxu0 0.0
    %754 = vmatpush1.msra.mxu0 %v194
    %755 = vmatprep.subr.mxu0 0.0
    %756 = vmatpush1.msra.mxu0 %v193
    %757 = vmatprep.subr.mxu0 0.0
    %758 = vmatpush1.msra.mxu0 %v192
    %759 = vmatprep.subr.mxu0 0.0
    %760 = vmatpush2.msra.mxu0 0.0
    %761 = vmatprep.subr.mxu0 0.0
    %762 = vmatpush2.msra.mxu0 0.0
    %763 = vmatprep.subr.mxu0 0.0
    %764 = vmatpush2.msra.mxu0 0.0
    %765 = vmatprep.subr.mxu0 0.0
    %766 = vmatpush2.msra.mxu0 0.0
    %767 = vmatprep.subr.mxu0 0.0
    %768 = vmatpush2.msra.mxu0 0.0
    %769 = vmatprep.subr.mxu0 0.0
    %770 = vmatpush2.msra.mxu0 0.0
    %771 = vmatprep.subr.mxu0 0.0
    %772 = vmatpush2.msra.mxu0 0.0
    %773 = vmatprep.subr.mxu0 0.0
    %774 = vmatpush2.msra.mxu0 0.0
    %775 = vmatprep.subr.mxu0 0.0
    %776 = vmatpush2.msra.mxu0 0.0
    %777 = vmatprep.subr.mxu0 0.0
    %778 = vmatpush2.msra.mxu0 0.0
    %779 = vmatprep.subr.mxu0 0.0
    %780 = vmatpush2.msra.mxu0 0.0
    %781 = vmatprep.subr.mxu0 0.0
    %782 = vmatpush2.msra.mxu0 0.0
    %783 = vmatprep.subr.mxu0 0.0
    %784 = vmatpush2.msra.mxu0 0.0
    %785 = vmatprep.subr.mxu0 0.0
    %786 = vmatpush2.msra.mxu0 0.0
    %787 = vmatprep.subr.mxu0 0.0
    %788 = vmatpush2.msra.mxu0 0.0
    %789 = vmatprep.subr.mxu0 0.0
    %790 = vmatpush2.msra.mxu0 0.0
    %791 = vmatprep.mubr.f32.mxu0 0.0
    %792 = vmatmul.mubr.f32.gmra.mxu0 %v725
    %v793 = vpop.f32.mrf.mxu0
    %v794 = vadd.f32 0.0, %v793
    %v795 = vpop.f32.mrf.mxu0
    %796 = vdwg.mxu0
    %v798 = vrot.slane %v794, 5
    %v799 = vrot.slane %v794, 6
    %v802 = vadd.f32 %v277, %v798
    %v803 = vadd.f32 %v282, %v799
    %v804 = vxor.u32 %v802, 2147483648
    %v805 = vxor.u32 %v803, 2147483648
    %v806 = vmul.f32 %v804, 1.442695
    %v807 = vpow.pop %v806
    %v808 = vmul.f32 %v805, 1.442695
    %v809 = vpow.pop %v808
    %v810 = vadd.f32 %v807, 1.0
    %v811 = vadd.f32 %v809, 1.0
    %v812 = vrcp.pop %v810
    %v813 = vmul.f32 1.0, %v812
    %v814 = vrcp.pop %v811
    %v815 = vmul.f32 1.0, %v814
    %v816 = vtanh.pop %v802
    %v817 = vtanh.pop %v803
    %v820 = vrot.slane %v695, 7
    %v821 = vrot.slane %v696, 7
    %v824 = vmul.f32 %v813, %v820
    %v825 = vmul.f32 %v815, %v821
    %828 = vrot.lane.b32.xlu0 %v816, 64
    %v829 = vpop.permute.xlu0 %828
    %830 = vrot.lane.b32.xlu0 %v817, 64
    %v831 = vpop.permute.xlu0 %830
    %v834 = vmul.f32 %v813, %v829
    %v835 = vmul.f32 %v815, %v831
    %838 = vrot.lane.b32.xlu0 %v834, 32
    %v839 = vpop.permute.xlu0 %838
    %840 = vrot.lane.b32.xlu0 %v835, 32
    %v841 = vpop.permute.xlu0 %840
    %v844 = vadd.f32 %v824, %v839
    %v845 = vadd.f32 %v825, %v841
    %v846 = vtanh.pop %v844
    %v847 = vtanh.pop %v845
    %850 = vrot.lane.b32.xlu0 %v846, 64
    %v851 = vpop.permute.xlu0 %850
    %852 = vrot.lane.b32.xlu0 %v847, 64
    %v853 = vpop.permute.xlu0 %852
    %v856 = vmul.f32 %v813, %v851
    %v857 = vmul.f32 %v815, %v853
    %860 = vrot.lane.b32.xlu0 %v856, 32
    %v861 = vpop.permute.xlu0 %860
    %862 = vrot.lane.b32.xlu0 %v857, 32
    %v863 = vpop.permute.xlu0 %862
    %vm866 = vcmask 257027
    %867 = vst.msk [vmem:[#allocation2] sm:$0x8] %vm866, %v861
    %868 = vst.msk [vmem:[#allocation2 + $0x8] sm:$0x8] %vm866, %v863
    %v869 = vrot.slane %v856, 3
    %v870 = vrot.slane %v857, 2
    %v871 = vsel %vm425, %v870, %v869
    %872 = vrot.lane.b32.xlu0 %v871, 32
    %v873 = vpop.permute.xlu0 %872
    %v874 = vsel %vm285, %v873, 0
    %876 = vmatprep.subr.mxu0 0.0
    %877 = vmatpush1.msra.mxu0 0.0
    %878 = vmatprep.subr.mxu0 0.0
    %879 = vmatpush1.msra.mxu0 0.0
    %880 = vmatprep.subr.mxu0 0.0
    %881 = vmatpush1.msra.mxu0 0.0
    %882 = vmatprep.subr.mxu0 0.0
    %883 = vmatpush1.msra.mxu0 0.0
    %884 = vmatprep.subr.mxu0 0.0
    %885 = vmatpush1.msra.mxu0 0.0
    %886 = vmatprep.subr.mxu0 0.0
    %887 = vmatpush1.msra.mxu0 0.0
    %888 = vmatprep.subr.mxu0 0.0
    %889 = vmatpush1.msra.mxu0 0.0
    %890 = vmatprep.subr.mxu0 0.0
    %891 = vmatpush1.msra.mxu0 0.0
    %892 = vmatprep.subr.mxu0 0.0
    %893 = vmatpush1.msra.mxu0 0.0
    %894 = vmatprep.subr.mxu0 0.0
    %895 = vmatpush1.msra.mxu0 0.0
    %896 = vmatprep.subr.mxu0 0.0
    %897 = vmatpush1.msra.mxu0 0.0
    %898 = vmatprep.subr.mxu0 0.0
    %899 = vmatpush1.msra.mxu0 0.0
    %900 = vmatprep.subr.mxu0 0.0
    %901 = vmatpush1.msra.mxu0 %v195
    %902 = vmatprep.subr.mxu0 0.0
    %903 = vmatpush1.msra.mxu0 %v194
    %904 = vmatprep.subr.mxu0 0.0
    %905 = vmatpush1.msra.mxu0 %v193
    %906 = vmatprep.subr.mxu0 0.0
    %907 = vmatpush1.msra.mxu0 %v192
    %908 = vmatprep.subr.mxu0 0.0
    %909 = vmatpush2.msra.mxu0 0.0
    %910 = vmatprep.subr.mxu0 0.0
    %911 = vmatpush2.msra.mxu0 0.0
    %912 = vmatprep.subr.mxu0 0.0
    %913 = vmatpush2.msra.mxu0 0.0
    %914 = vmatprep.subr.mxu0 0.0
    %915 = vmatpush2.msra.mxu0 0.0
    %916 = vmatprep.subr.mxu0 0.0
    %917 = vmatpush2.msra.mxu0 0.0
    %918 = vmatprep.subr.mxu0 0.0
    %919 = vmatpush2.msra.mxu0 0.0
    %920 = vmatprep.subr.mxu0 0.0
    %921 = vmatpush2.msra.mxu0 0.0
    %922 = vmatprep.subr.mxu0 0.0
    %923 = vmatpush2.msra.mxu0 0.0
    %924 = vmatprep.subr.mxu0 0.0
    %925 = vmatpush2.msra.mxu0 0.0
    %926 = vmatprep.subr.mxu0 0.0
    %927 = vmatpush2.msra.mxu0 0.0
    %928 = vmatprep.subr.mxu0 0.0
    %929 = vmatpush2.msra.mxu0 0.0
    %930 = vmatprep.subr.mxu0 0.0
    %931 = vmatpush2.msra.mxu0 0.0
    %932 = vmatprep.subr.mxu0 0.0
    %933 = vmatpush2.msra.mxu0 0.0
    %934 = vmatprep.subr.mxu0 0.0
    %935 = vmatpush2.msra.mxu0 0.0
    %936 = vmatprep.subr.mxu0 0.0
    %937 = vmatpush2.msra.mxu0 0.0
    %938 = vmatprep.subr.mxu0 0.0
    %939 = vmatpush2.msra.mxu0 0.0
    %940 = vmatprep.mubr.f32.mxu0 0.0
    %941 = vmatmul.mubr.f32.gmra.mxu0 %v874
    %v942 = vpop.f32.mrf.mxu0
    %v943 = vadd.f32 0.0, %v942
    %v944 = vpop.f32.mrf.mxu0
    %945 = vdwg.mxu0
    %v947 = vrot.slane %v943, 4
    %v948 = vrot.slane %v943, 5
    %v951 = vadd.f32 %v277, %v947
    %v952 = vadd.f32 %v282, %v948
    %v953 = vxor.u32 %v951, 2147483648
    %v954 = vxor.u32 %v952, 2147483648
    %v955 = vmul.f32 %v953, 1.442695
    %v956 = vpow.pop %v955
    %v957 = vmul.f32 %v954, 1.442695
    %v958 = vpow.pop %v957
    %v959 = vadd.f32 %v956, 1.0
    %v960 = vadd.f32 %v958, 1.0
    %v961 = vrcp.pop %v959
    %v962 = vmul.f32 1.0, %v961
    %v963 = vrcp.pop %v960
    %v964 = vmul.f32 1.0, %v963
    %v965 = vtanh.pop %v951
    %v966 = vtanh.pop %v952
    %v969 = vrot.slane %v844, 7
    %v970 = vrot.slane %v845, 7
    %v973 = vmul.f32 %v962, %v969
    %v974 = vmul.f32 %v964, %v970
    %977 = vrot.lane.b32.xlu0 %v965, 64
    %v978 = vpop.permute.xlu0 %977
    %979 = vrot.lane.b32.xlu0 %v966, 64
    %v980 = vpop.permute.xlu0 %979
    %v983 = vmul.f32 %v962, %v978
    %v984 = vmul.f32 %v964, %v980
    %987 = vrot.lane.b32.xlu0 %v983, 32
    %v988 = vpop.permute.xlu0 %987
    %989 = vrot.lane.b32.xlu0 %v984, 32
    %v990 = vpop.permute.xlu0 %989
    %v993 = vadd.f32 %v973, %v988
    %v994 = vadd.f32 %v974, %v990
    %v995 = vtanh.pop %v993
    %v996 = vtanh.pop %v994
    %999 = vrot.lane.b32.xlu0 %v995, 64
    %v1000 = vpop.permute.xlu0 %999
    %1001 = vrot.lane.b32.xlu0 %v996, 64
    %v1002 = vpop.permute.xlu0 %1001
    %v1005 = vmul.f32 %v962, %v1000
    %v1006 = vmul.f32 %v964, %v1002
    %1009 = vrot.lane.b32.xlu0 %v1005, 32
    %v1010 = vpop.permute.xlu0 %1009
    %1011 = vrot.lane.b32.xlu0 %v1006, 32
    %v1012 = vpop.permute.xlu0 %1011
    %vm1015 = vcmask 258052
    %1016 = vst.msk [vmem:[#allocation2] sm:$0x10] %vm1015, %v1010
    %1017 = vst.msk [vmem:[#allocation2 + $0x8] sm:$0x10] %vm1015, %v1012
    %v1018 = vrot.slane %v1005, 4
    %v1019 = vrot.slane %v1006, 3
    %v1020 = vsel %vm425, %v1019, %v1018
    %1021 = vrot.lane.b32.xlu0 %v1020, 32
    %v1022 = vpop.permute.xlu0 %1021
    %v1023 = vsel %vm285, %v1022, 0
    %1025 = vmatprep.subr.mxu0 0.0
    %1026 = vmatpush1.msra.mxu0 0.0
    %1027 = vmatprep.subr.mxu0 0.0
    %1028 = vmatpush1.msra.mxu0 0.0
    %1029 = vmatprep.subr.mxu0 0.0
    %1030 = vmatpush1.msra.mxu0 0.0
    %1031 = vmatprep.subr.mxu0 0.0
    %1032 = vmatpush1.msra.mxu0 0.0
    %1033 = vmatprep.subr.mxu0 0.0
    %1034 = vmatpush1.msra.mxu0 0.0
    %1035 = vmatprep.subr.mxu0 0.0
    %1036 = vmatpush1.msra.mxu0 0.0
    %1037 = vmatprep.subr.mxu0 0.0
    %1038 = vmatpush1.msra.mxu0 0.0
    %1039 = vmatprep.subr.mxu0 0.0
    %1040 = vmatpush1.msra.mxu0 0.0
    %1041 = vmatprep.subr.mxu0 0.0
    %1042 = vmatpush1.msra.mxu0 0.0
    %1043 = vmatprep.subr.mxu0 0.0
    %1044 = vmatpush1.msra.mxu0 0.0
    %1045 = vmatprep.subr.mxu0 0.0
    %1046 = vmatpush1.msra.mxu0 0.0
    %1047 = vmatprep.subr.mxu0 0.0
    %1048 = vmatpush1.msra.mxu0 0.0
    %1049 = vmatprep.subr.mxu0 0.0
    %1050 = vmatpush1.msra.mxu0 %v195
    %1051 = vmatprep.subr.mxu0 0.0
    %1052 = vmatpush1.msra.mxu0 %v194
    %1053 = vmatprep.subr.mxu0 0.0
    %1054 = vmatpush1.msra.mxu0 %v193
    %1055 = vmatprep.subr.mxu0 0.0
    %1056 = vmatpush1.msra.mxu0 %v192
    %1057 = vmatprep.subr.mxu0 0.0
    %1058 = vmatpush2.msra.mxu0 0.0
    %1059 = vmatprep.subr.mxu0 0.0
    %1060 = vmatpush2.msra.mxu0 0.0
    %1061 = vmatprep.subr.mxu0 0.0
    %1062 = vmatpush2.msra.mxu0 0.0
    %1063 = vmatprep.subr.mxu0 0.0
    %1064 = vmatpush2.msra.mxu0 0.0
    %1065 = vmatprep.subr.mxu0 0.0
    %1066 = vmatpush2.msra.mxu0 0.0
    %1067 = vmatprep.subr.mxu0 0.0
    %1068 = vmatpush2.msra.mxu0 0.0
    %1069 = vmatprep.subr.mxu0 0.0
    %1070 = vmatpush2.msra.mxu0 0.0
    %1071 = vmatprep.subr.mxu0 0.0
    %1072 = vmatpush2.msra.mxu0 0.0
    %1073 = vmatprep.subr.mxu0 0.0
    %1074 = vmatpush2.msra.mxu0 0.0
    %1075 = vmatprep.subr.mxu0 0.0
    %1076 = vmatpush2.msra.mxu0 0.0
    %1077 = vmatprep.subr.mxu0 0.0
    %1078 = vmatpush2.msra.mxu0 0.0
    %1079 = vmatprep.subr.mxu0 0.0
    %1080 = vmatpush2.msra.mxu0 0.0
    %1081 = vmatprep.subr.mxu0 0.0
    %1082 = vmatpush2.msra.mxu0 0.0
    %1083 = vmatprep.subr.mxu0 0.0
    %1084 = vmatpush2.msra.mxu0 0.0
    %1085 = vmatprep.subr.mxu0 0.0
    %1086 = vmatpush2.msra.mxu0 0.0
    %1087 = vmatprep.subr.mxu0 0.0
    %1088 = vmatpush2.msra.mxu0 0.0
    %1089 = vmatprep.mubr.f32.mxu0 0.0
    %1090 = vmatmul.mubr.f32.gmra.mxu0 %v1023
    %v1091 = vpop.f32.mrf.mxu0
    %v1092 = vadd.f32 0.0, %v1091
    %v1093 = vpop.f32.mrf.mxu0
    %1094 = vdwg.mxu0
    %v1096 = vrot.slane %v1092, 3
    %v1097 = vrot.slane %v1092, 4
    %v1100 = vadd.f32 %v277, %v1096
    %v1101 = vadd.f32 %v282, %v1097
    %v1102 = vxor.u32 %v1100, 2147483648
    %v1103 = vxor.u32 %v1101, 2147483648
    %v1104 = vmul.f32 %v1102, 1.442695
    %v1105 = vpow.pop %v1104
    %v1106 = vmul.f32 %v1103, 1.442695
    %v1107 = vpow.pop %v1106
    %v1108 = vadd.f32 %v1105, 1.0
    %v1109 = vadd.f32 %v1107, 1.0
    %v1110 = vrcp.pop %v1108
    %v1111 = vmul.f32 1.0, %v1110
    %v1112 = vrcp.pop %v1109
    %v1113 = vmul.f32 1.0, %v1112
    %v1114 = vtanh.pop %v1100
    %v1115 = vtanh.pop %v1101
    %v1118 = vrot.slane %v993, 7
    %v1119 = vrot.slane %v994, 7
    %v1122 = vmul.f32 %v1111, %v1118
    %v1123 = vmul.f32 %v1113, %v1119
    %1126 = vrot.lane.b32.xlu0 %v1114, 64
    %v1127 = vpop.permute.xlu0 %1126
    %1128 = vrot.lane.b32.xlu0 %v1115, 64
    %v1129 = vpop.permute.xlu0 %1128
    %v1132 = vmul.f32 %v1111, %v1127
    %v1133 = vmul.f32 %v1113, %v1129
    %1136 = vrot.lane.b32.xlu0 %v1132, 32
    %v1137 = vpop.permute.xlu0 %1136
    %1138 = vrot.lane.b32.xlu0 %v1133, 32
    %v1139 = vpop.permute.xlu0 %1138
    %v1142 = vadd.f32 %v1122, %v1137
    %v1143 = vadd.f32 %v1123, %v1139
    %v1144 = vtanh.pop %v1142
    %v1145 = vtanh.pop %v1143
    %1148 = vrot.lane.b32.xlu0 %v1144, 64
    %v1149 = vpop.permute.xlu0 %1148
    %1150 = vrot.lane.b32.xlu0 %v1145, 64
    %v1151 = vpop.permute.xlu0 %1150
    %v1154 = vmul.f32 %v1111, %v1149
    %v1155 = vmul.f32 %v1113, %v1151
    %1158 = vrot.lane.b32.xlu0 %v1154, 32
    %v1159 = vpop.permute.xlu0 %1158
    %1160 = vrot.lane.b32.xlu0 %v1155, 32
    %v1161 = vpop.permute.xlu0 %1160
    %vm1164 = vcmask 259077
    %1165 = vst.msk [vmem:[#allocation2] sm:$0x20] %vm1164, %v1159
    %1166 = vst.msk [vmem:[#allocation2 + $0x8] sm:$0x20] %vm1164, %v1161
    %v1167 = vrot.slane %v1154, 5
    %v1168 = vrot.slane %v1155, 4
    %v1169 = vsel %vm425, %v1168, %v1167
    %1170 = vrot.lane.b32.xlu0 %v1169, 32
    %v1171 = vpop.permute.xlu0 %1170
    %v1172 = vsel %vm285, %v1171, 0
    %1174 = vmatprep.subr.mxu0 0.0
    %1175 = vmatpush1.msra.mxu0 0.0
    %1176 = vmatprep.subr.mxu0 0.0
    %1177 = vmatpush1.msra.mxu0 0.0
    %1178 = vmatprep.subr.mxu0 0.0
    %1179 = vmatpush1.msra.mxu0 0.0
    %1180 = vmatprep.subr.mxu0 0.0
    %1181 = vmatpush1.msra.mxu0 0.0
    %1182 = vmatprep.subr.mxu0 0.0
    %1183 = vmatpush1.msra.mxu0 0.0
    %1184 = vmatprep.subr.mxu0 0.0
    %1185 = vmatpush1.msra.mxu0 0.0
    %1186 = vmatprep.subr.mxu0 0.0
    %1187 = vmatpush1.msra.mxu0 0.0
    %1188 = vmatprep.subr.mxu0 0.0
    %1189 = vmatpush1.msra.mxu0 0.0
    %1190 = vmatprep.subr.mxu0 0.0
    %1191 = vmatpush1.msra.mxu0 0.0
    %1192 = vmatprep.subr.mxu0 0.0
    %1193 = vmatpush1.msra.mxu0 0.0
    %1194 = vmatprep.subr.mxu0 0.0
    %1195 = vmatpush1.msra.mxu0 0.0
    %1196 = vmatprep.subr.mxu0 0.0
    %1197 = vmatpush1.msra.mxu0 0.0
    %1198 = vmatprep.subr.mxu0 0.0
    %1199 = vmatpush1.msra.mxu0 %v195
    %1200 = vmatprep.subr.mxu0 0.0
    %1201 = vmatpush1.msra.mxu0 %v194
    %1202 = vmatprep.subr.mxu0 0.0
    %1203 = vmatpush1.msra.mxu0 %v193
    %1204 = vmatprep.subr.mxu0 0.0
    %1205 = vmatpush1.msra.mxu0 %v192
    %1206 = vmatprep.subr.mxu0 0.0
    %1207 = vmatpush2.msra.mxu0 0.0
    %1208 = vmatprep.subr.mxu0 0.0
    %1209 = vmatpush2.msra.mxu0 0.0
    %1210 = vmatprep.subr.mxu0 0.0
    %1211 = vmatpush2.msra.mxu0 0.0
    %1212 = vmatprep.subr.mxu0 0.0
    %1213 = vmatpush2.msra.mxu0 0.0
    %1214 = vmatprep.subr.mxu0 0.0
    %1215 = vmatpush2.msra.mxu0 0.0
    %1216 = vmatprep.subr.mxu0 0.0
    %1217 = vmatpush2.msra.mxu0 0.0
    %1218 = vmatprep.subr.mxu0 0.0
    %1219 = vmatpush2.msra.mxu0 0.0
    %1220 = vmatprep.subr.mxu0 0.0
    %1221 = vmatpush2.msra.mxu0 0.0
    %1222 = vmatprep.subr.mxu0 0.0
    %1223 = vmatpush2.msra.mxu0 0.0
    %1224 = vmatprep.subr.mxu0 0.0
    %1225 = vmatpush2.msra.mxu0 0.0
    %1226 = vmatprep.subr.mxu0 0.0
    %1227 = vmatpush2.msra.mxu0 0.0
    %1228 = vmatprep.subr.mxu0 0.0
    %1229 = vmatpush2.msra.mxu0 0.0
    %1230 = vmatprep.subr.mxu0 0.0
    %1231 = vmatpush2.msra.mxu0 0.0
    %1232 = vmatprep.subr.mxu0 0.0
    %1233 = vmatpush2.msra.mxu0 0.0
    %1234 = vmatprep.subr.mxu0 0.0
    %1235 = vmatpush2.msra.mxu0 0.0
    %1236 = vmatprep.subr.mxu0 0.0
    %1237 = vmatpush2.msra.mxu0 0.0
    %1238 = vmatprep.mubr.f32.mxu0 0.0
    %1239 = vmatmul.mubr.f32.gmra.mxu0 %v1172
    %v1240 = vpop.f32.mrf.mxu0
    %v1241 = vadd.f32 0.0, %v1240
    %v1242 = vpop.f32.mrf.mxu0
    %1243 = vdwg.mxu0
    %v1245 = vrot.slane %v1241, 2
    %v1246 = vrot.slane %v1241, 3
    %v1249 = vadd.f32 %v277, %v1245
    %v1250 = vadd.f32 %v282, %v1246
    %v1251 = vxor.u32 %v1249, 2147483648
    %v1252 = vxor.u32 %v1250, 2147483648
    %v1253 = vmul.f32 %v1251, 1.442695
    %v1254 = vpow.pop %v1253
    %v1255 = vmul.f32 %v1252, 1.442695
    %v1256 = vpow.pop %v1255
    %v1257 = vadd.f32 %v1254, 1.0
    %v1258 = vadd.f32 %v1256, 1.0
    %v1259 = vrcp.pop %v1257
    %v1260 = vmul.f32 1.0, %v1259
    %v1261 = vrcp.pop %v1258
    %v1262 = vmul.f32 1.0, %v1261
    %v1263 = vtanh.pop %v1249
    %v1264 = vtanh.pop %v1250
    %v1267 = vrot.slane %v1142, 7
    %v1268 = vrot.slane %v1143, 7
    %v1271 = vmul.f32 %v1260, %v1267
    %v1272 = vmul.f32 %v1262, %v1268
    %1275 = vrot.lane.b32.xlu0 %v1263, 64
    %v1276 = vpop.permute.xlu0 %1275
    %1277 = vrot.lane.b32.xlu0 %v1264, 64
    %v1278 = vpop.permute.xlu0 %1277
    %v1281 = vmul.f32 %v1260, %v1276
    %v1282 = vmul.f32 %v1262, %v1278
    %1285 = vrot.lane.b32.xlu0 %v1281, 32
    %v1286 = vpop.permute.xlu0 %1285
    %1287 = vrot.lane.b32.xlu0 %v1282, 32
    %v1288 = vpop.permute.xlu0 %1287
    %v1291 = vadd.f32 %v1271, %v1286
    %v1292 = vadd.f32 %v1272, %v1288
    %v1293 = vtanh.pop %v1291
    %v1294 = vtanh.pop %v1292
    %1297 = vrot.lane.b32.xlu0 %v1293, 64
    %v1298 = vpop.permute.xlu0 %1297
    %1299 = vrot.lane.b32.xlu0 %v1294, 64
    %v1300 = vpop.permute.xlu0 %1299
    %v1303 = vmul.f32 %v1260, %v1298
    %v1304 = vmul.f32 %v1262, %v1300
    %1307 = vrot.lane.b32.xlu0 %v1303, 32
    %v1308 = vpop.permute.xlu0 %1307
    %1309 = vrot.lane.b32.xlu0 %v1304, 32
    %v1310 = vpop.permute.xlu0 %1309
    %vm1313 = vcmask 260102
    %1314 = vst.msk [vmem:[#allocation2] sm:$0x40] %vm1313, %v1308
    %1315 = vst.msk [vmem:[#allocation2 + $0x8] sm:$0x40] %vm1313, %v1310
    %v1316 = vrot.slane %v1303, 6
    %v1317 = vrot.slane %v1304, 5
    %v1318 = vsel %vm425, %v1317, %v1316
    %1319 = vrot.lane.b32.xlu0 %v1318, 32
    %v1320 = vpop.permute.xlu0 %1319
    %v1321 = vsel %vm285, %v1320, 0
    %1323 = vmatprep.subr.mxu0 0.0
    %1324 = vmatpush1.msra.mxu0 0.0
    %1325 = vmatprep.subr.mxu0 0.0
    %1326 = vmatpush1.msra.mxu0 0.0
    %1327 = vmatprep.subr.mxu0 0.0
    %1328 = vmatpush1.msra.mxu0 0.0
    %1329 = vmatprep.subr.mxu0 0.0
    %1330 = vmatpush1.msra.mxu0 0.0
    %1331 = vmatprep.subr.mxu0 0.0
    %1332 = vmatpush1.msra.mxu0 0.0
    %1333 = vmatprep.subr.mxu0 0.0
    %1334 = vmatpush1.msra.mxu0 0.0
    %1335 = vmatprep.subr.mxu0 0.0
    %1336 = vmatpush1.msra.mxu0 0.0
    %1337 = vmatprep.subr.mxu0 0.0
    %1338 = vmatpush1.msra.mxu0 0.0
    %1339 = vmatprep.subr.mxu0 0.0
    %1340 = vmatpush1.msra.mxu0 0.0
    %1341 = vmatprep.subr.mxu0 0.0
    %1342 = vmatpush1.msra.mxu0 0.0
    %1343 = vmatprep.subr.mxu0 0.0
    %1344 = vmatpush1.msra.mxu0 0.0
    %1345 = vmatprep.subr.mxu0 0.0
    %1346 = vmatpush1.msra.mxu0 0.0
    %1347 = vmatprep.subr.mxu0 0.0
    %1348 = vmatpush1.msra.mxu0 %v195
    %1349 = vmatprep.subr.mxu0 0.0
    %1350 = vmatpush1.msra.mxu0 %v194
    %1351 = vmatprep.subr.mxu0 0.0
    %1352 = vmatpush1.msra.mxu0 %v193
    %1353 = vmatprep.subr.mxu0 0.0
    %1354 = vmatpush1.msra.mxu0 %v192
    %1355 = vmatprep.subr.mxu0 0.0
    %1356 = vmatpush2.msra.mxu0 0.0
    %1357 = vmatprep.subr.mxu0 0.0
    %1358 = vmatpush2.msra.mxu0 0.0
    %1359 = vmatprep.subr.mxu0 0.0
    %1360 = vmatpush2.msra.mxu0 0.0
    %1361 = vmatprep.subr.mxu0 0.0
    %1362 = vmatpush2.msra.mxu0 0.0
    %1363 = vmatprep.subr.mxu0 0.0
    %1364 = vmatpush2.msra.mxu0 0.0
    %1365 = vmatprep.subr.mxu0 0.0
    %1366 = vmatpush2.msra.mxu0 0.0
    %1367 = vmatprep.subr.mxu0 0.0
    %1368 = vmatpush2.msra.mxu0 0.0
    %1369 = vmatprep.subr.mxu0 0.0
    %1370 = vmatpush2.msra.mxu0 0.0
    %1371 = vmatprep.subr.mxu0 0.0
    %1372 = vmatpush2.msra.mxu0 0.0
    %1373 = vmatprep.subr.mxu0 0.0
    %1374 = vmatpush2.msra.mxu0 0.0
    %1375 = vmatprep.subr.mxu0 0.0
    %1376 = vmatpush2.msra.mxu0 0.0
    %1377 = vmatprep.subr.mxu0 0.0
    %1378 = vmatpush2.msra.mxu0 0.0
    %1379 = vmatprep.subr.mxu0 0.0
    %1380 = vmatpush2.msra.mxu0 0.0
    %1381 = vmatprep.subr.mxu0 0.0
    %1382 = vmatpush2.msra.mxu0 0.0
    %1383 = vmatprep.subr.mxu0 0.0
    %1384 = vmatpush2.msra.mxu0 0.0
    %1385 = vmatprep.subr.mxu0 0.0
    %1386 = vmatpush2.msra.mxu0 0.0
    %1387 = vmatprep.mubr.f32.mxu0 0.0
    %1388 = vmatmul.mubr.f32.gmra.mxu0 %v1321
    %v1389 = vpop.f32.mrf.mxu0
    %v1390 = vadd.f32 0.0, %v1389
    %v1391 = vpop.f32.mrf.mxu0
    %1392 = vdwg.mxu0
    %v1394 = vrot.slane %v1390, 1
    %v1395 = vrot.slane %v1390, 2
    %v1398 = vadd.f32 %v277, %v1394
    %v1399 = vadd.f32 %v282, %v1395
    %v1400 = vxor.u32 %v1398, 2147483648
    %v1401 = vxor.u32 %v1399, 2147483648
    %v1402 = vmul.f32 %v1400, 1.442695
    %v1403 = vpow.pop %v1402
    %v1404 = vmul.f32 %v1401, 1.442695
    %v1405 = vpow.pop %v1404
    %v1406 = vadd.f32 %v1403, 1.0
    %v1407 = vadd.f32 %v1405, 1.0
    %v1408 = vrcp.pop %v1406
    %v1409 = vmul.f32 1.0, %v1408
    %v1410 = vrcp.pop %v1407
    %v1411 = vmul.f32 1.0, %v1410
    %v1412 = vtanh.pop %v1398
    %v1413 = vtanh.pop %v1399
    %v1416 = vrot.slane %v1291, 7
    %v1417 = vrot.slane %v1292, 7
    %v1420 = vmul.f32 %v1409, %v1416
    %v1421 = vmul.f32 %v1411, %v1417
    %1424 = vrot.lane.b32.xlu0 %v1412, 64
    %v1425 = vpop.permute.xlu0 %1424
    %1426 = vrot.lane.b32.xlu0 %v1413, 64
    %v1427 = vpop.permute.xlu0 %1426
    %v1430 = vmul.f32 %v1409, %v1425
    %v1431 = vmul.f32 %v1411, %v1427
    %1434 = vrot.lane.b32.xlu0 %v1430, 32
    %v1435 = vpop.permute.xlu0 %1434
    %1436 = vrot.lane.b32.xlu0 %v1431, 32
    %v1437 = vpop.permute.xlu0 %1436
    %v1440 = vadd.f32 %v1420, %v1435
    %v1441 = vadd.f32 %v1421, %v1437
    %v1442 = vtanh.pop %v1440
    %v1443 = vtanh.pop %v1441
    %1446 = vrot.lane.b32.xlu0 %v1442, 64
    %v1447 = vpop.permute.xlu0 %1446
    %1448 = vrot.lane.b32.xlu0 %v1443, 64
    %v1449 = vpop.permute.xlu0 %1448
    %v1452 = vmul.f32 %v1409, %v1447
    %v1453 = vmul.f32 %v1411, %v1449
    %1456 = vrot.lane.b32.xlu0 %v1452, 32
    %v1457 = vpop.permute.xlu0 %1456
    %1458 = vrot.lane.b32.xlu0 %v1453, 32
    %v1459 = vpop.permute.xlu0 %1458
    %vm1462 = vcmask 261127
    %1463 = vst.msk [vmem:[#allocation2] sm:$0x80] %vm1462, %v1457
    %1464 = vst.msk [vmem:[#allocation2 + $0x8] sm:$0x80] %vm1462, %v1459
    %v1465 = vld [vmem:[#allocation2] sm:$0xff]
    %v1466 = vld [vmem:[#allocation2 + $0x8] sm:$0xff]
    %v1467 = vld [vmem:[%s4] sm:$0xff]
    %v1468 = vld [vmem:[%s4 + $0x8] sm:$0xff]
    %v1469 = vld [vmem:[%s4 + $0x10] sm:$0xff]
    %v1470 = vld [vmem:[%s4 + $0x18] sm:$0xff]
    %v1471 = vld [vmem:[#allocation11] sm:$0xff]
    %v1472 = vld [vmem:[#allocation11 + $0x8] sm:$0xff]
    %v1473 = vld [vmem:[#allocation11 + $0x10] sm:$0xff]
    %v1474 = vld [vmem:[#allocation11 + $0x18] sm:$0xff]
    %v1475 = vld [vmem:[#allocation12] sm:$0x1]
    %v1477 = vlaneseq
    %v1478 = vshrl.u32 %v1477, 7
    %v1479 = vsub.s32 0, %v1478
    %v1480 = vrot.slane %v1475, %v1479
    %v1483 = vsel %vm285, %v1465, 0
    %v1486 = vsel %vm285, %v1466, 0
    %1488 = vmatprep.subr.mxu0 0.0
    %1489 = vmatpush1.msra.mxu0 0.0
    %1490 = vmatprep.subr.mxu0 0.0
    %1491 = vmatpush1.msra.mxu0 0.0
    %1492 = vmatprep.subr.mxu0 0.0
    %1493 = vmatpush1.msra.mxu0 0.0
    %1494 = vmatprep.subr.mxu0 0.0
    %1495 = vmatpush1.msra.mxu0 0.0
    %1496 = vmatprep.subr.mxu0 0.0
    %1497 = vmatpush1.msra.mxu0 0.0
    %1498 = vmatprep.subr.mxu0 0.0
    %1499 = vmatpush1.msra.mxu0 0.0
    %1500 = vmatprep.subr.mxu0 0.0
    %1501 = vmatpush1.msra.mxu0 0.0
    %1502 = vmatprep.subr.mxu0 0.0
    %1503 = vmatpush1.msra.mxu0 0.0
    %1504 = vmatprep.subr.mxu0 0.0
    %1505 = vmatpush1.msra.mxu0 0.0
    %1506 = vmatprep.subr.mxu0 0.0
    %1507 = vmatpush1.msra.mxu0 0.0
    %1508 = vmatprep.subr.mxu0 0.0
    %1509 = vmatpush1.msra.mxu0 0.0
    %1510 = vmatprep.subr.mxu0 0.0
    %1511 = vmatpush1.msra.mxu0 0.0
    %1512 = vmatprep.subr.mxu0 0.0
    %1513 = vmatpush1.msra.mxu0 %v1470
    %1514 = vmatprep.subr.mxu0 0.0
    %1515 = vmatpush1.msra.mxu0 %v1469
    %1516 = vmatprep.subr.mxu0 0.0
    %1517 = vmatpush1.msra.mxu0 %v1468
    %1518 = vmatprep.subr.mxu0 0.0
    %1519 = vmatpush1.msra.mxu0 %v1467
    %1520 = vmatprep.subr.mxu0 0.0
    %1521 = vmatpush2.msra.mxu0 0.0
    %1522 = vmatprep.subr.mxu0 0.0
    %1523 = vmatpush2.msra.mxu0 0.0
    %1524 = vmatprep.subr.mxu0 0.0
    %1525 = vmatpush2.msra.mxu0 0.0
    %1526 = vmatprep.subr.mxu0 0.0
    %1527 = vmatpush2.msra.mxu0 0.0
    %1528 = vmatprep.subr.mxu0 0.0
    %1529 = vmatpush2.msra.mxu0 0.0
    %1530 = vmatprep.subr.mxu0 0.0
    %1531 = vmatpush2.msra.mxu0 0.0
    %1532 = vmatprep.subr.mxu0 0.0
    %1533 = vmatpush2.msra.mxu0 0.0
    %1534 = vmatprep.subr.mxu0 0.0
    %1535 = vmatpush2.msra.mxu0 0.0
    %1536 = vmatprep.subr.mxu0 0.0
    %1537 = vmatpush2.msra.mxu0 0.0
    %1538 = vmatprep.subr.mxu0 0.0
    %1539 = vmatpush2.msra.mxu0 0.0
    %1540 = vmatprep.subr.mxu0 0.0
    %1541 = vmatpush2.msra.mxu0 0.0
    %1542 = vmatprep.subr.mxu0 0.0
    %1543 = vmatpush2.msra.mxu0 0.0
    %1544 = vmatprep.subr.mxu0 0.0
    %1545 = vmatpush2.msra.mxu0 0.0
    %1546 = vmatprep.subr.mxu0 0.0
    %1547 = vmatpush2.msra.mxu0 0.0
    %1548 = vmatprep.subr.mxu0 0.0
    %1549 = vmatpush2.msra.mxu0 0.0
    %1550 = vmatprep.subr.mxu0 0.0
    %1551 = vmatpush2.msra.mxu0 0.0
    %1552 = vmatprep.mubr.f32.mxu0 0.0
    %1553 = vmatmul.mubr.f32.gmra.mxu0 %v1483
    %v1554 = vpop.f32.mrf.mxu0
    %v1555 = vadd.f32 %v1480, %v1554
    %v1556 = vpop.f32.mrf.mxu0
    %1557 = vmatprep.mubr.f32.mxu0 0.0
    %1558 = vmatmul.mubr.f32.gmra.mxu0 %v1486
    %v1559 = vpop.f32.mrf.mxu0
    %v1560 = vadd.f32 %v1480, %v1559
    %v1561 = vpop.f32.mrf.mxu0
    %1562 = vdwg.mxu0
    %1563 = vmatprep.subr.mxu0 0.0
    %1564 = vmatpush1.msra.mxu0 0.0
    %1565 = vmatprep.subr.mxu0 0.0
    %1566 = vmatpush1.msra.mxu0 0.0
    %1567 = vmatprep.subr.mxu0 0.0
    %1568 = vmatpush1.msra.mxu0 0.0
    %1569 = vmatprep.subr.mxu0 0.0
    %1570 = vmatpush1.msra.mxu0 0.0
    %1571 = vmatprep.subr.mxu0 0.0
    %1572 = vmatpush1.msra.mxu0 0.0
    %1573 = vmatprep.subr.mxu0 0.0
    %1574 = vmatpush1.msra.mxu0 0.0
    %1575 = vmatprep.subr.mxu0 0.0
    %1576 = vmatpush1.msra.mxu0 0.0
    %1577 = vmatprep.subr.mxu0 0.0
    %1578 = vmatpush1.msra.mxu0 0.0
    %1579 = vmatprep.subr.mxu0 0.0
    %1580 = vmatpush1.msra.mxu0 0.0
    %1581 = vmatprep.subr.mxu0 0.0
    %1582 = vmatpush1.msra.mxu0 0.0
    %1583 = vmatprep.subr.mxu0 0.0
    %1584 = vmatpush1.msra.mxu0 0.0
    %1585 = vmatprep.subr.mxu0 0.0
    %1586 = vmatpush1.msra.mxu0 0.0
    %1587 = vmatprep.subr.mxu0 0.0
    %1588 = vmatpush1.msra.mxu0 %v1474
    %1589 = vmatprep.subr.mxu0 0.0
    %1590 = vmatpush1.msra.mxu0 %v1473
    %1591 = vmatprep.subr.mxu0 0.0
    %1592 = vmatpush1.msra.mxu0 %v1472
    %1593 = vmatprep.subr.mxu0 0.0
    %1594 = vmatpush1.msra.mxu0 %v1471
    %1595 = vmatprep.subr.mxu0 0.0
    %1596 = vmatpush2.msra.mxu0 0.0
    %1597 = vmatprep.subr.mxu0 0.0
    %1598 = vmatpush2.msra.mxu0 0.0
    %1599 = vmatprep.subr.mxu0 0.0
    %1600 = vmatpush2.msra.mxu0 0.0
    %1601 = vmatprep.subr.mxu0 0.0
    %1602 = vmatpush2.msra.mxu0 0.0
    %1603 = vmatprep.subr.mxu0 0.0
    %1604 = vmatpush2.msra.mxu0 0.0
    %1605 = vmatprep.subr.mxu0 0.0
    %1606 = vmatpush2.msra.mxu0 0.0
    %1607 = vmatprep.subr.mxu0 0.0
    %1608 = vmatpush2.msra.mxu0 0.0
    %1609 = vmatprep.subr.mxu0 0.0
    %1610 = vmatpush2.msra.mxu0 0.0
    %1611 = vmatprep.subr.mxu0 0.0
    %1612 = vmatpush2.msra.mxu0 0.0
    %1613 = vmatprep.subr.mxu0 0.0
    %1614 = vmatpush2.msra.mxu0 0.0
    %1615 = vmatprep.subr.mxu0 0.0
    %1616 = vmatpush2.msra.mxu0 0.0
    %1617 = vmatprep.subr.mxu0 0.0
    %1618 = vmatpush2.msra.mxu0 0.0
    %1619 = vmatprep.subr.mxu0 0.0
    %1620 = vmatpush2.msra.mxu0 0.0
    %1621 = vmatprep.subr.mxu0 0.0
    %1622 = vmatpush2.msra.mxu0 0.0
    %1623 = vmatprep.subr.mxu0 0.0
    %1624 = vmatpush2.msra.mxu0 0.0
    %1625 = vmatprep.subr.mxu0 0.0
    %1626 = vmatpush2.msra.mxu0 0.0
    %1627 = vmatprep.mubr.f32.mxu0 0.0
    %1628 = vmatmul.mubr.f32.gmra.mxu0 %v287
    %v1629 = vpop.f32.mrf.mxu0
    %v1630 = vadd.f32 0.0, %v1629
    %v1631 = vpop.f32.mrf.mxu0
    %1632 = vdwg.mxu0
    %v1634 = vrot.slane %v1630, 1
    %v1637 = vadd.f32 %v1555, %v1630
    %v1638 = vadd.f32 %v1560, %v1634
    %v1639 = vxor.u32 %v1637, 2147483648
    %v1640 = vxor.u32 %v1638, 2147483648
    %v1641 = vmul.f32 %v1639, 1.442695
    %v1642 = vpow.pop %v1641
    %v1643 = vmul.f32 %v1640, 1.442695
    %v1644 = vpow.pop %v1643
    %v1645 = vadd.f32 %v1642, 1.0
    %v1646 = vadd.f32 %v1644, 1.0
    %v1647 = vrcp.pop %v1645
    %v1648 = vmul.f32 1.0, %v1647
    %v1649 = vrcp.pop %v1646
    %v1650 = vmul.f32 1.0, %v1649
    %v1651 = vtanh.pop %v1637
    %v1652 = vtanh.pop %v1638
    %v1653 = vmul.f32 %v1648, 0.0
    %v1654 = vmul.f32 %v1650, 0.0
    %1657 = vrot.lane.b32.xlu0 %v1651, 64
    %v1658 = vpop.permute.xlu0 %1657
    %1659 = vrot.lane.b32.xlu0 %v1652, 64
    %v1660 = vpop.permute.xlu0 %1659
    %v1663 = vmul.f32 %v1648, %v1658
    %v1664 = vmul.f32 %v1650, %v1660
    %1667 = vrot.lane.b32.xlu0 %v1663, 32
    %v1668 = vpop.permute.xlu0 %1667
    %1669 = vrot.lane.b32.xlu0 %v1664, 32
    %v1670 = vpop.permute.xlu0 %1669
    %v1673 = vadd.f32 %v1653, %v1668
    %v1674 = vadd.f32 %v1654, %v1670
    %v1675 = vtanh.pop %v1673
    %v1676 = vtanh.pop %v1674
    %1679 = vrot.lane.b32.xlu0 %v1675, 64
    %v1680 = vpop.permute.xlu0 %1679
    %1681 = vrot.lane.b32.xlu0 %v1676, 64
    %v1682 = vpop.permute.xlu0 %1681
    %v1685 = vmul.f32 %v1648, %v1680
    %v1686 = vmul.f32 %v1650, %v1682
    %1689 = vrot.lane.b32.xlu0 %v1685, 32
    %v1690 = vpop.permute.xlu0 %1689
    %1691 = vrot.lane.b32.xlu0 %v1686, 32
    %v1692 = vpop.permute.xlu0 %1691
    %1695 = vst.msk [vmem:[#allocation3] sm:$0x1] %vm421, %v1690
    %1696 = vst.msk [vmem:[#allocation3 + $0x8] sm:$0x1] %vm421, %v1692
    %v1697 = vrot.slane %v1686, 7
    %v1698 = vsel %vm425, %v1697, %v1685
    %1699 = vrot.lane.b32.xlu0 %v1698, 32
    %v1700 = vpop.permute.xlu0 %1699
    %v1701 = vsel %vm285, %v1700, 0
    %1703 = vmatprep.subr.mxu0 0.0
    %1704 = vmatpush1.msra.mxu0 0.0
    %1705 = vmatprep.subr.mxu0 0.0
    %1706 = vmatpush1.msra.mxu0 0.0
    %1707 = vmatprep.subr.mxu0 0.0
    %1708 = vmatpush1.msra.mxu0 0.0
    %1709 = vmatprep.subr.mxu0 0.0
    %1710 = vmatpush1.msra.mxu0 0.0
    %1711 = vmatprep.subr.mxu0 0.0
    %1712 = vmatpush1.msra.mxu0 0.0
    %1713 = vmatprep.subr.mxu0 0.0
    %1714 = vmatpush1.msra.mxu0 0.0
    %1715 = vmatprep.subr.mxu0 0.0
    %1716 = vmatpush1.msra.mxu0 0.0
    %1717 = vmatprep.subr.mxu0 0.0
    %1718 = vmatpush1.msra.mxu0 0.0
    %1719 = vmatprep.subr.mxu0 0.0
    %1720 = vmatpush1.msra.mxu0 0.0
    %1721 = vmatprep.subr.mxu0 0.0
    %1722 = vmatpush1.msra.mxu0 0.0
    %1723 = vmatprep.subr.mxu0 0.0
    %1724 = vmatpush1.msra.mxu0 0.0
    %1725 = vmatprep.subr.mxu0 0.0
    %1726 = vmatpush1.msra.mxu0 0.0
    %1727 = vmatprep.subr.mxu0 0.0
    %1728 = vmatpush1.msra.mxu0 %v1474
    %1729 = vmatprep.subr.mxu0 0.0
    %1730 = vmatpush1.msra.mxu0 %v1473
    %1731 = vmatprep.subr.mxu0 0.0
    %1732 = vmatpush1.msra.mxu0 %v1472
    %1733 = vmatprep.subr.mxu0 0.0
    %1734 = vmatpush1.msra.mxu0 %v1471
    %1735 = vmatprep.subr.mxu0 0.0
    %1736 = vmatpush2.msra.mxu0 0.0
    %1737 = vmatprep.subr.mxu0 0.0
    %1738 = vmatpush2.msra.mxu0 0.0
    %1739 = vmatprep.subr.mxu0 0.0
    %1740 = vmatpush2.msra.mxu0 0.0
    %1741 = vmatprep.subr.mxu0 0.0
    %1742 = vmatpush2.msra.mxu0 0.0
    %1743 = vmatprep.subr.mxu0 0.0
    %1744 = vmatpush2.msra.mxu0 0.0
    %1745 = vmatprep.subr.mxu0 0.0
    %1746 = vmatpush2.msra.mxu0 0.0
    %1747 = vmatprep.subr.mxu0 0.0
    %1748 = vmatpush2.msra.mxu0 0.0
    %1749 = vmatprep.subr.mxu0 0.0
    %1750 = vmatpush2.msra.mxu0 0.0
    %1751 = vmatprep.subr.mxu0 0.0
    %1752 = vmatpush2.msra.mxu0 0.0
    %1753 = vmatprep.subr.mxu0 0.0
    %1754 = vmatpush2.msra.mxu0 0.0
    %1755 = vmatprep.subr.mxu0 0.0
    %1756 = vmatpush2.msra.mxu0 0.0
    %1757 = vmatprep.subr.mxu0 0.0
    %1758 = vmatpush2.msra.mxu0 0.0
    %1759 = vmatprep.subr.mxu0 0.0
    %1760 = vmatpush2.msra.mxu0 0.0
    %1761 = vmatprep.subr.mxu0 0.0
    %1762 = vmatpush2.msra.mxu0 0.0
    %1763 = vmatprep.subr.mxu0 0.0
    %1764 = vmatpush2.msra.mxu0 0.0
    %1765 = vmatprep.subr.mxu0 0.0
    %1766 = vmatpush2.msra.mxu0 0.0
    %1767 = vmatprep.mubr.f32.mxu0 0.0
    %1768 = vmatmul.mubr.f32.gmra.mxu0 %v1701
    %v1769 = vpop.f32.mrf.mxu0
    %v1770 = vadd.f32 0.0, %v1769
    %v1771 = vpop.f32.mrf.mxu0
    %1772 = vdwg.mxu0
    %v1774 = vrot.slane %v1770, 7
    %v1777 = vadd.f32 %v1555, %v1774
    %v1778 = vadd.f32 %v1560, %v1770
    %v1779 = vxor.u32 %v1777, 2147483648
    %v1780 = vxor.u32 %v1778, 2147483648
    %v1781 = vmul.f32 %v1779, 1.442695
    %v1782 = vpow.pop %v1781
    %v1783 = vmul.f32 %v1780, 1.442695
    %v1784 = vpow.pop %v1783
    %v1785 = vadd.f32 %v1782, 1.0
    %v1786 = vadd.f32 %v1784, 1.0
    %v1787 = vrcp.pop %v1785
    %v1788 = vmul.f32 1.0, %v1787
    %v1789 = vrcp.pop %v1786
    %v1790 = vmul.f32 1.0, %v1789
    %v1791 = vtanh.pop %v1777
    %v1792 = vtanh.pop %v1778
    %v1795 = vrot.slane %v1673, 7
    %v1796 = vrot.slane %v1674, 7
    %v1799 = vmul.f32 %v1788, %v1795
    %v1800 = vmul.f32 %v1790, %v1796
    %1803 = vrot.lane.b32.xlu0 %v1791, 64
    %v1804 = vpop.permute.xlu0 %1803
    %1805 = vrot.lane.b32.xlu0 %v1792, 64
    %v1806 = vpop.permute.xlu0 %1805
    %v1809 = vmul.f32 %v1788, %v1804
    %v1810 = vmul.f32 %v1790, %v1806
    %1813 = vrot.lane.b32.xlu0 %v1809, 32
    %v1814 = vpop.permute.xlu0 %1813
    %1815 = vrot.lane.b32.xlu0 %v1810, 32
    %v1816 = vpop.permute.xlu0 %1815
    %v1819 = vadd.f32 %v1799, %v1814
    %v1820 = vadd.f32 %v1800, %v1816
    %v1821 = vtanh.pop %v1819
    %v1822 = vtanh.pop %v1820
    %1825 = vrot.lane.b32.xlu0 %v1821, 64
    %v1826 = vpop.permute.xlu0 %1825
    %1827 = vrot.lane.b32.xlu0 %v1822, 64
    %v1828 = vpop.permute.xlu0 %1827
    %v1831 = vmul.f32 %v1788, %v1826
    %v1832 = vmul.f32 %v1790, %v1828
    %1835 = vrot.lane.b32.xlu0 %v1831, 32
    %v1836 = vpop.permute.xlu0 %1835
    %1837 = vrot.lane.b32.xlu0 %v1832, 32
    %v1838 = vpop.permute.xlu0 %1837
    %1841 = vst.msk [vmem:[#allocation3] sm:$0x2] %vm569, %v1836
    %1842 = vst.msk [vmem:[#allocation3 + $0x8] sm:$0x2] %vm569, %v1838
    %v1843 = vrot.slane %v1831, 1
    %v1844 = vsel %vm425, %v1832, %v1843
    %1845 = vrot.lane.b32.xlu0 %v1844, 32
    %v1846 = vpop.permute.xlu0 %1845
    %v1847 = vsel %vm285, %v1846, 0
    %1849 = vmatprep.subr.mxu0 0.0
    %1850 = vmatpush1.msra.mxu0 0.0
    %1851 = vmatprep.subr.mxu0 0.0
    %1852 = vmatpush1.msra.mxu0 0.0
    %1853 = vmatprep.subr.mxu0 0.0
    %1854 = vmatpush1.msra.mxu0 0.0
    %1855 = vmatprep.subr.mxu0 0.0
    %1856 = vmatpush1.msra.mxu0 0.0
    %1857 = vmatprep.subr.mxu0 0.0
    %1858 = vmatpush1.msra.mxu0 0.0
    %1859 = vmatprep.subr.mxu0 0.0
    %1860 = vmatpush1.msra.mxu0 0.0
    %1861 = vmatprep.subr.mxu0 0.0
    %1862 = vmatpush1.msra.mxu0 0.0
    %1863 = vmatprep.subr.mxu0 0.0
    %1864 = vmatpush1.msra.mxu0 0.0
    %1865 = vmatprep.subr.mxu0 0.0
    %1866 = vmatpush1.msra.mxu0 0.0
    %1867 = vmatprep.subr.mxu0 0.0
    %1868 = vmatpush1.msra.mxu0 0.0
    %1869 = vmatprep.subr.mxu0 0.0
    %1870 = vmatpush1.msra.mxu0 0.0
    %1871 = vmatprep.subr.mxu0 0.0
    %1872 = vmatpush1.msra.mxu0 0.0
    %1873 = vmatprep.subr.mxu0 0.0
    %1874 = vmatpush1.msra.mxu0 %v1474
    %1875 = vmatprep.subr.mxu0 0.0
    %1876 = vmatpush1.msra.mxu0 %v1473
    %1877 = vmatprep.subr.mxu0 0.0
    %1878 = vmatpush1.msra.mxu0 %v1472
    %1879 = vmatprep.subr.mxu0 0.0
    %1880 = vmatpush1.msra.mxu0 %v1471
    %1881 = vmatprep.subr.mxu0 0.0
    %1882 = vmatpush2.msra.mxu0 0.0
    %1883 = vmatprep.subr.mxu0 0.0
    %1884 = vmatpush2.msra.mxu0 0.0
    %1885 = vmatprep.subr.mxu0 0.0
    %1886 = vmatpush2.msra.mxu0 0.0
    %1887 = vmatprep.subr.mxu0 0.0
    %1888 = vmatpush2.msra.mxu0 0.0
    %1889 = vmatprep.subr.mxu0 0.0
    %1890 = vmatpush2.msra.mxu0 0.0
    %1891 = vmatprep.subr.mxu0 0.0
    %1892 = vmatpush2.msra.mxu0 0.0
    %1893 = vmatprep.subr.mxu0 0.0
    %1894 = vmatpush2.msra.mxu0 0.0
    %1895 = vmatprep.subr.mxu0 0.0
    %1896 = vmatpush2.msra.mxu0 0.0
    %1897 = vmatprep.subr.mxu0 0.0
    %1898 = vmatpush2.msra.mxu0 0.0
    %1899 = vmatprep.subr.mxu0 0.0
    %1900 = vmatpush2.msra.mxu0 0.0
    %1901 = vmatprep.subr.mxu0 0.0
    %1902 = vmatpush2.msra.mxu0 0.0
    %1903 = vmatprep.subr.mxu0 0.0
    %1904 = vmatpush2.msra.mxu0 0.0
    %1905 = vmatprep.subr.mxu0 0.0
    %1906 = vmatpush2.msra.mxu0 0.0
    %1907 = vmatprep.subr.mxu0 0.0
    %1908 = vmatpush2.msra.mxu0 0.0
    %1909 = vmatprep.subr.mxu0 0.0
    %1910 = vmatpush2.msra.mxu0 0.0
    %1911 = vmatprep.subr.mxu0 0.0
    %1912 = vmatpush2.msra.mxu0 0.0
    %1913 = vmatprep.mubr.f32.mxu0 0.0
    %1914 = vmatmul.mubr.f32.gmra.mxu0 %v1847
    %v1915 = vpop.f32.mrf.mxu0
    %v1916 = vadd.f32 0.0, %v1915
    %v1917 = vpop.f32.mrf.mxu0
    %1918 = vdwg.mxu0
    %v1920 = vrot.slane %v1916, 6
    %v1921 = vrot.slane %v1916, 7
    %v1924 = vadd.f32 %v1555, %v1920
    %v1925 = vadd.f32 %v1560, %v1921
    %v1926 = vxor.u32 %v1924, 2147483648
    %v1927 = vxor.u32 %v1925, 2147483648
    %v1928 = vmul.f32 %v1926, 1.442695
    %v1929 = vpow.pop %v1928
    %v1930 = vmul.f32 %v1927, 1.442695
    %v1931 = vpow.pop %v1930
    %v1932 = vadd.f32 %v1929, 1.0
    %v1933 = vadd.f32 %v1931, 1.0
    %v1934 = vrcp.pop %v1932
    %v1935 = vmul.f32 1.0, %v1934
    %v1936 = vrcp.pop %v1933
    %v1937 = vmul.f32 1.0, %v1936
    %v1938 = vtanh.pop %v1924
    %v1939 = vtanh.pop %v1925
    %v1942 = vrot.slane %v1819, 7
    %v1943 = vrot.slane %v1820, 7
    %v1946 = vmul.f32 %v1935, %v1942
    %v1947 = vmul.f32 %v1937, %v1943
    %1950 = vrot.lane.b32.xlu0 %v1938, 64
    %v1951 = vpop.permute.xlu0 %1950
    %1952 = vrot.lane.b32.xlu0 %v1939, 64
    %v1953 = vpop.permute.xlu0 %1952
    %v1956 = vmul.f32 %v1935, %v1951
    %v1957 = vmul.f32 %v1937, %v1953
    %1960 = vrot.lane.b32.xlu0 %v1956, 32
    %v1961 = vpop.permute.xlu0 %1960
    %1962 = vrot.lane.b32.xlu0 %v1957, 32
    %v1963 = vpop.permute.xlu0 %1962
    %v1966 = vadd.f32 %v1946, %v1961
    %v1967 = vadd.f32 %v1947, %v1963
    %v1968 = vtanh.pop %v1966
    %v1969 = vtanh.pop %v1967
    %1972 = vrot.lane.b32.xlu0 %v1968, 64
    %v1973 = vpop.permute.xlu0 %1972
    %1974 = vrot.lane.b32.xlu0 %v1969, 64
    %v1975 = vpop.permute.xlu0 %1974
    %v1978 = vmul.f32 %v1935, %v1973
    %v1979 = vmul.f32 %v1937, %v1975
    %1982 = vrot.lane.b32.xlu0 %v1978, 32
    %v1983 = vpop.permute.xlu0 %1982
    %1984 = vrot.lane.b32.xlu0 %v1979, 32
    %v1985 = vpop.permute.xlu0 %1984
    %1988 = vst.msk [vmem:[#allocation3] sm:$0x4] %vm717, %v1983
    %1989 = vst.msk [vmem:[#allocation3 + $0x8] sm:$0x4] %vm717, %v1985
    %v1990 = vrot.slane %v1978, 2
    %v1991 = vrot.slane %v1979, 1
    %v1992 = vsel %vm425, %v1991, %v1990
    %1993 = vrot.lane.b32.xlu0 %v1992, 32
    %v1994 = vpop.permute.xlu0 %1993
    %v1995 = vsel %vm285, %v1994, 0
    %1997 = vmatprep.subr.mxu0 0.0
    %1998 = vmatpush1.msra.mxu0 0.0
    %1999 = vmatprep.subr.mxu0 0.0
    %2000 = vmatpush1.msra.mxu0 0.0
    %2001 = vmatprep.subr.mxu0 0.0
    %2002 = vmatpush1.msra.mxu0 0.0
    %2003 = vmatprep.subr.mxu0 0.0
    %2004 = vmatpush1.msra.mxu0 0.0
    %2005 = vmatprep.subr.mxu0 0.0
    %2006 = vmatpush1.msra.mxu0 0.0
    %2007 = vmatprep.subr.mxu0 0.0
    %2008 = vmatpush1.msra.mxu0 0.0
    %2009 = vmatprep.subr.mxu0 0.0
    %2010 = vmatpush1.msra.mxu0 0.0
    %2011 = vmatprep.subr.mxu0 0.0
    %2012 = vmatpush1.msra.mxu0 0.0
    %2013 = vmatprep.subr.mxu0 0.0
    %2014 = vmatpush1.msra.mxu0 0.0
    %2015 = vmatprep.subr.mxu0 0.0
    %2016 = vmatpush1.msra.mxu0 0.0
    %2017 = vmatprep.subr.mxu0 0.0
    %2018 = vmatpush1.msra.mxu0 0.0
    %2019 = vmatprep.subr.mxu0 0.0
    %2020 = vmatpush1.msra.mxu0 0.0
    %2021 = vmatprep.subr.mxu0 0.0
    %2022 = vmatpush1.msra.mxu0 %v1474
    %2023 = vmatprep.subr.mxu0 0.0
    %2024 = vmatpush1.msra.mxu0 %v1473
    %2025 = vmatprep.subr.mxu0 0.0
    %2026 = vmatpush1.msra.mxu0 %v1472
    %2027 = vmatprep.subr.mxu0 0.0
    %2028 = vmatpush1.msra.mxu0 %v1471
    %2029 = vmatprep.subr.mxu0 0.0
    %2030 = vmatpush2.msra.mxu0 0.0
    %2031 = vmatprep.subr.mxu0 0.0
    %2032 = vmatpush2.msra.mxu0 0.0
    %2033 = vmatprep.subr.mxu0 0.0
    %2034 = vmatpush2.msra.mxu0 0.0
    %2035 = vmatprep.subr.mxu0 0.0
    %2036 = vmatpush2.msra.mxu0 0.0
    %2037 = vmatprep.subr.mxu0 0.0
    %2038 = vmatpush2.msra.mxu0 0.0
    %2039 = vmatprep.subr.mxu0 0.0
    %2040 = vmatpush2.msra.mxu0 0.0
    %2041 = vmatprep.subr.mxu0 0.0
    %2042 = vmatpush2.msra.mxu0 0.0
    %2043 = vmatprep.subr.mxu0 0.0
    %2044 = vmatpush2.msra.mxu0 0.0
    %2045 = vmatprep.subr.mxu0 0.0
    %2046 = vmatpush2.msra.mxu0 0.0
    %2047 = vmatprep.subr.mxu0 0.0
    %2048 = vmatpush2.msra.mxu0 0.0
    %2049 = vmatprep.subr.mxu0 0.0
    %2050 = vmatpush2.msra.mxu0 0.0
    %2051 = vmatprep.subr.mxu0 0.0
    %2052 = vmatpush2.msra.mxu0 0.0
    %2053 = vmatprep.subr.mxu0 0.0
    %2054 = vmatpush2.msra.mxu0 0.0
    %2055 = vmatprep.subr.mxu0 0.0
    %2056 = vmatpush2.msra.mxu0 0.0
    %2057 = vmatprep.subr.mxu0 0.0
    %2058 = vmatpush2.msra.mxu0 0.0
    %2059 = vmatprep.subr.mxu0 0.0
    %2060 = vmatpush2.msra.mxu0 0.0
    %2061 = vmatprep.mubr.f32.mxu0 0.0
    %2062 = vmatmul.mubr.f32.gmra.mxu0 %v1995
    %v2063 = vpop.f32.mrf.mxu0
    %v2064 = vadd.f32 0.0, %v2063
    %v2065 = vpop.f32.mrf.mxu0
    %2066 = vdwg.mxu0
    %v2068 = vrot.slane %v2064, 5
    %v2069 = vrot.slane %v2064, 6
    %v2072 = vadd.f32 %v1555, %v2068
    %v2073 = vadd.f32 %v1560, %v2069
    %v2074 = vxor.u32 %v2072, 2147483648
    %v2075 = vxor.u32 %v2073, 2147483648
    %v2076 = vmul.f32 %v2074, 1.442695
    %v2077 = vpow.pop %v2076
    %v2078 = vmul.f32 %v2075, 1.442695
    %v2079 = vpow.pop %v2078
    %v2080 = vadd.f32 %v2077, 1.0
    %v2081 = vadd.f32 %v2079, 1.0
    %v2082 = vrcp.pop %v2080
    %v2083 = vmul.f32 1.0, %v2082
    %v2084 = vrcp.pop %v2081
    %v2085 = vmul.f32 1.0, %v2084
    %v2086 = vtanh.pop %v2072
    %v2087 = vtanh.pop %v2073
    %v2090 = vrot.slane %v1966, 7
    %v2091 = vrot.slane %v1967, 7
    %v2094 = vmul.f32 %v2083, %v2090
    %v2095 = vmul.f32 %v2085, %v2091
    %2098 = vrot.lane.b32.xlu0 %v2086, 64
    %v2099 = vpop.permute.xlu0 %2098
    %2100 = vrot.lane.b32.xlu0 %v2087, 64
    %v2101 = vpop.permute.xlu0 %2100
    %v2104 = vmul.f32 %v2083, %v2099
    %v2105 = vmul.f32 %v2085, %v2101
    %2108 = vrot.lane.b32.xlu0 %v2104, 32
    %v2109 = vpop.permute.xlu0 %2108
    %2110 = vrot.lane.b32.xlu0 %v2105, 32
    %v2111 = vpop.permute.xlu0 %2110
    %v2114 = vadd.f32 %v2094, %v2109
    %v2115 = vadd.f32 %v2095, %v2111
    %v2116 = vtanh.pop %v2114
    %v2117 = vtanh.pop %v2115
    %2120 = vrot.lane.b32.xlu0 %v2116, 64
    %v2121 = vpop.permute.xlu0 %2120
    %2122 = vrot.lane.b32.xlu0 %v2117, 64
    %v2123 = vpop.permute.xlu0 %2122
    %v2126 = vmul.f32 %v2083, %v2121
    %v2127 = vmul.f32 %v2085, %v2123
    %2130 = vrot.lane.b32.xlu0 %v2126, 32
    %v2131 = vpop.permute.xlu0 %2130
    %2132 = vrot.lane.b32.xlu0 %v2127, 32
    %v2133 = vpop.permute.xlu0 %2132
    %2136 = vst.msk [vmem:[#allocation3] sm:$0x8] %vm866, %v2131
    %2137 = vst.msk [vmem:[#allocation3 + $0x8] sm:$0x8] %vm866, %v2133
    %v2138 = vrot.slane %v2126, 3
    %v2139 = vrot.slane %v2127, 2
    %v2140 = vsel %vm425, %v2139, %v2138
    %2141 = vrot.lane.b32.xlu0 %v2140, 32
    %v2142 = vpop.permute.xlu0 %2141
    %v2143 = vsel %vm285, %v2142, 0
    %2145 = vmatprep.subr.mxu0 0.0
    %2146 = vmatpush1.msra.mxu0 0.0
    %2147 = vmatprep.subr.mxu0 0.0
    %2148 = vmatpush1.msra.mxu0 0.0
    %2149 = vmatprep.subr.mxu0 0.0
    %2150 = vmatpush1.msra.mxu0 0.0
    %2151 = vmatprep.subr.mxu0 0.0
    %2152 = vmatpush1.msra.mxu0 0.0
    %2153 = vmatprep.subr.mxu0 0.0
    %2154 = vmatpush1.msra.mxu0 0.0
    %2155 = vmatprep.subr.mxu0 0.0
    %2156 = vmatpush1.msra.mxu0 0.0
    %2157 = vmatprep.subr.mxu0 0.0
    %2158 = vmatpush1.msra.mxu0 0.0
    %2159 = vmatprep.subr.mxu0 0.0
    %2160 = vmatpush1.msra.mxu0 0.0
    %2161 = vmatprep.subr.mxu0 0.0
    %2162 = vmatpush1.msra.mxu0 0.0
    %2163 = vmatprep.subr.mxu0 0.0
    %2164 = vmatpush1.msra.mxu0 0.0
    %2165 = vmatprep.subr.mxu0 0.0
    %2166 = vmatpush1.msra.mxu0 0.0
    %2167 = vmatprep.subr.mxu0 0.0
    %2168 = vmatpush1.msra.mxu0 0.0
    %2169 = vmatprep.subr.mxu0 0.0
    %2170 = vmatpush1.msra.mxu0 %v1474
    %2171 = vmatprep.subr.mxu0 0.0
    %2172 = vmatpush1.msra.mxu0 %v1473
    %2173 = vmatprep.subr.mxu0 0.0
    %2174 = vmatpush1.msra.mxu0 %v1472
    %2175 = vmatprep.subr.mxu0 0.0
    %2176 = vmatpush1.msra.mxu0 %v1471
    %2177 = vmatprep.subr.mxu0 0.0
    %2178 = vmatpush2.msra.mxu0 0.0
    %2179 = vmatprep.subr.mxu0 0.0
    %2180 = vmatpush2.msra.mxu0 0.0
    %2181 = vmatprep.subr.mxu0 0.0
    %2182 = vmatpush2.msra.mxu0 0.0
    %2183 = vmatprep.subr.mxu0 0.0
    %2184 = vmatpush2.msra.mxu0 0.0
    %2185 = vmatprep.subr.mxu0 0.0
    %2186 = vmatpush2.msra.mxu0 0.0
    %2187 = vmatprep.subr.mxu0 0.0
    %2188 = vmatpush2.msra.mxu0 0.0
    %2189 = vmatprep.subr.mxu0 0.0
    %2190 = vmatpush2.msra.mxu0 0.0
    %2191 = vmatprep.subr.mxu0 0.0
    %2192 = vmatpush2.msra.mxu0 0.0
    %2193 = vmatprep.subr.mxu0 0.0
    %2194 = vmatpush2.msra.mxu0 0.0
    %2195 = vmatprep.subr.mxu0 0.0
    %2196 = vmatpush2.msra.mxu0 0.0
    %2197 = vmatprep.subr.mxu0 0.0
    %2198 = vmatpush2.msra.mxu0 0.0
    %2199 = vmatprep.subr.mxu0 0.0
    %2200 = vmatpush2.msra.mxu0 0.0
    %2201 = vmatprep.subr.mxu0 0.0
    %2202 = vmatpush2.msra.mxu0 0.0
    %2203 = vmatprep.subr.mxu0 0.0
    %2204 = vmatpush2.msra.mxu0 0.0
    %2205 = vmatprep.subr.mxu0 0.0
    %2206 = vmatpush2.msra.mxu0 0.0
    %2207 = vmatprep.subr.mxu0 0.0
    %2208 = vmatpush2.msra.mxu0 0.0
    %2209 = vmatprep.mubr.f32.mxu0 0.0
    %2210 = vmatmul.mubr.f32.gmra.mxu0 %v2143
    %v2211 = vpop.f32.mrf.mxu0
    %v2212 = vadd.f32 0.0, %v2211
    %v2213 = vpop.f32.mrf.mxu0
    %2214 = vdwg.mxu0
    %v2216 = vrot.slane %v2212, 4
    %v2217 = vrot.slane %v2212, 5
    %v2220 = vadd.f32 %v1555, %v2216
    %v2221 = vadd.f32 %v1560, %v2217
    %v2222 = vxor.u32 %v2220, 2147483648
    %v2223 = vxor.u32 %v2221, 2147483648
    %v2224 = vmul.f32 %v2222, 1.442695
    %v2225 = vpow.pop %v2224
    %v2226 = vmul.f32 %v2223, 1.442695
    %v2227 = vpow.pop %v2226
    %v2228 = vadd.f32 %v2225, 1.0
    %v2229 = vadd.f32 %v2227, 1.0
    %v2230 = vrcp.pop %v2228
    %v2231 = vmul.f32 1.0, %v2230
    %v2232 = vrcp.pop %v2229
    %v2233 = vmul.f32 1.0, %v2232
    %v2234 = vtanh.pop %v2220
    %v2235 = vtanh.pop %v2221
    %v2238 = vrot.slane %v2114, 7
    %v2239 = vrot.slane %v2115, 7
    %v2242 = vmul.f32 %v2231, %v2238
    %v2243 = vmul.f32 %v2233, %v2239
    %2246 = vrot.lane.b32.xlu0 %v2234, 64
    %v2247 = vpop.permute.xlu0 %2246
    %2248 = vrot.lane.b32.xlu0 %v2235, 64
    %v2249 = vpop.permute.xlu0 %2248
    %v2252 = vmul.f32 %v2231, %v2247
    %v2253 = vmul.f32 %v2233, %v2249
    %2256 = vrot.lane.b32.xlu0 %v2252, 32
    %v2257 = vpop.permute.xlu0 %2256
    %2258 = vrot.lane.b32.xlu0 %v2253, 32
    %v2259 = vpop.permute.xlu0 %2258
    %v2262 = vadd.f32 %v2242, %v2257
    %v2263 = vadd.f32 %v2243, %v2259
    %v2264 = vtanh.pop %v2262
    %v2265 = vtanh.pop %v2263
    %2268 = vrot.lane.b32.xlu0 %v2264, 64
    %v2269 = vpop.permute.xlu0 %2268
    %2270 = vrot.lane.b32.xlu0 %v2265, 64
    %v2271 = vpop.permute.xlu0 %2270
    %v2274 = vmul.f32 %v2231, %v2269
    %v2275 = vmul.f32 %v2233, %v2271
    %2278 = vrot.lane.b32.xlu0 %v2274, 32
    %v2279 = vpop.permute.xlu0 %2278
    %2280 = vrot.lane.b32.xlu0 %v2275, 32
    %v2281 = vpop.permute.xlu0 %2280
    %2284 = vst.msk [vmem:[#allocation3] sm:$0x10] %vm1015, %v2279
    %2285 = vst.msk [vmem:[#allocation3 + $0x8] sm:$0x10] %vm1015, %v2281
    %v2286 = vrot.slane %v2274, 4
    %v2287 = vrot.slane %v2275, 3
    %v2288 = vsel %vm425, %v2287, %v2286
    %2289 = vrot.lane.b32.xlu0 %v2288, 32
    %v2290 = vpop.permute.xlu0 %2289
    %v2291 = vsel %vm285, %v2290, 0
    %2293 = vmatprep.subr.mxu0 0.0
    %2294 = vmatpush1.msra.mxu0 0.0
    %2295 = vmatprep.subr.mxu0 0.0
    %2296 = vmatpush1.msra.mxu0 0.0
    %2297 = vmatprep.subr.mxu0 0.0
    %2298 = vmatpush1.msra.mxu0 0.0
    %2299 = vmatprep.subr.mxu0 0.0
    %2300 = vmatpush1.msra.mxu0 0.0
    %2301 = vmatprep.subr.mxu0 0.0
    %2302 = vmatpush1.msra.mxu0 0.0
    %2303 = vmatprep.subr.mxu0 0.0
    %2304 = vmatpush1.msra.mxu0 0.0
    %2305 = vmatprep.subr.mxu0 0.0
    %2306 = vmatpush1.msra.mxu0 0.0
    %2307 = vmatprep.subr.mxu0 0.0
    %2308 = vmatpush1.msra.mxu0 0.0
    %2309 = vmatprep.subr.mxu0 0.0
    %2310 = vmatpush1.msra.mxu0 0.0
    %2311 = vmatprep.subr.mxu0 0.0
    %2312 = vmatpush1.msra.mxu0 0.0
    %2313 = vmatprep.subr.mxu0 0.0
    %2314 = vmatpush1.msra.mxu0 0.0
    %2315 = vmatprep.subr.mxu0 0.0
    %2316 = vmatpush1.msra.mxu0 0.0
    %2317 = vmatprep.subr.mxu0 0.0
    %2318 = vmatpush1.msra.mxu0 %v1474
    %2319 = vmatprep.subr.mxu0 0.0
    %2320 = vmatpush1.msra.mxu0 %v1473
    %2321 = vmatprep.subr.mxu0 0.0
    %2322 = vmatpush1.msra.mxu0 %v1472
    %2323 = vmatprep.subr.mxu0 0.0
    %2324 = vmatpush1.msra.mxu0 %v1471
    %2325 = vmatprep.subr.mxu0 0.0
    %2326 = vmatpush2.msra.mxu0 0.0
    %2327 = vmatprep.subr.mxu0 0.0
    %2328 = vmatpush2.msra.mxu0 0.0
    %2329 = vmatprep.subr.mxu0 0.0
    %2330 = vmatpush2.msra.mxu0 0.0
    %2331 = vmatprep.subr.mxu0 0.0
    %2332 = vmatpush2.msra.mxu0 0.0
    %2333 = vmatprep.subr.mxu0 0.0
    %2334 = vmatpush2.msra.mxu0 0.0
    %2335 = vmatprep.subr.mxu0 0.0
    %2336 = vmatpush2.msra.mxu0 0.0
    %2337 = vmatprep.subr.mxu0 0.0
    %2338 = vmatpush2.msra.mxu0 0.0
    %2339 = vmatprep.subr.mxu0 0.0
    %2340 = vmatpush2.msra.mxu0 0.0
    %2341 = vmatprep.subr.mxu0 0.0
    %2342 = vmatpush2.msra.mxu0 0.0
    %2343 = vmatprep.subr.mxu0 0.0
    %2344 = vmatpush2.msra.mxu0 0.0
    %2345 = vmatprep.subr.mxu0 0.0
    %2346 = vmatpush2.msra.mxu0 0.0
    %2347 = vmatprep.subr.mxu0 0.0
    %2348 = vmatpush2.msra.mxu0 0.0
    %2349 = vmatprep.subr.mxu0 0.0
    %2350 = vmatpush2.msra.mxu0 0.0
    %2351 = vmatprep.subr.mxu0 0.0
    %2352 = vmatpush2.msra.mxu0 0.0
    %2353 = vmatprep.subr.mxu0 0.0
    %2354 = vmatpush2.msra.mxu0 0.0
    %2355 = vmatprep.subr.mxu0 0.0
    %2356 = vmatpush2.msra.mxu0 0.0
    %2357 = vmatprep.mubr.f32.mxu0 0.0
    %2358 = vmatmul.mubr.f32.gmra.mxu0 %v2291
    %v2359 = vpop.f32.mrf.mxu0
    %v2360 = vadd.f32 0.0, %v2359
    %v2361 = vpop.f32.mrf.mxu0
    %2362 = vdwg.mxu0
    %v2364 = vrot.slane %v2360, 3
    %v2365 = vrot.slane %v2360, 4
    %v2368 = vadd.f32 %v1555, %v2364
    %v2369 = vadd.f32 %v1560, %v2365
    %v2370 = vxor.u32 %v2368, 2147483648
    %v2371 = vxor.u32 %v2369, 2147483648
    %v2372 = vmul.f32 %v2370, 1.442695
    %v2373 = vpow.pop %v2372
    %v2374 = vmul.f32 %v2371, 1.442695
    %v2375 = vpow.pop %v2374
    %v2376 = vadd.f32 %v2373, 1.0
    %v2377 = vadd.f32 %v2375, 1.0
    %v2378 = vrcp.pop %v2376
    %v2379 = vmul.f32 1.0, %v2378
    %v2380 = vrcp.pop %v2377
    %v2381 = vmul.f32 1.0, %v2380
    %v2382 = vtanh.pop %v2368
    %v2383 = vtanh.pop %v2369
    %v2386 = vrot.slane %v2262, 7
    %v2387 = vrot.slane %v2263, 7
    %v2390 = vmul.f32 %v2379, %v2386
    %v2391 = vmul.f32 %v2381, %v2387
    %2394 = vrot.lane.b32.xlu0 %v2382, 64
    %v2395 = vpop.permute.xlu0 %2394
    %2396 = vrot.lane.b32.xlu0 %v2383, 64
    %v2397 = vpop.permute.xlu0 %2396
    %v2400 = vmul.f32 %v2379, %v2395
    %v2401 = vmul.f32 %v2381, %v2397
    %2404 = vrot.lane.b32.xlu0 %v2400, 32
    %v2405 = vpop.permute.xlu0 %2404
    %2406 = vrot.lane.b32.xlu0 %v2401, 32
    %v2407 = vpop.permute.xlu0 %2406
    %v2410 = vadd.f32 %v2390, %v2405
    %v2411 = vadd.f32 %v2391, %v2407
    %v2412 = vtanh.pop %v2410
    %v2413 = vtanh.pop %v2411
    %2416 = vrot.lane.b32.xlu0 %v2412, 64
    %v2417 = vpop.permute.xlu0 %2416
    %2418 = vrot.lane.b32.xlu0 %v2413, 64
    %v2419 = vpop.permute.xlu0 %2418
    %v2422 = vmul.f32 %v2379, %v2417
    %v2423 = vmul.f32 %v2381, %v2419
    %2426 = vrot.lane.b32.xlu0 %v2422, 32
    %v2427 = vpop.permute.xlu0 %2426
    %2428 = vrot.lane.b32.xlu0 %v2423, 32
    %v2429 = vpop.permute.xlu0 %2428
    %2432 = vst.msk [vmem:[#allocation3] sm:$0x20] %vm1164, %v2427
    %2433 = vst.msk [vmem:[#allocation3 + $0x8] sm:$0x20] %vm1164, %v2429
    %v2434 = vrot.slane %v2422, 5
    %v2435 = vrot.slane %v2423, 4
    %v2436 = vsel %vm425, %v2435, %v2434
    %2437 = vrot.lane.b32.xlu0 %v2436, 32
    %v2438 = vpop.permute.xlu0 %2437
    %v2439 = vsel %vm285, %v2438, 0
    %2441 = vmatprep.subr.mxu0 0.0
    %2442 = vmatpush1.msra.mxu0 0.0
    %2443 = vmatprep.subr.mxu0 0.0
    %2444 = vmatpush1.msra.mxu0 0.0
    %2445 = vmatprep.subr.mxu0 0.0
    %2446 = vmatpush1.msra.mxu0 0.0
    %2447 = vmatprep.subr.mxu0 0.0
    %2448 = vmatpush1.msra.mxu0 0.0
    %2449 = vmatprep.subr.mxu0 0.0
    %2450 = vmatpush1.msra.mxu0 0.0
    %2451 = vmatprep.subr.mxu0 0.0
    %2452 = vmatpush1.msra.mxu0 0.0
    %2453 = vmatprep.subr.mxu0 0.0
    %2454 = vmatpush1.msra.mxu0 0.0
    %2455 = vmatprep.subr.mxu0 0.0
    %2456 = vmatpush1.msra.mxu0 0.0
    %2457 = vmatprep.subr.mxu0 0.0
    %2458 = vmatpush1.msra.mxu0 0.0
    %2459 = vmatprep.subr.mxu0 0.0
    %2460 = vmatpush1.msra.mxu0 0.0
    %2461 = vmatprep.subr.mxu0 0.0
    %2462 = vmatpush1.msra.mxu0 0.0
    %2463 = vmatprep.subr.mxu0 0.0
    %2464 = vmatpush1.msra.mxu0 0.0
    %2465 = vmatprep.subr.mxu0 0.0
    %2466 = vmatpush1.msra.mxu0 %v1474
    %2467 = vmatprep.subr.mxu0 0.0
    %2468 = vmatpush1.msra.mxu0 %v1473
    %2469 = vmatprep.subr.mxu0 0.0
    %2470 = vmatpush1.msra.mxu0 %v1472
    %2471 = vmatprep.subr.mxu0 0.0
    %2472 = vmatpush1.msra.mxu0 %v1471
    %2473 = vmatprep.subr.mxu0 0.0
    %2474 = vmatpush2.msra.mxu0 0.0
    %2475 = vmatprep.subr.mxu0 0.0
    %2476 = vmatpush2.msra.mxu0 0.0
    %2477 = vmatprep.subr.mxu0 0.0
    %2478 = vmatpush2.msra.mxu0 0.0
    %2479 = vmatprep.subr.mxu0 0.0
    %2480 = vmatpush2.msra.mxu0 0.0
    %2481 = vmatprep.subr.mxu0 0.0
    %2482 = vmatpush2.msra.mxu0 0.0
    %2483 = vmatprep.subr.mxu0 0.0
    %2484 = vmatpush2.msra.mxu0 0.0
    %2485 = vmatprep.subr.mxu0 0.0
    %2486 = vmatpush2.msra.mxu0 0.0
    %2487 = vmatprep.subr.mxu0 0.0
    %2488 = vmatpush2.msra.mxu0 0.0
    %2489 = vmatprep.subr.mxu0 0.0
    %2490 = vmatpush2.msra.mxu0 0.0
    %2491 = vmatprep.subr.mxu0 0.0
    %2492 = vmatpush2.msra.mxu0 0.0
    %2493 = vmatprep.subr.mxu0 0.0
    %2494 = vmatpush2.msra.mxu0 0.0
    %2495 = vmatprep.subr.mxu0 0.0
    %2496 = vmatpush2.msra.mxu0 0.0
    %2497 = vmatprep.subr.mxu0 0.0
    %2498 = vmatpush2.msra.mxu0 0.0
    %2499 = vmatprep.subr.mxu0 0.0
    %2500 = vmatpush2.msra.mxu0 0.0
    %2501 = vmatprep.subr.mxu0 0.0
    %2502 = vmatpush2.msra.mxu0 0.0
    %2503 = vmatprep.subr.mxu0 0.0
    %2504 = vmatpush2.msra.mxu0 0.0
    %2505 = vmatprep.mubr.f32.mxu0 0.0
    %2506 = vmatmul.mubr.f32.gmra.mxu0 %v2439
    %v2507 = vpop.f32.mrf.mxu0
    %v2508 = vadd.f32 0.0, %v2507
    %v2509 = vpop.f32.mrf.mxu0
    %2510 = vdwg.mxu0
    %v2512 = vrot.slane %v2508, 2
    %v2513 = vrot.slane %v2508, 3
    %v2516 = vadd.f32 %v1555, %v2512
    %v2517 = vadd.f32 %v1560, %v2513
    %v2518 = vxor.u32 %v2516, 2147483648
    %v2519 = vxor.u32 %v2517, 2147483648
    %v2520 = vmul.f32 %v2518, 1.442695
    %v2521 = vpow.pop %v2520
    %v2522 = vmul.f32 %v2519, 1.442695
    %v2523 = vpow.pop %v2522
    %v2524 = vadd.f32 %v2521, 1.0
    %v2525 = vadd.f32 %v2523, 1.0
    %v2526 = vrcp.pop %v2524
    %v2527 = vmul.f32 1.0, %v2526
    %v2528 = vrcp.pop %v2525
    %v2529 = vmul.f32 1.0, %v2528
    %v2530 = vtanh.pop %v2516
    %v2531 = vtanh.pop %v2517
    %v2534 = vrot.slane %v2410, 7
    %v2535 = vrot.slane %v2411, 7
    %v2538 = vmul.f32 %v2527, %v2534
    %v2539 = vmul.f32 %v2529, %v2535
    %2542 = vrot.lane.b32.xlu0 %v2530, 64
    %v2543 = vpop.permute.xlu0 %2542
    %2544 = vrot.lane.b32.xlu0 %v2531, 64
    %v2545 = vpop.permute.xlu0 %2544
    %v2548 = vmul.f32 %v2527, %v2543
    %v2549 = vmul.f32 %v2529, %v2545
    %2552 = vrot.lane.b32.xlu0 %v2548, 32
    %v2553 = vpop.permute.xlu0 %2552
    %2554 = vrot.lane.b32.xlu0 %v2549, 32
    %v2555 = vpop.permute.xlu0 %2554
    %v2558 = vadd.f32 %v2538, %v2553
    %v2559 = vadd.f32 %v2539, %v2555
    %v2560 = vtanh.pop %v2558
    %v2561 = vtanh.pop %v2559
    %2564 = vrot.lane.b32.xlu0 %v2560, 64
    %v2565 = vpop.permute.xlu0 %2564
    %2566 = vrot.lane.b32.xlu0 %v2561, 64
    %v2567 = vpop.permute.xlu0 %2566
    %v2570 = vmul.f32 %v2527, %v2565
    %v2571 = vmul.f32 %v2529, %v2567
    %2574 = vrot.lane.b32.xlu0 %v2570, 32
    %v2575 = vpop.permute.xlu0 %2574
    %2576 = vrot.lane.b32.xlu0 %v2571, 32
    %v2577 = vpop.permute.xlu0 %2576
    %2580 = vst.msk [vmem:[#allocation3] sm:$0x40] %vm1313, %v2575
    %2581 = vst.msk [vmem:[#allocation3 + $0x8] sm:$0x40] %vm1313, %v2577
    %v2582 = vrot.slane %v2570, 6
    %v2583 = vrot.slane %v2571, 5
    %v2584 = vsel %vm425, %v2583, %v2582
    %2585 = vrot.lane.b32.xlu0 %v2584, 32
    %v2586 = vpop.permute.xlu0 %2585
    %v2587 = vsel %vm285, %v2586, 0
    %2589 = vmatprep.subr.mxu0 0.0
    %2590 = vmatpush1.msra.mxu0 0.0
    %2591 = vmatprep.subr.mxu0 0.0
    %2592 = vmatpush1.msra.mxu0 0.0
    %2593 = vmatprep.subr.mxu0 0.0
    %2594 = vmatpush1.msra.mxu0 0.0
    %2595 = vmatprep.subr.mxu0 0.0
    %2596 = vmatpush1.msra.mxu0 0.0
    %2597 = vmatprep.subr.mxu0 0.0
    %2598 = vmatpush1.msra.mxu0 0.0
    %2599 = vmatprep.subr.mxu0 0.0
    %2600 = vmatpush1.msra.mxu0 0.0
    %2601 = vmatprep.subr.mxu0 0.0
    %2602 = vmatpush1.msra.mxu0 0.0
    %2603 = vmatprep.subr.mxu0 0.0
    %2604 = vmatpush1.msra.mxu0 0.0
    %2605 = vmatprep.subr.mxu0 0.0
    %2606 = vmatpush1.msra.mxu0 0.0
    %2607 = vmatprep.subr.mxu0 0.0
    %2608 = vmatpush1.msra.mxu0 0.0
    %2609 = vmatprep.subr.mxu0 0.0
    %2610 = vmatpush1.msra.mxu0 0.0
    %2611 = vmatprep.subr.mxu0 0.0
    %2612 = vmatpush1.msra.mxu0 0.0
    %2613 = vmatprep.subr.mxu0 0.0
    %2614 = vmatpush1.msra.mxu0 %v1474
    %2615 = vmatprep.subr.mxu0 0.0
    %2616 = vmatpush1.msra.mxu0 %v1473
    %2617 = vmatprep.subr.mxu0 0.0
    %2618 = vmatpush1.msra.mxu0 %v1472
    %2619 = vmatprep.subr.mxu0 0.0
    %2620 = vmatpush1.msra.mxu0 %v1471
    %2621 = vmatprep.subr.mxu0 0.0
    %2622 = vmatpush2.msra.mxu0 0.0
    %2623 = vmatprep.subr.mxu0 0.0
    %2624 = vmatpush2.msra.mxu0 0.0
    %2625 = vmatprep.subr.mxu0 0.0
    %2626 = vmatpush2.msra.mxu0 0.0
    %2627 = vmatprep.subr.mxu0 0.0
    %2628 = vmatpush2.msra.mxu0 0.0
    %2629 = vmatprep.subr.mxu0 0.0
    %2630 = vmatpush2.msra.mxu0 0.0
    %2631 = vmatprep.subr.mxu0 0.0
    %2632 = vmatpush2.msra.mxu0 0.0
    %2633 = vmatprep.subr.mxu0 0.0
    %2634 = vmatpush2.msra.mxu0 0.0
    %2635 = vmatprep.subr.mxu0 0.0
    %2636 = vmatpush2.msra.mxu0 0.0
    %2637 = vmatprep.subr.mxu0 0.0
    %2638 = vmatpush2.msra.mxu0 0.0
    %2639 = vmatprep.subr.mxu0 0.0
    %2640 = vmatpush2.msra.mxu0 0.0
    %2641 = vmatprep.subr.mxu0 0.0
    %2642 = vmatpush2.msra.mxu0 0.0
    %2643 = vmatprep.subr.mxu0 0.0
    %2644 = vmatpush2.msra.mxu0 0.0
    %2645 = vmatprep.subr.mxu0 0.0
    %2646 = vmatpush2.msra.mxu0 0.0
    %2647 = vmatprep.subr.mxu0 0.0
    %2648 = vmatpush2.msra.mxu0 0.0
    %2649 = vmatprep.subr.mxu0 0.0
    %2650 = vmatpush2.msra.mxu0 0.0
    %2651 = vmatprep.subr.mxu0 0.0
    %2652 = vmatpush2.msra.mxu0 0.0
    %2653 = vmatprep.mubr.f32.mxu0 0.0
    %2654 = vmatmul.mubr.f32.gmra.mxu0 %v2587
    %v2655 = vpop.f32.mrf.mxu0
    %v2656 = vadd.f32 0.0, %v2655
    %v2657 = vpop.f32.mrf.mxu0
    %2658 = vdwg.mxu0
    %v2660 = vrot.slane %v2656, 1
    %v2661 = vrot.slane %v2656, 2
    %v2664 = vadd.f32 %v1555, %v2660
    %v2665 = vadd.f32 %v1560, %v2661
    %v2666 = vxor.u32 %v2664, 2147483648
    %v2667 = vxor.u32 %v2665, 2147483648
    %v2668 = vmul.f32 %v2666, 1.442695
    %v2669 = vpow.pop %v2668
    %v2670 = vmul.f32 %v2667, 1.442695
    %v2671 = vpow.pop %v2670
    %v2672 = vadd.f32 %v2669, 1.0
    %v2673 = vadd.f32 %v2671, 1.0
    %v2674 = vrcp.pop %v2672
    %v2675 = vmul.f32 1.0, %v2674
    %v2676 = vrcp.pop %v2673
    %v2677 = vmul.f32 1.0, %v2676
    %v2678 = vtanh.pop %v2664
    %v2679 = vtanh.pop %v2665
    %v2682 = vrot.slane %v2558, 7
    %v2683 = vrot.slane %v2559, 7
    %v2686 = vmul.f32 %v2675, %v2682
    %v2687 = vmul.f32 %v2677, %v2683
    %2690 = vrot.lane.b32.xlu0 %v2678, 64
    %v2691 = vpop.permute.xlu0 %2690
    %2692 = vrot.lane.b32.xlu0 %v2679, 64
    %v2693 = vpop.permute.xlu0 %2692
    %v2696 = vmul.f32 %v2675, %v2691
    %v2697 = vmul.f32 %v2677, %v2693
    %2700 = vrot.lane.b32.xlu0 %v2696, 32
    %v2701 = vpop.permute.xlu0 %2700
    %2702 = vrot.lane.b32.xlu0 %v2697, 32
    %v2703 = vpop.permute.xlu0 %2702
    %v2706 = vadd.f32 %v2686, %v2701
    %v2707 = vadd.f32 %v2687, %v2703
    %v2708 = vtanh.pop %v2706
    %v2709 = vtanh.pop %v2707
    %2712 = vrot.lane.b32.xlu0 %v2708, 64
    %v2713 = vpop.permute.xlu0 %2712
    %2714 = vrot.lane.b32.xlu0 %v2709, 64
    %v2715 = vpop.permute.xlu0 %2714
    %v2718 = vmul.f32 %v2675, %v2713
    %v2719 = vmul.f32 %v2677, %v2715
    %2722 = vrot.lane.b32.xlu0 %v2718, 32
    %v2723 = vpop.permute.xlu0 %2722
    %2724 = vrot.lane.b32.xlu0 %v2719, 32
    %v2725 = vpop.permute.xlu0 %2724
    %2728 = vst.msk [vmem:[#allocation3] sm:$0x80] %vm1462, %v2723
    %2729 = vst.msk [vmem:[#allocation3 + $0x8] sm:$0x80] %vm1462, %v2725
    %v2730 = vld [vmem:[#allocation3] sm:$0xff]
    %v2731 = vld [vmem:[#allocation3 + $0x8] sm:$0xff]
    %v2732 = vld [vmem:[%s7] sm:$0xff]
    %v2733 = vld [vmem:[%s7 + $0x8] sm:$0xff]
    %v2734 = vld [vmem:[%s7 + $0x10] sm:$0xff]
    %v2735 = vld [vmem:[%s7 + $0x18] sm:$0xff]
    %v2736 = vld [vmem:[#allocation14] sm:$0x1]
    %v2738 = vlaneseq
    %v2739 = vshrl.u32 %v2738, 7
    %v2740 = vsub.s32 0, %v2739
    %v2741 = vrot.slane %v2736, %v2740
    %v2744 = vsel %vm285, %v2730, 0
    %v2747 = vsel %vm285, %v2731, 0
    %2749 = vmatprep.subr.mxu0 0.0
    %2750 = vmatpush1.msra.mxu0 0.0
    %2751 = vmatprep.subr.mxu0 0.0
    %2752 = vmatpush1.msra.mxu0 0.0
    %2753 = vmatprep.subr.mxu0 0.0
    %2754 = vmatpush1.msra.mxu0 0.0
    %2755 = vmatprep.subr.mxu0 0.0
    %2756 = vmatpush1.msra.mxu0 0.0
    %2757 = vmatprep.subr.mxu0 0.0
    %2758 = vmatpush1.msra.mxu0 0.0
    %2759 = vmatprep.subr.mxu0 0.0
    %2760 = vmatpush1.msra.mxu0 0.0
    %2761 = vmatprep.subr.mxu0 0.0
    %2762 = vmatpush1.msra.mxu0 0.0
    %2763 = vmatprep.subr.mxu0 0.0
    %2764 = vmatpush1.msra.mxu0 0.0
    %2765 = vmatprep.subr.mxu0 0.0
    %2766 = vmatpush1.msra.mxu0 0.0
    %2767 = vmatprep.subr.mxu0 0.0
    %2768 = vmatpush1.msra.mxu0 0.0
    %2769 = vmatprep.subr.mxu0 0.0
    %2770 = vmatpush1.msra.mxu0 0.0
    %2771 = vmatprep.subr.mxu0 0.0
    %2772 = vmatpush1.msra.mxu0 0.0
    %2773 = vmatprep.subr.mxu0 0.0
    %2774 = vmatpush1.msra.mxu0 %v2735
    %2775 = vmatprep.subr.mxu0 0.0
    %2776 = vmatpush1.msra.mxu0 %v2734
    %2777 = vmatprep.subr.mxu0 0.0
    %2778 = vmatpush1.msra.mxu0 %v2733
    %2779 = vmatprep.subr.mxu0 0.0
    %2780 = vmatpush1.msra.mxu0 %v2732
    %2781 = vmatprep.subr.mxu0 0.0
    %2782 = vmatpush2.msra.mxu0 0.0
    %2783 = vmatprep.subr.mxu0 0.0
    %2784 = vmatpush2.msra.mxu0 0.0
    %2785 = vmatprep.subr.mxu0 0.0
    %2786 = vmatpush2.msra.mxu0 0.0
    %2787 = vmatprep.subr.mxu0 0.0
    %2788 = vmatpush2.msra.mxu0 0.0
    %2789 = vmatprep.subr.mxu0 0.0
    %2790 = vmatpush2.msra.mxu0 0.0
    %2791 = vmatprep.subr.mxu0 0.0
    %2792 = vmatpush2.msra.mxu0 0.0
    %2793 = vmatprep.subr.mxu0 0.0
    %2794 = vmatpush2.msra.mxu0 0.0
    %2795 = vmatprep.subr.mxu0 0.0
    %2796 = vmatpush2.msra.mxu0 0.0
    %2797 = vmatprep.subr.mxu0 0.0
    %2798 = vmatpush2.msra.mxu0 0.0
    %2799 = vmatprep.subr.mxu0 0.0
    %2800 = vmatpush2.msra.mxu0 0.0
    %2801 = vmatprep.subr.mxu0 0.0
    %2802 = vmatpush2.msra.mxu0 0.0
    %2803 = vmatprep.subr.mxu0 0.0
    %2804 = vmatpush2.msra.mxu0 0.0
    %2805 = vmatprep.subr.mxu0 0.0
    %2806 = vmatpush2.msra.mxu0 0.0
    %2807 = vmatprep.subr.mxu0 0.0
    %2808 = vmatpush2.msra.mxu0 0.0
    %2809 = vmatprep.subr.mxu0 0.0
    %2810 = vmatpush2.msra.mxu0 0.0
    %2811 = vmatprep.subr.mxu0 0.0
    %2812 = vmatpush2.msra.mxu0 0.0
    %2813 = vmatprep.mubr.f32.mxu0 0.0
    %2814 = vmatmul.mubr.f32.gmra.mxu0 %v2744
    %v2815 = vpop.f32.mrf.mxu0
    %v2816 = vadd.f32 %v2741, %v2815
    %v2817 = vpop.f32.mrf.mxu0
    %2818 = vmatprep.mubr.f32.mxu0 0.0
    %2819 = vmatmul.mubr.f32.gmra.mxu0 %v2747
    %v2820 = vpop.f32.mrf.mxu0
    %v2821 = vadd.f32 %v2741, %v2820
    %v2822 = vpop.f32.mrf.mxu0
    %2823 = vdwg.mxu0
    %v2824 = vmax.f32 %v2816, 0.0
    %v2825 = vmax.f32 %v2821, 0.0
    %v2826 = vld [vmem:[#allocation15] sm:$0xff]
    %v2827 = vld [vmem:[#allocation15 + $0x8] sm:$0xff]
    %v2828 = vld [vmem:[#allocation17] sm:$0x1]
    %v2830 = vlaneseq
    %v2831 = vshrl.u32 %v2830, 7
    %v2832 = vsub.s32 0, %v2831
    %v2833 = vrot.slane %v2828, %v2832
    %vm2835 = vcmask 130048
    %v2837 = vsel %vm2835, %v2824, 0
    %v2840 = vsel %vm2835, %v2825, 0
    %2842 = vmatprep.subr.mxu0 0.0
    %2843 = vmatpush1.msra.mxu0 0.0
    %2844 = vmatprep.subr.mxu0 0.0
    %2845 = vmatpush1.msra.mxu0 0.0
    %2846 = vmatprep.subr.mxu0 0.0
    %2847 = vmatpush1.msra.mxu0 0.0
    %2848 = vmatprep.subr.mxu0 0.0
    %2849 = vmatpush1.msra.mxu0 0.0
    %2850 = vmatprep.subr.mxu0 0.0
    %2851 = vmatpush1.msra.mxu0 0.0
    %2852 = vmatprep.subr.mxu0 0.0
    %2853 = vmatpush1.msra.mxu0 0.0
    %2854 = vmatprep.subr.mxu0 0.0
    %2855 = vmatpush1.msra.mxu0 0.0
    %2856 = vmatprep.subr.mxu0 0.0
    %2857 = vmatpush1.msra.mxu0 0.0
    %2858 = vmatprep.subr.mxu0 0.0
    %2859 = vmatpush1.msra.mxu0 0.0
    %2860 = vmatprep.subr.mxu0 0.0
    %2861 = vmatpush1.msra.mxu0 0.0
    %2862 = vmatprep.subr.mxu0 0.0
    %2863 = vmatpush1.msra.mxu0 0.0
    %2864 = vmatprep.subr.mxu0 0.0
    %2865 = vmatpush1.msra.mxu0 0.0
    %2866 = vmatprep.subr.mxu0 0.0
    %2867 = vmatpush1.msra.mxu0 0.0
    %2868 = vmatprep.subr.mxu0 0.0
    %2869 = vmatpush1.msra.mxu0 0.0
    %2870 = vmatprep.subr.mxu0 0.0
    %2871 = vmatpush1.msra.mxu0 %v2827
    %2872 = vmatprep.subr.mxu0 0.0
    %2873 = vmatpush1.msra.mxu0 %v2826
    %2874 = vmatprep.subr.mxu0 0.0
    %2875 = vmatpush2.msra.mxu0 0.0
    %2876 = vmatprep.subr.mxu0 0.0
    %2877 = vmatpush2.msra.mxu0 0.0
    %2878 = vmatprep.subr.mxu0 0.0
    %2879 = vmatpush2.msra.mxu0 0.0
    %2880 = vmatprep.subr.mxu0 0.0
    %2881 = vmatpush2.msra.mxu0 0.0
    %2882 = vmatprep.subr.mxu0 0.0
    %2883 = vmatpush2.msra.mxu0 0.0
    %2884 = vmatprep.subr.mxu0 0.0
    %2885 = vmatpush2.msra.mxu0 0.0
    %2886 = vmatprep.subr.mxu0 0.0
    %2887 = vmatpush2.msra.mxu0 0.0
    %2888 = vmatprep.subr.mxu0 0.0
    %2889 = vmatpush2.msra.mxu0 0.0
    %2890 = vmatprep.subr.mxu0 0.0
    %2891 = vmatpush2.msra.mxu0 0.0
    %2892 = vmatprep.subr.mxu0 0.0
    %2893 = vmatpush2.msra.mxu0 0.0
    %2894 = vmatprep.subr.mxu0 0.0
    %2895 = vmatpush2.msra.mxu0 0.0
    %2896 = vmatprep.subr.mxu0 0.0
    %2897 = vmatpush2.msra.mxu0 0.0
    %2898 = vmatprep.subr.mxu0 0.0
    %2899 = vmatpush2.msra.mxu0 0.0
    %2900 = vmatprep.subr.mxu0 0.0
    %2901 = vmatpush2.msra.mxu0 0.0
    %2902 = vmatprep.subr.mxu0 0.0
    %2903 = vmatpush2.msra.mxu0 0.0
    %2904 = vmatprep.subr.mxu0 0.0
    %2905 = vmatpush2.msra.mxu0 0.0
    %2906 = vmatprep.mubr.f32.mxu0 0.0
    %2907 = vmatmul.mubr.f32.gmra.mxu0 %v2837
    %v2908 = vpop.f32.mrf.mxu0
    %v2909 = vadd.f32 %v2833, %v2908
    %v2910 = vpop.f32.mrf.mxu0
    %2911 = vmatprep.mubr.f32.mxu0 0.0
    %2912 = vmatmul.mubr.f32.gmra.mxu0 %v2840
    %v2913 = vpop.f32.mrf.mxu0
    %v2914 = vadd.f32 %v2833, %v2913
    %v2915 = vpop.f32.mrf.mxu0
    %2916 = vdwg.mxu0
    %v2917 = vmax.f32 %v2909, 0.0
    %v2918 = vmax.f32 %v2914, 0.0
    %v2919 = vld [vmem:[#allocation18] sm:$0xff]
    %v2920 = vld [vmem:[#allocation18 + $0x8] sm:$0xff]
    %v2921 = vld [vmem:[#allocation18 + $0x10] sm:$0xff]
    %v2922 = vld [vmem:[#allocation18 + $0x18] sm:$0xff]
    %v2923 = vld [vmem:[%s12] sm:$0xff]
    %v2924 = vld [vmem:[%s12 + $0x8] sm:$0xff]
    %v2925 = vld [vmem:[%s13] sm:$0x1]
    %v2927 = vlaneseq
    %v2928 = vshrl.u32 %v2927, 7
    %v2929 = vsub.s32 0, %v2928
    %v2930 = vrot.slane %v2925, %v2929
    %v2933 = vsel %vm285, %v2917, 0
    %v2936 = vsel %vm285, %v2918, 0
    %2938 = vmatprep.subr.mxu0 0.0
    %2939 = vmatpush1.msra.mxu0 0.0
    %2940 = vmatprep.subr.mxu0 0.0
    %2941 = vmatpush1.msra.mxu0 0.0
    %2942 = vmatprep.subr.mxu0 0.0
    %2943 = vmatpush1.msra.mxu0 0.0
    %2944 = vmatprep.subr.mxu0 0.0
    %2945 = vmatpush1.msra.mxu0 0.0
    %2946 = vmatprep.subr.mxu0 0.0
    %2947 = vmatpush1.msra.mxu0 0.0
    %2948 = vmatprep.subr.mxu0 0.0
    %2949 = vmatpush1.msra.mxu0 0.0
    %2950 = vmatprep.subr.mxu0 0.0
    %2951 = vmatpush1.msra.mxu0 0.0
    %2952 = vmatprep.subr.mxu0 0.0
    %2953 = vmatpush1.msra.mxu0 0.0
    %2954 = vmatprep.subr.mxu0 0.0
    %2955 = vmatpush1.msra.mxu0 0.0
    %2956 = vmatprep.subr.mxu0 0.0
    %2957 = vmatpush1.msra.mxu0 0.0
    %2958 = vmatprep.subr.mxu0 0.0
    %2959 = vmatpush1.msra.mxu0 0.0
    %2960 = vmatprep.subr.mxu0 0.0
    %2961 = vmatpush1.msra.mxu0 0.0
    %2962 = vmatprep.subr.mxu0 0.0
    %2963 = vmatpush1.msra.mxu0 %v2922
    %2964 = vmatprep.subr.mxu0 0.0
    %2965 = vmatpush1.msra.mxu0 %v2921
    %2966 = vmatprep.subr.mxu0 0.0
    %2967 = vmatpush1.msra.mxu0 %v2920
    %2968 = vmatprep.subr.mxu0 0.0
    %2969 = vmatpush1.msra.mxu0 %v2919
    %2970 = vmatprep.subr.mxu0 0.0
    %2971 = vmatpush2.msra.mxu0 0.0
    %2972 = vmatprep.subr.mxu0 0.0
    %2973 = vmatpush2.msra.mxu0 0.0
    %2974 = vmatprep.subr.mxu0 0.0
    %2975 = vmatpush2.msra.mxu0 0.0
    %2976 = vmatprep.subr.mxu0 0.0
    %2977 = vmatpush2.msra.mxu0 0.0
    %2978 = vmatprep.subr.mxu0 0.0
    %2979 = vmatpush2.msra.mxu0 0.0
    %2980 = vmatprep.subr.mxu0 0.0
    %2981 = vmatpush2.msra.mxu0 0.0
    %2982 = vmatprep.subr.mxu0 0.0
    %2983 = vmatpush2.msra.mxu0 0.0
    %2984 = vmatprep.subr.mxu0 0.0
    %2985 = vmatpush2.msra.mxu0 0.0
    %2986 = vmatprep.subr.mxu0 0.0
    %2987 = vmatpush2.msra.mxu0 0.0
    %2988 = vmatprep.subr.mxu0 0.0
    %2989 = vmatpush2.msra.mxu0 0.0
    %2990 = vmatprep.subr.mxu0 0.0
    %2991 = vmatpush2.msra.mxu0 0.0
    %2992 = vmatprep.subr.mxu0 0.0
    %2993 = vmatpush2.msra.mxu0 0.0
    %2994 = vmatprep.subr.mxu0 0.0
    %2995 = vmatpush2.msra.mxu0 0.0
    %2996 = vmatprep.subr.mxu0 0.0
    %2997 = vmatpush2.msra.mxu0 0.0
    %2998 = vmatprep.subr.mxu0 0.0
    %2999 = vmatpush2.msra.mxu0 0.0
    %3000 = vmatprep.subr.mxu0 0.0
    %3001 = vmatpush2.msra.mxu0 0.0
    %3002 = vmatprep.mubr.f32.mxu0 0.0
    %3003 = vmatmul.mubr.f32.gmra.mxu0 %v2933
    %v3004 = vpop.f32.mrf.mxu0
    %v3005 = vadd.f32 %v2930, %v3004
    %v3006 = vpop.f32.mrf.mxu0
    %3007 = vmatprep.mubr.f32.mxu0 0.0
    %3008 = vmatmul.mubr.f32.gmra.mxu0 %v2936
    %v3009 = vpop.f32.mrf.mxu0
    %v3010 = vadd.f32 %v2930, %v3009
    %v3011 = vpop.f32.mrf.mxu0
    %3012 = vdwg.mxu0
    %v3013 = vsel %vm2835, 0.0, 0
    %3015 = vmatprep.subr.mxu0 0.0
    %3016 = vmatpush1.msra.mxu0 0.0
    %3017 = vmatprep.subr.mxu0 0.0
    %3018 = vmatpush1.msra.mxu0 0.0
    %3019 = vmatprep.subr.mxu0 0.0
    %3020 = vmatpush1.msra.mxu0 0.0
    %3021 = vmatprep.subr.mxu0 0.0
    %3022 = vmatpush1.msra.mxu0 0.0
    %3023 = vmatprep.subr.mxu0 0.0
    %3024 = vmatpush1.msra.mxu0 0.0
    %3025 = vmatprep.subr.mxu0 0.0
    %3026 = vmatpush1.msra.mxu0 0.0
    %3027 = vmatprep.subr.mxu0 0.0
    %3028 = vmatpush1.msra.mxu0 0.0
    %3029 = vmatprep.subr.mxu0 0.0
    %3030 = vmatpush1.msra.mxu0 0.0
    %3031 = vmatprep.subr.mxu0 0.0
    %3032 = vmatpush1.msra.mxu0 0.0
    %3033 = vmatprep.subr.mxu0 0.0
    %3034 = vmatpush1.msra.mxu0 0.0
    %3035 = vmatprep.subr.mxu0 0.0
    %3036 = vmatpush1.msra.mxu0 0.0
    %3037 = vmatprep.subr.mxu0 0.0
    %3038 = vmatpush1.msra.mxu0 0.0
    %3039 = vmatprep.subr.mxu0 0.0
    %3040 = vmatpush1.msra.mxu0 0.0
    %3041 = vmatprep.subr.mxu0 0.0
    %3042 = vmatpush1.msra.mxu0 0.0
    %3043 = vmatprep.subr.mxu0 0.0
    %3044 = vmatpush1.msra.mxu0 %v2924
    %3045 = vmatprep.subr.mxu0 0.0
    %3046 = vmatpush1.msra.mxu0 %v2923
    %3047 = vmatprep.subr.mxu0 0.0
    %3048 = vmatpush2.msra.mxu0 0.0
    %3049 = vmatprep.subr.mxu0 0.0
    %3050 = vmatpush2.msra.mxu0 0.0
    %3051 = vmatprep.subr.mxu0 0.0
    %3052 = vmatpush2.msra.mxu0 0.0
    %3053 = vmatprep.subr.mxu0 0.0
    %3054 = vmatpush2.msra.mxu0 0.0
    %3055 = vmatprep.subr.mxu0 0.0
    %3056 = vmatpush2.msra.mxu0 0.0
    %3057 = vmatprep.subr.mxu0 0.0
    %3058 = vmatpush2.msra.mxu0 0.0
    %3059 = vmatprep.subr.mxu0 0.0
    %3060 = vmatpush2.msra.mxu0 0.0
    %3061 = vmatprep.subr.mxu0 0.0
    %3062 = vmatpush2.msra.mxu0 0.0
    %3063 = vmatprep.subr.mxu0 0.0
    %3064 = vmatpush2.msra.mxu0 0.0
    %3065 = vmatprep.subr.mxu0 0.0
    %3066 = vmatpush2.msra.mxu0 0.0
    %3067 = vmatprep.subr.mxu0 0.0
    %3068 = vmatpush2.msra.mxu0 0.0
    %3069 = vmatprep.subr.mxu0 0.0
    %3070 = vmatpush2.msra.mxu0 0.0
    %3071 = vmatprep.subr.mxu0 0.0
    %3072 = vmatpush2.msra.mxu0 0.0
    %3073 = vmatprep.subr.mxu0 0.0
    %3074 = vmatpush2.msra.mxu0 0.0
    %3075 = vmatprep.subr.mxu0 0.0
    %3076 = vmatpush2.msra.mxu0 0.0
    %3077 = vmatprep.subr.mxu0 0.0
    %3078 = vmatpush2.msra.mxu0 0.0
    %3079 = vmatprep.mubr.f32.mxu0 0.0
    %3080 = vmatmul.mubr.f32.gmra.mxu0 %v3013
    %v3081 = vpop.f32.mrf.mxu0
    %v3082 = vadd.f32 0.0, %v3081
    %v3083 = vpop.f32.mrf.mxu0
    %3084 = vdwg.mxu0
    %v3086 = vrot.slane %v3082, 1
    %v3089 = vadd.f32 %v3005, %v3082
    %v3090 = vadd.f32 %v3010, %v3086
    %v3091 = vxor.u32 %v3089, 2147483648
    %v3092 = vxor.u32 %v3090, 2147483648
    %v3093 = vmul.f32 %v3091, 1.442695
    %v3094 = vpow.pop %v3093
    %v3095 = vmul.f32 %v3092, 1.442695
    %v3096 = vpow.pop %v3095
    %v3097 = vadd.f32 %v3094, 1.0
    %v3098 = vadd.f32 %v3096, 1.0
    %v3099 = vrcp.pop %v3097
    %v3100 = vmul.f32 1.0, %v3099
    %v3101 = vrcp.pop %v3098
    %v3102 = vmul.f32 1.0, %v3101
    %v3103 = vtanh.pop %v3089
    %v3104 = vtanh.pop %v3090
    %v3105 = vmul.f32 %v3100, 0.0
    %v3106 = vmul.f32 %v3102, 0.0
    %3109 = vrot.lane.b32.xlu0 %v3103, 96
    %v3110 = vpop.permute.xlu0 %3109
    %3111 = vrot.lane.b32.xlu0 %v3104, 96
    %v3112 = vpop.permute.xlu0 %3111
    %v3115 = vmul.f32 %v3100, %v3110
    %v3116 = vmul.f32 %v3102, %v3112
    %3119 = vrot.lane.b32.xlu0 %v3115, 16
    %v3120 = vpop.permute.xlu0 %3119
    %3121 = vrot.lane.b32.xlu0 %v3116, 16
    %v3122 = vpop.permute.xlu0 %3121
    %v3125 = vadd.f32 %v3105, %v3120
    %v3126 = vadd.f32 %v3106, %v3122
    %v3127 = vtanh.pop %v3125
    %v3128 = vtanh.pop %v3126
    %3131 = vrot.lane.b32.xlu0 %v3127, 32
    %v3132 = vpop.permute.xlu0 %3131
    %3133 = vrot.lane.b32.xlu0 %v3128, 32
    %v3134 = vpop.permute.xlu0 %3133
    %v3137 = vmul.f32 %v3100, %v3132
    %v3138 = vmul.f32 %v3102, %v3134
    %3141 = vrot.lane.b32.xlu0 %v3137, 80
    %v3142 = vpop.permute.xlu0 %3141
    %3143 = vrot.lane.b32.xlu0 %v3138, 80
    %v3144 = vpop.permute.xlu0 %3143
    %vm3147 = vcmask 122880
    %3148 = vst.msk [vmem:[#allocation4] sm:$0x1] %vm3147, %v3142
    %3149 = vst.msk [vmem:[#allocation4 + $0x8] sm:$0x1] %vm3147, %v3144
    %v3150 = vrot.slane %v3138, 7
    %v3151 = vsel %vm425, %v3150, %v3137
    %3152 = vrot.lane.b32.xlu0 %v3151, 80
    %v3153 = vpop.permute.xlu0 %3152
    %v3154 = vsel %vm2835, %v3153, 0
    %3156 = vmatprep.subr.mxu0 0.0
    %3157 = vmatpush1.msra.mxu0 0.0
    %3158 = vmatprep.subr.mxu0 0.0
    %3159 = vmatpush1.msra.mxu0 0.0
    %3160 = vmatprep.subr.mxu0 0.0
    %3161 = vmatpush1.msra.mxu0 0.0
    %3162 = vmatprep.subr.mxu0 0.0
    %3163 = vmatpush1.msra.mxu0 0.0
    %3164 = vmatprep.subr.mxu0 0.0
    %3165 = vmatpush1.msra.mxu0 0.0
    %3166 = vmatprep.subr.mxu0 0.0
    %3167 = vmatpush1.msra.mxu0 0.0
    %3168 = vmatprep.subr.mxu0 0.0
    %3169 = vmatpush1.msra.mxu0 0.0
    %3170 = vmatprep.subr.mxu0 0.0
    %3171 = vmatpush1.msra.mxu0 0.0
    %3172 = vmatprep.subr.mxu0 0.0
    %3173 = vmatpush1.msra.mxu0 0.0
    %3174 = vmatprep.subr.mxu0 0.0
    %3175 = vmatpush1.msra.mxu0 0.0
    %3176 = vmatprep.subr.mxu0 0.0
    %3177 = vmatpush1.msra.mxu0 0.0
    %3178 = vmatprep.subr.mxu0 0.0
    %3179 = vmatpush1.msra.mxu0 0.0
    %3180 = vmatprep.subr.mxu0 0.0
    %3181 = vmatpush1.msra.mxu0 0.0
    %3182 = vmatprep.subr.mxu0 0.0
    %3183 = vmatpush1.msra.mxu0 0.0
    %3184 = vmatprep.subr.mxu0 0.0
    %3185 = vmatpush1.msra.mxu0 %v2924
    %3186 = vmatprep.subr.mxu0 0.0
    %3187 = vmatpush1.msra.mxu0 %v2923
    %3188 = vmatprep.subr.mxu0 0.0
    %3189 = vmatpush2.msra.mxu0 0.0
    %3190 = vmatprep.subr.mxu0 0.0
    %3191 = vmatpush2.msra.mxu0 0.0
    %3192 = vmatprep.subr.mxu0 0.0
    %3193 = vmatpush2.msra.mxu0 0.0
    %3194 = vmatprep.subr.mxu0 0.0
    %3195 = vmatpush2.msra.mxu0 0.0
    %3196 = vmatprep.subr.mxu0 0.0
    %3197 = vmatpush2.msra.mxu0 0.0
    %3198 = vmatprep.subr.mxu0 0.0
    %3199 = vmatpush2.msra.mxu0 0.0
    %3200 = vmatprep.subr.mxu0 0.0
    %3201 = vmatpush2.msra.mxu0 0.0
    %3202 = vmatprep.subr.mxu0 0.0
    %3203 = vmatpush2.msra.mxu0 0.0
    %3204 = vmatprep.subr.mxu0 0.0
    %3205 = vmatpush2.msra.mxu0 0.0
    %3206 = vmatprep.subr.mxu0 0.0
    %3207 = vmatpush2.msra.mxu0 0.0
    %3208 = vmatprep.subr.mxu0 0.0
    %3209 = vmatpush2.msra.mxu0 0.0
    %3210 = vmatprep.subr.mxu0 0.0
    %3211 = vmatpush2.msra.mxu0 0.0
    %3212 = vmatprep.subr.mxu0 0.0
    %3213 = vmatpush2.msra.mxu0 0.0
    %3214 = vmatprep.subr.mxu0 0.0
    %3215 = vmatpush2.msra.mxu0 0.0
    %3216 = vmatprep.subr.mxu0 0.0
    %3217 = vmatpush2.msra.mxu0 0.0
    %3218 = vmatprep.subr.mxu0 0.0
    %3219 = vmatpush2.msra.mxu0 0.0
    %3220 = vmatprep.mubr.f32.mxu0 0.0
    %3221 = vmatmul.mubr.f32.gmra.mxu0 %v3154
    %v3222 = vpop.f32.mrf.mxu0
    %v3223 = vadd.f32 0.0, %v3222
    %v3224 = vpop.f32.mrf.mxu0
    %3225 = vdwg.mxu0
    %v3227 = vrot.slane %v3223, 7
    %v3230 = vadd.f32 %v3005, %v3227
    %v3231 = vadd.f32 %v3010, %v3223
    %v3232 = vxor.u32 %v3230, 2147483648
    %v3233 = vxor.u32 %v3231, 2147483648
    %v3234 = vmul.f32 %v3232, 1.442695
    %v3235 = vpow.pop %v3234
    %v3236 = vmul.f32 %v3233, 1.442695
    %v3237 = vpow.pop %v3236
    %v3238 = vadd.f32 %v3235, 1.0
    %v3239 = vadd.f32 %v3237, 1.0
    %v3240 = vrcp.pop %v3238
    %v3241 = vmul.f32 1.0, %v3240
    %v3242 = vrcp.pop %v3239
    %v3243 = vmul.f32 1.0, %v3242
    %v3244 = vtanh.pop %v3230
    %v3245 = vtanh.pop %v3231
    %v3248 = vrot.slane %v3125, 7
    %v3249 = vrot.slane %v3126, 7
    %v3252 = vmul.f32 %v3241, %v3248
    %v3253 = vmul.f32 %v3243, %v3249
    %3256 = vrot.lane.b32.xlu0 %v3244, 96
    %v3257 = vpop.permute.xlu0 %3256
    %3258 = vrot.lane.b32.xlu0 %v3245, 96
    %v3259 = vpop.permute.xlu0 %3258
    %v3262 = vmul.f32 %v3241, %v3257
    %v3263 = vmul.f32 %v3243, %v3259
    %3266 = vrot.lane.b32.xlu0 %v3262, 16
    %v3267 = vpop.permute.xlu0 %3266
    %3268 = vrot.lane.b32.xlu0 %v3263, 16
    %v3269 = vpop.permute.xlu0 %3268
    %v3272 = vadd.f32 %v3252, %v3267
    %v3273 = vadd.f32 %v3253, %v3269
    %v3274 = vtanh.pop %v3272
    %v3275 = vtanh.pop %v3273
    %3278 = vrot.lane.b32.xlu0 %v3274, 32
    %v3279 = vpop.permute.xlu0 %3278
    %3280 = vrot.lane.b32.xlu0 %v3275, 32
    %v3281 = vpop.permute.xlu0 %3280
    %v3284 = vmul.f32 %v3241, %v3279
    %v3285 = vmul.f32 %v3243, %v3281
    %3288 = vrot.lane.b32.xlu0 %v3284, 80
    %v3289 = vpop.permute.xlu0 %3288
    %3290 = vrot.lane.b32.xlu0 %v3285, 80
    %v3291 = vpop.permute.xlu0 %3290
    %vm3294 = vcmask 123905
    %3295 = vst.msk [vmem:[#allocation4] sm:$0x2] %vm3294, %v3289
    %3296 = vst.msk [vmem:[#allocation4 + $0x8] sm:$0x2] %vm3294, %v3291
    %v3297 = vrot.slane %v3284, 1
    %v3298 = vsel %vm425, %v3285, %v3297
    %3299 = vrot.lane.b32.xlu0 %v3298, 80
    %v3300 = vpop.permute.xlu0 %3299
    %v3301 = vsel %vm2835, %v3300, 0
    %3303 = vmatprep.subr.mxu0 0.0
    %3304 = vmatpush1.msra.mxu0 0.0
    %3305 = vmatprep.subr.mxu0 0.0
    %3306 = vmatpush1.msra.mxu0 0.0
    %3307 = vmatprep.subr.mxu0 0.0
    %3308 = vmatpush1.msra.mxu0 0.0
    %3309 = vmatprep.subr.mxu0 0.0
    %3310 = vmatpush1.msra.mxu0 0.0
    %3311 = vmatprep.subr.mxu0 0.0
    %3312 = vmatpush1.msra.mxu0 0.0
    %3313 = vmatprep.subr.mxu0 0.0
    %3314 = vmatpush1.msra.mxu0 0.0
    %3315 = vmatprep.subr.mxu0 0.0
    %3316 = vmatpush1.msra.mxu0 0.0
    %3317 = vmatprep.subr.mxu0 0.0
    %3318 = vmatpush1.msra.mxu0 0.0
    %3319 = vmatprep.subr.mxu0 0.0
    %3320 = vmatpush1.msra.mxu0 0.0
    %3321 = vmatprep.subr.mxu0 0.0
    %3322 = vmatpush1.msra.mxu0 0.0
    %3323 = vmatprep.subr.mxu0 0.0
    %3324 = vmatpush1.msra.mxu0 0.0
    %3325 = vmatprep.subr.mxu0 0.0
    %3326 = vmatpush1.msra.mxu0 0.0
    %3327 = vmatprep.subr.mxu0 0.0
    %3328 = vmatpush1.msra.mxu0 0.0
    %3329 = vmatprep.subr.mxu0 0.0
    %3330 = vmatpush1.msra.mxu0 0.0
    %3331 = vmatprep.subr.mxu0 0.0
    %3332 = vmatpush1.msra.mxu0 %v2924
    %3333 = vmatprep.subr.mxu0 0.0
    %3334 = vmatpush1.msra.mxu0 %v2923
    %3335 = vmatprep.subr.mxu0 0.0
    %3336 = vmatpush2.msra.mxu0 0.0
    %3337 = vmatprep.subr.mxu0 0.0
    %3338 = vmatpush2.msra.mxu0 0.0
    %3339 = vmatprep.subr.mxu0 0.0
    %3340 = vmatpush2.msra.mxu0 0.0
    %3341 = vmatprep.subr.mxu0 0.0
    %3342 = vmatpush2.msra.mxu0 0.0
    %3343 = vmatprep.subr.mxu0 0.0
    %3344 = vmatpush2.msra.mxu0 0.0
    %3345 = vmatprep.subr.mxu0 0.0
    %3346 = vmatpush2.msra.mxu0 0.0
    %3347 = vmatprep.subr.mxu0 0.0
    %3348 = vmatpush2.msra.mxu0 0.0
    %3349 = vmatprep.subr.mxu0 0.0
    %3350 = vmatpush2.msra.mxu0 0.0
    %3351 = vmatprep.subr.mxu0 0.0
    %3352 = vmatpush2.msra.mxu0 0.0
    %3353 = vmatprep.subr.mxu0 0.0
    %3354 = vmatpush2.msra.mxu0 0.0
    %3355 = vmatprep.subr.mxu0 0.0
    %3356 = vmatpush2.msra.mxu0 0.0
    %3357 = vmatprep.subr.mxu0 0.0
    %3358 = vmatpush2.msra.mxu0 0.0
    %3359 = vmatprep.subr.mxu0 0.0
    %3360 = vmatpush2.msra.mxu0 0.0
    %3361 = vmatprep.subr.mxu0 0.0
    %3362 = vmatpush2.msra.mxu0 0.0
    %3363 = vmatprep.subr.mxu0 0.0
    %3364 = vmatpush2.msra.mxu0 0.0
    %3365 = vmatprep.subr.mxu0 0.0
    %3366 = vmatpush2.msra.mxu0 0.0
    %3367 = vmatprep.mubr.f32.mxu0 0.0
    %3368 = vmatmul.mubr.f32.gmra.mxu0 %v3301
    %v3369 = vpop.f32.mrf.mxu0
    %v3370 = vadd.f32 0.0, %v3369
    %v3371 = vpop.f32.mrf.mxu0
    %3372 = vdwg.mxu0
    %v3374 = vrot.slane %v3370, 6
    %v3375 = vrot.slane %v3370, 7
    %v3378 = vadd.f32 %v3005, %v3374
    %v3379 = vadd.f32 %v3010, %v3375
    %v3380 = vxor.u32 %v3378, 2147483648
    %v3381 = vxor.u32 %v3379, 2147483648
    %v3382 = vmul.f32 %v3380, 1.442695
    %v3383 = vpow.pop %v3382
    %v3384 = vmul.f32 %v3381, 1.442695
    %v3385 = vpow.pop %v3384
    %v3386 = vadd.f32 %v3383, 1.0
    %v3387 = vadd.f32 %v3385, 1.0
    %v3388 = vrcp.pop %v3386
    %v3389 = vmul.f32 1.0, %v3388
    %v3390 = vrcp.pop %v3387
    %v3391 = vmul.f32 1.0, %v3390
    %v3392 = vtanh.pop %v3378
    %v3393 = vtanh.pop %v3379
    %v3396 = vrot.slane %v3272, 7
    %v3397 = vrot.slane %v3273, 7
    %v3400 = vmul.f32 %v3389, %v3396
    %v3401 = vmul.f32 %v3391, %v3397
    %3404 = vrot.lane.b32.xlu0 %v3392, 96
    %v3405 = vpop.permute.xlu0 %3404
    %3406 = vrot.lane.b32.xlu0 %v3393, 96
    %v3407 = vpop.permute.xlu0 %3406
    %v3410 = vmul.f32 %v3389, %v3405
    %v3411 = vmul.f32 %v3391, %v3407
    %3414 = vrot.lane.b32.xlu0 %v3410, 16
    %v3415 = vpop.permute.xlu0 %3414
    %3416 = vrot.lane.b32.xlu0 %v3411, 16
    %v3417 = vpop.permute.xlu0 %3416
    %v3420 = vadd.f32 %v3400, %v3415
    %v3421 = vadd.f32 %v3401, %v3417
    %v3422 = vtanh.pop %v3420
    %v3423 = vtanh.pop %v3421
    %3426 = vrot.lane.b32.xlu0 %v3422, 32
    %v3427 = vpop.permute.xlu0 %3426
    %3428 = vrot.lane.b32.xlu0 %v3423, 32
    %v3429 = vpop.permute.xlu0 %3428
    %v3432 = vmul.f32 %v3389, %v3427
    %v3433 = vmul.f32 %v3391, %v3429
    %3436 = vrot.lane.b32.xlu0 %v3432, 80
    %v3437 = vpop.permute.xlu0 %3436
    %3438 = vrot.lane.b32.xlu0 %v3433, 80
    %v3439 = vpop.permute.xlu0 %3438
    %vm3442 = vcmask 124930
    %3443 = vst.msk [vmem:[#allocation4] sm:$0x4] %vm3442, %v3437
    %3444 = vst.msk [vmem:[#allocation4 + $0x8] sm:$0x4] %vm3442, %v3439
    %v3445 = vrot.slane %v3432, 2
    %v3446 = vrot.slane %v3433, 1
    %v3447 = vsel %vm425, %v3446, %v3445
    %3448 = vrot.lane.b32.xlu0 %v3447, 80
    %v3449 = vpop.permute.xlu0 %3448
    %v3450 = vsel %vm2835, %v3449, 0
    %3452 = vmatprep.subr.mxu0 0.0
    %3453 = vmatpush1.msra.mxu0 0.0
    %3454 = vmatprep.subr.mxu0 0.0
    %3455 = vmatpush1.msra.mxu0 0.0
    %3456 = vmatprep.subr.mxu0 0.0
    %3457 = vmatpush1.msra.mxu0 0.0
    %3458 = vmatprep.subr.mxu0 0.0
    %3459 = vmatpush1.msra.mxu0 0.0
    %3460 = vmatprep.subr.mxu0 0.0
    %3461 = vmatpush1.msra.mxu0 0.0
    %3462 = vmatprep.subr.mxu0 0.0
    %3463 = vmatpush1.msra.mxu0 0.0
    %3464 = vmatprep.subr.mxu0 0.0
    %3465 = vmatpush1.msra.mxu0 0.0
    %3466 = vmatprep.subr.mxu0 0.0
    %3467 = vmatpush1.msra.mxu0 0.0
    %3468 = vmatprep.subr.mxu0 0.0
    %3469 = vmatpush1.msra.mxu0 0.0
    %3470 = vmatprep.subr.mxu0 0.0
    %3471 = vmatpush1.msra.mxu0 0.0
    %3472 = vmatprep.subr.mxu0 0.0
    %3473 = vmatpush1.msra.mxu0 0.0
    %3474 = vmatprep.subr.mxu0 0.0
    %3475 = vmatpush1.msra.mxu0 0.0
    %3476 = vmatprep.subr.mxu0 0.0
    %3477 = vmatpush1.msra.mxu0 0.0
    %3478 = vmatprep.subr.mxu0 0.0
    %3479 = vmatpush1.msra.mxu0 0.0
    %3480 = vmatprep.subr.mxu0 0.0
    %3481 = vmatpush1.msra.mxu0 %v2924
    %3482 = vmatprep.subr.mxu0 0.0
    %3483 = vmatpush1.msra.mxu0 %v2923
    %3484 = vmatprep.subr.mxu0 0.0
    %3485 = vmatpush2.msra.mxu0 0.0
    %3486 = vmatprep.subr.mxu0 0.0
    %3487 = vmatpush2.msra.mxu0 0.0
    %3488 = vmatprep.subr.mxu0 0.0
    %3489 = vmatpush2.msra.mxu0 0.0
    %3490 = vmatprep.subr.mxu0 0.0
    %3491 = vmatpush2.msra.mxu0 0.0
    %3492 = vmatprep.subr.mxu0 0.0
    %3493 = vmatpush2.msra.mxu0 0.0
    %3494 = vmatprep.subr.mxu0 0.0
    %3495 = vmatpush2.msra.mxu0 0.0
    %3496 = vmatprep.subr.mxu0 0.0
    %3497 = vmatpush2.msra.mxu0 0.0
    %3498 = vmatprep.subr.mxu0 0.0
    %3499 = vmatpush2.msra.mxu0 0.0
    %3500 = vmatprep.subr.mxu0 0.0
    %3501 = vmatpush2.msra.mxu0 0.0
    %3502 = vmatprep.subr.mxu0 0.0
    %3503 = vmatpush2.msra.mxu0 0.0
    %3504 = vmatprep.subr.mxu0 0.0
    %3505 = vmatpush2.msra.mxu0 0.0
    %3506 = vmatprep.subr.mxu0 0.0
    %3507 = vmatpush2.msra.mxu0 0.0
    %3508 = vmatprep.subr.mxu0 0.0
    %3509 = vmatpush2.msra.mxu0 0.0
    %3510 = vmatprep.subr.mxu0 0.0
    %3511 = vmatpush2.msra.mxu0 0.0
    %3512 = vmatprep.subr.mxu0 0.0
    %3513 = vmatpush2.msra.mxu0 0.0
    %3514 = vmatprep.subr.mxu0 0.0
    %3515 = vmatpush2.msra.mxu0 0.0
    %3516 = vmatprep.mubr.f32.mxu0 0.0
    %3517 = vmatmul.mubr.f32.gmra.mxu0 %v3450
    %v3518 = vpop.f32.mrf.mxu0
    %v3519 = vadd.f32 0.0, %v3518
    %v3520 = vpop.f32.mrf.mxu0
    %3521 = vdwg.mxu0
    %v3523 = vrot.slane %v3519, 5
    %v3524 = vrot.slane %v3519, 6
    %v3527 = vadd.f32 %v3005, %v3523
    %v3528 = vadd.f32 %v3010, %v3524
    %v3529 = vxor.u32 %v3527, 2147483648
    %v3530 = vxor.u32 %v3528, 2147483648
    %v3531 = vmul.f32 %v3529, 1.442695
    %v3532 = vpow.pop %v3531
    %v3533 = vmul.f32 %v3530, 1.442695
    %v3534 = vpow.pop %v3533
    %v3535 = vadd.f32 %v3532, 1.0
    %v3536 = vadd.f32 %v3534, 1.0
    %v3537 = vrcp.pop %v3535
    %v3538 = vmul.f32 1.0, %v3537
    %v3539 = vrcp.pop %v3536
    %v3540 = vmul.f32 1.0, %v3539
    %v3541 = vtanh.pop %v3527
    %v3542 = vtanh.pop %v3528
    %v3545 = vrot.slane %v3420, 7
    %v3546 = vrot.slane %v3421, 7
    %v3549 = vmul.f32 %v3538, %v3545
    %v3550 = vmul.f32 %v3540, %v3546
    %3553 = vrot.lane.b32.xlu0 %v3541, 96
    %v3554 = vpop.permute.xlu0 %3553
    %3555 = vrot.lane.b32.xlu0 %v3542, 96
    %v3556 = vpop.permute.xlu0 %3555
    %v3559 = vmul.f32 %v3538, %v3554
    %v3560 = vmul.f32 %v3540, %v3556
    %3563 = vrot.lane.b32.xlu0 %v3559, 16
    %v3564 = vpop.permute.xlu0 %3563
    %3565 = vrot.lane.b32.xlu0 %v3560, 16
    %v3566 = vpop.permute.xlu0 %3565
    %v3569 = vadd.f32 %v3549, %v3564
    %v3570 = vadd.f32 %v3550, %v3566
    %v3571 = vtanh.pop %v3569
    %v3572 = vtanh.pop %v3570
    %3575 = vrot.lane.b32.xlu0 %v3571, 32
    %v3576 = vpop.permute.xlu0 %3575
    %3577 = vrot.lane.b32.xlu0 %v3572, 32
    %v3578 = vpop.permute.xlu0 %3577
    %v3581 = vmul.f32 %v3538, %v3576
    %v3582 = vmul.f32 %v3540, %v3578
    %3585 = vrot.lane.b32.xlu0 %v3581, 80
    %v3586 = vpop.permute.xlu0 %3585
    %3587 = vrot.lane.b32.xlu0 %v3582, 80
    %v3588 = vpop.permute.xlu0 %3587
    %vm3591 = vcmask 125955
    %3592 = vst.msk [vmem:[#allocation4] sm:$0x8] %vm3591, %v3586
    %3593 = vst.msk [vmem:[#allocation4 + $0x8] sm:$0x8] %vm3591, %v3588
    %v3594 = vrot.slane %v3581, 3
    %v3595 = vrot.slane %v3582, 2
    %v3596 = vsel %vm425, %v3595, %v3594
    %3597 = vrot.lane.b32.xlu0 %v3596, 80
    %v3598 = vpop.permute.xlu0 %3597
    %v3599 = vsel %vm2835, %v3598, 0
    %3601 = vmatprep.subr.mxu0 0.0
    %3602 = vmatpush1.msra.mxu0 0.0
    %3603 = vmatprep.subr.mxu0 0.0
    %3604 = vmatpush1.msra.mxu0 0.0
    %3605 = vmatprep.subr.mxu0 0.0
    %3606 = vmatpush1.msra.mxu0 0.0
    %3607 = vmatprep.subr.mxu0 0.0
    %3608 = vmatpush1.msra.mxu0 0.0
    %3609 = vmatprep.subr.mxu0 0.0
    %3610 = vmatpush1.msra.mxu0 0.0
    %3611 = vmatprep.subr.mxu0 0.0
    %3612 = vmatpush1.msra.mxu0 0.0
    %3613 = vmatprep.subr.mxu0 0.0
    %3614 = vmatpush1.msra.mxu0 0.0
    %3615 = vmatprep.subr.mxu0 0.0
    %3616 = vmatpush1.msra.mxu0 0.0
    %3617 = vmatprep.subr.mxu0 0.0
    %3618 = vmatpush1.msra.mxu0 0.0
    %3619 = vmatprep.subr.mxu0 0.0
    %3620 = vmatpush1.msra.mxu0 0.0
    %3621 = vmatprep.subr.mxu0 0.0
    %3622 = vmatpush1.msra.mxu0 0.0
    %3623 = vmatprep.subr.mxu0 0.0
    %3624 = vmatpush1.msra.mxu0 0.0
    %3625 = vmatprep.subr.mxu0 0.0
    %3626 = vmatpush1.msra.mxu0 0.0
    %3627 = vmatprep.subr.mxu0 0.0
    %3628 = vmatpush1.msra.mxu0 0.0
    %3629 = vmatprep.subr.mxu0 0.0
    %3630 = vmatpush1.msra.mxu0 %v2924
    %3631 = vmatprep.subr.mxu0 0.0
    %3632 = vmatpush1.msra.mxu0 %v2923
    %3633 = vmatprep.subr.mxu0 0.0
    %3634 = vmatpush2.msra.mxu0 0.0
    %3635 = vmatprep.subr.mxu0 0.0
    %3636 = vmatpush2.msra.mxu0 0.0
    %3637 = vmatprep.subr.mxu0 0.0
    %3638 = vmatpush2.msra.mxu0 0.0
    %3639 = vmatprep.subr.mxu0 0.0
    %3640 = vmatpush2.msra.mxu0 0.0
    %3641 = vmatprep.subr.mxu0 0.0
    %3642 = vmatpush2.msra.mxu0 0.0
    %3643 = vmatprep.subr.mxu0 0.0
    %3644 = vmatpush2.msra.mxu0 0.0
    %3645 = vmatprep.subr.mxu0 0.0
    %3646 = vmatpush2.msra.mxu0 0.0
    %3647 = vmatprep.subr.mxu0 0.0
    %3648 = vmatpush2.msra.mxu0 0.0
    %3649 = vmatprep.subr.mxu0 0.0
    %3650 = vmatpush2.msra.mxu0 0.0
    %3651 = vmatprep.subr.mxu0 0.0
    %3652 = vmatpush2.msra.mxu0 0.0
    %3653 = vmatprep.subr.mxu0 0.0
    %3654 = vmatpush2.msra.mxu0 0.0
    %3655 = vmatprep.subr.mxu0 0.0
    %3656 = vmatpush2.msra.mxu0 0.0
    %3657 = vmatprep.subr.mxu0 0.0
    %3658 = vmatpush2.msra.mxu0 0.0
    %3659 = vmatprep.subr.mxu0 0.0
    %3660 = vmatpush2.msra.mxu0 0.0
    %3661 = vmatprep.subr.mxu0 0.0
    %3662 = vmatpush2.msra.mxu0 0.0
    %3663 = vmatprep.subr.mxu0 0.0
    %3664 = vmatpush2.msra.mxu0 0.0
    %3665 = vmatprep.mubr.f32.mxu0 0.0
    %3666 = vmatmul.mubr.f32.gmra.mxu0 %v3599
    %v3667 = vpop.f32.mrf.mxu0
    %v3668 = vadd.f32 0.0, %v3667
    %v3669 = vpop.f32.mrf.mxu0
    %3670 = vdwg.mxu0
    %v3672 = vrot.slane %v3668, 4
    %v3673 = vrot.slane %v3668, 5
    %v3676 = vadd.f32 %v3005, %v3672
    %v3677 = vadd.f32 %v3010, %v3673
    %v3678 = vxor.u32 %v3676, 2147483648
    %v3679 = vxor.u32 %v3677, 2147483648
    %v3680 = vmul.f32 %v3678, 1.442695
    %v3681 = vpow.pop %v3680
    %v3682 = vmul.f32 %v3679, 1.442695
    %v3683 = vpow.pop %v3682
    %v3684 = vadd.f32 %v3681, 1.0
    %v3685 = vadd.f32 %v3683, 1.0
    %v3686 = vrcp.pop %v3684
    %v3687 = vmul.f32 1.0, %v3686
    %v3688 = vrcp.pop %v3685
    %v3689 = vmul.f32 1.0, %v3688
    %v3690 = vtanh.pop %v3676
    %v3691 = vtanh.pop %v3677
    %v3694 = vrot.slane %v3569, 7
    %v3695 = vrot.slane %v3570, 7
    %v3698 = vmul.f32 %v3687, %v3694
    %v3699 = vmul.f32 %v3689, %v3695
    %3702 = vrot.lane.b32.xlu0 %v3690, 96
    %v3703 = vpop.permute.xlu0 %3702
    %3704 = vrot.lane.b32.xlu0 %v3691, 96
    %v3705 = vpop.permute.xlu0 %3704
    %v3708 = vmul.f32 %v3687, %v3703
    %v3709 = vmul.f32 %v3689, %v3705
    %3712 = vrot.lane.b32.xlu0 %v3708, 16
    %v3713 = vpop.permute.xlu0 %3712
    %3714 = vrot.lane.b32.xlu0 %v3709, 16
    %v3715 = vpop.permute.xlu0 %3714
    %v3718 = vadd.f32 %v3698, %v3713
    %v3719 = vadd.f32 %v3699, %v3715
    %v3720 = vtanh.pop %v3718
    %v3721 = vtanh.pop %v3719
    %3724 = vrot.lane.b32.xlu0 %v3720, 32
    %v3725 = vpop.permute.xlu0 %3724
    %3726 = vrot.lane.b32.xlu0 %v3721, 32
    %v3727 = vpop.permute.xlu0 %3726
    %v3730 = vmul.f32 %v3687, %v3725
    %v3731 = vmul.f32 %v3689, %v3727
    %3734 = vrot.lane.b32.xlu0 %v3730, 80
    %v3735 = vpop.permute.xlu0 %3734
    %3736 = vrot.lane.b32.xlu0 %v3731, 80
    %v3737 = vpop.permute.xlu0 %3736
    %vm3740 = vcmask 126980
    %3741 = vst.msk [vmem:[#allocation4] sm:$0x10] %vm3740, %v3735
    %3742 = vst.msk [vmem:[#allocation4 + $0x8] sm:$0x10] %vm3740, %v3737
    %v3743 = vrot.slane %v3730, 4
    %v3744 = vrot.slane %v3731, 3
    %v3745 = vsel %vm425, %v3744, %v3743
    %3746 = vrot.lane.b32.xlu0 %v3745, 80
    %v3747 = vpop.permute.xlu0 %3746
    %v3748 = vsel %vm2835, %v3747, 0
    %3750 = vmatprep.subr.mxu0 0.0
    %3751 = vmatpush1.msra.mxu0 0.0
    %3752 = vmatprep.subr.mxu0 0.0
    %3753 = vmatpush1.msra.mxu0 0.0
    %3754 = vmatprep.subr.mxu0 0.0
    %3755 = vmatpush1.msra.mxu0 0.0
    %3756 = vmatprep.subr.mxu0 0.0
    %3757 = vmatpush1.msra.mxu0 0.0
    %3758 = vmatprep.subr.mxu0 0.0
    %3759 = vmatpush1.msra.mxu0 0.0
    %3760 = vmatprep.subr.mxu0 0.0
    %3761 = vmatpush1.msra.mxu0 0.0
    %3762 = vmatprep.subr.mxu0 0.0
    %3763 = vmatpush1.msra.mxu0 0.0
    %3764 = vmatprep.subr.mxu0 0.0
    %3765 = vmatpush1.msra.mxu0 0.0
    %3766 = vmatprep.subr.mxu0 0.0
    %3767 = vmatpush1.msra.mxu0 0.0
    %3768 = vmatprep.subr.mxu0 0.0
    %3769 = vmatpush1.msra.mxu0 0.0
    %3770 = vmatprep.subr.mxu0 0.0
    %3771 = vmatpush1.msra.mxu0 0.0
    %3772 = vmatprep.subr.mxu0 0.0
    %3773 = vmatpush1.msra.mxu0 0.0
    %3774 = vmatprep.subr.mxu0 0.0
    %3775 = vmatpush1.msra.mxu0 0.0
    %3776 = vmatprep.subr.mxu0 0.0
    %3777 = vmatpush1.msra.mxu0 0.0
    %3778 = vmatprep.subr.mxu0 0.0
    %3779 = vmatpush1.msra.mxu0 %v2924
    %3780 = vmatprep.subr.mxu0 0.0
    %3781 = vmatpush1.msra.mxu0 %v2923
    %3782 = vmatprep.subr.mxu0 0.0
    %3783 = vmatpush2.msra.mxu0 0.0
    %3784 = vmatprep.subr.mxu0 0.0
    %3785 = vmatpush2.msra.mxu0 0.0
    %3786 = vmatprep.subr.mxu0 0.0
    %3787 = vmatpush2.msra.mxu0 0.0
    %3788 = vmatprep.subr.mxu0 0.0
    %3789 = vmatpush2.msra.mxu0 0.0
    %3790 = vmatprep.subr.mxu0 0.0
    %3791 = vmatpush2.msra.mxu0 0.0
    %3792 = vmatprep.subr.mxu0 0.0
    %3793 = vmatpush2.msra.mxu0 0.0
    %3794 = vmatprep.subr.mxu0 0.0
    %3795 = vmatpush2.msra.mxu0 0.0
    %3796 = vmatprep.subr.mxu0 0.0
    %3797 = vmatpush2.msra.mxu0 0.0
    %3798 = vmatprep.subr.mxu0 0.0
    %3799 = vmatpush2.msra.mxu0 0.0
    %3800 = vmatprep.subr.mxu0 0.0
    %3801 = vmatpush2.msra.mxu0 0.0
    %3802 = vmatprep.subr.mxu0 0.0
    %3803 = vmatpush2.msra.mxu0 0.0
    %3804 = vmatprep.subr.mxu0 0.0
    %3805 = vmatpush2.msra.mxu0 0.0
    %3806 = vmatprep.subr.mxu0 0.0
    %3807 = vmatpush2.msra.mxu0 0.0
    %3808 = vmatprep.subr.mxu0 0.0
    %3809 = vmatpush2.msra.mxu0 0.0
    %3810 = vmatprep.subr.mxu0 0.0
    %3811 = vmatpush2.msra.mxu0 0.0
    %3812 = vmatprep.subr.mxu0 0.0
    %3813 = vmatpush2.msra.mxu0 0.0
    %3814 = vmatprep.mubr.f32.mxu0 0.0
    %3815 = vmatmul.mubr.f32.gmra.mxu0 %v3748
    %v3816 = vpop.f32.mrf.mxu0
    %v3817 = vadd.f32 0.0, %v3816
    %v3818 = vpop.f32.mrf.mxu0
    %3819 = vdwg.mxu0
    %v3821 = vrot.slane %v3817, 3
    %v3822 = vrot.slane %v3817, 4
    %v3825 = vadd.f32 %v3005, %v3821
    %v3826 = vadd.f32 %v3010, %v3822
    %v3827 = vxor.u32 %v3825, 2147483648
    %v3828 = vxor.u32 %v3826, 2147483648
    %v3829 = vmul.f32 %v3827, 1.442695
    %v3830 = vpow.pop %v3829
    %v3831 = vmul.f32 %v3828, 1.442695
    %v3832 = vpow.pop %v3831
    %v3833 = vadd.f32 %v3830, 1.0
    %v3834 = vadd.f32 %v3832, 1.0
    %v3835 = vrcp.pop %v3833
    %v3836 = vmul.f32 1.0, %v3835
    %v3837 = vrcp.pop %v3834
    %v3838 = vmul.f32 1.0, %v3837
    %v3839 = vtanh.pop %v3825
    %v3840 = vtanh.pop %v3826
    %v3843 = vrot.slane %v3718, 7
    %v3844 = vrot.slane %v3719, 7
    %v3847 = vmul.f32 %v3836, %v3843
    %v3848 = vmul.f32 %v3838, %v3844
    %3851 = vrot.lane.b32.xlu0 %v3839, 96
    %v3852 = vpop.permute.xlu0 %3851
    %3853 = vrot.lane.b32.xlu0 %v3840, 96
    %v3854 = vpop.permute.xlu0 %3853
    %v3857 = vmul.f32 %v3836, %v3852
    %v3858 = vmul.f32 %v3838, %v3854
    %3861 = vrot.lane.b32.xlu0 %v3857, 16
    %v3862 = vpop.permute.xlu0 %3861
    %3863 = vrot.lane.b32.xlu0 %v3858, 16
    %v3864 = vpop.permute.xlu0 %3863
    %v3867 = vadd.f32 %v3847, %v3862
    %v3868 = vadd.f32 %v3848, %v3864
    %v3869 = vtanh.pop %v3867
    %v3870 = vtanh.pop %v3868
    %3873 = vrot.lane.b32.xlu0 %v3869, 32
    %v3874 = vpop.permute.xlu0 %3873
    %3875 = vrot.lane.b32.xlu0 %v3870, 32
    %v3876 = vpop.permute.xlu0 %3875
    %v3879 = vmul.f32 %v3836, %v3874
    %v3880 = vmul.f32 %v3838, %v3876
    %3883 = vrot.lane.b32.xlu0 %v3879, 80
    %v3884 = vpop.permute.xlu0 %3883
    %3885 = vrot.lane.b32.xlu0 %v3880, 80
    %v3886 = vpop.permute.xlu0 %3885
    %vm3889 = vcmask 128005
    %3890 = vst.msk [vmem:[#allocation4] sm:$0x20] %vm3889, %v3884
    %3891 = vst.msk [vmem:[#allocation4 + $0x8] sm:$0x20] %vm3889, %v3886
    %v3892 = vrot.slane %v3879, 5
    %v3893 = vrot.slane %v3880, 4
    %v3894 = vsel %vm425, %v3893, %v3892
    %3895 = vrot.lane.b32.xlu0 %v3894, 80
    %v3896 = vpop.permute.xlu0 %3895
    %v3897 = vsel %vm2835, %v3896, 0
    %3899 = vmatprep.subr.mxu0 0.0
    %3900 = vmatpush1.msra.mxu0 0.0
    %3901 = vmatprep.subr.mxu0 0.0
    %3902 = vmatpush1.msra.mxu0 0.0
    %3903 = vmatprep.subr.mxu0 0.0
    %3904 = vmatpush1.msra.mxu0 0.0
    %3905 = vmatprep.subr.mxu0 0.0
    %3906 = vmatpush1.msra.mxu0 0.0
    %3907 = vmatprep.subr.mxu0 0.0
    %3908 = vmatpush1.msra.mxu0 0.0
    %3909 = vmatprep.subr.mxu0 0.0
    %3910 = vmatpush1.msra.mxu0 0.0
    %3911 = vmatprep.subr.mxu0 0.0
    %3912 = vmatpush1.msra.mxu0 0.0
    %3913 = vmatprep.subr.mxu0 0.0
    %3914 = vmatpush1.msra.mxu0 0.0
    %3915 = vmatprep.subr.mxu0 0.0
    %3916 = vmatpush1.msra.mxu0 0.0
    %3917 = vmatprep.subr.mxu0 0.0
    %3918 = vmatpush1.msra.mxu0 0.0
    %3919 = vmatprep.subr.mxu0 0.0
    %3920 = vmatpush1.msra.mxu0 0.0
    %3921 = vmatprep.subr.mxu0 0.0
    %3922 = vmatpush1.msra.mxu0 0.0
    %3923 = vmatprep.subr.mxu0 0.0
    %3924 = vmatpush1.msra.mxu0 0.0
    %3925 = vmatprep.subr.mxu0 0.0
    %3926 = vmatpush1.msra.mxu0 0.0
    %3927 = vmatprep.subr.mxu0 0.0
    %3928 = vmatpush1.msra.mxu0 %v2924
    %3929 = vmatprep.subr.mxu0 0.0
    %3930 = vmatpush1.msra.mxu0 %v2923
    %3931 = vmatprep.subr.mxu0 0.0
    %3932 = vmatpush2.msra.mxu0 0.0
    %3933 = vmatprep.subr.mxu0 0.0
    %3934 = vmatpush2.msra.mxu0 0.0
    %3935 = vmatprep.subr.mxu0 0.0
    %3936 = vmatpush2.msra.mxu0 0.0
    %3937 = vmatprep.subr.mxu0 0.0
    %3938 = vmatpush2.msra.mxu0 0.0
    %3939 = vmatprep.subr.mxu0 0.0
    %3940 = vmatpush2.msra.mxu0 0.0
    %3941 = vmatprep.subr.mxu0 0.0
    %3942 = vmatpush2.msra.mxu0 0.0
    %3943 = vmatprep.subr.mxu0 0.0
    %3944 = vmatpush2.msra.mxu0 0.0
    %3945 = vmatprep.subr.mxu0 0.0
    %3946 = vmatpush2.msra.mxu0 0.0
    %3947 = vmatprep.subr.mxu0 0.0
    %3948 = vmatpush2.msra.mxu0 0.0
    %3949 = vmatprep.subr.mxu0 0.0
    %3950 = vmatpush2.msra.mxu0 0.0
    %3951 = vmatprep.subr.mxu0 0.0
    %3952 = vmatpush2.msra.mxu0 0.0
    %3953 = vmatprep.subr.mxu0 0.0
    %3954 = vmatpush2.msra.mxu0 0.0
    %3955 = vmatprep.subr.mxu0 0.0
    %3956 = vmatpush2.msra.mxu0 0.0
    %3957 = vmatprep.subr.mxu0 0.0
    %3958 = vmatpush2.msra.mxu0 0.0
    %3959 = vmatprep.subr.mxu0 0.0
    %3960 = vmatpush2.msra.mxu0 0.0
    %3961 = vmatprep.subr.mxu0 0.0
    %3962 = vmatpush2.msra.mxu0 0.0
    %3963 = vmatprep.mubr.f32.mxu0 0.0
    %3964 = vmatmul.mubr.f32.gmra.mxu0 %v3897
    %v3965 = vpop.f32.mrf.mxu0
    %v3966 = vadd.f32 0.0, %v3965
    %v3967 = vpop.f32.mrf.mxu0
    %3968 = vdwg.mxu0
    %v3970 = vrot.slane %v3966, 2
    %v3971 = vrot.slane %v3966, 3
    %v3974 = vadd.f32 %v3005, %v3970
    %v3975 = vadd.f32 %v3010, %v3971
    %v3976 = vxor.u32 %v3974, 2147483648
    %v3977 = vxor.u32 %v3975, 2147483648
    %v3978 = vmul.f32 %v3976, 1.442695
    %v3979 = vpow.pop %v3978
    %v3980 = vmul.f32 %v3977, 1.442695
    %v3981 = vpow.pop %v3980
    %v3982 = vadd.f32 %v3979, 1.0
    %v3983 = vadd.f32 %v3981, 1.0
    %v3984 = vrcp.pop %v3982
    %v3985 = vmul.f32 1.0, %v3984
    %v3986 = vrcp.pop %v3983
    %v3987 = vmul.f32 1.0, %v3986
    %v3988 = vtanh.pop %v3974
    %v3989 = vtanh.pop %v3975
    %v3992 = vrot.slane %v3867, 7
    %v3993 = vrot.slane %v3868, 7
    %v3996 = vmul.f32 %v3985, %v3992
    %v3997 = vmul.f32 %v3987, %v3993
    %4000 = vrot.lane.b32.xlu0 %v3988, 96
    %v4001 = vpop.permute.xlu0 %4000
    %4002 = vrot.lane.b32.xlu0 %v3989, 96
    %v4003 = vpop.permute.xlu0 %4002
    %v4006 = vmul.f32 %v3985, %v4001
    %v4007 = vmul.f32 %v3987, %v4003
    %4010 = vrot.lane.b32.xlu0 %v4006, 16
    %v4011 = vpop.permute.xlu0 %4010
    %4012 = vrot.lane.b32.xlu0 %v4007, 16
    %v4013 = vpop.permute.xlu0 %4012
    %v4016 = vadd.f32 %v3996, %v4011
    %v4017 = vadd.f32 %v3997, %v4013
    %v4018 = vtanh.pop %v4016
    %v4019 = vtanh.pop %v4017
    %4022 = vrot.lane.b32.xlu0 %v4018, 32
    %v4023 = vpop.permute.xlu0 %4022
    %4024 = vrot.lane.b32.xlu0 %v4019, 32
    %v4025 = vpop.permute.xlu0 %4024
    %v4028 = vmul.f32 %v3985, %v4023
    %v4029 = vmul.f32 %v3987, %v4025
    %4032 = vrot.lane.b32.xlu0 %v4028, 80
    %v4033 = vpop.permute.xlu0 %4032
    %4034 = vrot.lane.b32.xlu0 %v4029, 80
    %v4035 = vpop.permute.xlu0 %4034
    %vm4038 = vcmask 129030
    %4039 = vst.msk [vmem:[#allocation4] sm:$0x40] %vm4038, %v4033
    %4040 = vst.msk [vmem:[#allocation4 + $0x8] sm:$0x40] %vm4038, %v4035
    %v4041 = vrot.slane %v4028, 6
    %v4042 = vrot.slane %v4029, 5
    %v4043 = vsel %vm425, %v4042, %v4041
    %4044 = vrot.lane.b32.xlu0 %v4043, 80
    %v4045 = vpop.permute.xlu0 %4044
    %v4046 = vsel %vm2835, %v4045, 0
    %4048 = vmatprep.subr.mxu0 0.0
    %4049 = vmatpush1.msra.mxu0 0.0
    %4050 = vmatprep.subr.mxu0 0.0
    %4051 = vmatpush1.msra.mxu0 0.0
    %4052 = vmatprep.subr.mxu0 0.0
    %4053 = vmatpush1.msra.mxu0 0.0
    %4054 = vmatprep.subr.mxu0 0.0
    %4055 = vmatpush1.msra.mxu0 0.0
    %4056 = vmatprep.subr.mxu0 0.0
    %4057 = vmatpush1.msra.mxu0 0.0
    %4058 = vmatprep.subr.mxu0 0.0
    %4059 = vmatpush1.msra.mxu0 0.0
    %4060 = vmatprep.subr.mxu0 0.0
    %4061 = vmatpush1.msra.mxu0 0.0
    %4062 = vmatprep.subr.mxu0 0.0
    %4063 = vmatpush1.msra.mxu0 0.0
    %4064 = vmatprep.subr.mxu0 0.0
    %4065 = vmatpush1.msra.mxu0 0.0
    %4066 = vmatprep.subr.mxu0 0.0
    %4067 = vmatpush1.msra.mxu0 0.0
    %4068 = vmatprep.subr.mxu0 0.0
    %4069 = vmatpush1.msra.mxu0 0.0
    %4070 = vmatprep.subr.mxu0 0.0
    %4071 = vmatpush1.msra.mxu0 0.0
    %4072 = vmatprep.subr.mxu0 0.0
    %4073 = vmatpush1.msra.mxu0 0.0
    %4074 = vmatprep.subr.mxu0 0.0
    %4075 = vmatpush1.msra.mxu0 0.0
    %4076 = vmatprep.subr.mxu0 0.0
    %4077 = vmatpush1.msra.mxu0 %v2924
    %4078 = vmatprep.subr.mxu0 0.0
    %4079 = vmatpush1.msra.mxu0 %v2923
    %4080 = vmatprep.subr.mxu0 0.0
    %4081 = vmatpush2.msra.mxu0 0.0
    %4082 = vmatprep.subr.mxu0 0.0
    %4083 = vmatpush2.msra.mxu0 0.0
    %4084 = vmatprep.subr.mxu0 0.0
    %4085 = vmatpush2.msra.mxu0 0.0
    %4086 = vmatprep.subr.mxu0 0.0
    %4087 = vmatpush2.msra.mxu0 0.0
    %4088 = vmatprep.subr.mxu0 0.0
    %4089 = vmatpush2.msra.mxu0 0.0
    %4090 = vmatprep.subr.mxu0 0.0
    %4091 = vmatpush2.msra.mxu0 0.0
    %4092 = vmatprep.subr.mxu0 0.0
    %4093 = vmatpush2.msra.mxu0 0.0
    %4094 = vmatprep.subr.mxu0 0.0
    %4095 = vmatpush2.msra.mxu0 0.0
    %4096 = vmatprep.subr.mxu0 0.0
    %4097 = vmatpush2.msra.mxu0 0.0
    %4098 = vmatprep.subr.mxu0 0.0
    %4099 = vmatpush2.msra.mxu0 0.0
    %4100 = vmatprep.subr.mxu0 0.0
    %4101 = vmatpush2.msra.mxu0 0.0
    %4102 = vmatprep.subr.mxu0 0.0
    %4103 = vmatpush2.msra.mxu0 0.0
    %4104 = vmatprep.subr.mxu0 0.0
    %4105 = vmatpush2.msra.mxu0 0.0
    %4106 = vmatprep.subr.mxu0 0.0
    %4107 = vmatpush2.msra.mxu0 0.0
    %4108 = vmatprep.subr.mxu0 0.0
    %4109 = vmatpush2.msra.mxu0 0.0
    %4110 = vmatprep.subr.mxu0 0.0
    %4111 = vmatpush2.msra.mxu0 0.0
    %4112 = vmatprep.mubr.f32.mxu0 0.0
    %4113 = vmatmul.mubr.f32.gmra.mxu0 %v4046
    %v4114 = vpop.f32.mrf.mxu0
    %v4115 = vadd.f32 0.0, %v4114
    %v4116 = vpop.f32.mrf.mxu0
    %4117 = vdwg.mxu0
    %v4119 = vrot.slane %v4115, 1
    %v4120 = vrot.slane %v4115, 2
    %v4123 = vadd.f32 %v3005, %v4119
    %v4124 = vadd.f32 %v3010, %v4120
    %v4125 = vxor.u32 %v4123, 2147483648
    %v4126 = vxor.u32 %v4124, 2147483648
    %v4127 = vmul.f32 %v4125, 1.442695
    %v4128 = vpow.pop %v4127
    %v4129 = vmul.f32 %v4126, 1.442695
    %v4130 = vpow.pop %v4129
    %v4131 = vadd.f32 %v4128, 1.0
    %v4132 = vadd.f32 %v4130, 1.0
    %v4133 = vrcp.pop %v4131
    %v4134 = vmul.f32 1.0, %v4133
    %v4135 = vrcp.pop %v4132
    %v4136 = vmul.f32 1.0, %v4135
    %v4137 = vtanh.pop %v4123
    %v4138 = vtanh.pop %v4124
    %v4141 = vrot.slane %v4016, 7
    %v4142 = vrot.slane %v4017, 7
    %v4145 = vmul.f32 %v4134, %v4141
    %v4146 = vmul.f32 %v4136, %v4142
    %4149 = vrot.lane.b32.xlu0 %v4137, 96
    %v4150 = vpop.permute.xlu0 %4149
    %4151 = vrot.lane.b32.xlu0 %v4138, 96
    %v4152 = vpop.permute.xlu0 %4151
    %v4155 = vmul.f32 %v4134, %v4150
    %v4156 = vmul.f32 %v4136, %v4152
    %4159 = vrot.lane.b32.xlu0 %v4155, 16
    %v4160 = vpop.permute.xlu0 %4159
    %4161 = vrot.lane.b32.xlu0 %v4156, 16
    %v4162 = vpop.permute.xlu0 %4161
    %v4165 = vadd.f32 %v4145, %v4160
    %v4166 = vadd.f32 %v4146, %v4162
    %v4167 = vtanh.pop %v4165
    %v4168 = vtanh.pop %v4166
    %4171 = vrot.lane.b32.xlu0 %v4167, 32
    %v4172 = vpop.permute.xlu0 %4171
    %4173 = vrot.lane.b32.xlu0 %v4168, 32
    %v4174 = vpop.permute.xlu0 %4173
    %v4177 = vmul.f32 %v4134, %v4172
    %v4178 = vmul.f32 %v4136, %v4174
    %4181 = vrot.lane.b32.xlu0 %v4177, 80
    %v4182 = vpop.permute.xlu0 %4181
    %4183 = vrot.lane.b32.xlu0 %v4178, 80
    %v4184 = vpop.permute.xlu0 %4183
    %vm4187 = vcmask 130055
    %4188 = vst.msk [vmem:[#allocation4] sm:$0x80] %vm4187, %v4182
    %4189 = vst.msk [vmem:[#allocation4 + $0x8] sm:$0x80] %vm4187, %v4184
    %v4190 = vld [vmem:[#allocation4] sm:$0xff]
    %v4191 = vld [vmem:[#allocation4 + $0x8] sm:$0xff]
    %v4192 = vld [vmem:[%s14] sm:$0xff]
    %v4193 = vld [vmem:[%s14 + $0x8] sm:$0xff]
    %v4194 = vld [vmem:[#allocation20] sm:$0xff]
    %v4195 = vld [vmem:[#allocation20 + $0x8] sm:$0xff]
    %v4196 = vld [vmem:[%s16] sm:$0x1]
    %v4198 = vlaneseq
    %v4199 = vshrl.u32 %v4198, 7
    %v4200 = vsub.s32 0, %v4199
    %v4201 = vrot.slane %v4196, %v4200
    %v4204 = vsel %vm2835, %v4190, 0
    %v4207 = vsel %vm2835, %v4191, 0
    %4209 = vmatprep.subr.mxu0 0.0
    %4210 = vmatpush1.msra.mxu0 0.0
    %4211 = vmatprep.subr.mxu0 0.0
    %4212 = vmatpush1.msra.mxu0 0.0
    %4213 = vmatprep.subr.mxu0 0.0
    %4214 = vmatpush1.msra.mxu0 0.0
    %4215 = vmatprep.subr.mxu0 0.0
    %4216 = vmatpush1.msra.mxu0 0.0
    %4217 = vmatprep.subr.mxu0 0.0
    %4218 = vmatpush1.msra.mxu0 0.0
    %4219 = vmatprep.subr.mxu0 0.0
    %4220 = vmatpush1.msra.mxu0 0.0
    %4221 = vmatprep.subr.mxu0 0.0
    %4222 = vmatpush1.msra.mxu0 0.0
    %4223 = vmatprep.subr.mxu0 0.0
    %4224 = vmatpush1.msra.mxu0 0.0
    %4225 = vmatprep.subr.mxu0 0.0
    %4226 = vmatpush1.msra.mxu0 0.0
    %4227 = vmatprep.subr.mxu0 0.0
    %4228 = vmatpush1.msra.mxu0 0.0
    %4229 = vmatprep.subr.mxu0 0.0
    %4230 = vmatpush1.msra.mxu0 0.0
    %4231 = vmatprep.subr.mxu0 0.0
    %4232 = vmatpush1.msra.mxu0 0.0
    %4233 = vmatprep.subr.mxu0 0.0
    %4234 = vmatpush1.msra.mxu0 0.0
    %4235 = vmatprep.subr.mxu0 0.0
    %4236 = vmatpush1.msra.mxu0 0.0
    %4237 = vmatprep.subr.mxu0 0.0
    %4238 = vmatpush1.msra.mxu0 %v4193
    %4239 = vmatprep.subr.mxu0 0.0
    %4240 = vmatpush1.msra.mxu0 %v4192
    %4241 = vmatprep.subr.mxu0 0.0
    %4242 = vmatpush2.msra.mxu0 0.0
    %4243 = vmatprep.subr.mxu0 0.0
    %4244 = vmatpush2.msra.mxu0 0.0
    %4245 = vmatprep.subr.mxu0 0.0
    %4246 = vmatpush2.msra.mxu0 0.0
    %4247 = vmatprep.subr.mxu0 0.0
    %4248 = vmatpush2.msra.mxu0 0.0
    %4249 = vmatprep.subr.mxu0 0.0
    %4250 = vmatpush2.msra.mxu0 0.0
    %4251 = vmatprep.subr.mxu0 0.0
    %4252 = vmatpush2.msra.mxu0 0.0
    %4253 = vmatprep.subr.mxu0 0.0
    %4254 = vmatpush2.msra.mxu0 0.0
    %4255 = vmatprep.subr.mxu0 0.0
    %4256 = vmatpush2.msra.mxu0 0.0
    %4257 = vmatprep.subr.mxu0 0.0
    %4258 = vmatpush2.msra.mxu0 0.0
    %4259 = vmatprep.subr.mxu0 0.0
    %4260 = vmatpush2.msra.mxu0 0.0
    %4261 = vmatprep.subr.mxu0 0.0
    %4262 = vmatpush2.msra.mxu0 0.0
    %4263 = vmatprep.subr.mxu0 0.0
    %4264 = vmatpush2.msra.mxu0 0.0
    %4265 = vmatprep.subr.mxu0 0.0
    %4266 = vmatpush2.msra.mxu0 0.0
    %4267 = vmatprep.subr.mxu0 0.0
    %4268 = vmatpush2.msra.mxu0 0.0
    %4269 = vmatprep.subr.mxu0 0.0
    %4270 = vmatpush2.msra.mxu0 0.0
    %4271 = vmatprep.subr.mxu0 0.0
    %4272 = vmatpush2.msra.mxu0 0.0
    %4273 = vmatprep.mubr.f32.mxu0 0.0
    %4274 = vmatmul.mubr.f32.gmra.mxu0 %v4204
    %v4275 = vpop.f32.mrf.mxu0
    %v4276 = vadd.f32 %v4201, %v4275
    %v4277 = vpop.f32.mrf.mxu0
    %4278 = vmatprep.mubr.f32.mxu0 0.0
    %4279 = vmatmul.mubr.f32.gmra.mxu0 %v4207
    %v4280 = vpop.f32.mrf.mxu0
    %v4281 = vadd.f32 %v4201, %v4280
    %v4282 = vpop.f32.mrf.mxu0
    %4283 = vdwg.mxu0
    %4284 = vmatprep.subr.mxu0 0.0
    %4285 = vmatpush1.msra.mxu0 0.0
    %4286 = vmatprep.subr.mxu0 0.0
    %4287 = vmatpush1.msra.mxu0 0.0
    %4288 = vmatprep.subr.mxu0 0.0
    %4289 = vmatpush1.msra.mxu0 0.0
    %4290 = vmatprep.subr.mxu0 0.0
    %4291 = vmatpush1.msra.mxu0 0.0
    %4292 = vmatprep.subr.mxu0 0.0
    %4293 = vmatpush1.msra.mxu0 0.0
    %4294 = vmatprep.subr.mxu0 0.0
    %4295 = vmatpush1.msra.mxu0 0.0
    %4296 = vmatprep.subr.mxu0 0.0
    %4297 = vmatpush1.msra.mxu0 0.0
    %4298 = vmatprep.subr.mxu0 0.0
    %4299 = vmatpush1.msra.mxu0 0.0
    %4300 = vmatprep.subr.mxu0 0.0
    %4301 = vmatpush1.msra.mxu0 0.0
    %4302 = vmatprep.subr.mxu0 0.0
    %4303 = vmatpush1.msra.mxu0 0.0
    %4304 = vmatprep.subr.mxu0 0.0
    %4305 = vmatpush1.msra.mxu0 0.0
    %4306 = vmatprep.subr.mxu0 0.0
    %4307 = vmatpush1.msra.mxu0 0.0
    %4308 = vmatprep.subr.mxu0 0.0
    %4309 = vmatpush1.msra.mxu0 0.0
    %4310 = vmatprep.subr.mxu0 0.0
    %4311 = vmatpush1.msra.mxu0 0.0
    %4312 = vmatprep.subr.mxu0 0.0
    %4313 = vmatpush1.msra.mxu0 %v4195
    %4314 = vmatprep.subr.mxu0 0.0
    %4315 = vmatpush1.msra.mxu0 %v4194
    %4316 = vmatprep.subr.mxu0 0.0
    %4317 = vmatpush2.msra.mxu0 0.0
    %4318 = vmatprep.subr.mxu0 0.0
    %4319 = vmatpush2.msra.mxu0 0.0
    %4320 = vmatprep.subr.mxu0 0.0
    %4321 = vmatpush2.msra.mxu0 0.0
    %4322 = vmatprep.subr.mxu0 0.0
    %4323 = vmatpush2.msra.mxu0 0.0
    %4324 = vmatprep.subr.mxu0 0.0
    %4325 = vmatpush2.msra.mxu0 0.0
    %4326 = vmatprep.subr.mxu0 0.0
    %4327 = vmatpush2.msra.mxu0 0.0
    %4328 = vmatprep.subr.mxu0 0.0
    %4329 = vmatpush2.msra.mxu0 0.0
    %4330 = vmatprep.subr.mxu0 0.0
    %4331 = vmatpush2.msra.mxu0 0.0
    %4332 = vmatprep.subr.mxu0 0.0
    %4333 = vmatpush2.msra.mxu0 0.0
    %4334 = vmatprep.subr.mxu0 0.0
    %4335 = vmatpush2.msra.mxu0 0.0
    %4336 = vmatprep.subr.mxu0 0.0
    %4337 = vmatpush2.msra.mxu0 0.0
    %4338 = vmatprep.subr.mxu0 0.0
    %4339 = vmatpush2.msra.mxu0 0.0
    %4340 = vmatprep.subr.mxu0 0.0
    %4341 = vmatpush2.msra.mxu0 0.0
    %4342 = vmatprep.subr.mxu0 0.0
    %4343 = vmatpush2.msra.mxu0 0.0
    %4344 = vmatprep.subr.mxu0 0.0
    %4345 = vmatpush2.msra.mxu0 0.0
    %4346 = vmatprep.subr.mxu0 0.0
    %4347 = vmatpush2.msra.mxu0 0.0
    %4348 = vmatprep.mubr.f32.mxu0 0.0
    %4349 = vmatmul.mubr.f32.gmra.mxu0 %v3013
    %v4350 = vpop.f32.mrf.mxu0
    %v4351 = vadd.f32 0.0, %v4350
    %v4352 = vpop.f32.mrf.mxu0
    %4353 = vdwg.mxu0
    %v4355 = vrot.slane %v4351, 1
    %v4358 = vadd.f32 %v4276, %v4351
    %v4359 = vadd.f32 %v4281, %v4355
    %v4360 = vxor.u32 %v4358, 2147483648
    %v4361 = vxor.u32 %v4359, 2147483648
    %v4362 = vmul.f32 %v4360, 1.442695
    %v4363 = vpow.pop %v4362
    %v4364 = vmul.f32 %v4361, 1.442695
    %v4365 = vpow.pop %v4364
    %v4366 = vadd.f32 %v4363, 1.0
    %v4367 = vadd.f32 %v4365, 1.0
    %v4368 = vrcp.pop %v4366
    %v4369 = vmul.f32 1.0, %v4368
    %v4370 = vrcp.pop %v4367
    %v4371 = vmul.f32 1.0, %v4370
    %v4372 = vtanh.pop %v4358
    %v4373 = vtanh.pop %v4359
    %v4374 = vmul.f32 %v4369, 0.0
    %v4375 = vmul.f32 %v4371, 0.0
    %4378 = vrot.lane.b32.xlu0 %v4372, 96
    %v4379 = vpop.permute.xlu0 %4378
    %4380 = vrot.lane.b32.xlu0 %v4373, 96
    %v4381 = vpop.permute.xlu0 %4380
    %v4384 = vmul.f32 %v4369, %v4379
    %v4385 = vmul.f32 %v4371, %v4381
    %4388 = vrot.lane.b32.xlu0 %v4384, 16
    %v4389 = vpop.permute.xlu0 %4388
    %4390 = vrot.lane.b32.xlu0 %v4385, 16
    %v4391 = vpop.permute.xlu0 %4390
    %v4394 = vadd.f32 %v4374, %v4389
    %v4395 = vadd.f32 %v4375, %v4391
    %v4396 = vtanh.pop %v4394
    %v4397 = vtanh.pop %v4395
    %4400 = vrot.lane.b32.xlu0 %v4396, 32
    %v4401 = vpop.permute.xlu0 %4400
    %4402 = vrot.lane.b32.xlu0 %v4397, 32
    %v4403 = vpop.permute.xlu0 %4402
    %v4406 = vmul.f32 %v4369, %v4401
    %v4407 = vmul.f32 %v4371, %v4403
    %4410 = vrot.lane.b32.xlu0 %v4406, 80
    %v4411 = vpop.permute.xlu0 %4410
    %4412 = vrot.lane.b32.xlu0 %v4407, 80
    %v4413 = vpop.permute.xlu0 %4412
    %4416 = vst.msk [vmem:[#allocation5] sm:$0x1] %vm3147, %v4411
    %4417 = vst.msk [vmem:[#allocation5 + $0x8] sm:$0x1] %vm3147, %v4413
    %v4418 = vrot.slane %v4407, 7
    %v4419 = vsel %vm425, %v4418, %v4406
    %4420 = vrot.lane.b32.xlu0 %v4419, 80
    %v4421 = vpop.permute.xlu0 %4420
    %v4422 = vsel %vm2835, %v4421, 0
    %4424 = vmatprep.subr.mxu0 0.0
    %4425 = vmatpush1.msra.mxu0 0.0
    %4426 = vmatprep.subr.mxu0 0.0
    %4427 = vmatpush1.msra.mxu0 0.0
    %4428 = vmatprep.subr.mxu0 0.0
    %4429 = vmatpush1.msra.mxu0 0.0
    %4430 = vmatprep.subr.mxu0 0.0
    %4431 = vmatpush1.msra.mxu0 0.0
    %4432 = vmatprep.subr.mxu0 0.0
    %4433 = vmatpush1.msra.mxu0 0.0
    %4434 = vmatprep.subr.mxu0 0.0
    %4435 = vmatpush1.msra.mxu0 0.0
    %4436 = vmatprep.subr.mxu0 0.0
    %4437 = vmatpush1.msra.mxu0 0.0
    %4438 = vmatprep.subr.mxu0 0.0
    %4439 = vmatpush1.msra.mxu0 0.0
    %4440 = vmatprep.subr.mxu0 0.0
    %4441 = vmatpush1.msra.mxu0 0.0
    %4442 = vmatprep.subr.mxu0 0.0
    %4443 = vmatpush1.msra.mxu0 0.0
    %4444 = vmatprep.subr.mxu0 0.0
    %4445 = vmatpush1.msra.mxu0 0.0
    %4446 = vmatprep.subr.mxu0 0.0
    %4447 = vmatpush1.msra.mxu0 0.0
    %4448 = vmatprep.subr.mxu0 0.0
    %4449 = vmatpush1.msra.mxu0 0.0
    %4450 = vmatprep.subr.mxu0 0.0
    %4451 = vmatpush1.msra.mxu0 0.0
    %4452 = vmatprep.subr.mxu0 0.0
    %4453 = vmatpush1.msra.mxu0 %v4195
    %4454 = vmatprep.subr.mxu0 0.0
    %4455 = vmatpush1.msra.mxu0 %v4194
    %4456 = vmatprep.subr.mxu0 0.0
    %4457 = vmatpush2.msra.mxu0 0.0
    %4458 = vmatprep.subr.mxu0 0.0
    %4459 = vmatpush2.msra.mxu0 0.0
    %4460 = vmatprep.subr.mxu0 0.0
    %4461 = vmatpush2.msra.mxu0 0.0
    %4462 = vmatprep.subr.mxu0 0.0
    %4463 = vmatpush2.msra.mxu0 0.0
    %4464 = vmatprep.subr.mxu0 0.0
    %4465 = vmatpush2.msra.mxu0 0.0
    %4466 = vmatprep.subr.mxu0 0.0
    %4467 = vmatpush2.msra.mxu0 0.0
    %4468 = vmatprep.subr.mxu0 0.0
    %4469 = vmatpush2.msra.mxu0 0.0
    %4470 = vmatprep.subr.mxu0 0.0
    %4471 = vmatpush2.msra.mxu0 0.0
    %4472 = vmatprep.subr.mxu0 0.0
    %4473 = vmatpush2.msra.mxu0 0.0
    %4474 = vmatprep.subr.mxu0 0.0
    %4475 = vmatpush2.msra.mxu0 0.0
    %4476 = vmatprep.subr.mxu0 0.0
    %4477 = vmatpush2.msra.mxu0 0.0
    %4478 = vmatprep.subr.mxu0 0.0
    %4479 = vmatpush2.msra.mxu0 0.0
    %4480 = vmatprep.subr.mxu0 0.0
    %4481 = vmatpush2.msra.mxu0 0.0
    %4482 = vmatprep.subr.mxu0 0.0
    %4483 = vmatpush2.msra.mxu0 0.0
    %4484 = vmatprep.subr.mxu0 0.0
    %4485 = vmatpush2.msra.mxu0 0.0
    %4486 = vmatprep.subr.mxu0 0.0
    %4487 = vmatpush2.msra.mxu0 0.0
    %4488 = vmatprep.mubr.f32.mxu0 0.0
    %4489 = vmatmul.mubr.f32.gmra.mxu0 %v4422
    %v4490 = vpop.f32.mrf.mxu0
    %v4491 = vadd.f32 0.0, %v4490
    %v4492 = vpop.f32.mrf.mxu0
    %4493 = vdwg.mxu0
    %v4495 = vrot.slane %v4491, 7
    %v4498 = vadd.f32 %v4276, %v4495
    %v4499 = vadd.f32 %v4281, %v4491
    %v4500 = vxor.u32 %v4498, 2147483648
    %v4501 = vxor.u32 %v4499, 2147483648
    %v4502 = vmul.f32 %v4500, 1.442695
    %v4503 = vpow.pop %v4502
    %v4504 = vmul.f32 %v4501, 1.442695
    %v4505 = vpow.pop %v4504
    %v4506 = vadd.f32 %v4503, 1.0
    %v4507 = vadd.f32 %v4505, 1.0
    %v4508 = vrcp.pop %v4506
    %v4509 = vmul.f32 1.0, %v4508
    %v4510 = vrcp.pop %v4507
    %v4511 = vmul.f32 1.0, %v4510
    %v4512 = vtanh.pop %v4498
    %v4513 = vtanh.pop %v4499
    %v4516 = vrot.slane %v4394, 7
    %v4517 = vrot.slane %v4395, 7
    %v4520 = vmul.f32 %v4509, %v4516
    %v4521 = vmul.f32 %v4511, %v4517
    %4524 = vrot.lane.b32.xlu0 %v4512, 96
    %v4525 = vpop.permute.xlu0 %4524
    %4526 = vrot.lane.b32.xlu0 %v4513, 96
    %v4527 = vpop.permute.xlu0 %4526
    %v4530 = vmul.f32 %v4509, %v4525
    %v4531 = vmul.f32 %v4511, %v4527
    %4534 = vrot.lane.b32.xlu0 %v4530, 16
    %v4535 = vpop.permute.xlu0 %4534
    %4536 = vrot.lane.b32.xlu0 %v4531, 16
    %v4537 = vpop.permute.xlu0 %4536
    %v4540 = vadd.f32 %v4520, %v4535
    %v4541 = vadd.f32 %v4521, %v4537
    %v4542 = vtanh.pop %v4540
    %v4543 = vtanh.pop %v4541
    %4546 = vrot.lane.b32.xlu0 %v4542, 32
    %v4547 = vpop.permute.xlu0 %4546
    %4548 = vrot.lane.b32.xlu0 %v4543, 32
    %v4549 = vpop.permute.xlu0 %4548
    %v4552 = vmul.f32 %v4509, %v4547
    %v4553 = vmul.f32 %v4511, %v4549
    %4556 = vrot.lane.b32.xlu0 %v4552, 80
    %v4557 = vpop.permute.xlu0 %4556
    %4558 = vrot.lane.b32.xlu0 %v4553, 80
    %v4559 = vpop.permute.xlu0 %4558
    %4562 = vst.msk [vmem:[#allocation5] sm:$0x2] %vm3294, %v4557
    %4563 = vst.msk [vmem:[#allocation5 + $0x8] sm:$0x2] %vm3294, %v4559
    %v4564 = vrot.slane %v4552, 1
    %v4565 = vsel %vm425, %v4553, %v4564
    %4566 = vrot.lane.b32.xlu0 %v4565, 80
    %v4567 = vpop.permute.xlu0 %4566
    %v4568 = vsel %vm2835, %v4567, 0
    %4570 = vmatprep.subr.mxu0 0.0
    %4571 = vmatpush1.msra.mxu0 0.0
    %4572 = vmatprep.subr.mxu0 0.0
    %4573 = vmatpush1.msra.mxu0 0.0
    %4574 = vmatprep.subr.mxu0 0.0
    %4575 = vmatpush1.msra.mxu0 0.0
    %4576 = vmatprep.subr.mxu0 0.0
    %4577 = vmatpush1.msra.mxu0 0.0
    %4578 = vmatprep.subr.mxu0 0.0
    %4579 = vmatpush1.msra.mxu0 0.0
    %4580 = vmatprep.subr.mxu0 0.0
    %4581 = vmatpush1.msra.mxu0 0.0
    %4582 = vmatprep.subr.mxu0 0.0
    %4583 = vmatpush1.msra.mxu0 0.0
    %4584 = vmatprep.subr.mxu0 0.0
    %4585 = vmatpush1.msra.mxu0 0.0
    %4586 = vmatprep.subr.mxu0 0.0
    %4587 = vmatpush1.msra.mxu0 0.0
    %4588 = vmatprep.subr.mxu0 0.0
    %4589 = vmatpush1.msra.mxu0 0.0
    %4590 = vmatprep.subr.mxu0 0.0
    %4591 = vmatpush1.msra.mxu0 0.0
    %4592 = vmatprep.subr.mxu0 0.0
    %4593 = vmatpush1.msra.mxu0 0.0
    %4594 = vmatprep.subr.mxu0 0.0
    %4595 = vmatpush1.msra.mxu0 0.0
    %4596 = vmatprep.subr.mxu0 0.0
    %4597 = vmatpush1.msra.mxu0 0.0
    %4598 = vmatprep.subr.mxu0 0.0
    %4599 = vmatpush1.msra.mxu0 %v4195
    %4600 = vmatprep.subr.mxu0 0.0
    %4601 = vmatpush1.msra.mxu0 %v4194
    %4602 = vmatprep.subr.mxu0 0.0
    %4603 = vmatpush2.msra.mxu0 0.0
    %4604 = vmatprep.subr.mxu0 0.0
    %4605 = vmatpush2.msra.mxu0 0.0
    %4606 = vmatprep.subr.mxu0 0.0
    %4607 = vmatpush2.msra.mxu0 0.0
    %4608 = vmatprep.subr.mxu0 0.0
    %4609 = vmatpush2.msra.mxu0 0.0
    %4610 = vmatprep.subr.mxu0 0.0
    %4611 = vmatpush2.msra.mxu0 0.0
    %4612 = vmatprep.subr.mxu0 0.0
    %4613 = vmatpush2.msra.mxu0 0.0
    %4614 = vmatprep.subr.mxu0 0.0
    %4615 = vmatpush2.msra.mxu0 0.0
    %4616 = vmatprep.subr.mxu0 0.0
    %4617 = vmatpush2.msra.mxu0 0.0
    %4618 = vmatprep.subr.mxu0 0.0
    %4619 = vmatpush2.msra.mxu0 0.0
    %4620 = vmatprep.subr.mxu0 0.0
    %4621 = vmatpush2.msra.mxu0 0.0
    %4622 = vmatprep.subr.mxu0 0.0
    %4623 = vmatpush2.msra.mxu0 0.0
    %4624 = vmatprep.subr.mxu0 0.0
    %4625 = vmatpush2.msra.mxu0 0.0
    %4626 = vmatprep.subr.mxu0 0.0
    %4627 = vmatpush2.msra.mxu0 0.0
    %4628 = vmatprep.subr.mxu0 0.0
    %4629 = vmatpush2.msra.mxu0 0.0
    %4630 = vmatprep.subr.mxu0 0.0
    %4631 = vmatpush2.msra.mxu0 0.0
    %4632 = vmatprep.subr.mxu0 0.0
    %4633 = vmatpush2.msra.mxu0 0.0
    %4634 = vmatprep.mubr.f32.mxu0 0.0
    %4635 = vmatmul.mubr.f32.gmra.mxu0 %v4568
    %v4636 = vpop.f32.mrf.mxu0
    %v4637 = vadd.f32 0.0, %v4636
    %v4638 = vpop.f32.mrf.mxu0
    %4639 = vdwg.mxu0
    %v4641 = vrot.slane %v4637, 6
    %v4642 = vrot.slane %v4637, 7
    %v4645 = vadd.f32 %v4276, %v4641
    %v4646 = vadd.f32 %v4281, %v4642
    %v4647 = vxor.u32 %v4645, 2147483648
    %v4648 = vxor.u32 %v4646, 2147483648
    %v4649 = vmul.f32 %v4647, 1.442695
    %v4650 = vpow.pop %v4649
    %v4651 = vmul.f32 %v4648, 1.442695
    %v4652 = vpow.pop %v4651
    %v4653 = vadd.f32 %v4650, 1.0
    %v4654 = vadd.f32 %v4652, 1.0
    %v4655 = vrcp.pop %v4653
    %v4656 = vmul.f32 1.0, %v4655
    %v4657 = vrcp.pop %v4654
    %v4658 = vmul.f32 1.0, %v4657
    %v4659 = vtanh.pop %v4645
    %v4660 = vtanh.pop %v4646
    %v4663 = vrot.slane %v4540, 7
    %v4664 = vrot.slane %v4541, 7
    %v4667 = vmul.f32 %v4656, %v4663
    %v4668 = vmul.f32 %v4658, %v4664
    %4671 = vrot.lane.b32.xlu0 %v4659, 96
    %v4672 = vpop.permute.xlu0 %4671
    %4673 = vrot.lane.b32.xlu0 %v4660, 96
    %v4674 = vpop.permute.xlu0 %4673
    %v4677 = vmul.f32 %v4656, %v4672
    %v4678 = vmul.f32 %v4658, %v4674
    %4681 = vrot.lane.b32.xlu0 %v4677, 16
    %v4682 = vpop.permute.xlu0 %4681
    %4683 = vrot.lane.b32.xlu0 %v4678, 16
    %v4684 = vpop.permute.xlu0 %4683
    %v4687 = vadd.f32 %v4667, %v4682
    %v4688 = vadd.f32 %v4668, %v4684
    %v4689 = vtanh.pop %v4687
    %v4690 = vtanh.pop %v4688
    %4693 = vrot.lane.b32.xlu0 %v4689, 32
    %v4694 = vpop.permute.xlu0 %4693
    %4695 = vrot.lane.b32.xlu0 %v4690, 32
    %v4696 = vpop.permute.xlu0 %4695
    %v4699 = vmul.f32 %v4656, %v4694
    %v4700 = vmul.f32 %v4658, %v4696
    %4703 = vrot.lane.b32.xlu0 %v4699, 80
    %v4704 = vpop.permute.xlu0 %4703
    %4705 = vrot.lane.b32.xlu0 %v4700, 80
    %v4706 = vpop.permute.xlu0 %4705
    %4709 = vst.msk [vmem:[#allocation5] sm:$0x4] %vm3442, %v4704
    %4710 = vst.msk [vmem:[#allocation5 + $0x8] sm:$0x4] %vm3442, %v4706
    %v4711 = vrot.slane %v4699, 2
    %v4712 = vrot.slane %v4700, 1
    %v4713 = vsel %vm425, %v4712, %v4711
    %4714 = vrot.lane.b32.xlu0 %v4713, 80
    %v4715 = vpop.permute.xlu0 %4714
    %v4716 = vsel %vm2835, %v4715, 0
    %4718 = vmatprep.subr.mxu0 0.0
    %4719 = vmatpush1.msra.mxu0 0.0
    %4720 = vmatprep.subr.mxu0 0.0
    %4721 = vmatpush1.msra.mxu0 0.0
    %4722 = vmatprep.subr.mxu0 0.0
    %4723 = vmatpush1.msra.mxu0 0.0
    %4724 = vmatprep.subr.mxu0 0.0
    %4725 = vmatpush1.msra.mxu0 0.0
    %4726 = vmatprep.subr.mxu0 0.0
    %4727 = vmatpush1.msra.mxu0 0.0
    %4728 = vmatprep.subr.mxu0 0.0
    %4729 = vmatpush1.msra.mxu0 0.0
    %4730 = vmatprep.subr.mxu0 0.0
    %4731 = vmatpush1.msra.mxu0 0.0
    %4732 = vmatprep.subr.mxu0 0.0
    %4733 = vmatpush1.msra.mxu0 0.0
    %4734 = vmatprep.subr.mxu0 0.0
    %4735 = vmatpush1.msra.mxu0 0.0
    %4736 = vmatprep.subr.mxu0 0.0
    %4737 = vmatpush1.msra.mxu0 0.0
    %4738 = vmatprep.subr.mxu0 0.0
    %4739 = vmatpush1.msra.mxu0 0.0
    %4740 = vmatprep.subr.mxu0 0.0
    %4741 = vmatpush1.msra.mxu0 0.0
    %4742 = vmatprep.subr.mxu0 0.0
    %4743 = vmatpush1.msra.mxu0 0.0
    %4744 = vmatprep.subr.mxu0 0.0
    %4745 = vmatpush1.msra.mxu0 0.0
    %4746 = vmatprep.subr.mxu0 0.0
    %4747 = vmatpush1.msra.mxu0 %v4195
    %4748 = vmatprep.subr.mxu0 0.0
    %4749 = vmatpush1.msra.mxu0 %v4194
    %4750 = vmatprep.subr.mxu0 0.0
    %4751 = vmatpush2.msra.mxu0 0.0
    %4752 = vmatprep.subr.mxu0 0.0
    %4753 = vmatpush2.msra.mxu0 0.0
    %4754 = vmatprep.subr.mxu0 0.0
    %4755 = vmatpush2.msra.mxu0 0.0
    %4756 = vmatprep.subr.mxu0 0.0
    %4757 = vmatpush2.msra.mxu0 0.0
    %4758 = vmatprep.subr.mxu0 0.0
    %4759 = vmatpush2.msra.mxu0 0.0
    %4760 = vmatprep.subr.mxu0 0.0
    %4761 = vmatpush2.msra.mxu0 0.0
    %4762 = vmatprep.subr.mxu0 0.0
    %4763 = vmatpush2.msra.mxu0 0.0
    %4764 = vmatprep.subr.mxu0 0.0
    %4765 = vmatpush2.msra.mxu0 0.0
    %4766 = vmatprep.subr.mxu0 0.0
    %4767 = vmatpush2.msra.mxu0 0.0
    %4768 = vmatprep.subr.mxu0 0.0
    %4769 = vmatpush2.msra.mxu0 0.0
    %4770 = vmatprep.subr.mxu0 0.0
    %4771 = vmatpush2.msra.mxu0 0.0
    %4772 = vmatprep.subr.mxu0 0.0
    %4773 = vmatpush2.msra.mxu0 0.0
    %4774 = vmatprep.subr.mxu0 0.0
    %4775 = vmatpush2.msra.mxu0 0.0
    %4776 = vmatprep.subr.mxu0 0.0
    %4777 = vmatpush2.msra.mxu0 0.0
    %4778 = vmatprep.subr.mxu0 0.0
    %4779 = vmatpush2.msra.mxu0 0.0
    %4780 = vmatprep.subr.mxu0 0.0
    %4781 = vmatpush2.msra.mxu0 0.0
    %4782 = vmatprep.mubr.f32.mxu0 0.0
    %4783 = vmatmul.mubr.f32.gmra.mxu0 %v4716
    %v4784 = vpop.f32.mrf.mxu0
    %v4785 = vadd.f32 0.0, %v4784
    %v4786 = vpop.f32.mrf.mxu0
    %4787 = vdwg.mxu0
    %v4789 = vrot.slane %v4785, 5
    %v4790 = vrot.slane %v4785, 6
    %v4793 = vadd.f32 %v4276, %v4789
    %v4794 = vadd.f32 %v4281, %v4790
    %v4795 = vxor.u32 %v4793, 2147483648
    %v4796 = vxor.u32 %v4794, 2147483648
    %v4797 = vmul.f32 %v4795, 1.442695
    %v4798 = vpow.pop %v4797
    %v4799 = vmul.f32 %v4796, 1.442695
    %v4800 = vpow.pop %v4799
    %v4801 = vadd.f32 %v4798, 1.0
    %v4802 = vadd.f32 %v4800, 1.0
    %v4803 = vrcp.pop %v4801
    %v4804 = vmul.f32 1.0, %v4803
    %v4805 = vrcp.pop %v4802
    %v4806 = vmul.f32 1.0, %v4805
    %v4807 = vtanh.pop %v4793
    %v4808 = vtanh.pop %v4794
    %v4811 = vrot.slane %v4687, 7
    %v4812 = vrot.slane %v4688, 7
    %v4815 = vmul.f32 %v4804, %v4811
    %v4816 = vmul.f32 %v4806, %v4812
    %4819 = vrot.lane.b32.xlu0 %v4807, 96
    %v4820 = vpop.permute.xlu0 %4819
    %4821 = vrot.lane.b32.xlu0 %v4808, 96
    %v4822 = vpop.permute.xlu0 %4821
    %v4825 = vmul.f32 %v4804, %v4820
    %v4826 = vmul.f32 %v4806, %v4822
    %4829 = vrot.lane.b32.xlu0 %v4825, 16
    %v4830 = vpop.permute.xlu0 %4829
    %4831 = vrot.lane.b32.xlu0 %v4826, 16
    %v4832 = vpop.permute.xlu0 %4831
    %v4835 = vadd.f32 %v4815, %v4830
    %v4836 = vadd.f32 %v4816, %v4832
    %v4837 = vtanh.pop %v4835
    %v4838 = vtanh.pop %v4836
    %4841 = vrot.lane.b32.xlu0 %v4837, 32
    %v4842 = vpop.permute.xlu0 %4841
    %4843 = vrot.lane.b32.xlu0 %v4838, 32
    %v4844 = vpop.permute.xlu0 %4843
    %v4847 = vmul.f32 %v4804, %v4842
    %v4848 = vmul.f32 %v4806, %v4844
    %4851 = vrot.lane.b32.xlu0 %v4847, 80
    %v4852 = vpop.permute.xlu0 %4851
    %4853 = vrot.lane.b32.xlu0 %v4848, 80
    %v4854 = vpop.permute.xlu0 %4853
    %4857 = vst.msk [vmem:[#allocation5] sm:$0x8] %vm3591, %v4852
    %4858 = vst.msk [vmem:[#allocation5 + $0x8] sm:$0x8] %vm3591, %v4854
    %v4859 = vrot.slane %v4847, 3
    %v4860 = vrot.slane %v4848, 2
    %v4861 = vsel %vm425, %v4860, %v4859
    %4862 = vrot.lane.b32.xlu0 %v4861, 80
    %v4863 = vpop.permute.xlu0 %4862
    %v4864 = vsel %vm2835, %v4863, 0
    %4866 = vmatprep.subr.mxu0 0.0
    %4867 = vmatpush1.msra.mxu0 0.0
    %4868 = vmatprep.subr.mxu0 0.0
    %4869 = vmatpush1.msra.mxu0 0.0
    %4870 = vmatprep.subr.mxu0 0.0
    %4871 = vmatpush1.msra.mxu0 0.0
    %4872 = vmatprep.subr.mxu0 0.0
    %4873 = vmatpush1.msra.mxu0 0.0
    %4874 = vmatprep.subr.mxu0 0.0
    %4875 = vmatpush1.msra.mxu0 0.0
    %4876 = vmatprep.subr.mxu0 0.0
    %4877 = vmatpush1.msra.mxu0 0.0
    %4878 = vmatprep.subr.mxu0 0.0
    %4879 = vmatpush1.msra.mxu0 0.0
    %4880 = vmatprep.subr.mxu0 0.0
    %4881 = vmatpush1.msra.mxu0 0.0
    %4882 = vmatprep.subr.mxu0 0.0
    %4883 = vmatpush1.msra.mxu0 0.0
    %4884 = vmatprep.subr.mxu0 0.0
    %4885 = vmatpush1.msra.mxu0 0.0
    %4886 = vmatprep.subr.mxu0 0.0
    %4887 = vmatpush1.msra.mxu0 0.0
    %4888 = vmatprep.subr.mxu0 0.0
    %4889 = vmatpush1.msra.mxu0 0.0
    %4890 = vmatprep.subr.mxu0 0.0
    %4891 = vmatpush1.msra.mxu0 0.0
    %4892 = vmatprep.subr.mxu0 0.0
    %4893 = vmatpush1.msra.mxu0 0.0
    %4894 = vmatprep.subr.mxu0 0.0
    %4895 = vmatpush1.msra.mxu0 %v4195
    %4896 = vmatprep.subr.mxu0 0.0
    %4897 = vmatpush1.msra.mxu0 %v4194
    %4898 = vmatprep.subr.mxu0 0.0
    %4899 = vmatpush2.msra.mxu0 0.0
    %4900 = vmatprep.subr.mxu0 0.0
    %4901 = vmatpush2.msra.mxu0 0.0
    %4902 = vmatprep.subr.mxu0 0.0
    %4903 = vmatpush2.msra.mxu0 0.0
    %4904 = vmatprep.subr.mxu0 0.0
    %4905 = vmatpush2.msra.mxu0 0.0
    %4906 = vmatprep.subr.mxu0 0.0
    %4907 = vmatpush2.msra.mxu0 0.0
    %4908 = vmatprep.subr.mxu0 0.0
    %4909 = vmatpush2.msra.mxu0 0.0
    %4910 = vmatprep.subr.mxu0 0.0
    %4911 = vmatpush2.msra.mxu0 0.0
    %4912 = vmatprep.subr.mxu0 0.0
    %4913 = vmatpush2.msra.mxu0 0.0
    %4914 = vmatprep.subr.mxu0 0.0
    %4915 = vmatpush2.msra.mxu0 0.0
    %4916 = vmatprep.subr.mxu0 0.0
    %4917 = vmatpush2.msra.mxu0 0.0
    %4918 = vmatprep.subr.mxu0 0.0
    %4919 = vmatpush2.msra.mxu0 0.0
    %4920 = vmatprep.subr.mxu0 0.0
    %4921 = vmatpush2.msra.mxu0 0.0
    %4922 = vmatprep.subr.mxu0 0.0
    %4923 = vmatpush2.msra.mxu0 0.0
    %4924 = vmatprep.subr.mxu0 0.0
    %4925 = vmatpush2.msra.mxu0 0.0
    %4926 = vmatprep.subr.mxu0 0.0
    %4927 = vmatpush2.msra.mxu0 0.0
    %4928 = vmatprep.subr.mxu0 0.0
    %4929 = vmatpush2.msra.mxu0 0.0
    %4930 = vmatprep.mubr.f32.mxu0 0.0
    %4931 = vmatmul.mubr.f32.gmra.mxu0 %v4864
    %v4932 = vpop.f32.mrf.mxu0
    %v4933 = vadd.f32 0.0, %v4932
    %v4934 = vpop.f32.mrf.mxu0
    %4935 = vdwg.mxu0
    %v4937 = vrot.slane %v4933, 4
    %v4938 = vrot.slane %v4933, 5
    %v4941 = vadd.f32 %v4276, %v4937
    %v4942 = vadd.f32 %v4281, %v4938
    %v4943 = vxor.u32 %v4941, 2147483648
    %v4944 = vxor.u32 %v4942, 2147483648
    %v4945 = vmul.f32 %v4943, 1.442695
    %v4946 = vpow.pop %v4945
    %v4947 = vmul.f32 %v4944, 1.442695
    %v4948 = vpow.pop %v4947
    %v4949 = vadd.f32 %v4946, 1.0
    %v4950 = vadd.f32 %v4948, 1.0
    %v4951 = vrcp.pop %v4949
    %v4952 = vmul.f32 1.0, %v4951
    %v4953 = vrcp.pop %v4950
    %v4954 = vmul.f32 1.0, %v4953
    %v4955 = vtanh.pop %v4941
    %v4956 = vtanh.pop %v4942
    %v4959 = vrot.slane %v4835, 7
    %v4960 = vrot.slane %v4836, 7
    %v4963 = vmul.f32 %v4952, %v4959
    %v4964 = vmul.f32 %v4954, %v4960
    %4967 = vrot.lane.b32.xlu0 %v4955, 96
    %v4968 = vpop.permute.xlu0 %4967
    %4969 = vrot.lane.b32.xlu0 %v4956, 96
    %v4970 = vpop.permute.xlu0 %4969
    %v4973 = vmul.f32 %v4952, %v4968
    %v4974 = vmul.f32 %v4954, %v4970
    %4977 = vrot.lane.b32.xlu0 %v4973, 16
    %v4978 = vpop.permute.xlu0 %4977
    %4979 = vrot.lane.b32.xlu0 %v4974, 16
    %v4980 = vpop.permute.xlu0 %4979
    %v4983 = vadd.f32 %v4963, %v4978
    %v4984 = vadd.f32 %v4964, %v4980
    %v4985 = vtanh.pop %v4983
    %v4986 = vtanh.pop %v4984
    %4989 = vrot.lane.b32.xlu0 %v4985, 32
    %v4990 = vpop.permute.xlu0 %4989
    %4991 = vrot.lane.b32.xlu0 %v4986, 32
    %v4992 = vpop.permute.xlu0 %4991
    %v4995 = vmul.f32 %v4952, %v4990
    %v4996 = vmul.f32 %v4954, %v4992
    %4999 = vrot.lane.b32.xlu0 %v4995, 80
    %v5000 = vpop.permute.xlu0 %4999
    %5001 = vrot.lane.b32.xlu0 %v4996, 80
    %v5002 = vpop.permute.xlu0 %5001
    %5005 = vst.msk [vmem:[#allocation5] sm:$0x10] %vm3740, %v5000
    %5006 = vst.msk [vmem:[#allocation5 + $0x8] sm:$0x10] %vm3740, %v5002
    %v5007 = vrot.slane %v4995, 4
    %v5008 = vrot.slane %v4996, 3
    %v5009 = vsel %vm425, %v5008, %v5007
    %5010 = vrot.lane.b32.xlu0 %v5009, 80
    %v5011 = vpop.permute.xlu0 %5010
    %v5012 = vsel %vm2835, %v5011, 0
    %5014 = vmatprep.subr.mxu0 0.0
    %5015 = vmatpush1.msra.mxu0 0.0
    %5016 = vmatprep.subr.mxu0 0.0
    %5017 = vmatpush1.msra.mxu0 0.0
    %5018 = vmatprep.subr.mxu0 0.0
    %5019 = vmatpush1.msra.mxu0 0.0
    %5020 = vmatprep.subr.mxu0 0.0
    %5021 = vmatpush1.msra.mxu0 0.0
    %5022 = vmatprep.subr.mxu0 0.0
    %5023 = vmatpush1.msra.mxu0 0.0
    %5024 = vmatprep.subr.mxu0 0.0
    %5025 = vmatpush1.msra.mxu0 0.0
    %5026 = vmatprep.subr.mxu0 0.0
    %5027 = vmatpush1.msra.mxu0 0.0
    %5028 = vmatprep.subr.mxu0 0.0
    %5029 = vmatpush1.msra.mxu0 0.0
    %5030 = vmatprep.subr.mxu0 0.0
    %5031 = vmatpush1.msra.mxu0 0.0
    %5032 = vmatprep.subr.mxu0 0.0
    %5033 = vmatpush1.msra.mxu0 0.0
    %5034 = vmatprep.subr.mxu0 0.0
    %5035 = vmatpush1.msra.mxu0 0.0
    %5036 = vmatprep.subr.mxu0 0.0
    %5037 = vmatpush1.msra.mxu0 0.0
    %5038 = vmatprep.subr.mxu0 0.0
    %5039 = vmatpush1.msra.mxu0 0.0
    %5040 = vmatprep.subr.mxu0 0.0
    %5041 = vmatpush1.msra.mxu0 0.0
    %5042 = vmatprep.subr.mxu0 0.0
    %5043 = vmatpush1.msra.mxu0 %v4195
    %5044 = vmatprep.subr.mxu0 0.0
    %5045 = vmatpush1.msra.mxu0 %v4194
    %5046 = vmatprep.subr.mxu0 0.0
    %5047 = vmatpush2.msra.mxu0 0.0
    %5048 = vmatprep.subr.mxu0 0.0
    %5049 = vmatpush2.msra.mxu0 0.0
    %5050 = vmatprep.subr.mxu0 0.0
    %5051 = vmatpush2.msra.mxu0 0.0
    %5052 = vmatprep.subr.mxu0 0.0
    %5053 = vmatpush2.msra.mxu0 0.0
    %5054 = vmatprep.subr.mxu0 0.0
    %5055 = vmatpush2.msra.mxu0 0.0
    %5056 = vmatprep.subr.mxu0 0.0
    %5057 = vmatpush2.msra.mxu0 0.0
    %5058 = vmatprep.subr.mxu0 0.0
    %5059 = vmatpush2.msra.mxu0 0.0
    %5060 = vmatprep.subr.mxu0 0.0
    %5061 = vmatpush2.msra.mxu0 0.0
    %5062 = vmatprep.subr.mxu0 0.0
    %5063 = vmatpush2.msra.mxu0 0.0
    %5064 = vmatprep.subr.mxu0 0.0
    %5065 = vmatpush2.msra.mxu0 0.0
    %5066 = vmatprep.subr.mxu0 0.0
    %5067 = vmatpush2.msra.mxu0 0.0
    %5068 = vmatprep.subr.mxu0 0.0
    %5069 = vmatpush2.msra.mxu0 0.0
    %5070 = vmatprep.subr.mxu0 0.0
    %5071 = vmatpush2.msra.mxu0 0.0
    %5072 = vmatprep.subr.mxu0 0.0
    %5073 = vmatpush2.msra.mxu0 0.0
    %5074 = vmatprep.subr.mxu0 0.0
    %5075 = vmatpush2.msra.mxu0 0.0
    %5076 = vmatprep.subr.mxu0 0.0
    %5077 = vmatpush2.msra.mxu0 0.0
    %5078 = vmatprep.mubr.f32.mxu0 0.0
    %5079 = vmatmul.mubr.f32.gmra.mxu0 %v5012
    %v5080 = vpop.f32.mrf.mxu0
    %v5081 = vadd.f32 0.0, %v5080
    %v5082 = vpop.f32.mrf.mxu0
    %5083 = vdwg.mxu0
    %v5085 = vrot.slane %v5081, 3
    %v5086 = vrot.slane %v5081, 4
    %v5089 = vadd.f32 %v4276, %v5085
    %v5090 = vadd.f32 %v4281, %v5086
    %v5091 = vxor.u32 %v5089, 2147483648
    %v5092 = vxor.u32 %v5090, 2147483648
    %v5093 = vmul.f32 %v5091, 1.442695
    %v5094 = vpow.pop %v5093
    %v5095 = vmul.f32 %v5092, 1.442695
    %v5096 = vpow.pop %v5095
    %v5097 = vadd.f32 %v5094, 1.0
    %v5098 = vadd.f32 %v5096, 1.0
    %v5099 = vrcp.pop %v5097
    %v5100 = vmul.f32 1.0, %v5099
    %v5101 = vrcp.pop %v5098
    %v5102 = vmul.f32 1.0, %v5101
    %v5103 = vtanh.pop %v5089
    %v5104 = vtanh.pop %v5090
    %v5107 = vrot.slane %v4983, 7
    %v5108 = vrot.slane %v4984, 7
    %v5111 = vmul.f32 %v5100, %v5107
    %v5112 = vmul.f32 %v5102, %v5108
    %5115 = vrot.lane.b32.xlu0 %v5103, 96
    %v5116 = vpop.permute.xlu0 %5115
    %5117 = vrot.lane.b32.xlu0 %v5104, 96
    %v5118 = vpop.permute.xlu0 %5117
    %v5121 = vmul.f32 %v5100, %v5116
    %v5122 = vmul.f32 %v5102, %v5118
    %5125 = vrot.lane.b32.xlu0 %v5121, 16
    %v5126 = vpop.permute.xlu0 %5125
    %5127 = vrot.lane.b32.xlu0 %v5122, 16
    %v5128 = vpop.permute.xlu0 %5127
    %v5131 = vadd.f32 %v5111, %v5126
    %v5132 = vadd.f32 %v5112, %v5128
    %v5133 = vtanh.pop %v5131
    %v5134 = vtanh.pop %v5132
    %5137 = vrot.lane.b32.xlu0 %v5133, 32
    %v5138 = vpop.permute.xlu0 %5137
    %5139 = vrot.lane.b32.xlu0 %v5134, 32
    %v5140 = vpop.permute.xlu0 %5139
    %v5143 = vmul.f32 %v5100, %v5138
    %v5144 = vmul.f32 %v5102, %v5140
    %5147 = vrot.lane.b32.xlu0 %v5143, 80
    %v5148 = vpop.permute.xlu0 %5147
    %5149 = vrot.lane.b32.xlu0 %v5144, 80
    %v5150 = vpop.permute.xlu0 %5149
    %5153 = vst.msk [vmem:[#allocation5] sm:$0x20] %vm3889, %v5148
    %5154 = vst.msk [vmem:[#allocation5 + $0x8] sm:$0x20] %vm3889, %v5150
    %v5155 = vrot.slane %v5143, 5
    %v5156 = vrot.slane %v5144, 4
    %v5157 = vsel %vm425, %v5156, %v5155
    %5158 = vrot.lane.b32.xlu0 %v5157, 80
    %v5159 = vpop.permute.xlu0 %5158
    %v5160 = vsel %vm2835, %v5159, 0
    %5162 = vmatprep.subr.mxu0 0.0
    %5163 = vmatpush1.msra.mxu0 0.0
    %5164 = vmatprep.subr.mxu0 0.0
    %5165 = vmatpush1.msra.mxu0 0.0
    %5166 = vmatprep.subr.mxu0 0.0
    %5167 = vmatpush1.msra.mxu0 0.0
    %5168 = vmatprep.subr.mxu0 0.0
    %5169 = vmatpush1.msra.mxu0 0.0
    %5170 = vmatprep.subr.mxu0 0.0
    %5171 = vmatpush1.msra.mxu0 0.0
    %5172 = vmatprep.subr.mxu0 0.0
    %5173 = vmatpush1.msra.mxu0 0.0
    %5174 = vmatprep.subr.mxu0 0.0
    %5175 = vmatpush1.msra.mxu0 0.0
    %5176 = vmatprep.subr.mxu0 0.0
    %5177 = vmatpush1.msra.mxu0 0.0
    %5178 = vmatprep.subr.mxu0 0.0
    %5179 = vmatpush1.msra.mxu0 0.0
    %5180 = vmatprep.subr.mxu0 0.0
    %5181 = vmatpush1.msra.mxu0 0.0
    %5182 = vmatprep.subr.mxu0 0.0
    %5183 = vmatpush1.msra.mxu0 0.0
    %5184 = vmatprep.subr.mxu0 0.0
    %5185 = vmatpush1.msra.mxu0 0.0
    %5186 = vmatprep.subr.mxu0 0.0
    %5187 = vmatpush1.msra.mxu0 0.0
    %5188 = vmatprep.subr.mxu0 0.0
    %5189 = vmatpush1.msra.mxu0 0.0
    %5190 = vmatprep.subr.mxu0 0.0
    %5191 = vmatpush1.msra.mxu0 %v4195
    %5192 = vmatprep.subr.mxu0 0.0
    %5193 = vmatpush1.msra.mxu0 %v4194
    %5194 = vmatprep.subr.mxu0 0.0
    %5195 = vmatpush2.msra.mxu0 0.0
    %5196 = vmatprep.subr.mxu0 0.0
    %5197 = vmatpush2.msra.mxu0 0.0
    %5198 = vmatprep.subr.mxu0 0.0
    %5199 = vmatpush2.msra.mxu0 0.0
    %5200 = vmatprep.subr.mxu0 0.0
    %5201 = vmatpush2.msra.mxu0 0.0
    %5202 = vmatprep.subr.mxu0 0.0
    %5203 = vmatpush2.msra.mxu0 0.0
    %5204 = vmatprep.subr.mxu0 0.0
    %5205 = vmatpush2.msra.mxu0 0.0
    %5206 = vmatprep.subr.mxu0 0.0
    %5207 = vmatpush2.msra.mxu0 0.0
    %5208 = vmatprep.subr.mxu0 0.0
    %5209 = vmatpush2.msra.mxu0 0.0
    %5210 = vmatprep.subr.mxu0 0.0
    %5211 = vmatpush2.msra.mxu0 0.0
    %5212 = vmatprep.subr.mxu0 0.0
    %5213 = vmatpush2.msra.mxu0 0.0
    %5214 = vmatprep.subr.mxu0 0.0
    %5215 = vmatpush2.msra.mxu0 0.0
    %5216 = vmatprep.subr.mxu0 0.0
    %5217 = vmatpush2.msra.mxu0 0.0
    %5218 = vmatprep.subr.mxu0 0.0
    %5219 = vmatpush2.msra.mxu0 0.0
    %5220 = vmatprep.subr.mxu0 0.0
    %5221 = vmatpush2.msra.mxu0 0.0
    %5222 = vmatprep.subr.mxu0 0.0
    %5223 = vmatpush2.msra.mxu0 0.0
    %5224 = vmatprep.subr.mxu0 0.0
    %5225 = vmatpush2.msra.mxu0 0.0
    %5226 = vmatprep.mubr.f32.mxu0 0.0
    %5227 = vmatmul.mubr.f32.gmra.mxu0 %v5160
    %v5228 = vpop.f32.mrf.mxu0
    %v5229 = vadd.f32 0.0, %v5228
    %v5230 = vpop.f32.mrf.mxu0
    %5231 = vdwg.mxu0
    %v5233 = vrot.slane %v5229, 2
    %v5234 = vrot.slane %v5229, 3
    %v5237 = vadd.f32 %v4276, %v5233
    %v5238 = vadd.f32 %v4281, %v5234
    %v5239 = vxor.u32 %v5237, 2147483648
    %v5240 = vxor.u32 %v5238, 2147483648
    %v5241 = vmul.f32 %v5239, 1.442695
    %v5242 = vpow.pop %v5241
    %v5243 = vmul.f32 %v5240, 1.442695
    %v5244 = vpow.pop %v5243
    %v5245 = vadd.f32 %v5242, 1.0
    %v5246 = vadd.f32 %v5244, 1.0
    %v5247 = vrcp.pop %v5245
    %v5248 = vmul.f32 1.0, %v5247
    %v5249 = vrcp.pop %v5246
    %v5250 = vmul.f32 1.0, %v5249
    %v5251 = vtanh.pop %v5237
    %v5252 = vtanh.pop %v5238
    %v5255 = vrot.slane %v5131, 7
    %v5256 = vrot.slane %v5132, 7
    %v5259 = vmul.f32 %v5248, %v5255
    %v5260 = vmul.f32 %v5250, %v5256
    %5263 = vrot.lane.b32.xlu0 %v5251, 96
    %v5264 = vpop.permute.xlu0 %5263
    %5265 = vrot.lane.b32.xlu0 %v5252, 96
    %v5266 = vpop.permute.xlu0 %5265
    %v5269 = vmul.f32 %v5248, %v5264
    %v5270 = vmul.f32 %v5250, %v5266
    %5273 = vrot.lane.b32.xlu0 %v5269, 16
    %v5274 = vpop.permute.xlu0 %5273
    %5275 = vrot.lane.b32.xlu0 %v5270, 16
    %v5276 = vpop.permute.xlu0 %5275
    %v5279 = vadd.f32 %v5259, %v5274
    %v5280 = vadd.f32 %v5260, %v5276
    %v5281 = vtanh.pop %v5279
    %v5282 = vtanh.pop %v5280
    %5285 = vrot.lane.b32.xlu0 %v5281, 32
    %v5286 = vpop.permute.xlu0 %5285
    %5287 = vrot.lane.b32.xlu0 %v5282, 32
    %v5288 = vpop.permute.xlu0 %5287
    %v5291 = vmul.f32 %v5248, %v5286
    %v5292 = vmul.f32 %v5250, %v5288
    %5295 = vrot.lane.b32.xlu0 %v5291, 80
    %v5296 = vpop.permute.xlu0 %5295
    %5297 = vrot.lane.b32.xlu0 %v5292, 80
    %v5298 = vpop.permute.xlu0 %5297
    %5301 = vst.msk [vmem:[#allocation5] sm:$0x40] %vm4038, %v5296
    %5302 = vst.msk [vmem:[#allocation5 + $0x8] sm:$0x40] %vm4038, %v5298
    %v5303 = vrot.slane %v5291, 6
    %v5304 = vrot.slane %v5292, 5
    %v5305 = vsel %vm425, %v5304, %v5303
    %5306 = vrot.lane.b32.xlu0 %v5305, 80
    %v5307 = vpop.permute.xlu0 %5306
    %v5308 = vsel %vm2835, %v5307, 0
    %5310 = vmatprep.subr.mxu0 0.0
    %5311 = vmatpush1.msra.mxu0 0.0
    %5312 = vmatprep.subr.mxu0 0.0
    %5313 = vmatpush1.msra.mxu0 0.0
    %5314 = vmatprep.subr.mxu0 0.0
    %5315 = vmatpush1.msra.mxu0 0.0
    %5316 = vmatprep.subr.mxu0 0.0
    %5317 = vmatpush1.msra.mxu0 0.0
    %5318 = vmatprep.subr.mxu0 0.0
    %5319 = vmatpush1.msra.mxu0 0.0
    %5320 = vmatprep.subr.mxu0 0.0
    %5321 = vmatpush1.msra.mxu0 0.0
    %5322 = vmatprep.subr.mxu0 0.0
    %5323 = vmatpush1.msra.mxu0 0.0
    %5324 = vmatprep.subr.mxu0 0.0
    %5325 = vmatpush1.msra.mxu0 0.0
    %5326 = vmatprep.subr.mxu0 0.0
    %5327 = vmatpush1.msra.mxu0 0.0
    %5328 = vmatprep.subr.mxu0 0.0
    %5329 = vmatpush1.msra.mxu0 0.0
    %5330 = vmatprep.subr.mxu0 0.0
    %5331 = vmatpush1.msra.mxu0 0.0
    %5332 = vmatprep.subr.mxu0 0.0
    %5333 = vmatpush1.msra.mxu0 0.0
    %5334 = vmatprep.subr.mxu0 0.0
    %5335 = vmatpush1.msra.mxu0 0.0
    %5336 = vmatprep.subr.mxu0 0.0
    %5337 = vmatpush1.msra.mxu0 0.0
    %5338 = vmatprep.subr.mxu0 0.0
    %5339 = vmatpush1.msra.mxu0 %v4195
    %5340 = vmatprep.subr.mxu0 0.0
    %5341 = vmatpush1.msra.mxu0 %v4194
    %5342 = vmatprep.subr.mxu0 0.0
    %5343 = vmatpush2.msra.mxu0 0.0
    %5344 = vmatprep.subr.mxu0 0.0
    %5345 = vmatpush2.msra.mxu0 0.0
    %5346 = vmatprep.subr.mxu0 0.0
    %5347 = vmatpush2.msra.mxu0 0.0
    %5348 = vmatprep.subr.mxu0 0.0
    %5349 = vmatpush2.msra.mxu0 0.0
    %5350 = vmatprep.subr.mxu0 0.0
    %5351 = vmatpush2.msra.mxu0 0.0
    %5352 = vmatprep.subr.mxu0 0.0
    %5353 = vmatpush2.msra.mxu0 0.0
    %5354 = vmatprep.subr.mxu0 0.0
    %5355 = vmatpush2.msra.mxu0 0.0
    %5356 = vmatprep.subr.mxu0 0.0
    %5357 = vmatpush2.msra.mxu0 0.0
    %5358 = vmatprep.subr.mxu0 0.0
    %5359 = vmatpush2.msra.mxu0 0.0
    %5360 = vmatprep.subr.mxu0 0.0
    %5361 = vmatpush2.msra.mxu0 0.0
    %5362 = vmatprep.subr.mxu0 0.0
    %5363 = vmatpush2.msra.mxu0 0.0
    %5364 = vmatprep.subr.mxu0 0.0
    %5365 = vmatpush2.msra.mxu0 0.0
    %5366 = vmatprep.subr.mxu0 0.0
    %5367 = vmatpush2.msra.mxu0 0.0
    %5368 = vmatprep.subr.mxu0 0.0
    %5369 = vmatpush2.msra.mxu0 0.0
    %5370 = vmatprep.subr.mxu0 0.0
    %5371 = vmatpush2.msra.mxu0 0.0
    %5372 = vmatprep.subr.mxu0 0.0
    %5373 = vmatpush2.msra.mxu0 0.0
    %5374 = vmatprep.mubr.f32.mxu0 0.0
    %5375 = vmatmul.mubr.f32.gmra.mxu0 %v5308
    %v5376 = vpop.f32.mrf.mxu0
    %v5377 = vadd.f32 0.0, %v5376
    %v5378 = vpop.f32.mrf.mxu0
    %5379 = vdwg.mxu0
    %v5381 = vrot.slane %v5377, 1
    %v5382 = vrot.slane %v5377, 2
    %v5385 = vadd.f32 %v4276, %v5381
    %v5386 = vadd.f32 %v4281, %v5382
    %v5387 = vxor.u32 %v5385, 2147483648
    %v5388 = vxor.u32 %v5386, 2147483648
    %v5389 = vmul.f32 %v5387, 1.442695
    %v5390 = vpow.pop %v5389
    %v5391 = vmul.f32 %v5388, 1.442695
    %v5392 = vpow.pop %v5391
    %v5393 = vadd.f32 %v5390, 1.0
    %v5394 = vadd.f32 %v5392, 1.0
    %v5395 = vrcp.pop %v5393
    %v5396 = vmul.f32 1.0, %v5395
    %v5397 = vrcp.pop %v5394
    %v5398 = vmul.f32 1.0, %v5397
    %v5399 = vtanh.pop %v5385
    %v5400 = vtanh.pop %v5386
    %v5403 = vrot.slane %v5279, 7
    %v5404 = vrot.slane %v5280, 7
    %v5407 = vmul.f32 %v5396, %v5403
    %v5408 = vmul.f32 %v5398, %v5404
    %5411 = vrot.lane.b32.xlu0 %v5399, 96
    %v5412 = vpop.permute.xlu0 %5411
    %5413 = vrot.lane.b32.xlu0 %v5400, 96
    %v5414 = vpop.permute.xlu0 %5413
    %v5417 = vmul.f32 %v5396, %v5412
    %v5418 = vmul.f32 %v5398, %v5414
    %5421 = vrot.lane.b32.xlu0 %v5417, 16
    %v5422 = vpop.permute.xlu0 %5421
    %5423 = vrot.lane.b32.xlu0 %v5418, 16
    %v5424 = vpop.permute.xlu0 %5423
    %v5427 = vadd.f32 %v5407, %v5422
    %v5428 = vadd.f32 %v5408, %v5424
    %v5429 = vtanh.pop %v5427
    %v5430 = vtanh.pop %v5428
    %5433 = vrot.lane.b32.xlu0 %v5429, 32
    %v5434 = vpop.permute.xlu0 %5433
    %5435 = vrot.lane.b32.xlu0 %v5430, 32
    %v5436 = vpop.permute.xlu0 %5435
    %v5439 = vmul.f32 %v5396, %v5434
    %v5440 = vmul.f32 %v5398, %v5436
    %5443 = vrot.lane.b32.xlu0 %v5439, 80
    %v5444 = vpop.permute.xlu0 %5443
    %5445 = vrot.lane.b32.xlu0 %v5440, 80
    %v5446 = vpop.permute.xlu0 %5445
    %5449 = vst.msk [vmem:[#allocation5] sm:$0x80] %vm4187, %v5444
    %5450 = vst.msk [vmem:[#allocation5 + $0x8] sm:$0x80] %vm4187, %v5446
    %v5451 = vld [vmem:[#allocation5] sm:$0xff]
    %v5452 = vld [vmem:[#allocation5 + $0x8] sm:$0xff]
    %v5453 = vld [vmem:[%s17] sm:$0xff]
    %v5454 = vld [vmem:[%s17 + $0x8] sm:$0xff]
    %v5455 = vld [vmem:[#allocation21] sm:$0x1]
    %v5457 = vlaneseq
    %v5458 = vshrl.u32 %v5457, 7
    %v5459 = vsub.s32 0, %v5458
    %v5460 = vrot.slane %v5455, %v5459
    %v5463 = vsel %vm2835, %v5451, 0
    %v5466 = vsel %vm2835, %v5452, 0
    %5468 = vmatprep.subr.mxu0 0.0
    %5469 = vmatpush1.msra.mxu0 0.0
    %5470 = vmatprep.subr.mxu0 0.0
    %5471 = vmatpush1.msra.mxu0 0.0
    %5472 = vmatprep.subr.mxu0 0.0
    %5473 = vmatpush1.msra.mxu0 0.0
    %5474 = vmatprep.subr.mxu0 0.0
    %5475 = vmatpush1.msra.mxu0 0.0
    %5476 = vmatprep.subr.mxu0 0.0
    %5477 = vmatpush1.msra.mxu0 0.0
    %5478 = vmatprep.subr.mxu0 0.0
    %5479 = vmatpush1.msra.mxu0 0.0
    %5480 = vmatprep.subr.mxu0 0.0
    %5481 = vmatpush1.msra.mxu0 0.0
    %5482 = vmatprep.subr.mxu0 0.0
    %5483 = vmatpush1.msra.mxu0 0.0
    %5484 = vmatprep.subr.mxu0 0.0
    %5485 = vmatpush1.msra.mxu0 0.0
    %5486 = vmatprep.subr.mxu0 0.0
    %5487 = vmatpush1.msra.mxu0 0.0
    %5488 = vmatprep.subr.mxu0 0.0
    %5489 = vmatpush1.msra.mxu0 0.0
    %5490 = vmatprep.subr.mxu0 0.0
    %5491 = vmatpush1.msra.mxu0 0.0
    %5492 = vmatprep.subr.mxu0 0.0
    %5493 = vmatpush1.msra.mxu0 0.0
    %5494 = vmatprep.subr.mxu0 0.0
    %5495 = vmatpush1.msra.mxu0 0.0
    %5496 = vmatprep.subr.mxu0 0.0
    %5497 = vmatpush1.msra.mxu0 %v5454
    %5498 = vmatprep.subr.mxu0 0.0
    %5499 = vmatpush1.msra.mxu0 %v5453
    %5500 = vmatprep.subr.mxu0 0.0
    %5501 = vmatpush2.msra.mxu0 0.0
    %5502 = vmatprep.subr.mxu0 0.0
    %5503 = vmatpush2.msra.mxu0 0.0
    %5504 = vmatprep.subr.mxu0 0.0
    %5505 = vmatpush2.msra.mxu0 0.0
    %5506 = vmatprep.subr.mxu0 0.0
    %5507 = vmatpush2.msra.mxu0 0.0
    %5508 = vmatprep.subr.mxu0 0.0
    %5509 = vmatpush2.msra.mxu0 0.0
    %5510 = vmatprep.subr.mxu0 0.0
    %5511 = vmatpush2.msra.mxu0 0.0
    %5512 = vmatprep.subr.mxu0 0.0
    %5513 = vmatpush2.msra.mxu0 0.0
    %5514 = vmatprep.subr.mxu0 0.0
    %5515 = vmatpush2.msra.mxu0 0.0
    %5516 = vmatprep.subr.mxu0 0.0
    %5517 = vmatpush2.msra.mxu0 0.0
    %5518 = vmatprep.subr.mxu0 0.0
    %5519 = vmatpush2.msra.mxu0 0.0
    %5520 = vmatprep.subr.mxu0 0.0
    %5521 = vmatpush2.msra.mxu0 0.0
    %5522 = vmatprep.subr.mxu0 0.0
    %5523 = vmatpush2.msra.mxu0 0.0
    %5524 = vmatprep.subr.mxu0 0.0
    %5525 = vmatpush2.msra.mxu0 0.0
    %5526 = vmatprep.subr.mxu0 0.0
    %5527 = vmatpush2.msra.mxu0 0.0
    %5528 = vmatprep.subr.mxu0 0.0
    %5529 = vmatpush2.msra.mxu0 0.0
    %5530 = vmatprep.subr.mxu0 0.0
    %5531 = vmatpush2.msra.mxu0 0.0
    %5532 = vmatprep.mubr.f32.mxu0 0.0
    %5533 = vmatmul.mubr.f32.gmra.mxu0 %v5463
    %v5534 = vpop.f32.mrf.mxu0
    %v5535 = vadd.f32 %v5460, %v5534
    %v5536 = vpop.f32.mrf.mxu0
    %5537 = vmatprep.mubr.f32.mxu0 0.0
    %5538 = vmatmul.mubr.f32.gmra.mxu0 %v5466
    %v5539 = vpop.f32.mrf.mxu0
    %v5540 = vadd.f32 %v5460, %v5539
    %v5541 = vpop.f32.mrf.mxu0
    %5542 = vdwg.mxu0
    %5543 = vst.msk [vmem:[#allocation23] sm:$0xff] %vm203, %v5535
    %5544 = vst.msk [vmem:[#allocation23 + $0x8] sm:$0xff] %vm203, %v5540
    // Predicated region
    $region118: #{lstm_model_forward.1} parent=1 // pred_check
      _
    $region119: #{lstm_model_forward.1} parent=1 // pred_check_branch
      %5546 = sbr.rel (0) target = $region121
    $region120: #{lstm_model_forward.1} parent=1 // pred_region
      %s5548 = ssub.s32 256, 256
      %5549 = vsyncadd [#allocation8], %s5548
      %s5550 = sshll.u32 [#allocation23], 4
      %s5551 = int_to_ptr.vmem [resolvable:$true] %s5550
      %5556 = dma.vmem_to_hbm [thread:$0]  %s5551, 256, %s19, [#allocation8], 128, 128, 8
    $region121: #{lstm_model_forward.1} parent=1 // pred_fallthru
      _
    // Predicated region
    $region122: #{lstm_model_forward.1} parent=1 // pred_check
      _
    $region123: #{lstm_model_forward.1} parent=1 // pred_check_branch
      %5558 = sbr.rel (0) target = $region125
    $region124: #{lstm_model_forward.1} parent=1 // pred_region
      %5559 = dma.done [#allocation8], 256
    $region125: #{lstm_model_forward.1} parent=1 // pred_fallthru
      _
    %5560 = vsyncpa [#allocation7], 1
    %5561 = vsyncpa [#allocation10], 1
    %5562 = vsyncpa [#allocation13], 1
    %5563 = vsyncpa [#allocation16], 1
    %5564 = vsyncpa [#allocation19], 1
    %5565 = vsyncpa [#allocation22], 1
    %5566 = vsyncpa [#allocation8], 1

</llo_original>
